<compile_context>
chip_gen: v7x
topology: tpu7x:2x2x1
jax: 0.10.0
libtpu: 0.0.40
codegen_flags: <defaults>
</compile_context>

<pallas_src>
import functools

import jax
import jax.numpy as jnp
from jax import lax
from jax.experimental import pallas as pl
from jax.experimental.pallas import tpu as pltpu

CONV_OUT = 128          # nn.Conv2d(in_channels, 128, kernel_size=1)
FC_OUT = 2048           # nn.Linear(3200, 2048)
TILE_N = 1024           # fc output tile handled per grid step (NT = 2 tiles total)
NT = FC_OUT // TILE_N   # number of fc output tiles


def _num_tc_splits():
    """2 on dual-TensorCore chips (v7x), else 1.  Fallback 1 is always correct."""
    try:
        kind = jax.devices()[0].device_kind.lower()
    except Exception:
        return 1
    if "v7" in kind or "7x" in kind:
        return 2
    return 1


def _aux2_kernel(act_ref, fcw_ref, fcb_ref, hw_ref, o_ref, hacc_ref, *, nj, tile_n):
    j = pl.program_id(1)

    @pl.when(j == 0)
    def _init():
        hacc_ref[...] = jnp.zeros_like(hacc_ref)

    # fc tile: one long-K (3200) bf16 matmul with f32 accumulation, bias, ReLU.
    fc = jnp.dot(act_ref[...], fcw_ref[0],
                 preferred_element_type=jnp.float32) + fcb_ref[...]
    fc_act = jnp.maximum(fc, 0.0)
    # TODO(synk): nn.Dropout is identity in eval mode; training-mode random masking not implemented.

    # pos/ori heads are linear in fc_act -> accumulate this tile's contribution
    # using the matching rows of the fully-resident (2048, 7) head weight.
    tile_idx = pl.program_id(0) * nj + j
    row0 = pl.multiple_of(tile_idx * tile_n, tile_n)
    hacc_ref[...] += jnp.dot(fc_act, hw_ref[pl.ds(row0, tile_n), :],
                             preferred_element_type=jnp.float32)

    @pl.when(j == pl.num_programs(1) - 1)
    def _epilogue():
        o_ref[0] = hacc_ref[...]


def prepare_params(params):
    """One-time packing of PyTorch-layout weights into kernel layout.

    The fc weight transpose / tile-major reshape / bf16 cast never appears in
    the per-call hot path, and each (3200, TILE_N) tile is contiguous in HBM.
    """
    C = params["conv_w"].shape[1]
    K = params["fc_w"].shape[1]                       # 3200

    cw = params["conv_w"].reshape(CONV_OUT, C)        # (128, C) — used in glue conv
    cb = params["conv_b"]

    fcw = params["fc_w"].T.astype(jnp.bfloat16)       # (3200, 2048) bf16
    fcw = fcw.reshape(K, NT, TILE_N).transpose(1, 0, 2)   # (NT, 3200, TILE_N) tile-major
    fcb = params["fc_b"].reshape(1, FC_OUT).astype(jnp.float32)

    hw = jnp.concatenate([params["pos_w"], params["ori_w"]], axis=0).T   # (2048, 7)
    hw = hw.astype(jnp.float32)
    hb = jnp.concatenate([params["pos_b"], params["ori_b"]]).reshape(1, 7)
    return {"cw": cw, "cb": cb, "fcw": fcw, "fcb": fcb, "hw": hw, "hb": hb}


def inception_aux2_forward(x, kp):
    B = x.shape[0]

    # AvgPool2d(kernel_size=5, stride=3) + 1x1 conv + ReLU: tiny, done in JAX glue.
    pooled = lax.reduce_window(x, 0.0, lax.add, (1, 1, 5, 5), (1, 1, 3, 3), "VALID") / 25.0
    conv = jnp.einsum("bchw,oc->bohw", pooled, kp["cw"]) + kp["cb"][None, :, None, None]
    conv = jnp.maximum(conv, 0.0)
    act = conv.reshape(B, -1).astype(jnp.bfloat16)        # channel-major flatten, (B, 3200)

    K = act.shape[1]
    nt, kw, tile_n = kp["fcw"].shape
    assert K == kw, "fc in_features mismatch"
    n_head = kp["hw"].shape[1]

    nsplit = _num_tc_splits()
    if nt % nsplit:
        nsplit = 1
    nj = nt // nsplit

    kernel = functools.partial(_aux2_kernel, nj=nj, tile_n=tile_n)

    partials = pl.pallas_call(
        kernel,
        out_shape=jax.ShapeDtypeStruct((nsplit, B, n_head), jnp.float32),
        grid_spec=pltpu.PrefetchScalarGridSpec(
            num_scalar_prefetch=0,
            grid=(nsplit, nj),
            in_specs=[
                pl.BlockSpec((B, K), lambda i, j: (0, 0)),                       # activation (resident)
                pl.BlockSpec((1, K, tile_n), lambda i, j: (i * nj + j, 0, 0)),   # fc weight tile (contiguous)
                pl.BlockSpec((1, tile_n), lambda i, j: (0, i * nj + j)),         # fc bias tile
                pl.BlockSpec((FC_OUT, n_head), lambda i, j: (0, 0)),             # head weight (resident)
            ],
            out_specs=pl.BlockSpec((1, B, n_head), lambda i, j: (i, 0, 0)),      # per-core partial
            scratch_shapes=[
                pltpu.VMEM((B, n_head), jnp.float32),    # head accumulator (B, 7)
            ],
        ),
        compiler_params=pltpu.CompilerParams(
            dimension_semantics=("parallel", "arbitrary"),
            vmem_limit_bytes=32 * 1024 * 1024,
        ),
    )(act, kp["fcw"], kp["fcb"], kp["hw"])

    # combine per-core partial head outputs; add head biases exactly once.
    return jnp.sum(partials, axis=0) + kp["hb"]


def reference_forward(x, params):
    """Pure-JAX reference following PyTorch semantics exactly (f32)."""
    pooled = lax.reduce_window(x, 0.0, lax.add, (1, 1, 5, 5), (1, 1, 3, 3), "VALID") / 25.0
    w = params["conv_w"].reshape(CONV_OUT, -1)
    conv = jnp.einsum("bchw,oc->bohw", pooled, w) + params["conv_b"][None, :, None, None]
    conv = jnp.maximum(conv, 0.0)
    flat = conv.reshape(conv.shape[0], -1)                 # channel-major flatten like torch
    fc = jnp.maximum(flat @ params["fc_w"].T + params["fc_b"], 0.0)
    pos = fc @ params["pos_w"].T + params["pos_b"]
    ori = fc @ params["ori_w"].T + params["ori_b"]
    return jnp.concatenate([pos, ori], axis=1)


def make_params(key, in_channels, fc_in):
    ks = jax.random.split(key, 8)
    return {
        "conv_w": jax.random.normal(ks[0], (CONV_OUT, in_channels, 1, 1), jnp.float32)
        * (1.0 / jnp.sqrt(in_channels)),
        "conv_b": jax.random.normal(ks[1], (CONV_OUT,), jnp.float32) * 0.05,
        "fc_w": jax.random.normal(ks[2], (FC_OUT, fc_in), jnp.float32) * (1.0 / jnp.sqrt(fc_in)),
        "fc_b": jax.random.normal(ks[3], (FC_OUT,), jnp.float32) * 0.05,
        "pos_w": jax.random.normal(ks[4], (3, FC_OUT), jnp.float32) * (1.0 / jnp.sqrt(FC_OUT)),
        "pos_b": jax.random.normal(ks[5], (3,), jnp.float32) * 0.05,
        "ori_w": jax.random.normal(ks[6], (4, FC_OUT), jnp.float32) * (1.0 / jnp.sqrt(FC_OUT)),
        "ori_b": jax.random.normal(ks[7], (4,), jnp.float32) * 0.05,
    }


if __name__ == "__main__":
    key = jax.random.PRNGKey(0)
    kx, kp_key = jax.random.split(key)
    # Spatial 17x17 so that AvgPool2d(5, stride=3) -> 5x5, conv -> 128 ch,
    # flatten -> 128*5*5 = 3200, matching nn.Linear(3200, 2048).
    B, C_in, H, W = 2, 4, 17, 17
    x = jax.random.normal(kx, (B, C_in, H, W), jnp.float32)
    params = make_params(kp_key, C_in, fc_in=CONV_OUT * 25)

    kparams = prepare_params(params)   # one-time weight packing (tile-major / transpose / bf16)
    out = jax.block_until_ready(inception_aux2_forward(x, kparams))
    ref = jax.block_until_ready(reference_forward(x, params))

    assert out.shape == (B, 7), out.shape
    err = float(jnp.max(jnp.abs(out - ref)))
    assert err < 5e-2, f"max abs err {err}"
    print("KERNEL_OK")
</pallas_src>

<mosaic_0001>
module attributes {stable_mosaic.version = 11 : i64} {
  func.func @_aux2_kernel(%arg0: i32, %arg1: i32, %arg2: memref<2x3200xbf16, #tpu.memory_space<vmem>>, %arg3: memref<1x3200x1024xbf16, #tpu.memory_space<vmem>>, %arg4: memref<1x1024xf32, #tpu.memory_space<vmem>>, %arg5: memref<2048x7xf32, #tpu.memory_space<vmem>>, %arg6: memref<1x2x7xf32, #tpu.memory_space<vmem>>, %arg7: memref<2x7xf32, #tpu.memory_space<vmem>>) attributes {dimension_semantics = [#tpu.dimension_semantics<parallel>, #tpu.dimension_semantics<arbitrary>], iteration_bounds = array<i64: 1, 2>, scalar_prefetch = 0 : i64, scratch_operands = 1 : i64, tpu.core_type = #tpu.core_type<tc>, window_params = [{pipeline_mode = #tpu.pipeline_mode<synchronous>, transform_indices = @transform_0, window_bounds = array<i64: 2, 3200>}, {transform_indices = @transform_1, window_bounds = array<i64: 1, 3200, 1024>}, {transform_indices = @transform_2, window_bounds = array<i64: 1, 1024>}, {pipeline_mode = #tpu.pipeline_mode<synchronous>, transform_indices = @transform_3, window_bounds = array<i64: 2048, 7>}, {transform_indices = @transform_4, window_bounds = array<i64: 1, 2, 7>}]} {
    %c0_i32 = arith.constant 0 : i32
    %0 = arith.cmpi eq, %arg1, %c0_i32 : i32
    %1 = arith.extui %0 : i1 to i32
    %c0_i32_0 = arith.constant 0 : i32
    %2 = arith.cmpi ne, %1, %c0_i32_0 : i32
    scf.if %2 {
      %cst_15 = arith.constant 0.000000e+00 : f32
      %25 = vector.broadcast %cst_15 : f32 to vector<2x7xf32>
      %c0_16 = arith.constant 0 : index
      %c0_17 = arith.constant 0 : index
      %26 = vector.load %arg7[%c0_16, %c0_17] : memref<2x7xf32, #tpu.memory_space<vmem>>, vector<2x7xf32>
      tpu.vector_store %arg7[%c0_16, %c0_17], %25 {strides = array<i32>} : memref<2x7xf32, #tpu.memory_space<vmem>>, vector<2x7xf32>,
    } else {
    }
    %c0 = arith.constant 0 : index
    %c0_1 = arith.constant 0 : index
    %3 = vector.load %arg2[%c0, %c0_1] : memref<2x3200xbf16, #tpu.memory_space<vmem>>, vector<2x3200xbf16>
    %c0_2 = arith.constant 0 : index
    %c0_3 = arith.constant 0 : index
    %c0_4 = arith.constant 0 : index
    %4 = vector.load %arg3[%c0_2, %c0_3, %c0_4] : memref<1x3200x1024xbf16, #tpu.memory_space<vmem>>, vector<1x3200x1024xbf16>
    %5 = vector.shape_cast %4 : vector<1x3200x1024xbf16> to vector<3200x1024xbf16>
    %cst = arith.constant dense<0.000000e+00> : vector<2x1024xf32>
    %6 = tpu.matmul %3, %5, %cst {dimension_numbers = #tpu.dot_dimension_numbers<[1], [0], [0], [1], [0, 0, 1, 1], [], []>} : vector<2x3200xbf16>, vector<3200x1024xbf16>, vector<2x1024xf32> -> vector<2x1024xf32>
    %c0_5 = arith.constant 0 : index
    %c0_6 = arith.constant 0 : index
    %7 = vector.load %arg4[%c0_5, %c0_6] : memref<1x1024xf32, #tpu.memory_space<vmem>>, vector<1x1024xf32>
    %8 = vector.broadcast %7 : vector<1x1024xf32> to vector<2x1024xf32>
    %9 = arith.addf %6, %8 : vector<2x1024xf32>
    %cst_7 = arith.constant 0.000000e+00 : f32
    %10 = vector.broadcast %cst_7 : f32 to vector<2x1024xf32>
    %11 = arith.maximumf %9, %10 : vector<2x1024xf32>
    %c2_i32 = arith.constant 2 : i32
    %12 = arith.muli %arg0, %c2_i32 : i32
    %13 = arith.addi %12, %arg1 : i32
    %c1024_i32 = arith.constant 1024 : i32
    %14 = arith.muli %13, %c1024_i32 : i32
    %15 = tpu.assume_multiple %14, 1024 : i32
    %c0_8 = arith.constant 0 : index
    %c0_9 = arith.constant 0 : index
    %16 = vector.load %arg7[%c0_8, %c0_9] : memref<2x7xf32, #tpu.memory_space<vmem>>, vector<2x7xf32>
    %17 = arith.index_cast %15 : i32 to index
    %c0_10 = arith.constant 0 : index
    %18 = vector.load %arg5[%17, %c0_10] : memref<2048x7xf32, #tpu.memory_space<vmem>>, vector<1024x7xf32>
    %cst_11 = arith.constant dense<0.000000e+00> : vector<2x7xf32>
    %19 = tpu.matmul %11, %18, %cst_11 {dimension_numbers = #tpu.dot_dimension_numbers<[1], [0], [0], [1], [0, 0, 1, 1], [], []>} : vector<2x1024xf32>, vector<1024x7xf32>, vector<2x7xf32> -> vector<2x7xf32>
    %20 = arith.addf %16, %19 : vector<2x7xf32>
    %c0_12 = arith.constant 0 : index
    %c0_13 = arith.constant 0 : index
    %21 = vector.load %arg7[%c0_12, %c0_13] : memref<2x7xf32, #tpu.memory_space<vmem>>, vector<2x7xf32>
    tpu.vector_store %arg7[%c0_12, %c0_13], %20 {strides = array<i32>} : memref<2x7xf32, #tpu.memory_space<vmem>>, vector<2x7xf32>,
    %c1_i32 = arith.constant 1 : i32
    %22 = arith.cmpi eq, %arg1, %c1_i32 : i32
    %23 = arith.extui %22 : i1 to i32
    %c0_i32_14 = arith.constant 0 : i32
    %24 = arith.cmpi ne, %23, %c0_i32_14 : i32
    scf.if %24 {
      %c0_15 = arith.constant 0 : index
      %c0_16 = arith.constant 0 : index
      %25 = vector.load %arg7[%c0_15, %c0_16] : memref<2x7xf32, #tpu.memory_space<vmem>>, vector<2x7xf32>
      %c0_17 = arith.constant 0 : index
      %c0_18 = arith.constant 0 : index
      %c0_19 = arith.constant 0 : index
      %26 = vector.load %arg6[%c0_17, %c0_18, %c0_19] : memref<1x2x7xf32, #tpu.memory_space<vmem>>, vector<1x2x7xf32>
      %27 = vector.shape_cast %26 : vector<1x2x7xf32> to vector<2x7xf32>
      %28 = vector.shape_cast %25 : vector<2x7xf32> to vector<1x2x7xf32>
      tpu.vector_store %arg6[%c0_17, %c0_18, %c0_19], %28 {strides = array<i32>} : memref<1x2x7xf32, #tpu.memory_space<vmem>>, vector<1x2x7xf32>,
    } else {
    }
    return
  }
  func.func @transform_0(%arg0: i32, %arg1: i32) -> (i32, i32) {
    %c0_i32 = arith.constant 0 : i32
    %c0_i32_0 = arith.constant 0 : i32
    %c0_i32_1 = arith.constant 0 : i32
    return %c0_i32, %c0_i32_0 : i32, i32
  }
  func.func @transform_1(%arg0: i32, %arg1: i32) -> (i32, i32, i32) {
    %c2_i32 = arith.constant 2 : i32
    %0 = arith.muli %arg0, %c2_i32 : i32
    %1 = arith.addi %0, %arg1 : i32
    %c0_i32 = arith.constant 0 : i32
    %c0_i32_0 = arith.constant 0 : i32
    %c0_i32_1 = arith.constant 0 : i32
    return %1, %c0_i32, %c0_i32_0 : i32, i32, i32
  }
  func.func @transform_2(%arg0: i32, %arg1: i32) -> (i32, i32) {
    %c2_i32 = arith.constant 2 : i32
    %0 = arith.muli %arg0, %c2_i32 : i32
    %1 = arith.addi %0, %arg1 : i32
    %c0_i32 = arith.constant 0 : i32
    %c0_i32_0 = arith.constant 0 : i32
    return %c0_i32, %1 : i32, i32
  }
  func.func @transform_3(%arg0: i32, %arg1: i32) -> (i32, i32) {
    %c0_i32 = arith.constant 0 : i32
    %c0_i32_0 = arith.constant 0 : i32
    %c0_i32_1 = arith.constant 0 : i32
    return %c0_i32, %c0_i32_0 : i32, i32
  }
  func.func @transform_4(%arg0: i32, %arg1: i32) -> (i32, i32, i32) {
    %c0_i32 = arith.constant 0 : i32
    %c0_i32_0 = arith.constant 0 : i32
    %c0_i32_1 = arith.constant 0 : i32
    return %arg0, %c0_i32, %c0_i32_0 : i32, i32, i32
  }
}

</mosaic_0001>

<llo_original>
// kernel: tpu_custom_call.1
$region0: #{tpu_custom_call.1}
  #allocation0 [shape = 'u32[]', space=smem, size = 0x4, offset = 0x4, fixed_abs, tag = 'smem constant byte address 0x4 - core index']
  #allocation1 [shape = 'u32[144,128]{1,0:T(1,128)}', space=vmem, size = 0x12000, scoped, tag = 'internal scratch']
  #allocation2 [shape = 'f32[2,7]{1,0:T(2,128)}', space=vmem, size = 0x400, scoped, tag = 'scratch operand']
  %s0 = inlined_call_operand.hbm [shape: bf16[2,3200], index: 0, kind: input, shape index: {}]
  %s1 = inlined_call_operand.hbm [shape: bf16[2,3200,1024], index: 1, kind: input, shape index: {}]
  %s2 = inlined_call_operand.hbm [shape: f32[1,2048], index: 2, kind: input, shape index: {}]
  %s3 = inlined_call_operand.vmem [shape: f32[2048,7], index: 3, kind: input, shape index: {}]
  %s4 = inlined_call_operand.hbm [shape: f32[1,2,7], index: 4, kind: output, shape index: {}]
  %s5 = sld [smem:[#allocation0]]
  $region69: #{tpu_custom_call.1} parent=0
    _
  %s7 = ssub.s32 1, %s5
  %s8 = scalar_select 0, %s7, %s5
  $region1: #{tpu_custom_call.1} parent=0
    #allocation3 [shape = 'u8[12800]{0}', space=vmem, size = 0x3400, scoped, tag = 'input window, operand 0, single buffered']
    #allocation4 [shape = 's32[2]{0}', space=sflag, size = 0x8, scoped, tag = 'scoped memory for tpu_custom_call.1']
    #allocation5 [shape = 's32[2]{0}', space=sflag, size = 0x8, scoped, tag = 'scoped memory for tpu_custom_call.1']
    #allocation6 [shape = 'u8[13107200]{0}', space=vmem, size = 0xc80000, scoped, tag = 'input window, operand 1']
    #allocation7 [shape = 's32[2]{0}', space=sflag, size = 0x8, scoped, tag = 'scoped memory for tpu_custom_call.1']
    #allocation8 [shape = 'u8[8192]{0}', space=vmem, size = 0x2000, scoped, tag = 'input window, operand 2']
    #allocation9 [shape = 'u8[1024]{0}', space=vmem, size = 0x400, scoped, tag = 'output window, operand 0, single buffered']
    %9 = vsyncpa [#allocation4], 0
    %10 = vsyncpa [#allocation7], 0
    %s11 = scalar_lea.sflag [#allocation7], 1
    %12 = vsyncpa %s11, 0
    %13 = vsyncpa [#allocation5], 0
    loop: start=0, step=1, limit=4
    $region2: #{tpu_custom_call.1} parent=1 // loop_pre_header
      _
    $region3: #{tpu_custom_call.1} parent=1 // loop_header
      %s15 = sphi 0, %s19
      %p16 = scmp.ge.s32.totalorder %s15, 4
      %s22 = sphi 0, %s34
      %s23 = sphi 0, %s30
      %s24 = sphi 0, %s22
      %s25 = sphi 0, %s23
      %s26 = sphi 0, %s24
      %s27 = sphi 0, %s25
      %s35 = sphi 0, %s35
      %s37 = sphi 0, %s35
      %s38 = sphi 0, %s37
      %s52 = sphi 0, %s38
      %s62 = sphi 0, %s64
      %s65 = sphi 0, %s62
      %s66 = sphi 0, %s65
      %s82 = sphi 0, %s66
      %s92 = sphi 0, %s94
      %s95 = sphi 0, %s92
      %s96 = sphi 0, %s95
      %s112 = sphi 0, %s96
      %s116 = sphi 0, %s116
      %s118 = sphi 0, %s116
      %s119 = sphi 0, %s118
      %s133 = sphi 0, %s119
      %s139 = sphi 0, %s141
      %s142 = sphi 0, %s139
      %s143 = sphi 0, %s142
      %s159 = sphi 0, %s143
    $region4: #{tpu_custom_call.1} parent=1 // loop_header_branch
      %18 = sbr.rel (%p16) target = $region8
    $region5: #{tpu_custom_call.1} parent=1 // loop_body
      %s20 = ssub.s32 %s15, 1
      %s21 = ssub.s32 %s15, 2
      %s28 = sadd.s32 1, %s23
      %p29 = scmp.ge.s32.totalorder %s28, 2
      %s30 = scalar_select %p29, 0, %s28
      %s31 = sadd.s32 1, %s22
      %s32 = scalar_select %p29, %s31, %s22
      %p33 = scmp.ge.s32.totalorder %s32, 1
      %s34 = scalar_select %p33, 0, %s32
      %s36 = sadd.s32 %s35, 1
      %p39 = scmp.eq.s32.totalorder %s15, 1
      %p40 = scmp.ne.s32.totalorder %s35, %s37
      %p41 = scmp.eq.s32.totalorder %s15, 0
      %p42 = por %p40, %p41
      %p43 = scmp.ne.s32.totalorder %s35, %s37
      %p44 = scmp.eq.s32.totalorder %s20, 1
      %p45 = por %p43, %p44
      %p46 = scmp.ne.s32.totalorder %s37, %s38
      %p47 = scmp.eq.s32.totalorder %s20, 0
      %p48 = por %p46, %p47
      %p49 = scmp.ne.s32.totalorder %s37, %s38
      %p50 = scmp.eq.s32.totalorder %s21, 1
      %p51 = por %p49, %p50
      %p53 = scmp.ne.s32.totalorder %s38, %s52
      %p54 = scmp.eq.s32.totalorder %s21, 0
      %p55 = por %p53, %p54
      %s56 = smul.u32 %s22, 2
      %s57 = sadd.s32 %s56, %s23
      %s58 = smul.u32 %s34, 2
      %s59 = sadd.s32 %s58, %s30
      %s60 = ssub.s32 %s57, %s59
      %p61 = scmp.eq.s32.totalorder %s60, 0
      %s63 = sadd.s32 %s62, 1
      %s64 = scalar_select %p61, %s62, %s63
      %p67 = pneg %p61
      %p68 = scmp.eq.s32.totalorder %s15, 1
      %p69 = por %p67, %p68
      %p70 = scmp.ne.s32.totalorder %s62, %s65
      %p71 = scmp.eq.s32.totalorder %s15, 0
      %p72 = por %p70, %p71
      %p73 = scmp.ne.s32.totalorder %s62, %s65
      %p74 = scmp.eq.s32.totalorder %s20, 1
      %p75 = por %p73, %p74
      %p76 = scmp.ne.s32.totalorder %s65, %s66
      %p77 = scmp.eq.s32.totalorder %s20, 0
      %p78 = por %p76, %p77
      %p79 = scmp.ne.s32.totalorder %s65, %s66
      %p80 = scmp.eq.s32.totalorder %s21, 1
      %p81 = por %p79, %p80
      %p83 = scmp.ne.s32.totalorder %s66, %s82
      %p84 = scmp.eq.s32.totalorder %s21, 0
      %p85 = por %p83, %p84
      %s86 = smul.u32 %s22, 2
      %s87 = sadd.s32 %s86, %s23
      %s88 = smul.u32 %s34, 2
      %s89 = sadd.s32 %s88, %s30
      %s90 = ssub.s32 %s87, %s89
      %p91 = scmp.eq.s32.totalorder %s90, 0
      %s93 = sadd.s32 %s92, 1
      %s94 = scalar_select %p91, %s92, %s93
      %p97 = pneg %p91
      %p98 = scmp.eq.s32.totalorder %s15, 1
      %p99 = por %p97, %p98
      %p100 = scmp.ne.s32.totalorder %s92, %s95
      %p101 = scmp.eq.s32.totalorder %s15, 0
      %p102 = por %p100, %p101
      %p103 = scmp.ne.s32.totalorder %s92, %s95
      %p104 = scmp.eq.s32.totalorder %s20, 1
      %p105 = por %p103, %p104
      %p106 = scmp.ne.s32.totalorder %s95, %s96
      %p107 = scmp.eq.s32.totalorder %s20, 0
      %p108 = por %p106, %p107
      %p109 = scmp.ne.s32.totalorder %s95, %s96
      %p110 = scmp.eq.s32.totalorder %s21, 1
      %p111 = por %p109, %p110
      %p113 = scmp.ne.s32.totalorder %s96, %s112
      %p114 = scmp.eq.s32.totalorder %s21, 0
      %p115 = por %p113, %p114
      %s117 = sadd.s32 %s116, 1
      %p120 = scmp.eq.s32.totalorder %s15, 1
      %p121 = scmp.ne.s32.totalorder %s116, %s118
      %p122 = scmp.eq.s32.totalorder %s15, 0
      %p123 = por %p121, %p122
      %p124 = scmp.ne.s32.totalorder %s116, %s118
      %p125 = scmp.eq.s32.totalorder %s20, 1
      %p126 = por %p124, %p125
      %p127 = scmp.ne.s32.totalorder %s118, %s119
      %p128 = scmp.eq.s32.totalorder %s20, 0
      %p129 = por %p127, %p128
      %p130 = scmp.ne.s32.totalorder %s118, %s119
      %p131 = scmp.eq.s32.totalorder %s21, 1
      %p132 = por %p130, %p131
      %p134 = scmp.ne.s32.totalorder %s119, %s133
      %p135 = scmp.eq.s32.totalorder %s21, 0
      %p136 = por %p134, %p135
      %s137 = ssub.s32 %s22, %s34
      %p138 = scmp.eq.s32.totalorder %s137, 0
      %s140 = sadd.s32 %s139, 1
      %s141 = scalar_select %p138, %s139, %s140
      %p144 = pneg %p138
      %p145 = scmp.eq.s32.totalorder %s15, 1
      %p146 = por %p144, %p145
      %p147 = scmp.ne.s32.totalorder %s139, %s142
      %p148 = scmp.eq.s32.totalorder %s15, 0
      %p149 = por %p147, %p148
      %p150 = scmp.ne.s32.totalorder %s139, %s142
      %p151 = scmp.eq.s32.totalorder %s20, 1
      %p152 = por %p150, %p151
      %p153 = scmp.ne.s32.totalorder %s142, %s143
      %p154 = scmp.eq.s32.totalorder %s20, 0
      %p155 = por %p153, %p154
      %p156 = scmp.ne.s32.totalorder %s142, %s143
      %p157 = scmp.eq.s32.totalorder %s21, 1
      %p158 = por %p156, %p157
      %p160 = scmp.ne.s32.totalorder %s143, %s159
      %p161 = scmp.eq.s32.totalorder %s21, 0
      %p162 = por %p160, %p161
      %p163 = scmp.le.s32.totalorder 1, %s15
      %p164 = scmp.lt.s32.totalorder %s15, 3
      %p165 = pnand %p163, %p164
      %p166 = pneg %p165
      // Predicated region
      $region9: #{tpu_custom_call.1} parent=5 // pred_check
        _
      $region10: #{tpu_custom_call.1} parent=5 // pred_check_branch
        %168 = sbr.rel (%p165) target = $region12
      $region11: #{tpu_custom_call.1} parent=5 // pred_region
        %s169 = ssub.s32 %s15, 1
        // Predicated region
        $region13: #{tpu_custom_call.1} parent=11 // pred_check
          %p170 = pneg %p48
        $region14: #{tpu_custom_call.1} parent=11 // pred_check_branch
          %172 = sbr.rel (%p170) target = $region16
        $region15: #{tpu_custom_call.1} parent=11 // pred_region
          %s174 = ssub.s32 400, 400
          %175 = vsyncadd [#allocation4], %s174
          %s177 = sshll.u32 [#allocation3], 4
          %s178 = int_to_ptr.vmem [resolvable:$true] %s177
          %180 = dma.hbm_to_vmem [thread:$0]  %s0, 400, %s178, [#allocation4]
        $region16: #{tpu_custom_call.1} parent=11 // pred_fallthru
          _
        // Predicated region
        $region17: #{tpu_custom_call.1} parent=11 // pred_check
          %p181 = pneg %p129
        $region18: #{tpu_custom_call.1} parent=11 // pred_check_branch
          %183 = sbr.rel (%p181) target = $region20
        $region19: #{tpu_custom_call.1} parent=11 // pred_region
          _
        $region20: #{tpu_custom_call.1} parent=11 // pred_fallthru
          _
      $region12: #{tpu_custom_call.1} parent=5 // pred_fallthru
        _
      %p184 = scmp.lt.s32.totalorder %s15, 2
      // Predicated region
      $region21: #{tpu_custom_call.1} parent=5 // pred_check
        %p185 = pneg %p184
      $region22: #{tpu_custom_call.1} parent=5 // pred_check_branch
        %187 = sbr.rel (%p185) target = $region24
      $region23: #{tpu_custom_call.1} parent=5 // pred_region
        // Predicated region
        $region25: #{tpu_custom_call.1} parent=23 // pred_check
          %p188 = pneg %p72
        $region26: #{tpu_custom_call.1} parent=23 // pred_check_branch
          %190 = sbr.rel (%p188) target = $region28
        $region27: #{tpu_custom_call.1} parent=23 // pred_region
          %s191 = sand.u32 %s15, 1
          %s192 = scalar_lea.sflag [#allocation7], %s191
          %s193 = sand.u32 %s62, 1
          %s194 = smul.addr %s193, 12800
          %s195 = scalar_lea.vmem [#allocation6], %s194
          %s196 = smul.u32 %s22, 2
          %s197 = sadd.s32 %s196, %s23
          %s199 = ssub.s32 204800, 204800
          %200 = vsyncadd %s192, %s199
          %s201 = smul.addr %s197, 3200
          %s202 = smul.addr %s201, 64
          %s203 = scalar_lea.hbm %s1, %s202
          %s204 = sshll.u32 %s195, 4
          %s205 = int_to_ptr.vmem [resolvable:$true] %s204
          %210 = dma.hbm_to_vmem [thread:$0]  %s203, 204800, %s205, %s192, 512, 512, 32
        $region28: #{tpu_custom_call.1} parent=23 // pred_fallthru
          _
        // Predicated region
        $region29: #{tpu_custom_call.1} parent=23 // pred_check
          %p211 = pneg %p102
        $region30: #{tpu_custom_call.1} parent=23 // pred_check_branch
          %213 = sbr.rel (%p211) target = $region32
        $region31: #{tpu_custom_call.1} parent=23 // pred_region
          %s214 = sand.u32 %s15, 1
          %s215 = scalar_lea.sflag [#allocation7], %s214
          %s216 = sand.u32 %s92, 1
          %s217 = smul.addr %s216, 8
          %s218 = scalar_lea.vmem [#allocation8], %s217
          %s219 = smul.u32 %s22, 2
          %s220 = sadd.s32 %s219, %s23
          %s221 = smul.u32 8, %s220
          %s223 = ssub.s32 128, 128
          %224 = vsyncadd %s215, %s223
          %s225 = smul.addr %s221, 16
          %s226 = scalar_lea.hbm %s2, %s225
          %s228 = sshll.u32 %s218, 4
          %s229 = int_to_ptr.vmem [resolvable:$true] %s228
          %231 = dma.hbm_to_vmem [thread:$0]  %s226, 128, %s229, %s215
        $region32: #{tpu_custom_call.1} parent=23 // pred_fallthru
          _
      $region24: #{tpu_custom_call.1} parent=5 // pred_fallthru
        _
      %p232 = scmp.le.s32.totalorder 1, %s15
      %p233 = scmp.lt.s32.totalorder %s15, 3
      %p234 = pnand %p232, %p233
      %p235 = pneg %p234
      // Predicated region
      $region33: #{tpu_custom_call.1} parent=5 // pred_check
        _
      $region34: #{tpu_custom_call.1} parent=5 // pred_check_branch
        %237 = sbr.rel (%p234) target = $region36
      $region35: #{tpu_custom_call.1} parent=5 // pred_region
        %s238 = ssub.s32 %s15, 1
        // Predicated region
        $region37: #{tpu_custom_call.1} parent=35 // pred_check
          %p239 = pneg %p48
        $region38: #{tpu_custom_call.1} parent=35 // pred_check_branch
          %241 = sbr.rel (%p239) target = $region40
        $region39: #{tpu_custom_call.1} parent=35 // pred_region
          %242 = dma.done [#allocation4], 400
        $region40: #{tpu_custom_call.1} parent=35 // pred_fallthru
          _
        %s243 = sand.u32 %s20, 1
        %s244 = scalar_lea.sflag [#allocation7], %s243
        %s245 = sand.u32 %s65, 1
        %s246 = smul.addr %s245, 12800
        %s247 = scalar_lea.vmem [#allocation6], %s246
        // Predicated region
        $region41: #{tpu_custom_call.1} parent=35 // pred_check
          %p248 = pneg %p78
        $region42: #{tpu_custom_call.1} parent=35 // pred_check_branch
          %250 = sbr.rel (%p248) target = $region44
        $region43: #{tpu_custom_call.1} parent=35 // pred_region
          %251 = dma.done %s244, 204800
        $region44: #{tpu_custom_call.1} parent=35 // pred_fallthru
          _
        %s252 = sand.u32 %s20, 1
        %s253 = scalar_lea.sflag [#allocation7], %s252
        %s254 = sand.u32 %s95, 1
        %s255 = smul.addr %s254, 8
        %s256 = scalar_lea.vmem [#allocation8], %s255
        // Predicated region
        $region45: #{tpu_custom_call.1} parent=35 // pred_check
          %p257 = pneg %p108
        $region46: #{tpu_custom_call.1} parent=35 // pred_check_branch
          %259 = sbr.rel (%p257) target = $region48
        $region47: #{tpu_custom_call.1} parent=35 // pred_region
          %260 = dma.done %s253, 128
        $region48: #{tpu_custom_call.1} parent=35 // pred_fallthru
          _
        %p261 = pneg %p48
        %p262 = pneg %p45
        %s263 = sand.u32 %s20, 1
        %s264 = scalar_lea.sflag [#allocation7], %s263
        %s265 = sand.u32 %s65, 1
        %s266 = smul.addr %s265, 12800
        %s267 = scalar_lea.vmem [#allocation6], %s266
        %p268 = pneg %p78
        %p269 = pneg %p75
        %s270 = sand.u32 %s20, 1
        %s271 = scalar_lea.sflag [#allocation7], %s270
        %s272 = sand.u32 %s95, 1
        %s273 = smul.addr %s272, 8
        %s274 = scalar_lea.vmem [#allocation8], %s273
        %p275 = pneg %p108
        %p276 = pneg %p105
        %p277 = pneg %p129
        %p278 = pneg %p126
        %p279 = pneg %p155
        %p280 = pneg %p152
        %s281 = smul.u32 %s24, 2
        %s282 = sadd.s32 %s281, %s25
        %s283 = smul.u32 %s24, 2
        %s284 = sadd.s32 %s283, %s25
        %s285 = smul.u32 8, %s284
        %p287 = scmp.eq.s32.totalorder %s25, 0
        // Predicated region
        $region49: #{tpu_custom_call.1} parent=35 // pred_check
          %p288 = pneg %p287
        $region50: #{tpu_custom_call.1} parent=35 // pred_check_branch
          %290 = sbr.rel (%p288) target = $region52
        $region51: #{tpu_custom_call.1} parent=35 // pred_region
          %vm291 = vcmask 50176
          %292 = vst.msk [vmem:[#allocation2] sm:$0x3] %vm291, 0.0
        $region52: #{tpu_custom_call.1} parent=35 // pred_fallthru
          _
        %v293 = vld [vmem:[#allocation3] sm:$0xff]
        %v294 = vld [vmem:[#allocation3 + $0x8] sm:$0xff]
        %v295 = vld [vmem:[#allocation3 + $0x10] sm:$0xff]
        %v296 = vld [vmem:[#allocation3 + $0x18] sm:$0x1]
        %v297 = vld [vmem:[%s247] sm:$0xff]
        %v298 = vld [vmem:[%s247 + $0x8] sm:$0xff]
        %v299 = vld [vmem:[%s247 + $0x10] sm:$0xff]
        %v300 = vld [vmem:[%s247 + $0x18] sm:$0xff]
        %v301 = vld [vmem:[%s247 + $0x20] sm:$0xff]
        %v302 = vld [vmem:[%s247 + $0x28] sm:$0xff]
        %v303 = vld [vmem:[%s247 + $0x30] sm:$0xff]
        %v304 = vld [vmem:[%s247 + $0x38] sm:$0xff]
        %v305 = vld [vmem:[%s247 + $0x40] sm:$0xff]
        %v306 = vld [vmem:[%s247 + $0x48] sm:$0xff]
        %v307 = vld [vmem:[%s247 + $0x50] sm:$0xff]
        %v308 = vld [vmem:[%s247 + $0x58] sm:$0xff]
        %v309 = vld [vmem:[%s247 + $0x60] sm:$0xff]
        %v310 = vld [vmem:[%s247 + $0x68] sm:$0xff]
        %v311 = vld [vmem:[%s247 + $0x70] sm:$0xff]
        %v312 = vld [vmem:[%s247 + $0x78] sm:$0xff]
        %v313 = vld [vmem:[%s247 + $0x80] sm:$0xff]
        %v314 = vld [vmem:[%s247 + $0x88] sm:$0xff]
        %v315 = vld [vmem:[%s247 + $0x90] sm:$0xff]
        %v316 = vld [vmem:[%s247 + $0x98] sm:$0xff]
        %v317 = vld [vmem:[%s247 + $0xa0] sm:$0xff]
        %v318 = vld [vmem:[%s247 + $0xa8] sm:$0xff]
        %v319 = vld [vmem:[%s247 + $0xb0] sm:$0xff]
        %v320 = vld [vmem:[%s247 + $0xb8] sm:$0xff]
        %v321 = vld [vmem:[%s247 + $0xc0] sm:$0xff]
        %v322 = vld [vmem:[%s247 + $0xc8] sm:$0xff]
        %v323 = vld [vmem:[%s247 + $0xd0] sm:$0xff]
        %v324 = vld [vmem:[%s247 + $0xd8] sm:$0xff]
        %v325 = vld [vmem:[%s247 + $0xe0] sm:$0xff]
        %v326 = vld [vmem:[%s247 + $0xe8] sm:$0xff]
        %v327 = vld [vmem:[%s247 + $0xf0] sm:$0xff]
        %v328 = vld [vmem:[%s247 + $0xf8] sm:$0xff]
        %v329 = vld [vmem:[%s247 + $0x100] sm:$0xff]
        %v330 = vld [vmem:[%s247 + $0x108] sm:$0xff]
        %v331 = vld [vmem:[%s247 + $0x110] sm:$0xff]
        %v332 = vld [vmem:[%s247 + $0x118] sm:$0xff]
        %v333 = vld [vmem:[%s247 + $0x120] sm:$0xff]
        %v334 = vld [vmem:[%s247 + $0x128] sm:$0xff]
        %v335 = vld [vmem:[%s247 + $0x130] sm:$0xff]
        %v336 = vld [vmem:[%s247 + $0x138] sm:$0xff]
        %v337 = vld [vmem:[%s247 + $0x140] sm:$0xff]
        %v338 = vld [vmem:[%s247 + $0x148] sm:$0xff]
        %v339 = vld [vmem:[%s247 + $0x150] sm:$0xff]
        %v340 = vld [vmem:[%s247 + $0x158] sm:$0xff]
        %v341 = vld [vmem:[%s247 + $0x160] sm:$0xff]
        %v342 = vld [vmem:[%s247 + $0x168] sm:$0xff]
        %v343 = vld [vmem:[%s247 + $0x170] sm:$0xff]
        %v344 = vld [vmem:[%s247 + $0x178] sm:$0xff]
        %v345 = vld [vmem:[%s247 + $0x180] sm:$0xff]
        %v346 = vld [vmem:[%s247 + $0x188] sm:$0xff]
        %v347 = vld [vmem:[%s247 + $0x190] sm:$0xff]
        %v348 = vld [vmem:[%s247 + $0x198] sm:$0xff]
        %v349 = vld [vmem:[%s247 + $0x1a0] sm:$0xff]
        %v350 = vld [vmem:[%s247 + $0x1a8] sm:$0xff]
        %v351 = vld [vmem:[%s247 + $0x1b0] sm:$0xff]
        %v352 = vld [vmem:[%s247 + $0x1b8] sm:$0xff]
        %v353 = vld [vmem:[%s247 + $0x1c0] sm:$0xff]
        %v354 = vld [vmem:[%s247 + $0x1c8] sm:$0xff]
        %v355 = vld [vmem:[%s247 + $0x1d0] sm:$0xff]
        %v356 = vld [vmem:[%s247 + $0x1d8] sm:$0xff]
        %v357 = vld [vmem:[%s247 + $0x1e0] sm:$0xff]
        %v358 = vld [vmem:[%s247 + $0x1e8] sm:$0xff]
        %v359 = vld [vmem:[%s247 + $0x1f0] sm:$0xff]
        %v360 = vld [vmem:[%s247 + $0x1f8] sm:$0xff]
        %v361 = vld [vmem:[%s247 + $0x200] sm:$0xff]
        %v362 = vld [vmem:[%s247 + $0x208] sm:$0xff]
        %v363 = vld [vmem:[%s247 + $0x210] sm:$0xff]
        %v364 = vld [vmem:[%s247 + $0x218] sm:$0xff]
        %v365 = vld [vmem:[%s247 + $0x220] sm:$0xff]
        %v366 = vld [vmem:[%s247 + $0x228] sm:$0xff]
        %v367 = vld [vmem:[%s247 + $0x230] sm:$0xff]
        %v368 = vld [vmem:[%s247 + $0x238] sm:$0xff]
        %v369 = vld [vmem:[%s247 + $0x240] sm:$0xff]
        %v370 = vld [vmem:[%s247 + $0x248] sm:$0xff]
        %v371 = vld [vmem:[%s247 + $0x250] sm:$0xff]
        %v372 = vld [vmem:[%s247 + $0x258] sm:$0xff]
        %v373 = vld [vmem:[%s247 + $0x260] sm:$0xff]
        %v374 = vld [vmem:[%s247 + $0x268] sm:$0xff]
        %v375 = vld [vmem:[%s247 + $0x270] sm:$0xff]
        %v376 = vld [vmem:[%s247 + $0x278] sm:$0xff]
        %v377 = vld [vmem:[%s247 + $0x280] sm:$0xff]
        %v378 = vld [vmem:[%s247 + $0x288] sm:$0xff]
        %v379 = vld [vmem:[%s247 + $0x290] sm:$0xff]
        %v380 = vld [vmem:[%s247 + $0x298] sm:$0xff]
        %v381 = vld [vmem:[%s247 + $0x2a0] sm:$0xff]
        %v382 = vld [vmem:[%s247 + $0x2a8] sm:$0xff]
        %v383 = vld [vmem:[%s247 + $0x2b0] sm:$0xff]
        %v384 = vld [vmem:[%s247 + $0x2b8] sm:$0xff]
        %v385 = vld [vmem:[%s247 + $0x2c0] sm:$0xff]
        %v386 = vld [vmem:[%s247 + $0x2c8] sm:$0xff]
        %v387 = vld [vmem:[%s247 + $0x2d0] sm:$0xff]
        %v388 = vld [vmem:[%s247 + $0x2d8] sm:$0xff]
        %v389 = vld [vmem:[%s247 + $0x2e0] sm:$0xff]
        %v390 = vld [vmem:[%s247 + $0x2e8] sm:$0xff]
        %v391 = vld [vmem:[%s247 + $0x2f0] sm:$0xff]
        %v392 = vld [vmem:[%s247 + $0x2f8] sm:$0xff]
        %v393 = vld [vmem:[%s247 + $0x300] sm:$0xff]
        %v394 = vld [vmem:[%s247 + $0x308] sm:$0xff]
        %v395 = vld [vmem:[%s247 + $0x310] sm:$0xff]
        %v396 = vld [vmem:[%s247 + $0x318] sm:$0xff]
        %v397 = vld [vmem:[%s247 + $0x320] sm:$0xff]
        %v398 = vld [vmem:[%s247 + $0x328] sm:$0xff]
        %v399 = vld [vmem:[%s247 + $0x330] sm:$0xff]
        %v400 = vld [vmem:[%s247 + $0x338] sm:$0xff]
        %v401 = vld [vmem:[%s247 + $0x340] sm:$0xff]
        %v402 = vld [vmem:[%s247 + $0x348] sm:$0xff]
        %v403 = vld [vmem:[%s247 + $0x350] sm:$0xff]
        %v404 = vld [vmem:[%s247 + $0x358] sm:$0xff]
        %v405 = vld [vmem:[%s247 + $0x360] sm:$0xff]
        %v406 = vld [vmem:[%s247 + $0x368] sm:$0xff]
        %v407 = vld [vmem:[%s247 + $0x370] sm:$0xff]
        %v408 = vld [vmem:[%s247 + $0x378] sm:$0xff]
        %v409 = vld [vmem:[%s247 + $0x380] sm:$0xff]
        %v410 = vld [vmem:[%s247 + $0x388] sm:$0xff]
        %v411 = vld [vmem:[%s247 + $0x390] sm:$0xff]
        %v412 = vld [vmem:[%s247 + $0x398] sm:$0xff]
        %v413 = vld [vmem:[%s247 + $0x3a0] sm:$0xff]
        %v414 = vld [vmem:[%s247 + $0x3a8] sm:$0xff]
        %v415 = vld [vmem:[%s247 + $0x3b0] sm:$0xff]
        %v416 = vld [vmem:[%s247 + $0x3b8] sm:$0xff]
        %v417 = vld [vmem:[%s247 + $0x3c0] sm:$0xff]
        %v418 = vld [vmem:[%s247 + $0x3c8] sm:$0xff]
        %v419 = vld [vmem:[%s247 + $0x3d0] sm:$0xff]
        %v420 = vld [vmem:[%s247 + $0x3d8] sm:$0xff]
        %v421 = vld [vmem:[%s247 + $0x3e0] sm:$0xff]
        %v422 = vld [vmem:[%s247 + $0x3e8] sm:$0xff]
        %v423 = vld [vmem:[%s247 + $0x3f0] sm:$0xff]
        %v424 = vld [vmem:[%s247 + $0x3f8] sm:$0xff]
        %v425 = vld [vmem:[%s247 + $0x400] sm:$0xff]
        %v426 = vld [vmem:[%s247 + $0x408] sm:$0xff]
        %v427 = vld [vmem:[%s247 + $0x410] sm:$0xff]
        %v428 = vld [vmem:[%s247 + $0x418] sm:$0xff]
        %v429 = vld [vmem:[%s247 + $0x420] sm:$0xff]
        %v430 = vld [vmem:[%s247 + $0x428] sm:$0xff]
        %v431 = vld [vmem:[%s247 + $0x430] sm:$0xff]
        %v432 = vld [vmem:[%s247 + $0x438] sm:$0xff]
        %v433 = vld [vmem:[%s247 + $0x440] sm:$0xff]
        %v434 = vld [vmem:[%s247 + $0x448] sm:$0xff]
        %v435 = vld [vmem:[%s247 + $0x450] sm:$0xff]
        %v436 = vld [vmem:[%s247 + $0x458] sm:$0xff]
        %v437 = vld [vmem:[%s247 + $0x460] sm:$0xff]
        %v438 = vld [vmem:[%s247 + $0x468] sm:$0xff]
        %v439 = vld [vmem:[%s247 + $0x470] sm:$0xff]
        %v440 = vld [vmem:[%s247 + $0x478] sm:$0xff]
        %v441 = vld [vmem:[%s247 + $0x480] sm:$0xff]
        %v442 = vld [vmem:[%s247 + $0x488] sm:$0xff]
        %v443 = vld [vmem:[%s247 + $0x490] sm:$0xff]
        %v444 = vld [vmem:[%s247 + $0x498] sm:$0xff]
        %v445 = vld [vmem:[%s247 + $0x4a0] sm:$0xff]
        %v446 = vld [vmem:[%s247 + $0x4a8] sm:$0xff]
        %v447 = vld [vmem:[%s247 + $0x4b0] sm:$0xff]
        %v448 = vld [vmem:[%s247 + $0x4b8] sm:$0xff]
        %v449 = vld [vmem:[%s247 + $0x4c0] sm:$0xff]
        %v450 = vld [vmem:[%s247 + $0x4c8] sm:$0xff]
        %v451 = vld [vmem:[%s247 + $0x4d0] sm:$0xff]
        %v452 = vld [vmem:[%s247 + $0x4d8] sm:$0xff]
        %v453 = vld [vmem:[%s247 + $0x4e0] sm:$0xff]
        %v454 = vld [vmem:[%s247 + $0x4e8] sm:$0xff]
        %v455 = vld [vmem:[%s247 + $0x4f0] sm:$0xff]
        %v456 = vld [vmem:[%s247 + $0x4f8] sm:$0xff]
        %v457 = vld [vmem:[%s247 + $0x500] sm:$0xff]
        %v458 = vld [vmem:[%s247 + $0x508] sm:$0xff]
        %v459 = vld [vmem:[%s247 + $0x510] sm:$0xff]
        %v460 = vld [vmem:[%s247 + $0x518] sm:$0xff]
        %v461 = vld [vmem:[%s247 + $0x520] sm:$0xff]
        %v462 = vld [vmem:[%s247 + $0x528] sm:$0xff]
        %v463 = vld [vmem:[%s247 + $0x530] sm:$0xff]
        %v464 = vld [vmem:[%s247 + $0x538] sm:$0xff]
        %v465 = vld [vmem:[%s247 + $0x540] sm:$0xff]
        %v466 = vld [vmem:[%s247 + $0x548] sm:$0xff]
        %v467 = vld [vmem:[%s247 + $0x550] sm:$0xff]
        %v468 = vld [vmem:[%s247 + $0x558] sm:$0xff]
        %v469 = vld [vmem:[%s247 + $0x560] sm:$0xff]
        %v470 = vld [vmem:[%s247 + $0x568] sm:$0xff]
        %v471 = vld [vmem:[%s247 + $0x570] sm:$0xff]
        %v472 = vld [vmem:[%s247 + $0x578] sm:$0xff]
        %v473 = vld [vmem:[%s247 + $0x580] sm:$0xff]
        %v474 = vld [vmem:[%s247 + $0x588] sm:$0xff]
        %v475 = vld [vmem:[%s247 + $0x590] sm:$0xff]
        %v476 = vld [vmem:[%s247 + $0x598] sm:$0xff]
        %v477 = vld [vmem:[%s247 + $0x5a0] sm:$0xff]
        %v478 = vld [vmem:[%s247 + $0x5a8] sm:$0xff]
        %v479 = vld [vmem:[%s247 + $0x5b0] sm:$0xff]
        %v480 = vld [vmem:[%s247 + $0x5b8] sm:$0xff]
        %v481 = vld [vmem:[%s247 + $0x5c0] sm:$0xff]
        %v482 = vld [vmem:[%s247 + $0x5c8] sm:$0xff]
        %v483 = vld [vmem:[%s247 + $0x5d0] sm:$0xff]
        %v484 = vld [vmem:[%s247 + $0x5d8] sm:$0xff]
        %v485 = vld [vmem:[%s247 + $0x5e0] sm:$0xff]
        %v486 = vld [vmem:[%s247 + $0x5e8] sm:$0xff]
        %v487 = vld [vmem:[%s247 + $0x5f0] sm:$0xff]
        %v488 = vld [vmem:[%s247 + $0x5f8] sm:$0xff]
        %v489 = vld [vmem:[%s247 + $0x600] sm:$0xff]
        %v490 = vld [vmem:[%s247 + $0x608] sm:$0xff]
        %v491 = vld [vmem:[%s247 + $0x610] sm:$0xff]
        %v492 = vld [vmem:[%s247 + $0x618] sm:$0xff]
        %v493 = vld [vmem:[%s247 + $0x620] sm:$0xff]
        %v494 = vld [vmem:[%s247 + $0x628] sm:$0xff]
        %v495 = vld [vmem:[%s247 + $0x630] sm:$0xff]
        %v496 = vld [vmem:[%s247 + $0x638] sm:$0xff]
        %v497 = vld [vmem:[%s247 + $0x640] sm:$0xff]
        %v498 = vld [vmem:[%s247 + $0x648] sm:$0xff]
        %v499 = vld [vmem:[%s247 + $0x650] sm:$0xff]
        %v500 = vld [vmem:[%s247 + $0x658] sm:$0xff]
        %v501 = vld [vmem:[%s247 + $0x660] sm:$0xff]
        %v502 = vld [vmem:[%s247 + $0x668] sm:$0xff]
        %v503 = vld [vmem:[%s247 + $0x670] sm:$0xff]
        %v504 = vld [vmem:[%s247 + $0x678] sm:$0xff]
        %v505 = vld [vmem:[%s247 + $0x680] sm:$0xff]
        %v506 = vld [vmem:[%s247 + $0x688] sm:$0xff]
        %v507 = vld [vmem:[%s247 + $0x690] sm:$0xff]
        %v508 = vld [vmem:[%s247 + $0x698] sm:$0xff]
        %v509 = vld [vmem:[%s247 + $0x6a0] sm:$0xff]
        %v510 = vld [vmem:[%s247 + $0x6a8] sm:$0xff]
        %v511 = vld [vmem:[%s247 + $0x6b0] sm:$0xff]
        %v512 = vld [vmem:[%s247 + $0x6b8] sm:$0xff]
        %v513 = vld [vmem:[%s247 + $0x6c0] sm:$0xff]
        %v514 = vld [vmem:[%s247 + $0x6c8] sm:$0xff]
        %v515 = vld [vmem:[%s247 + $0x6d0] sm:$0xff]
        %v516 = vld [vmem:[%s247 + $0x6d8] sm:$0xff]
        %v517 = vld [vmem:[%s247 + $0x6e0] sm:$0xff]
        %v518 = vld [vmem:[%s247 + $0x6e8] sm:$0xff]
        %v519 = vld [vmem:[%s247 + $0x6f0] sm:$0xff]
        %v520 = vld [vmem:[%s247 + $0x6f8] sm:$0xff]
        %v521 = vld [vmem:[%s247 + $0x700] sm:$0xff]
        %v522 = vld [vmem:[%s247 + $0x708] sm:$0xff]
        %v523 = vld [vmem:[%s247 + $0x710] sm:$0xff]
        %v524 = vld [vmem:[%s247 + $0x718] sm:$0xff]
        %v525 = vld [vmem:[%s247 + $0x720] sm:$0xff]
        %v526 = vld [vmem:[%s247 + $0x728] sm:$0xff]
        %v527 = vld [vmem:[%s247 + $0x730] sm:$0xff]
        %v528 = vld [vmem:[%s247 + $0x738] sm:$0xff]
        %v529 = vld [vmem:[%s247 + $0x740] sm:$0xff]
        %v530 = vld [vmem:[%s247 + $0x748] sm:$0xff]
        %v531 = vld [vmem:[%s247 + $0x750] sm:$0xff]
        %v532 = vld [vmem:[%s247 + $0x758] sm:$0xff]
        %v533 = vld [vmem:[%s247 + $0x760] sm:$0xff]
        %v534 = vld [vmem:[%s247 + $0x768] sm:$0xff]
        %v535 = vld [vmem:[%s247 + $0x770] sm:$0xff]
        %v536 = vld [vmem:[%s247 + $0x778] sm:$0xff]
        %v537 = vld [vmem:[%s247 + $0x780] sm:$0xff]
        %v538 = vld [vmem:[%s247 + $0x788] sm:$0xff]
        %v539 = vld [vmem:[%s247 + $0x790] sm:$0xff]
        %v540 = vld [vmem:[%s247 + $0x798] sm:$0xff]
        %v541 = vld [vmem:[%s247 + $0x7a0] sm:$0xff]
        %v542 = vld [vmem:[%s247 + $0x7a8] sm:$0xff]
        %v543 = vld [vmem:[%s247 + $0x7b0] sm:$0xff]
        %v544 = vld [vmem:[%s247 + $0x7b8] sm:$0xff]
        %v545 = vld [vmem:[%s247 + $0x7c0] sm:$0xff]
        %v546 = vld [vmem:[%s247 + $0x7c8] sm:$0xff]
        %v547 = vld [vmem:[%s247 + $0x7d0] sm:$0xff]
        %v548 = vld [vmem:[%s247 + $0x7d8] sm:$0xff]
        %v549 = vld [vmem:[%s247 + $0x7e0] sm:$0xff]
        %v550 = vld [vmem:[%s247 + $0x7e8] sm:$0xff]
        %v551 = vld [vmem:[%s247 + $0x7f0] sm:$0xff]
        %v552 = vld [vmem:[%s247 + $0x7f8] sm:$0xff]
        %v553 = vld [vmem:[%s247 + $0x800] sm:$0xff]
        %v554 = vld [vmem:[%s247 + $0x808] sm:$0xff]
        %v555 = vld [vmem:[%s247 + $0x810] sm:$0xff]
        %v556 = vld [vmem:[%s247 + $0x818] sm:$0xff]
        %v557 = vld [vmem:[%s247 + $0x820] sm:$0xff]
        %v558 = vld [vmem:[%s247 + $0x828] sm:$0xff]
        %v559 = vld [vmem:[%s247 + $0x830] sm:$0xff]
        %v560 = vld [vmem:[%s247 + $0x838] sm:$0xff]
        %v561 = vld [vmem:[%s247 + $0x840] sm:$0xff]
        %v562 = vld [vmem:[%s247 + $0x848] sm:$0xff]
        %v563 = vld [vmem:[%s247 + $0x850] sm:$0xff]
        %v564 = vld [vmem:[%s247 + $0x858] sm:$0xff]
        %v565 = vld [vmem:[%s247 + $0x860] sm:$0xff]
        %v566 = vld [vmem:[%s247 + $0x868] sm:$0xff]
        %v567 = vld [vmem:[%s247 + $0x870] sm:$0xff]
        %v568 = vld [vmem:[%s247 + $0x878] sm:$0xff]
        %v569 = vld [vmem:[%s247 + $0x880] sm:$0xff]
        %v570 = vld [vmem:[%s247 + $0x888] sm:$0xff]
        %v571 = vld [vmem:[%s247 + $0x890] sm:$0xff]
        %v572 = vld [vmem:[%s247 + $0x898] sm:$0xff]
        %v573 = vld [vmem:[%s247 + $0x8a0] sm:$0xff]
        %v574 = vld [vmem:[%s247 + $0x8a8] sm:$0xff]
        %v575 = vld [vmem:[%s247 + $0x8b0] sm:$0xff]
        %v576 = vld [vmem:[%s247 + $0x8b8] sm:$0xff]
        %v577 = vld [vmem:[%s247 + $0x8c0] sm:$0xff]
        %v578 = vld [vmem:[%s247 + $0x8c8] sm:$0xff]
        %v579 = vld [vmem:[%s247 + $0x8d0] sm:$0xff]
        %v580 = vld [vmem:[%s247 + $0x8d8] sm:$0xff]
        %v581 = vld [vmem:[%s247 + $0x8e0] sm:$0xff]
        %v582 = vld [vmem:[%s247 + $0x8e8] sm:$0xff]
        %v583 = vld [vmem:[%s247 + $0x8f0] sm:$0xff]
        %v584 = vld [vmem:[%s247 + $0x8f8] sm:$0xff]
        %v585 = vld [vmem:[%s247 + $0x900] sm:$0xff]
        %v586 = vld [vmem:[%s247 + $0x908] sm:$0xff]
        %v587 = vld [vmem:[%s247 + $0x910] sm:$0xff]
        %v588 = vld [vmem:[%s247 + $0x918] sm:$0xff]
        %v589 = vld [vmem:[%s247 + $0x920] sm:$0xff]
        %v590 = vld [vmem:[%s247 + $0x928] sm:$0xff]
        %v591 = vld [vmem:[%s247 + $0x930] sm:$0xff]
        %v592 = vld [vmem:[%s247 + $0x938] sm:$0xff]
        %v593 = vld [vmem:[%s247 + $0x940] sm:$0xff]
        %v594 = vld [vmem:[%s247 + $0x948] sm:$0xff]
        %v595 = vld [vmem:[%s247 + $0x950] sm:$0xff]
        %v596 = vld [vmem:[%s247 + $0x958] sm:$0xff]
        %v597 = vld [vmem:[%s247 + $0x960] sm:$0xff]
        %v598 = vld [vmem:[%s247 + $0x968] sm:$0xff]
        %v599 = vld [vmem:[%s247 + $0x970] sm:$0xff]
        %v600 = vld [vmem:[%s247 + $0x978] sm:$0xff]
        %v601 = vld [vmem:[%s247 + $0x980] sm:$0xff]
        %v602 = vld [vmem:[%s247 + $0x988] sm:$0xff]
        %v603 = vld [vmem:[%s247 + $0x990] sm:$0xff]
        %v604 = vld [vmem:[%s247 + $0x998] sm:$0xff]
        %v605 = vld [vmem:[%s247 + $0x9a0] sm:$0xff]
        %v606 = vld [vmem:[%s247 + $0x9a8] sm:$0xff]
        %v607 = vld [vmem:[%s247 + $0x9b0] sm:$0xff]
        %v608 = vld [vmem:[%s247 + $0x9b8] sm:$0xff]
        %v609 = vld [vmem:[%s247 + $0x9c0] sm:$0xff]
        %v610 = vld [vmem:[%s247 + $0x9c8] sm:$0xff]
        %v611 = vld [vmem:[%s247 + $0x9d0] sm:$0xff]
        %v612 = vld [vmem:[%s247 + $0x9d8] sm:$0xff]
        %v613 = vld [vmem:[%s247 + $0x9e0] sm:$0xff]
        %v614 = vld [vmem:[%s247 + $0x9e8] sm:$0xff]
        %v615 = vld [vmem:[%s247 + $0x9f0] sm:$0xff]
        %v616 = vld [vmem:[%s247 + $0x9f8] sm:$0xff]
        %v617 = vld [vmem:[%s247 + $0xa00] sm:$0xff]
        %v618 = vld [vmem:[%s247 + $0xa08] sm:$0xff]
        %v619 = vld [vmem:[%s247 + $0xa10] sm:$0xff]
        %v620 = vld [vmem:[%s247 + $0xa18] sm:$0xff]
        %v621 = vld [vmem:[%s247 + $0xa20] sm:$0xff]
        %v622 = vld [vmem:[%s247 + $0xa28] sm:$0xff]
        %v623 = vld [vmem:[%s247 + $0xa30] sm:$0xff]
        %v624 = vld [vmem:[%s247 + $0xa38] sm:$0xff]
        %v625 = vld [vmem:[%s247 + $0xa40] sm:$0xff]
        %v626 = vld [vmem:[%s247 + $0xa48] sm:$0xff]
        %v627 = vld [vmem:[%s247 + $0xa50] sm:$0xff]
        %v628 = vld [vmem:[%s247 + $0xa58] sm:$0xff]
        %v629 = vld [vmem:[%s247 + $0xa60] sm:$0xff]
        %v630 = vld [vmem:[%s247 + $0xa68] sm:$0xff]
        %v631 = vld [vmem:[%s247 + $0xa70] sm:$0xff]
        %v632 = vld [vmem:[%s247 + $0xa78] sm:$0xff]
        %v633 = vld [vmem:[%s247 + $0xa80] sm:$0xff]
        %v634 = vld [vmem:[%s247 + $0xa88] sm:$0xff]
        %v635 = vld [vmem:[%s247 + $0xa90] sm:$0xff]
        %v636 = vld [vmem:[%s247 + $0xa98] sm:$0xff]
        %v637 = vld [vmem:[%s247 + $0xaa0] sm:$0xff]
        %v638 = vld [vmem:[%s247 + $0xaa8] sm:$0xff]
        %v639 = vld [vmem:[%s247 + $0xab0] sm:$0xff]
        %v640 = vld [vmem:[%s247 + $0xab8] sm:$0xff]
        %v641 = vld [vmem:[%s247 + $0xac0] sm:$0xff]
        %v642 = vld [vmem:[%s247 + $0xac8] sm:$0xff]
        %v643 = vld [vmem:[%s247 + $0xad0] sm:$0xff]
        %v644 = vld [vmem:[%s247 + $0xad8] sm:$0xff]
        %v645 = vld [vmem:[%s247 + $0xae0] sm:$0xff]
        %v646 = vld [vmem:[%s247 + $0xae8] sm:$0xff]
        %v647 = vld [vmem:[%s247 + $0xaf0] sm:$0xff]
        %v648 = vld [vmem:[%s247 + $0xaf8] sm:$0xff]
        %v649 = vld [vmem:[%s247 + $0xb00] sm:$0xff]
        %v650 = vld [vmem:[%s247 + $0xb08] sm:$0xff]
        %v651 = vld [vmem:[%s247 + $0xb10] sm:$0xff]
        %v652 = vld [vmem:[%s247 + $0xb18] sm:$0xff]
        %v653 = vld [vmem:[%s247 + $0xb20] sm:$0xff]
        %v654 = vld [vmem:[%s247 + $0xb28] sm:$0xff]
        %v655 = vld [vmem:[%s247 + $0xb30] sm:$0xff]
        %v656 = vld [vmem:[%s247 + $0xb38] sm:$0xff]
        %v657 = vld [vmem:[%s247 + $0xb40] sm:$0xff]
        %v658 = vld [vmem:[%s247 + $0xb48] sm:$0xff]
        %v659 = vld [vmem:[%s247 + $0xb50] sm:$0xff]
        %v660 = vld [vmem:[%s247 + $0xb58] sm:$0xff]
        %v661 = vld [vmem:[%s247 + $0xb60] sm:$0xff]
        %v662 = vld [vmem:[%s247 + $0xb68] sm:$0xff]
        %v663 = vld [vmem:[%s247 + $0xb70] sm:$0xff]
        %v664 = vld [vmem:[%s247 + $0xb78] sm:$0xff]
        %v665 = vld [vmem:[%s247 + $0xb80] sm:$0xff]
        %v666 = vld [vmem:[%s247 + $0xb88] sm:$0xff]
        %v667 = vld [vmem:[%s247 + $0xb90] sm:$0xff]
        %v668 = vld [vmem:[%s247 + $0xb98] sm:$0xff]
        %v669 = vld [vmem:[%s247 + $0xba0] sm:$0xff]
        %v670 = vld [vmem:[%s247 + $0xba8] sm:$0xff]
        %v671 = vld [vmem:[%s247 + $0xbb0] sm:$0xff]
        %v672 = vld [vmem:[%s247 + $0xbb8] sm:$0xff]
        %v673 = vld [vmem:[%s247 + $0xbc0] sm:$0xff]
        %v674 = vld [vmem:[%s247 + $0xbc8] sm:$0xff]
        %v675 = vld [vmem:[%s247 + $0xbd0] sm:$0xff]
        %v676 = vld [vmem:[%s247 + $0xbd8] sm:$0xff]
        %v677 = vld [vmem:[%s247 + $0xbe0] sm:$0xff]
        %v678 = vld [vmem:[%s247 + $0xbe8] sm:$0xff]
        %v679 = vld [vmem:[%s247 + $0xbf0] sm:$0xff]
        %v680 = vld [vmem:[%s247 + $0xbf8] sm:$0xff]
        %v681 = vld [vmem:[%s247 + $0xc00] sm:$0xff]
        %v682 = vld [vmem:[%s247 + $0xc08] sm:$0xff]
        %v683 = vld [vmem:[%s247 + $0xc10] sm:$0xff]
        %v684 = vld [vmem:[%s247 + $0xc18] sm:$0xff]
        %v685 = vld [vmem:[%s247 + $0xc20] sm:$0xff]
        %v686 = vld [vmem:[%s247 + $0xc28] sm:$0xff]
        %v687 = vld [vmem:[%s247 + $0xc30] sm:$0xff]
        %v688 = vld [vmem:[%s247 + $0xc38] sm:$0xff]
        %v689 = vld [vmem:[%s247 + $0xc40] sm:$0xff]
        %v690 = vld [vmem:[%s247 + $0xc48] sm:$0xff]
        %v691 = vld [vmem:[%s247 + $0xc50] sm:$0xff]
        %v692 = vld [vmem:[%s247 + $0xc58] sm:$0xff]
        %v693 = vld [vmem:[%s247 + $0xc60] sm:$0xff]
        %v694 = vld [vmem:[%s247 + $0xc68] sm:$0xff]
        %v695 = vld [vmem:[%s247 + $0xc70] sm:$0xff]
        %v696 = vld [vmem:[%s247 + $0xc78] sm:$0xff]
        %v697 = vld [vmem:[%s247 + $0xc80] sm:$0xff]
        %v698 = vld [vmem:[%s247 + $0xc88] sm:$0xff]
        %v699 = vld [vmem:[%s247 + $0xc90] sm:$0xff]
        %v700 = vld [vmem:[%s247 + $0xc98] sm:$0xff]
        %v701 = vld [vmem:[%s247 + $0xca0] sm:$0xff]
        %v702 = vld [vmem:[%s247 + $0xca8] sm:$0xff]
        %v703 = vld [vmem:[%s247 + $0xcb0] sm:$0xff]
        %v704 = vld [vmem:[%s247 + $0xcb8] sm:$0xff]
        %v705 = vld [vmem:[%s247 + $0xcc0] sm:$0xff]
        %v706 = vld [vmem:[%s247 + $0xcc8] sm:$0xff]
        %v707 = vld [vmem:[%s247 + $0xcd0] sm:$0xff]
        %v708 = vld [vmem:[%s247 + $0xcd8] sm:$0xff]
        %v709 = vld [vmem:[%s247 + $0xce0] sm:$0xff]
        %v710 = vld [vmem:[%s247 + $0xce8] sm:$0xff]
        %v711 = vld [vmem:[%s247 + $0xcf0] sm:$0xff]
        %v712 = vld [vmem:[%s247 + $0xcf8] sm:$0xff]
        %v713 = vld [vmem:[%s247 + $0xd00] sm:$0xff]
        %v714 = vld [vmem:[%s247 + $0xd08] sm:$0xff]
        %v715 = vld [vmem:[%s247 + $0xd10] sm:$0xff]
        %v716 = vld [vmem:[%s247 + $0xd18] sm:$0xff]
        %v717 = vld [vmem:[%s247 + $0xd20] sm:$0xff]
        %v718 = vld [vmem:[%s247 + $0xd28] sm:$0xff]
        %v719 = vld [vmem:[%s247 + $0xd30] sm:$0xff]
        %v720 = vld [vmem:[%s247 + $0xd38] sm:$0xff]
        %v721 = vld [vmem:[%s247 + $0xd40] sm:$0xff]
        %v722 = vld [vmem:[%s247 + $0xd48] sm:$0xff]
        %v723 = vld [vmem:[%s247 + $0xd50] sm:$0xff]
        %v724 = vld [vmem:[%s247 + $0xd58] sm:$0xff]
        %v725 = vld [vmem:[%s247 + $0xd60] sm:$0xff]
        %v726 = vld [vmem:[%s247 + $0xd68] sm:$0xff]
        %v727 = vld [vmem:[%s247 + $0xd70] sm:$0xff]
        %v728 = vld [vmem:[%s247 + $0xd78] sm:$0xff]
        %v729 = vld [vmem:[%s247 + $0xd80] sm:$0xff]
        %v730 = vld [vmem:[%s247 + $0xd88] sm:$0xff]
        %v731 = vld [vmem:[%s247 + $0xd90] sm:$0xff]
        %v732 = vld [vmem:[%s247 + $0xd98] sm:$0xff]
        %v733 = vld [vmem:[%s247 + $0xda0] sm:$0xff]
        %v734 = vld [vmem:[%s247 + $0xda8] sm:$0xff]
        %v735 = vld [vmem:[%s247 + $0xdb0] sm:$0xff]
        %v736 = vld [vmem:[%s247 + $0xdb8] sm:$0xff]
        %v737 = vld [vmem:[%s247 + $0xdc0] sm:$0xff]
        %v738 = vld [vmem:[%s247 + $0xdc8] sm:$0xff]
        %v739 = vld [vmem:[%s247 + $0xdd0] sm:$0xff]
        %v740 = vld [vmem:[%s247 + $0xdd8] sm:$0xff]
        %v741 = vld [vmem:[%s247 + $0xde0] sm:$0xff]
        %v742 = vld [vmem:[%s247 + $0xde8] sm:$0xff]
        %v743 = vld [vmem:[%s247 + $0xdf0] sm:$0xff]
        %v744 = vld [vmem:[%s247 + $0xdf8] sm:$0xff]
        %v745 = vld [vmem:[%s247 + $0xe00] sm:$0xff]
        %v746 = vld [vmem:[%s247 + $0xe08] sm:$0xff]
        %v747 = vld [vmem:[%s247 + $0xe10] sm:$0xff]
        %v748 = vld [vmem:[%s247 + $0xe18] sm:$0xff]
        %v749 = vld [vmem:[%s247 + $0xe20] sm:$0xff]
        %v750 = vld [vmem:[%s247 + $0xe28] sm:$0xff]
        %v751 = vld [vmem:[%s247 + $0xe30] sm:$0xff]
        %v752 = vld [vmem:[%s247 + $0xe38] sm:$0xff]
        %v753 = vld [vmem:[%s247 + $0xe40] sm:$0xff]
        %v754 = vld [vmem:[%s247 + $0xe48] sm:$0xff]
        %v755 = vld [vmem:[%s247 + $0xe50] sm:$0xff]
        %v756 = vld [vmem:[%s247 + $0xe58] sm:$0xff]
        %v757 = vld [vmem:[%s247 + $0xe60] sm:$0xff]
        %v758 = vld [vmem:[%s247 + $0xe68] sm:$0xff]
        %v759 = vld [vmem:[%s247 + $0xe70] sm:$0xff]
        %v760 = vld [vmem:[%s247 + $0xe78] sm:$0xff]
        %v761 = vld [vmem:[%s247 + $0xe80] sm:$0xff]
        %v762 = vld [vmem:[%s247 + $0xe88] sm:$0xff]
        %v763 = vld [vmem:[%s247 + $0xe90] sm:$0xff]
        %v764 = vld [vmem:[%s247 + $0xe98] sm:$0xff]
        %v765 = vld [vmem:[%s247 + $0xea0] sm:$0xff]
        %v766 = vld [vmem:[%s247 + $0xea8] sm:$0xff]
        %v767 = vld [vmem:[%s247 + $0xeb0] sm:$0xff]
        %v768 = vld [vmem:[%s247 + $0xeb8] sm:$0xff]
        %v769 = vld [vmem:[%s247 + $0xec0] sm:$0xff]
        %v770 = vld [vmem:[%s247 + $0xec8] sm:$0xff]
        %v771 = vld [vmem:[%s247 + $0xed0] sm:$0xff]
        %v772 = vld [vmem:[%s247 + $0xed8] sm:$0xff]
        %v773 = vld [vmem:[%s247 + $0xee0] sm:$0xff]
        %v774 = vld [vmem:[%s247 + $0xee8] sm:$0xff]
        %v775 = vld [vmem:[%s247 + $0xef0] sm:$0xff]
        %v776 = vld [vmem:[%s247 + $0xef8] sm:$0xff]
        %v777 = vld [vmem:[%s247 + $0xf00] sm:$0xff]
        %v778 = vld [vmem:[%s247 + $0xf08] sm:$0xff]
        %v779 = vld [vmem:[%s247 + $0xf10] sm:$0xff]
        %v780 = vld [vmem:[%s247 + $0xf18] sm:$0xff]
        %v781 = vld [vmem:[%s247 + $0xf20] sm:$0xff]
        %v782 = vld [vmem:[%s247 + $0xf28] sm:$0xff]
        %v783 = vld [vmem:[%s247 + $0xf30] sm:$0xff]
        %v784 = vld [vmem:[%s247 + $0xf38] sm:$0xff]
        %v785 = vld [vmem:[%s247 + $0xf40] sm:$0xff]
        %v786 = vld [vmem:[%s247 + $0xf48] sm:$0xff]
        %v787 = vld [vmem:[%s247 + $0xf50] sm:$0xff]
        %v788 = vld [vmem:[%s247 + $0xf58] sm:$0xff]
        %v789 = vld [vmem:[%s247 + $0xf60] sm:$0xff]
        %v790 = vld [vmem:[%s247 + $0xf68] sm:$0xff]
        %v791 = vld [vmem:[%s247 + $0xf70] sm:$0xff]
        %v792 = vld [vmem:[%s247 + $0xf78] sm:$0xff]
        %v793 = vld [vmem:[%s247 + $0xf80] sm:$0xff]
        %v794 = vld [vmem:[%s247 + $0xf88] sm:$0xff]
        %v795 = vld [vmem:[%s247 + $0xf90] sm:$0xff]
        %v796 = vld [vmem:[%s247 + $0xf98] sm:$0xff]
        %v797 = vld [vmem:[%s247 + $0xfa0] sm:$0xff]
        %v798 = vld [vmem:[%s247 + $0xfa8] sm:$0xff]
        %v799 = vld [vmem:[%s247 + $0xfb0] sm:$0xff]
        %v800 = vld [vmem:[%s247 + $0xfb8] sm:$0xff]
        %v801 = vld [vmem:[%s247 + $0xfc0] sm:$0xff]
        %v802 = vld [vmem:[%s247 + $0xfc8] sm:$0xff]
        %v803 = vld [vmem:[%s247 + $0xfd0] sm:$0xff]
        %v804 = vld [vmem:[%s247 + $0xfd8] sm:$0xff]
        %v805 = vld [vmem:[%s247 + $0xfe0] sm:$0xff]
        %v806 = vld [vmem:[%s247 + $0xfe8] sm:$0xff]
        %v807 = vld [vmem:[%s247 + $0xff0] sm:$0xff]
        %v808 = vld [vmem:[%s247 + $0xff8] sm:$0xff]
        %v809 = vld [vmem:[%s247 + $0x1000] sm:$0xff]
        %v810 = vld [vmem:[%s247 + $0x1008] sm:$0xff]
        %v811 = vld [vmem:[%s247 + $0x1010] sm:$0xff]
        %v812 = vld [vmem:[%s247 + $0x1018] sm:$0xff]
        %v813 = vld [vmem:[%s247 + $0x1020] sm:$0xff]
        %v814 = vld [vmem:[%s247 + $0x1028] sm:$0xff]
        %v815 = vld [vmem:[%s247 + $0x1030] sm:$0xff]
        %v816 = vld [vmem:[%s247 + $0x1038] sm:$0xff]
        %v817 = vld [vmem:[%s247 + $0x1040] sm:$0xff]
        %v818 = vld [vmem:[%s247 + $0x1048] sm:$0xff]
        %v819 = vld [vmem:[%s247 + $0x1050] sm:$0xff]
        %v820 = vld [vmem:[%s247 + $0x1058] sm:$0xff]
        %v821 = vld [vmem:[%s247 + $0x1060] sm:$0xff]
        %v822 = vld [vmem:[%s247 + $0x1068] sm:$0xff]
        %v823 = vld [vmem:[%s247 + $0x1070] sm:$0xff]
        %v824 = vld [vmem:[%s247 + $0x1078] sm:$0xff]
        %v825 = vld [vmem:[%s247 + $0x1080] sm:$0xff]
        %v826 = vld [vmem:[%s247 + $0x1088] sm:$0xff]
        %v827 = vld [vmem:[%s247 + $0x1090] sm:$0xff]
        %v828 = vld [vmem:[%s247 + $0x1098] sm:$0xff]
        %v829 = vld [vmem:[%s247 + $0x10a0] sm:$0xff]
        %v830 = vld [vmem:[%s247 + $0x10a8] sm:$0xff]
        %v831 = vld [vmem:[%s247 + $0x10b0] sm:$0xff]
        %v832 = vld [vmem:[%s247 + $0x10b8] sm:$0xff]
        %v833 = vld [vmem:[%s247 + $0x10c0] sm:$0xff]
        %v834 = vld [vmem:[%s247 + $0x10c8] sm:$0xff]
        %v835 = vld [vmem:[%s247 + $0x10d0] sm:$0xff]
        %v836 = vld [vmem:[%s247 + $0x10d8] sm:$0xff]
        %v837 = vld [vmem:[%s247 + $0x10e0] sm:$0xff]
        %v838 = vld [vmem:[%s247 + $0x10e8] sm:$0xff]
        %v839 = vld [vmem:[%s247 + $0x10f0] sm:$0xff]
        %v840 = vld [vmem:[%s247 + $0x10f8] sm:$0xff]
        %v841 = vld [vmem:[%s247 + $0x1100] sm:$0xff]
        %v842 = vld [vmem:[%s247 + $0x1108] sm:$0xff]
        %v843 = vld [vmem:[%s247 + $0x1110] sm:$0xff]
        %v844 = vld [vmem:[%s247 + $0x1118] sm:$0xff]
        %v845 = vld [vmem:[%s247 + $0x1120] sm:$0xff]
        %v846 = vld [vmem:[%s247 + $0x1128] sm:$0xff]
        %v847 = vld [vmem:[%s247 + $0x1130] sm:$0xff]
        %v848 = vld [vmem:[%s247 + $0x1138] sm:$0xff]
        %v849 = vld [vmem:[%s247 + $0x1140] sm:$0xff]
        %v850 = vld [vmem:[%s247 + $0x1148] sm:$0xff]
        %v851 = vld [vmem:[%s247 + $0x1150] sm:$0xff]
        %v852 = vld [vmem:[%s247 + $0x1158] sm:$0xff]
        %v853 = vld [vmem:[%s247 + $0x1160] sm:$0xff]
        %v854 = vld [vmem:[%s247 + $0x1168] sm:$0xff]
        %v855 = vld [vmem:[%s247 + $0x1170] sm:$0xff]
        %v856 = vld [vmem:[%s247 + $0x1178] sm:$0xff]
        %v857 = vld [vmem:[%s247 + $0x1180] sm:$0xff]
        %v858 = vld [vmem:[%s247 + $0x1188] sm:$0xff]
        %v859 = vld [vmem:[%s247 + $0x1190] sm:$0xff]
        %v860 = vld [vmem:[%s247 + $0x1198] sm:$0xff]
        %v861 = vld [vmem:[%s247 + $0x11a0] sm:$0xff]
        %v862 = vld [vmem:[%s247 + $0x11a8] sm:$0xff]
        %v863 = vld [vmem:[%s247 + $0x11b0] sm:$0xff]
        %v864 = vld [vmem:[%s247 + $0x11b8] sm:$0xff]
        %v865 = vld [vmem:[%s247 + $0x11c0] sm:$0xff]
        %v866 = vld [vmem:[%s247 + $0x11c8] sm:$0xff]
        %v867 = vld [vmem:[%s247 + $0x11d0] sm:$0xff]
        %v868 = vld [vmem:[%s247 + $0x11d8] sm:$0xff]
        %v869 = vld [vmem:[%s247 + $0x11e0] sm:$0xff]
        %v870 = vld [vmem:[%s247 + $0x11e8] sm:$0xff]
        %v871 = vld [vmem:[%s247 + $0x11f0] sm:$0xff]
        %v872 = vld [vmem:[%s247 + $0x11f8] sm:$0xff]
        %v873 = vld [vmem:[%s247 + $0x1200] sm:$0xff]
        %v874 = vld [vmem:[%s247 + $0x1208] sm:$0xff]
        %v875 = vld [vmem:[%s247 + $0x1210] sm:$0xff]
        %v876 = vld [vmem:[%s247 + $0x1218] sm:$0xff]
        %v877 = vld [vmem:[%s247 + $0x1220] sm:$0xff]
        %v878 = vld [vmem:[%s247 + $0x1228] sm:$0xff]
        %v879 = vld [vmem:[%s247 + $0x1230] sm:$0xff]
        %v880 = vld [vmem:[%s247 + $0x1238] sm:$0xff]
        %v881 = vld [vmem:[%s247 + $0x1240] sm:$0xff]
        %v882 = vld [vmem:[%s247 + $0x1248] sm:$0xff]
        %v883 = vld [vmem:[%s247 + $0x1250] sm:$0xff]
        %v884 = vld [vmem:[%s247 + $0x1258] sm:$0xff]
        %v885 = vld [vmem:[%s247 + $0x1260] sm:$0xff]
        %v886 = vld [vmem:[%s247 + $0x1268] sm:$0xff]
        %v887 = vld [vmem:[%s247 + $0x1270] sm:$0xff]
        %v888 = vld [vmem:[%s247 + $0x1278] sm:$0xff]
        %v889 = vld [vmem:[%s247 + $0x1280] sm:$0xff]
        %v890 = vld [vmem:[%s247 + $0x1288] sm:$0xff]
        %v891 = vld [vmem:[%s247 + $0x1290] sm:$0xff]
        %v892 = vld [vmem:[%s247 + $0x1298] sm:$0xff]
        %v893 = vld [vmem:[%s247 + $0x12a0] sm:$0xff]
        %v894 = vld [vmem:[%s247 + $0x12a8] sm:$0xff]
        %v895 = vld [vmem:[%s247 + $0x12b0] sm:$0xff]
        %v896 = vld [vmem:[%s247 + $0x12b8] sm:$0xff]
        %v897 = vld [vmem:[%s247 + $0x12c0] sm:$0xff]
        %v898 = vld [vmem:[%s247 + $0x12c8] sm:$0xff]
        %v899 = vld [vmem:[%s247 + $0x12d0] sm:$0xff]
        %v900 = vld [vmem:[%s247 + $0x12d8] sm:$0xff]
        %v901 = vld [vmem:[%s247 + $0x12e0] sm:$0xff]
        %v902 = vld [vmem:[%s247 + $0x12e8] sm:$0xff]
        %v903 = vld [vmem:[%s247 + $0x12f0] sm:$0xff]
        %v904 = vld [vmem:[%s247 + $0x12f8] sm:$0xff]
        %v905 = vld [vmem:[%s247 + $0x1300] sm:$0xff]
        %v906 = vld [vmem:[%s247 + $0x1308] sm:$0xff]
        %v907 = vld [vmem:[%s247 + $0x1310] sm:$0xff]
        %v908 = vld [vmem:[%s247 + $0x1318] sm:$0xff]
        %v909 = vld [vmem:[%s247 + $0x1320] sm:$0xff]
        %v910 = vld [vmem:[%s247 + $0x1328] sm:$0xff]
        %v911 = vld [vmem:[%s247 + $0x1330] sm:$0xff]
        %v912 = vld [vmem:[%s247 + $0x1338] sm:$0xff]
        %v913 = vld [vmem:[%s247 + $0x1340] sm:$0xff]
        %v914 = vld [vmem:[%s247 + $0x1348] sm:$0xff]
        %v915 = vld [vmem:[%s247 + $0x1350] sm:$0xff]
        %v916 = vld [vmem:[%s247 + $0x1358] sm:$0xff]
        %v917 = vld [vmem:[%s247 + $0x1360] sm:$0xff]
        %v918 = vld [vmem:[%s247 + $0x1368] sm:$0xff]
        %v919 = vld [vmem:[%s247 + $0x1370] sm:$0xff]
        %v920 = vld [vmem:[%s247 + $0x1378] sm:$0xff]
        %v921 = vld [vmem:[%s247 + $0x1380] sm:$0xff]
        %v922 = vld [vmem:[%s247 + $0x1388] sm:$0xff]
        %v923 = vld [vmem:[%s247 + $0x1390] sm:$0xff]
        %v924 = vld [vmem:[%s247 + $0x1398] sm:$0xff]
        %v925 = vld [vmem:[%s247 + $0x13a0] sm:$0xff]
        %v926 = vld [vmem:[%s247 + $0x13a8] sm:$0xff]
        %v927 = vld [vmem:[%s247 + $0x13b0] sm:$0xff]
        %v928 = vld [vmem:[%s247 + $0x13b8] sm:$0xff]
        %v929 = vld [vmem:[%s247 + $0x13c0] sm:$0xff]
        %v930 = vld [vmem:[%s247 + $0x13c8] sm:$0xff]
        %v931 = vld [vmem:[%s247 + $0x13d0] sm:$0xff]
        %v932 = vld [vmem:[%s247 + $0x13d8] sm:$0xff]
        %v933 = vld [vmem:[%s247 + $0x13e0] sm:$0xff]
        %v934 = vld [vmem:[%s247 + $0x13e8] sm:$0xff]
        %v935 = vld [vmem:[%s247 + $0x13f0] sm:$0xff]
        %v936 = vld [vmem:[%s247 + $0x13f8] sm:$0xff]
        %v937 = vld [vmem:[%s247 + $0x1400] sm:$0xff]
        %v938 = vld [vmem:[%s247 + $0x1408] sm:$0xff]
        %v939 = vld [vmem:[%s247 + $0x1410] sm:$0xff]
        %v940 = vld [vmem:[%s247 + $0x1418] sm:$0xff]
        %v941 = vld [vmem:[%s247 + $0x1420] sm:$0xff]
        %v942 = vld [vmem:[%s247 + $0x1428] sm:$0xff]
        %v943 = vld [vmem:[%s247 + $0x1430] sm:$0xff]
        %v944 = vld [vmem:[%s247 + $0x1438] sm:$0xff]
        %v945 = vld [vmem:[%s247 + $0x1440] sm:$0xff]
        %v946 = vld [vmem:[%s247 + $0x1448] sm:$0xff]
        %v947 = vld [vmem:[%s247 + $0x1450] sm:$0xff]
        %v948 = vld [vmem:[%s247 + $0x1458] sm:$0xff]
        %v949 = vld [vmem:[%s247 + $0x1460] sm:$0xff]
        %v950 = vld [vmem:[%s247 + $0x1468] sm:$0xff]
        %v951 = vld [vmem:[%s247 + $0x1470] sm:$0xff]
        %v952 = vld [vmem:[%s247 + $0x1478] sm:$0xff]
        %v953 = vld [vmem:[%s247 + $0x1480] sm:$0xff]
        %v954 = vld [vmem:[%s247 + $0x1488] sm:$0xff]
        %v955 = vld [vmem:[%s247 + $0x1490] sm:$0xff]
        %v956 = vld [vmem:[%s247 + $0x1498] sm:$0xff]
        %v957 = vld [vmem:[%s247 + $0x14a0] sm:$0xff]
        %v958 = vld [vmem:[%s247 + $0x14a8] sm:$0xff]
        %v959 = vld [vmem:[%s247 + $0x14b0] sm:$0xff]
        %v960 = vld [vmem:[%s247 + $0x14b8] sm:$0xff]
        %v961 = vld [vmem:[%s247 + $0x14c0] sm:$0xff]
        %v962 = vld [vmem:[%s247 + $0x14c8] sm:$0xff]
        %v963 = vld [vmem:[%s247 + $0x14d0] sm:$0xff]
        %v964 = vld [vmem:[%s247 + $0x14d8] sm:$0xff]
        %v965 = vld [vmem:[%s247 + $0x14e0] sm:$0xff]
        %v966 = vld [vmem:[%s247 + $0x14e8] sm:$0xff]
        %v967 = vld [vmem:[%s247 + $0x14f0] sm:$0xff]
        %v968 = vld [vmem:[%s247 + $0x14f8] sm:$0xff]
        %v969 = vld [vmem:[%s247 + $0x1500] sm:$0xff]
        %v970 = vld [vmem:[%s247 + $0x1508] sm:$0xff]
        %v971 = vld [vmem:[%s247 + $0x1510] sm:$0xff]
        %v972 = vld [vmem:[%s247 + $0x1518] sm:$0xff]
        %v973 = vld [vmem:[%s247 + $0x1520] sm:$0xff]
        %v974 = vld [vmem:[%s247 + $0x1528] sm:$0xff]
        %v975 = vld [vmem:[%s247 + $0x1530] sm:$0xff]
        %v976 = vld [vmem:[%s247 + $0x1538] sm:$0xff]
        %v977 = vld [vmem:[%s247 + $0x1540] sm:$0xff]
        %v978 = vld [vmem:[%s247 + $0x1548] sm:$0xff]
        %v979 = vld [vmem:[%s247 + $0x1550] sm:$0xff]
        %v980 = vld [vmem:[%s247 + $0x1558] sm:$0xff]
        %v981 = vld [vmem:[%s247 + $0x1560] sm:$0xff]
        %v982 = vld [vmem:[%s247 + $0x1568] sm:$0xff]
        %v983 = vld [vmem:[%s247 + $0x1570] sm:$0xff]
        %v984 = vld [vmem:[%s247 + $0x1578] sm:$0xff]
        %v985 = vld [vmem:[%s247 + $0x1580] sm:$0xff]
        %v986 = vld [vmem:[%s247 + $0x1588] sm:$0xff]
        %v987 = vld [vmem:[%s247 + $0x1590] sm:$0xff]
        %v988 = vld [vmem:[%s247 + $0x1598] sm:$0xff]
        %v989 = vld [vmem:[%s247 + $0x15a0] sm:$0xff]
        %v990 = vld [vmem:[%s247 + $0x15a8] sm:$0xff]
        %v991 = vld [vmem:[%s247 + $0x15b0] sm:$0xff]
        %v992 = vld [vmem:[%s247 + $0x15b8] sm:$0xff]
        %v993 = vld [vmem:[%s247 + $0x15c0] sm:$0xff]
        %v994 = vld [vmem:[%s247 + $0x15c8] sm:$0xff]
        %v995 = vld [vmem:[%s247 + $0x15d0] sm:$0xff]
        %v996 = vld [vmem:[%s247 + $0x15d8] sm:$0xff]
        %v997 = vld [vmem:[%s247 + $0x15e0] sm:$0xff]
        %v998 = vld [vmem:[%s247 + $0x15e8] sm:$0xff]
        %v999 = vld [vmem:[%s247 + $0x15f0] sm:$0xff]
        %v1000 = vld [vmem:[%s247 + $0x15f8] sm:$0xff]
        %v1001 = vld [vmem:[%s247 + $0x1600] sm:$0xff]
        %v1002 = vld [vmem:[%s247 + $0x1608] sm:$0xff]
        %v1003 = vld [vmem:[%s247 + $0x1610] sm:$0xff]
        %v1004 = vld [vmem:[%s247 + $0x1618] sm:$0xff]
        %v1005 = vld [vmem:[%s247 + $0x1620] sm:$0xff]
        %v1006 = vld [vmem:[%s247 + $0x1628] sm:$0xff]
        %v1007 = vld [vmem:[%s247 + $0x1630] sm:$0xff]
        %v1008 = vld [vmem:[%s247 + $0x1638] sm:$0xff]
        %v1009 = vld [vmem:[%s247 + $0x1640] sm:$0xff]
        %v1010 = vld [vmem:[%s247 + $0x1648] sm:$0xff]
        %v1011 = vld [vmem:[%s247 + $0x1650] sm:$0xff]
        %v1012 = vld [vmem:[%s247 + $0x1658] sm:$0xff]
        %v1013 = vld [vmem:[%s247 + $0x1660] sm:$0xff]
        %v1014 = vld [vmem:[%s247 + $0x1668] sm:$0xff]
        %v1015 = vld [vmem:[%s247 + $0x1670] sm:$0xff]
        %v1016 = vld [vmem:[%s247 + $0x1678] sm:$0xff]
        %v1017 = vld [vmem:[%s247 + $0x1680] sm:$0xff]
        %v1018 = vld [vmem:[%s247 + $0x1688] sm:$0xff]
        %v1019 = vld [vmem:[%s247 + $0x1690] sm:$0xff]
        %v1020 = vld [vmem:[%s247 + $0x1698] sm:$0xff]
        %v1021 = vld [vmem:[%s247 + $0x16a0] sm:$0xff]
        %v1022 = vld [vmem:[%s247 + $0x16a8] sm:$0xff]
        %v1023 = vld [vmem:[%s247 + $0x16b0] sm:$0xff]
        %v1024 = vld [vmem:[%s247 + $0x16b8] sm:$0xff]
        %v1025 = vld [vmem:[%s247 + $0x16c0] sm:$0xff]
        %v1026 = vld [vmem:[%s247 + $0x16c8] sm:$0xff]
        %v1027 = vld [vmem:[%s247 + $0x16d0] sm:$0xff]
        %v1028 = vld [vmem:[%s247 + $0x16d8] sm:$0xff]
        %v1029 = vld [vmem:[%s247 + $0x16e0] sm:$0xff]
        %v1030 = vld [vmem:[%s247 + $0x16e8] sm:$0xff]
        %v1031 = vld [vmem:[%s247 + $0x16f0] sm:$0xff]
        %v1032 = vld [vmem:[%s247 + $0x16f8] sm:$0xff]
        %v1033 = vld [vmem:[%s247 + $0x1700] sm:$0xff]
        %v1034 = vld [vmem:[%s247 + $0x1708] sm:$0xff]
        %v1035 = vld [vmem:[%s247 + $0x1710] sm:$0xff]
        %v1036 = vld [vmem:[%s247 + $0x1718] sm:$0xff]
        %v1037 = vld [vmem:[%s247 + $0x1720] sm:$0xff]
        %v1038 = vld [vmem:[%s247 + $0x1728] sm:$0xff]
        %v1039 = vld [vmem:[%s247 + $0x1730] sm:$0xff]
        %v1040 = vld [vmem:[%s247 + $0x1738] sm:$0xff]
        %v1041 = vld [vmem:[%s247 + $0x1740] sm:$0xff]
        %v1042 = vld [vmem:[%s247 + $0x1748] sm:$0xff]
        %v1043 = vld [vmem:[%s247 + $0x1750] sm:$0xff]
        %v1044 = vld [vmem:[%s247 + $0x1758] sm:$0xff]
        %v1045 = vld [vmem:[%s247 + $0x1760] sm:$0xff]
        %v1046 = vld [vmem:[%s247 + $0x1768] sm:$0xff]
        %v1047 = vld [vmem:[%s247 + $0x1770] sm:$0xff]
        %v1048 = vld [vmem:[%s247 + $0x1778] sm:$0xff]
        %v1049 = vld [vmem:[%s247 + $0x1780] sm:$0xff]
        %v1050 = vld [vmem:[%s247 + $0x1788] sm:$0xff]
        %v1051 = vld [vmem:[%s247 + $0x1790] sm:$0xff]
        %v1052 = vld [vmem:[%s247 + $0x1798] sm:$0xff]
        %v1053 = vld [vmem:[%s247 + $0x17a0] sm:$0xff]
        %v1054 = vld [vmem:[%s247 + $0x17a8] sm:$0xff]
        %v1055 = vld [vmem:[%s247 + $0x17b0] sm:$0xff]
        %v1056 = vld [vmem:[%s247 + $0x17b8] sm:$0xff]
        %v1057 = vld [vmem:[%s247 + $0x17c0] sm:$0xff]
        %v1058 = vld [vmem:[%s247 + $0x17c8] sm:$0xff]
        %v1059 = vld [vmem:[%s247 + $0x17d0] sm:$0xff]
        %v1060 = vld [vmem:[%s247 + $0x17d8] sm:$0xff]
        %v1061 = vld [vmem:[%s247 + $0x17e0] sm:$0xff]
        %v1062 = vld [vmem:[%s247 + $0x17e8] sm:$0xff]
        %v1063 = vld [vmem:[%s247 + $0x17f0] sm:$0xff]
        %v1064 = vld [vmem:[%s247 + $0x17f8] sm:$0xff]
        %v1065 = vld [vmem:[%s247 + $0x1800] sm:$0xff]
        %v1066 = vld [vmem:[%s247 + $0x1808] sm:$0xff]
        %v1067 = vld [vmem:[%s247 + $0x1810] sm:$0xff]
        %v1068 = vld [vmem:[%s247 + $0x1818] sm:$0xff]
        %v1069 = vld [vmem:[%s247 + $0x1820] sm:$0xff]
        %v1070 = vld [vmem:[%s247 + $0x1828] sm:$0xff]
        %v1071 = vld [vmem:[%s247 + $0x1830] sm:$0xff]
        %v1072 = vld [vmem:[%s247 + $0x1838] sm:$0xff]
        %v1073 = vld [vmem:[%s247 + $0x1840] sm:$0xff]
        %v1074 = vld [vmem:[%s247 + $0x1848] sm:$0xff]
        %v1075 = vld [vmem:[%s247 + $0x1850] sm:$0xff]
        %v1076 = vld [vmem:[%s247 + $0x1858] sm:$0xff]
        %v1077 = vld [vmem:[%s247 + $0x1860] sm:$0xff]
        %v1078 = vld [vmem:[%s247 + $0x1868] sm:$0xff]
        %v1079 = vld [vmem:[%s247 + $0x1870] sm:$0xff]
        %v1080 = vld [vmem:[%s247 + $0x1878] sm:$0xff]
        %v1081 = vld [vmem:[%s247 + $0x1880] sm:$0xff]
        %v1082 = vld [vmem:[%s247 + $0x1888] sm:$0xff]
        %v1083 = vld [vmem:[%s247 + $0x1890] sm:$0xff]
        %v1084 = vld [vmem:[%s247 + $0x1898] sm:$0xff]
        %v1085 = vld [vmem:[%s247 + $0x18a0] sm:$0xff]
        %v1086 = vld [vmem:[%s247 + $0x18a8] sm:$0xff]
        %v1087 = vld [vmem:[%s247 + $0x18b0] sm:$0xff]
        %v1088 = vld [vmem:[%s247 + $0x18b8] sm:$0xff]
        %v1089 = vld [vmem:[%s247 + $0x18c0] sm:$0xff]
        %v1090 = vld [vmem:[%s247 + $0x18c8] sm:$0xff]
        %v1091 = vld [vmem:[%s247 + $0x18d0] sm:$0xff]
        %v1092 = vld [vmem:[%s247 + $0x18d8] sm:$0xff]
        %v1093 = vld [vmem:[%s247 + $0x18e0] sm:$0xff]
        %v1094 = vld [vmem:[%s247 + $0x18e8] sm:$0xff]
        %v1095 = vld [vmem:[%s247 + $0x18f0] sm:$0xff]
        %v1096 = vld [vmem:[%s247 + $0x18f8] sm:$0xff]
        %v1097 = vld [vmem:[%s247 + $0x1900] sm:$0xff]
        %v1098 = vld [vmem:[%s247 + $0x1908] sm:$0xff]
        %v1099 = vld [vmem:[%s247 + $0x1910] sm:$0xff]
        %v1100 = vld [vmem:[%s247 + $0x1918] sm:$0xff]
        %v1101 = vld [vmem:[%s247 + $0x1920] sm:$0xff]
        %v1102 = vld [vmem:[%s247 + $0x1928] sm:$0xff]
        %v1103 = vld [vmem:[%s247 + $0x1930] sm:$0xff]
        %v1104 = vld [vmem:[%s247 + $0x1938] sm:$0xff]
        %v1105 = vld [vmem:[%s247 + $0x1940] sm:$0xff]
        %v1106 = vld [vmem:[%s247 + $0x1948] sm:$0xff]
        %v1107 = vld [vmem:[%s247 + $0x1950] sm:$0xff]
        %v1108 = vld [vmem:[%s247 + $0x1958] sm:$0xff]
        %v1109 = vld [vmem:[%s247 + $0x1960] sm:$0xff]
        %v1110 = vld [vmem:[%s247 + $0x1968] sm:$0xff]
        %v1111 = vld [vmem:[%s247 + $0x1970] sm:$0xff]
        %v1112 = vld [vmem:[%s247 + $0x1978] sm:$0xff]
        %v1113 = vld [vmem:[%s247 + $0x1980] sm:$0xff]
        %v1114 = vld [vmem:[%s247 + $0x1988] sm:$0xff]
        %v1115 = vld [vmem:[%s247 + $0x1990] sm:$0xff]
        %v1116 = vld [vmem:[%s247 + $0x1998] sm:$0xff]
        %v1117 = vld [vmem:[%s247 + $0x19a0] sm:$0xff]
        %v1118 = vld [vmem:[%s247 + $0x19a8] sm:$0xff]
        %v1119 = vld [vmem:[%s247 + $0x19b0] sm:$0xff]
        %v1120 = vld [vmem:[%s247 + $0x19b8] sm:$0xff]
        %v1121 = vld [vmem:[%s247 + $0x19c0] sm:$0xff]
        %v1122 = vld [vmem:[%s247 + $0x19c8] sm:$0xff]
        %v1123 = vld [vmem:[%s247 + $0x19d0] sm:$0xff]
        %v1124 = vld [vmem:[%s247 + $0x19d8] sm:$0xff]
        %v1125 = vld [vmem:[%s247 + $0x19e0] sm:$0xff]
        %v1126 = vld [vmem:[%s247 + $0x19e8] sm:$0xff]
        %v1127 = vld [vmem:[%s247 + $0x19f0] sm:$0xff]
        %v1128 = vld [vmem:[%s247 + $0x19f8] sm:$0xff]
        %v1129 = vld [vmem:[%s247 + $0x1a00] sm:$0xff]
        %v1130 = vld [vmem:[%s247 + $0x1a08] sm:$0xff]
        %v1131 = vld [vmem:[%s247 + $0x1a10] sm:$0xff]
        %v1132 = vld [vmem:[%s247 + $0x1a18] sm:$0xff]
        %v1133 = vld [vmem:[%s247 + $0x1a20] sm:$0xff]
        %v1134 = vld [vmem:[%s247 + $0x1a28] sm:$0xff]
        %v1135 = vld [vmem:[%s247 + $0x1a30] sm:$0xff]
        %v1136 = vld [vmem:[%s247 + $0x1a38] sm:$0xff]
        %v1137 = vld [vmem:[%s247 + $0x1a40] sm:$0xff]
        %v1138 = vld [vmem:[%s247 + $0x1a48] sm:$0xff]
        %v1139 = vld [vmem:[%s247 + $0x1a50] sm:$0xff]
        %v1140 = vld [vmem:[%s247 + $0x1a58] sm:$0xff]
        %v1141 = vld [vmem:[%s247 + $0x1a60] sm:$0xff]
        %v1142 = vld [vmem:[%s247 + $0x1a68] sm:$0xff]
        %v1143 = vld [vmem:[%s247 + $0x1a70] sm:$0xff]
        %v1144 = vld [vmem:[%s247 + $0x1a78] sm:$0xff]
        %v1145 = vld [vmem:[%s247 + $0x1a80] sm:$0xff]
        %v1146 = vld [vmem:[%s247 + $0x1a88] sm:$0xff]
        %v1147 = vld [vmem:[%s247 + $0x1a90] sm:$0xff]
        %v1148 = vld [vmem:[%s247 + $0x1a98] sm:$0xff]
        %v1149 = vld [vmem:[%s247 + $0x1aa0] sm:$0xff]
        %v1150 = vld [vmem:[%s247 + $0x1aa8] sm:$0xff]
        %v1151 = vld [vmem:[%s247 + $0x1ab0] sm:$0xff]
        %v1152 = vld [vmem:[%s247 + $0x1ab8] sm:$0xff]
        %v1153 = vld [vmem:[%s247 + $0x1ac0] sm:$0xff]
        %v1154 = vld [vmem:[%s247 + $0x1ac8] sm:$0xff]
        %v1155 = vld [vmem:[%s247 + $0x1ad0] sm:$0xff]
        %v1156 = vld [vmem:[%s247 + $0x1ad8] sm:$0xff]
        %v1157 = vld [vmem:[%s247 + $0x1ae0] sm:$0xff]
        %v1158 = vld [vmem:[%s247 + $0x1ae8] sm:$0xff]
        %v1159 = vld [vmem:[%s247 + $0x1af0] sm:$0xff]
        %v1160 = vld [vmem:[%s247 + $0x1af8] sm:$0xff]
        %v1161 = vld [vmem:[%s247 + $0x1b00] sm:$0xff]
        %v1162 = vld [vmem:[%s247 + $0x1b08] sm:$0xff]
        %v1163 = vld [vmem:[%s247 + $0x1b10] sm:$0xff]
        %v1164 = vld [vmem:[%s247 + $0x1b18] sm:$0xff]
        %v1165 = vld [vmem:[%s247 + $0x1b20] sm:$0xff]
        %v1166 = vld [vmem:[%s247 + $0x1b28] sm:$0xff]
        %v1167 = vld [vmem:[%s247 + $0x1b30] sm:$0xff]
        %v1168 = vld [vmem:[%s247 + $0x1b38] sm:$0xff]
        %v1169 = vld [vmem:[%s247 + $0x1b40] sm:$0xff]
        %v1170 = vld [vmem:[%s247 + $0x1b48] sm:$0xff]
        %v1171 = vld [vmem:[%s247 + $0x1b50] sm:$0xff]
        %v1172 = vld [vmem:[%s247 + $0x1b58] sm:$0xff]
        %v1173 = vld [vmem:[%s247 + $0x1b60] sm:$0xff]
        %v1174 = vld [vmem:[%s247 + $0x1b68] sm:$0xff]
        %v1175 = vld [vmem:[%s247 + $0x1b70] sm:$0xff]
        %v1176 = vld [vmem:[%s247 + $0x1b78] sm:$0xff]
        %v1177 = vld [vmem:[%s247 + $0x1b80] sm:$0xff]
        %v1178 = vld [vmem:[%s247 + $0x1b88] sm:$0xff]
        %v1179 = vld [vmem:[%s247 + $0x1b90] sm:$0xff]
        %v1180 = vld [vmem:[%s247 + $0x1b98] sm:$0xff]
        %v1181 = vld [vmem:[%s247 + $0x1ba0] sm:$0xff]
        %v1182 = vld [vmem:[%s247 + $0x1ba8] sm:$0xff]
        %v1183 = vld [vmem:[%s247 + $0x1bb0] sm:$0xff]
        %v1184 = vld [vmem:[%s247 + $0x1bb8] sm:$0xff]
        %v1185 = vld [vmem:[%s247 + $0x1bc0] sm:$0xff]
        %v1186 = vld [vmem:[%s247 + $0x1bc8] sm:$0xff]
        %v1187 = vld [vmem:[%s247 + $0x1bd0] sm:$0xff]
        %v1188 = vld [vmem:[%s247 + $0x1bd8] sm:$0xff]
        %v1189 = vld [vmem:[%s247 + $0x1be0] sm:$0xff]
        %v1190 = vld [vmem:[%s247 + $0x1be8] sm:$0xff]
        %v1191 = vld [vmem:[%s247 + $0x1bf0] sm:$0xff]
        %v1192 = vld [vmem:[%s247 + $0x1bf8] sm:$0xff]
        %v1193 = vld [vmem:[%s247 + $0x1c00] sm:$0xff]
        %v1194 = vld [vmem:[%s247 + $0x1c08] sm:$0xff]
        %v1195 = vld [vmem:[%s247 + $0x1c10] sm:$0xff]
        %v1196 = vld [vmem:[%s247 + $0x1c18] sm:$0xff]
        %v1197 = vld [vmem:[%s247 + $0x1c20] sm:$0xff]
        %v1198 = vld [vmem:[%s247 + $0x1c28] sm:$0xff]
        %v1199 = vld [vmem:[%s247 + $0x1c30] sm:$0xff]
        %v1200 = vld [vmem:[%s247 + $0x1c38] sm:$0xff]
        %v1201 = vld [vmem:[%s247 + $0x1c40] sm:$0xff]
        %v1202 = vld [vmem:[%s247 + $0x1c48] sm:$0xff]
        %v1203 = vld [vmem:[%s247 + $0x1c50] sm:$0xff]
        %v1204 = vld [vmem:[%s247 + $0x1c58] sm:$0xff]
        %v1205 = vld [vmem:[%s247 + $0x1c60] sm:$0xff]
        %v1206 = vld [vmem:[%s247 + $0x1c68] sm:$0xff]
        %v1207 = vld [vmem:[%s247 + $0x1c70] sm:$0xff]
        %v1208 = vld [vmem:[%s247 + $0x1c78] sm:$0xff]
        %v1209 = vld [vmem:[%s247 + $0x1c80] sm:$0xff]
        %v1210 = vld [vmem:[%s247 + $0x1c88] sm:$0xff]
        %v1211 = vld [vmem:[%s247 + $0x1c90] sm:$0xff]
        %v1212 = vld [vmem:[%s247 + $0x1c98] sm:$0xff]
        %v1213 = vld [vmem:[%s247 + $0x1ca0] sm:$0xff]
        %v1214 = vld [vmem:[%s247 + $0x1ca8] sm:$0xff]
        %v1215 = vld [vmem:[%s247 + $0x1cb0] sm:$0xff]
        %v1216 = vld [vmem:[%s247 + $0x1cb8] sm:$0xff]
        %v1217 = vld [vmem:[%s247 + $0x1cc0] sm:$0xff]
        %v1218 = vld [vmem:[%s247 + $0x1cc8] sm:$0xff]
        %v1219 = vld [vmem:[%s247 + $0x1cd0] sm:$0xff]
        %v1220 = vld [vmem:[%s247 + $0x1cd8] sm:$0xff]
        %v1221 = vld [vmem:[%s247 + $0x1ce0] sm:$0xff]
        %v1222 = vld [vmem:[%s247 + $0x1ce8] sm:$0xff]
        %v1223 = vld [vmem:[%s247 + $0x1cf0] sm:$0xff]
        %v1224 = vld [vmem:[%s247 + $0x1cf8] sm:$0xff]
        %v1225 = vld [vmem:[%s247 + $0x1d00] sm:$0xff]
        %v1226 = vld [vmem:[%s247 + $0x1d08] sm:$0xff]
        %v1227 = vld [vmem:[%s247 + $0x1d10] sm:$0xff]
        %v1228 = vld [vmem:[%s247 + $0x1d18] sm:$0xff]
        %v1229 = vld [vmem:[%s247 + $0x1d20] sm:$0xff]
        %v1230 = vld [vmem:[%s247 + $0x1d28] sm:$0xff]
        %v1231 = vld [vmem:[%s247 + $0x1d30] sm:$0xff]
        %v1232 = vld [vmem:[%s247 + $0x1d38] sm:$0xff]
        %v1233 = vld [vmem:[%s247 + $0x1d40] sm:$0xff]
        %v1234 = vld [vmem:[%s247 + $0x1d48] sm:$0xff]
        %v1235 = vld [vmem:[%s247 + $0x1d50] sm:$0xff]
        %v1236 = vld [vmem:[%s247 + $0x1d58] sm:$0xff]
        %v1237 = vld [vmem:[%s247 + $0x1d60] sm:$0xff]
        %v1238 = vld [vmem:[%s247 + $0x1d68] sm:$0xff]
        %v1239 = vld [vmem:[%s247 + $0x1d70] sm:$0xff]
        %v1240 = vld [vmem:[%s247 + $0x1d78] sm:$0xff]
        %v1241 = vld [vmem:[%s247 + $0x1d80] sm:$0xff]
        %v1242 = vld [vmem:[%s247 + $0x1d88] sm:$0xff]
        %v1243 = vld [vmem:[%s247 + $0x1d90] sm:$0xff]
        %v1244 = vld [vmem:[%s247 + $0x1d98] sm:$0xff]
        %v1245 = vld [vmem:[%s247 + $0x1da0] sm:$0xff]
        %v1246 = vld [vmem:[%s247 + $0x1da8] sm:$0xff]
        %v1247 = vld [vmem:[%s247 + $0x1db0] sm:$0xff]
        %v1248 = vld [vmem:[%s247 + $0x1db8] sm:$0xff]
        %v1249 = vld [vmem:[%s247 + $0x1dc0] sm:$0xff]
        %v1250 = vld [vmem:[%s247 + $0x1dc8] sm:$0xff]
        %v1251 = vld [vmem:[%s247 + $0x1dd0] sm:$0xff]
        %v1252 = vld [vmem:[%s247 + $0x1dd8] sm:$0xff]
        %v1253 = vld [vmem:[%s247 + $0x1de0] sm:$0xff]
        %v1254 = vld [vmem:[%s247 + $0x1de8] sm:$0xff]
        %v1255 = vld [vmem:[%s247 + $0x1df0] sm:$0xff]
        %v1256 = vld [vmem:[%s247 + $0x1df8] sm:$0xff]
        %v1257 = vld [vmem:[%s247 + $0x1e00] sm:$0xff]
        %v1258 = vld [vmem:[%s247 + $0x1e08] sm:$0xff]
        %v1259 = vld [vmem:[%s247 + $0x1e10] sm:$0xff]
        %v1260 = vld [vmem:[%s247 + $0x1e18] sm:$0xff]
        %v1261 = vld [vmem:[%s247 + $0x1e20] sm:$0xff]
        %v1262 = vld [vmem:[%s247 + $0x1e28] sm:$0xff]
        %v1263 = vld [vmem:[%s247 + $0x1e30] sm:$0xff]
        %v1264 = vld [vmem:[%s247 + $0x1e38] sm:$0xff]
        %v1265 = vld [vmem:[%s247 + $0x1e40] sm:$0xff]
        %v1266 = vld [vmem:[%s247 + $0x1e48] sm:$0xff]
        %v1267 = vld [vmem:[%s247 + $0x1e50] sm:$0xff]
        %v1268 = vld [vmem:[%s247 + $0x1e58] sm:$0xff]
        %v1269 = vld [vmem:[%s247 + $0x1e60] sm:$0xff]
        %v1270 = vld [vmem:[%s247 + $0x1e68] sm:$0xff]
        %v1271 = vld [vmem:[%s247 + $0x1e70] sm:$0xff]
        %v1272 = vld [vmem:[%s247 + $0x1e78] sm:$0xff]
        %v1273 = vld [vmem:[%s247 + $0x1e80] sm:$0xff]
        %v1274 = vld [vmem:[%s247 + $0x1e88] sm:$0xff]
        %v1275 = vld [vmem:[%s247 + $0x1e90] sm:$0xff]
        %v1276 = vld [vmem:[%s247 + $0x1e98] sm:$0xff]
        %v1277 = vld [vmem:[%s247 + $0x1ea0] sm:$0xff]
        %v1278 = vld [vmem:[%s247 + $0x1ea8] sm:$0xff]
        %v1279 = vld [vmem:[%s247 + $0x1eb0] sm:$0xff]
        %v1280 = vld [vmem:[%s247 + $0x1eb8] sm:$0xff]
        %v1281 = vld [vmem:[%s247 + $0x1ec0] sm:$0xff]
        %v1282 = vld [vmem:[%s247 + $0x1ec8] sm:$0xff]
        %v1283 = vld [vmem:[%s247 + $0x1ed0] sm:$0xff]
        %v1284 = vld [vmem:[%s247 + $0x1ed8] sm:$0xff]
        %v1285 = vld [vmem:[%s247 + $0x1ee0] sm:$0xff]
        %v1286 = vld [vmem:[%s247 + $0x1ee8] sm:$0xff]
        %v1287 = vld [vmem:[%s247 + $0x1ef0] sm:$0xff]
        %v1288 = vld [vmem:[%s247 + $0x1ef8] sm:$0xff]
        %v1289 = vld [vmem:[%s247 + $0x1f00] sm:$0xff]
        %v1290 = vld [vmem:[%s247 + $0x1f08] sm:$0xff]
        %v1291 = vld [vmem:[%s247 + $0x1f10] sm:$0xff]
        %v1292 = vld [vmem:[%s247 + $0x1f18] sm:$0xff]
        %v1293 = vld [vmem:[%s247 + $0x1f20] sm:$0xff]
        %v1294 = vld [vmem:[%s247 + $0x1f28] sm:$0xff]
        %v1295 = vld [vmem:[%s247 + $0x1f30] sm:$0xff]
        %v1296 = vld [vmem:[%s247 + $0x1f38] sm:$0xff]
        %v1297 = vld [vmem:[%s247 + $0x1f40] sm:$0xff]
        %v1298 = vld [vmem:[%s247 + $0x1f48] sm:$0xff]
        %v1299 = vld [vmem:[%s247 + $0x1f50] sm:$0xff]
        %v1300 = vld [vmem:[%s247 + $0x1f58] sm:$0xff]
        %v1301 = vld [vmem:[%s247 + $0x1f60] sm:$0xff]
        %v1302 = vld [vmem:[%s247 + $0x1f68] sm:$0xff]
        %v1303 = vld [vmem:[%s247 + $0x1f70] sm:$0xff]
        %v1304 = vld [vmem:[%s247 + $0x1f78] sm:$0xff]
        %v1305 = vld [vmem:[%s247 + $0x1f80] sm:$0xff]
        %v1306 = vld [vmem:[%s247 + $0x1f88] sm:$0xff]
        %v1307 = vld [vmem:[%s247 + $0x1f90] sm:$0xff]
        %v1308 = vld [vmem:[%s247 + $0x1f98] sm:$0xff]
        %v1309 = vld [vmem:[%s247 + $0x1fa0] sm:$0xff]
        %v1310 = vld [vmem:[%s247 + $0x1fa8] sm:$0xff]
        %v1311 = vld [vmem:[%s247 + $0x1fb0] sm:$0xff]
        %v1312 = vld [vmem:[%s247 + $0x1fb8] sm:$0xff]
        %v1313 = vld [vmem:[%s247 + $0x1fc0] sm:$0xff]
        %v1314 = vld [vmem:[%s247 + $0x1fc8] sm:$0xff]
        %v1315 = vld [vmem:[%s247 + $0x1fd0] sm:$0xff]
        %v1316 = vld [vmem:[%s247 + $0x1fd8] sm:$0xff]
        %v1317 = vld [vmem:[%s247 + $0x1fe0] sm:$0xff]
        %v1318 = vld [vmem:[%s247 + $0x1fe8] sm:$0xff]
        %v1319 = vld [vmem:[%s247 + $0x1ff0] sm:$0xff]
        %v1320 = vld [vmem:[%s247 + $0x1ff8] sm:$0xff]
        %v1321 = vld [vmem:[%s247 + $0x2000] sm:$0xff]
        %v1322 = vld [vmem:[%s247 + $0x2008] sm:$0xff]
        %v1323 = vld [vmem:[%s247 + $0x2010] sm:$0xff]
        %v1324 = vld [vmem:[%s247 + $0x2018] sm:$0xff]
        %v1325 = vld [vmem:[%s247 + $0x2020] sm:$0xff]
        %v1326 = vld [vmem:[%s247 + $0x2028] sm:$0xff]
        %v1327 = vld [vmem:[%s247 + $0x2030] sm:$0xff]
        %v1328 = vld [vmem:[%s247 + $0x2038] sm:$0xff]
        %v1329 = vld [vmem:[%s247 + $0x2040] sm:$0xff]
        %v1330 = vld [vmem:[%s247 + $0x2048] sm:$0xff]
        %v1331 = vld [vmem:[%s247 + $0x2050] sm:$0xff]
        %v1332 = vld [vmem:[%s247 + $0x2058] sm:$0xff]
        %v1333 = vld [vmem:[%s247 + $0x2060] sm:$0xff]
        %v1334 = vld [vmem:[%s247 + $0x2068] sm:$0xff]
        %v1335 = vld [vmem:[%s247 + $0x2070] sm:$0xff]
        %v1336 = vld [vmem:[%s247 + $0x2078] sm:$0xff]
        %v1337 = vld [vmem:[%s247 + $0x2080] sm:$0xff]
        %v1338 = vld [vmem:[%s247 + $0x2088] sm:$0xff]
        %v1339 = vld [vmem:[%s247 + $0x2090] sm:$0xff]
        %v1340 = vld [vmem:[%s247 + $0x2098] sm:$0xff]
        %v1341 = vld [vmem:[%s247 + $0x20a0] sm:$0xff]
        %v1342 = vld [vmem:[%s247 + $0x20a8] sm:$0xff]
        %v1343 = vld [vmem:[%s247 + $0x20b0] sm:$0xff]
        %v1344 = vld [vmem:[%s247 + $0x20b8] sm:$0xff]
        %v1345 = vld [vmem:[%s247 + $0x20c0] sm:$0xff]
        %v1346 = vld [vmem:[%s247 + $0x20c8] sm:$0xff]
        %v1347 = vld [vmem:[%s247 + $0x20d0] sm:$0xff]
        %v1348 = vld [vmem:[%s247 + $0x20d8] sm:$0xff]
        %v1349 = vld [vmem:[%s247 + $0x20e0] sm:$0xff]
        %v1350 = vld [vmem:[%s247 + $0x20e8] sm:$0xff]
        %v1351 = vld [vmem:[%s247 + $0x20f0] sm:$0xff]
        %v1352 = vld [vmem:[%s247 + $0x20f8] sm:$0xff]
        %v1353 = vld [vmem:[%s247 + $0x2100] sm:$0xff]
        %v1354 = vld [vmem:[%s247 + $0x2108] sm:$0xff]
        %v1355 = vld [vmem:[%s247 + $0x2110] sm:$0xff]
        %v1356 = vld [vmem:[%s247 + $0x2118] sm:$0xff]
        %v1357 = vld [vmem:[%s247 + $0x2120] sm:$0xff]
        %v1358 = vld [vmem:[%s247 + $0x2128] sm:$0xff]
        %v1359 = vld [vmem:[%s247 + $0x2130] sm:$0xff]
        %v1360 = vld [vmem:[%s247 + $0x2138] sm:$0xff]
        %v1361 = vld [vmem:[%s247 + $0x2140] sm:$0xff]
        %v1362 = vld [vmem:[%s247 + $0x2148] sm:$0xff]
        %v1363 = vld [vmem:[%s247 + $0x2150] sm:$0xff]
        %v1364 = vld [vmem:[%s247 + $0x2158] sm:$0xff]
        %v1365 = vld [vmem:[%s247 + $0x2160] sm:$0xff]
        %v1366 = vld [vmem:[%s247 + $0x2168] sm:$0xff]
        %v1367 = vld [vmem:[%s247 + $0x2170] sm:$0xff]
        %v1368 = vld [vmem:[%s247 + $0x2178] sm:$0xff]
        %v1369 = vld [vmem:[%s247 + $0x2180] sm:$0xff]
        %v1370 = vld [vmem:[%s247 + $0x2188] sm:$0xff]
        %v1371 = vld [vmem:[%s247 + $0x2190] sm:$0xff]
        %v1372 = vld [vmem:[%s247 + $0x2198] sm:$0xff]
        %v1373 = vld [vmem:[%s247 + $0x21a0] sm:$0xff]
        %v1374 = vld [vmem:[%s247 + $0x21a8] sm:$0xff]
        %v1375 = vld [vmem:[%s247 + $0x21b0] sm:$0xff]
        %v1376 = vld [vmem:[%s247 + $0x21b8] sm:$0xff]
        %v1377 = vld [vmem:[%s247 + $0x21c0] sm:$0xff]
        %v1378 = vld [vmem:[%s247 + $0x21c8] sm:$0xff]
        %v1379 = vld [vmem:[%s247 + $0x21d0] sm:$0xff]
        %v1380 = vld [vmem:[%s247 + $0x21d8] sm:$0xff]
        %v1381 = vld [vmem:[%s247 + $0x21e0] sm:$0xff]
        %v1382 = vld [vmem:[%s247 + $0x21e8] sm:$0xff]
        %v1383 = vld [vmem:[%s247 + $0x21f0] sm:$0xff]
        %v1384 = vld [vmem:[%s247 + $0x21f8] sm:$0xff]
        %v1385 = vld [vmem:[%s247 + $0x2200] sm:$0xff]
        %v1386 = vld [vmem:[%s247 + $0x2208] sm:$0xff]
        %v1387 = vld [vmem:[%s247 + $0x2210] sm:$0xff]
        %v1388 = vld [vmem:[%s247 + $0x2218] sm:$0xff]
        %v1389 = vld [vmem:[%s247 + $0x2220] sm:$0xff]
        %v1390 = vld [vmem:[%s247 + $0x2228] sm:$0xff]
        %v1391 = vld [vmem:[%s247 + $0x2230] sm:$0xff]
        %v1392 = vld [vmem:[%s247 + $0x2238] sm:$0xff]
        %v1393 = vld [vmem:[%s247 + $0x2240] sm:$0xff]
        %v1394 = vld [vmem:[%s247 + $0x2248] sm:$0xff]
        %v1395 = vld [vmem:[%s247 + $0x2250] sm:$0xff]
        %v1396 = vld [vmem:[%s247 + $0x2258] sm:$0xff]
        %v1397 = vld [vmem:[%s247 + $0x2260] sm:$0xff]
        %v1398 = vld [vmem:[%s247 + $0x2268] sm:$0xff]
        %v1399 = vld [vmem:[%s247 + $0x2270] sm:$0xff]
        %v1400 = vld [vmem:[%s247 + $0x2278] sm:$0xff]
        %v1401 = vld [vmem:[%s247 + $0x2280] sm:$0xff]
        %v1402 = vld [vmem:[%s247 + $0x2288] sm:$0xff]
        %v1403 = vld [vmem:[%s247 + $0x2290] sm:$0xff]
        %v1404 = vld [vmem:[%s247 + $0x2298] sm:$0xff]
        %v1405 = vld [vmem:[%s247 + $0x22a0] sm:$0xff]
        %v1406 = vld [vmem:[%s247 + $0x22a8] sm:$0xff]
        %v1407 = vld [vmem:[%s247 + $0x22b0] sm:$0xff]
        %v1408 = vld [vmem:[%s247 + $0x22b8] sm:$0xff]
        %v1409 = vld [vmem:[%s247 + $0x22c0] sm:$0xff]
        %v1410 = vld [vmem:[%s247 + $0x22c8] sm:$0xff]
        %v1411 = vld [vmem:[%s247 + $0x22d0] sm:$0xff]
        %v1412 = vld [vmem:[%s247 + $0x22d8] sm:$0xff]
        %v1413 = vld [vmem:[%s247 + $0x22e0] sm:$0xff]
        %v1414 = vld [vmem:[%s247 + $0x22e8] sm:$0xff]
        %v1415 = vld [vmem:[%s247 + $0x22f0] sm:$0xff]
        %v1416 = vld [vmem:[%s247 + $0x22f8] sm:$0xff]
        %v1417 = vld [vmem:[%s247 + $0x2300] sm:$0xff]
        %v1418 = vld [vmem:[%s247 + $0x2308] sm:$0xff]
        %v1419 = vld [vmem:[%s247 + $0x2310] sm:$0xff]
        %v1420 = vld [vmem:[%s247 + $0x2318] sm:$0xff]
        %v1421 = vld [vmem:[%s247 + $0x2320] sm:$0xff]
        %v1422 = vld [vmem:[%s247 + $0x2328] sm:$0xff]
        %v1423 = vld [vmem:[%s247 + $0x2330] sm:$0xff]
        %v1424 = vld [vmem:[%s247 + $0x2338] sm:$0xff]
        %v1425 = vld [vmem:[%s247 + $0x2340] sm:$0xff]
        %v1426 = vld [vmem:[%s247 + $0x2348] sm:$0xff]
        %v1427 = vld [vmem:[%s247 + $0x2350] sm:$0xff]
        %v1428 = vld [vmem:[%s247 + $0x2358] sm:$0xff]
        %v1429 = vld [vmem:[%s247 + $0x2360] sm:$0xff]
        %v1430 = vld [vmem:[%s247 + $0x2368] sm:$0xff]
        %v1431 = vld [vmem:[%s247 + $0x2370] sm:$0xff]
        %v1432 = vld [vmem:[%s247 + $0x2378] sm:$0xff]
        %v1433 = vld [vmem:[%s247 + $0x2380] sm:$0xff]
        %v1434 = vld [vmem:[%s247 + $0x2388] sm:$0xff]
        %v1435 = vld [vmem:[%s247 + $0x2390] sm:$0xff]
        %v1436 = vld [vmem:[%s247 + $0x2398] sm:$0xff]
        %v1437 = vld [vmem:[%s247 + $0x23a0] sm:$0xff]
        %v1438 = vld [vmem:[%s247 + $0x23a8] sm:$0xff]
        %v1439 = vld [vmem:[%s247 + $0x23b0] sm:$0xff]
        %v1440 = vld [vmem:[%s247 + $0x23b8] sm:$0xff]
        %v1441 = vld [vmem:[%s247 + $0x23c0] sm:$0xff]
        %v1442 = vld [vmem:[%s247 + $0x23c8] sm:$0xff]
        %v1443 = vld [vmem:[%s247 + $0x23d0] sm:$0xff]
        %v1444 = vld [vmem:[%s247 + $0x23d8] sm:$0xff]
        %v1445 = vld [vmem:[%s247 + $0x23e0] sm:$0xff]
        %v1446 = vld [vmem:[%s247 + $0x23e8] sm:$0xff]
        %v1447 = vld [vmem:[%s247 + $0x23f0] sm:$0xff]
        %v1448 = vld [vmem:[%s247 + $0x23f8] sm:$0xff]
        %v1449 = vld [vmem:[%s247 + $0x2400] sm:$0xff]
        %v1450 = vld [vmem:[%s247 + $0x2408] sm:$0xff]
        %v1451 = vld [vmem:[%s247 + $0x2410] sm:$0xff]
        %v1452 = vld [vmem:[%s247 + $0x2418] sm:$0xff]
        %v1453 = vld [vmem:[%s247 + $0x2420] sm:$0xff]
        %v1454 = vld [vmem:[%s247 + $0x2428] sm:$0xff]
        %v1455 = vld [vmem:[%s247 + $0x2430] sm:$0xff]
        %v1456 = vld [vmem:[%s247 + $0x2438] sm:$0xff]
        %v1457 = vld [vmem:[%s247 + $0x2440] sm:$0xff]
        %v1458 = vld [vmem:[%s247 + $0x2448] sm:$0xff]
        %v1459 = vld [vmem:[%s247 + $0x2450] sm:$0xff]
        %v1460 = vld [vmem:[%s247 + $0x2458] sm:$0xff]
        %v1461 = vld [vmem:[%s247 + $0x2460] sm:$0xff]
        %v1462 = vld [vmem:[%s247 + $0x2468] sm:$0xff]
        %v1463 = vld [vmem:[%s247 + $0x2470] sm:$0xff]
        %v1464 = vld [vmem:[%s247 + $0x2478] sm:$0xff]
        %v1465 = vld [vmem:[%s247 + $0x2480] sm:$0xff]
        %v1466 = vld [vmem:[%s247 + $0x2488] sm:$0xff]
        %v1467 = vld [vmem:[%s247 + $0x2490] sm:$0xff]
        %v1468 = vld [vmem:[%s247 + $0x2498] sm:$0xff]
        %v1469 = vld [vmem:[%s247 + $0x24a0] sm:$0xff]
        %v1470 = vld [vmem:[%s247 + $0x24a8] sm:$0xff]
        %v1471 = vld [vmem:[%s247 + $0x24b0] sm:$0xff]
        %v1472 = vld [vmem:[%s247 + $0x24b8] sm:$0xff]
        %v1473 = vld [vmem:[%s247 + $0x24c0] sm:$0xff]
        %v1474 = vld [vmem:[%s247 + $0x24c8] sm:$0xff]
        %v1475 = vld [vmem:[%s247 + $0x24d0] sm:$0xff]
        %v1476 = vld [vmem:[%s247 + $0x24d8] sm:$0xff]
        %v1477 = vld [vmem:[%s247 + $0x24e0] sm:$0xff]
        %v1478 = vld [vmem:[%s247 + $0x24e8] sm:$0xff]
        %v1479 = vld [vmem:[%s247 + $0x24f0] sm:$0xff]
        %v1480 = vld [vmem:[%s247 + $0x24f8] sm:$0xff]
        %v1481 = vld [vmem:[%s247 + $0x2500] sm:$0xff]
        %v1482 = vld [vmem:[%s247 + $0x2508] sm:$0xff]
        %v1483 = vld [vmem:[%s247 + $0x2510] sm:$0xff]
        %v1484 = vld [vmem:[%s247 + $0x2518] sm:$0xff]
        %v1485 = vld [vmem:[%s247 + $0x2520] sm:$0xff]
        %v1486 = vld [vmem:[%s247 + $0x2528] sm:$0xff]
        %v1487 = vld [vmem:[%s247 + $0x2530] sm:$0xff]
        %v1488 = vld [vmem:[%s247 + $0x2538] sm:$0xff]
        %v1489 = vld [vmem:[%s247 + $0x2540] sm:$0xff]
        %v1490 = vld [vmem:[%s247 + $0x2548] sm:$0xff]
        %v1491 = vld [vmem:[%s247 + $0x2550] sm:$0xff]
        %v1492 = vld [vmem:[%s247 + $0x2558] sm:$0xff]
        %v1493 = vld [vmem:[%s247 + $0x2560] sm:$0xff]
        %v1494 = vld [vmem:[%s247 + $0x2568] sm:$0xff]
        %v1495 = vld [vmem:[%s247 + $0x2570] sm:$0xff]
        %v1496 = vld [vmem:[%s247 + $0x2578] sm:$0xff]
        %v1497 = vld [vmem:[%s247 + $0x2580] sm:$0xff]
        %v1498 = vld [vmem:[%s247 + $0x2588] sm:$0xff]
        %v1499 = vld [vmem:[%s247 + $0x2590] sm:$0xff]
        %v1500 = vld [vmem:[%s247 + $0x2598] sm:$0xff]
        %v1501 = vld [vmem:[%s247 + $0x25a0] sm:$0xff]
        %v1502 = vld [vmem:[%s247 + $0x25a8] sm:$0xff]
        %v1503 = vld [vmem:[%s247 + $0x25b0] sm:$0xff]
        %v1504 = vld [vmem:[%s247 + $0x25b8] sm:$0xff]
        %v1505 = vld [vmem:[%s247 + $0x25c0] sm:$0xff]
        %v1506 = vld [vmem:[%s247 + $0x25c8] sm:$0xff]
        %v1507 = vld [vmem:[%s247 + $0x25d0] sm:$0xff]
        %v1508 = vld [vmem:[%s247 + $0x25d8] sm:$0xff]
        %v1509 = vld [vmem:[%s247 + $0x25e0] sm:$0xff]
        %v1510 = vld [vmem:[%s247 + $0x25e8] sm:$0xff]
        %v1511 = vld [vmem:[%s247 + $0x25f0] sm:$0xff]
        %v1512 = vld [vmem:[%s247 + $0x25f8] sm:$0xff]
        %v1513 = vld [vmem:[%s247 + $0x2600] sm:$0xff]
        %v1514 = vld [vmem:[%s247 + $0x2608] sm:$0xff]
        %v1515 = vld [vmem:[%s247 + $0x2610] sm:$0xff]
        %v1516 = vld [vmem:[%s247 + $0x2618] sm:$0xff]
        %v1517 = vld [vmem:[%s247 + $0x2620] sm:$0xff]
        %v1518 = vld [vmem:[%s247 + $0x2628] sm:$0xff]
        %v1519 = vld [vmem:[%s247 + $0x2630] sm:$0xff]
        %v1520 = vld [vmem:[%s247 + $0x2638] sm:$0xff]
        %v1521 = vld [vmem:[%s247 + $0x2640] sm:$0xff]
        %v1522 = vld [vmem:[%s247 + $0x2648] sm:$0xff]
        %v1523 = vld [vmem:[%s247 + $0x2650] sm:$0xff]
        %v1524 = vld [vmem:[%s247 + $0x2658] sm:$0xff]
        %v1525 = vld [vmem:[%s247 + $0x2660] sm:$0xff]
        %v1526 = vld [vmem:[%s247 + $0x2668] sm:$0xff]
        %v1527 = vld [vmem:[%s247 + $0x2670] sm:$0xff]
        %v1528 = vld [vmem:[%s247 + $0x2678] sm:$0xff]
        %v1529 = vld [vmem:[%s247 + $0x2680] sm:$0xff]
        %v1530 = vld [vmem:[%s247 + $0x2688] sm:$0xff]
        %v1531 = vld [vmem:[%s247 + $0x2690] sm:$0xff]
        %v1532 = vld [vmem:[%s247 + $0x2698] sm:$0xff]
        %v1533 = vld [vmem:[%s247 + $0x26a0] sm:$0xff]
        %v1534 = vld [vmem:[%s247 + $0x26a8] sm:$0xff]
        %v1535 = vld [vmem:[%s247 + $0x26b0] sm:$0xff]
        %v1536 = vld [vmem:[%s247 + $0x26b8] sm:$0xff]
        %v1537 = vld [vmem:[%s247 + $0x26c0] sm:$0xff]
        %v1538 = vld [vmem:[%s247 + $0x26c8] sm:$0xff]
        %v1539 = vld [vmem:[%s247 + $0x26d0] sm:$0xff]
        %v1540 = vld [vmem:[%s247 + $0x26d8] sm:$0xff]
        %v1541 = vld [vmem:[%s247 + $0x26e0] sm:$0xff]
        %v1542 = vld [vmem:[%s247 + $0x26e8] sm:$0xff]
        %v1543 = vld [vmem:[%s247 + $0x26f0] sm:$0xff]
        %v1544 = vld [vmem:[%s247 + $0x26f8] sm:$0xff]
        %v1545 = vld [vmem:[%s247 + $0x2700] sm:$0xff]
        %v1546 = vld [vmem:[%s247 + $0x2708] sm:$0xff]
        %v1547 = vld [vmem:[%s247 + $0x2710] sm:$0xff]
        %v1548 = vld [vmem:[%s247 + $0x2718] sm:$0xff]
        %v1549 = vld [vmem:[%s247 + $0x2720] sm:$0xff]
        %v1550 = vld [vmem:[%s247 + $0x2728] sm:$0xff]
        %v1551 = vld [vmem:[%s247 + $0x2730] sm:$0xff]
        %v1552 = vld [vmem:[%s247 + $0x2738] sm:$0xff]
        %v1553 = vld [vmem:[%s247 + $0x2740] sm:$0xff]
        %v1554 = vld [vmem:[%s247 + $0x2748] sm:$0xff]
        %v1555 = vld [vmem:[%s247 + $0x2750] sm:$0xff]
        %v1556 = vld [vmem:[%s247 + $0x2758] sm:$0xff]
        %v1557 = vld [vmem:[%s247 + $0x2760] sm:$0xff]
        %v1558 = vld [vmem:[%s247 + $0x2768] sm:$0xff]
        %v1559 = vld [vmem:[%s247 + $0x2770] sm:$0xff]
        %v1560 = vld [vmem:[%s247 + $0x2778] sm:$0xff]
        %v1561 = vld [vmem:[%s247 + $0x2780] sm:$0xff]
        %v1562 = vld [vmem:[%s247 + $0x2788] sm:$0xff]
        %v1563 = vld [vmem:[%s247 + $0x2790] sm:$0xff]
        %v1564 = vld [vmem:[%s247 + $0x2798] sm:$0xff]
        %v1565 = vld [vmem:[%s247 + $0x27a0] sm:$0xff]
        %v1566 = vld [vmem:[%s247 + $0x27a8] sm:$0xff]
        %v1567 = vld [vmem:[%s247 + $0x27b0] sm:$0xff]
        %v1568 = vld [vmem:[%s247 + $0x27b8] sm:$0xff]
        %v1569 = vld [vmem:[%s247 + $0x27c0] sm:$0xff]
        %v1570 = vld [vmem:[%s247 + $0x27c8] sm:$0xff]
        %v1571 = vld [vmem:[%s247 + $0x27d0] sm:$0xff]
        %v1572 = vld [vmem:[%s247 + $0x27d8] sm:$0xff]
        %v1573 = vld [vmem:[%s247 + $0x27e0] sm:$0xff]
        %v1574 = vld [vmem:[%s247 + $0x27e8] sm:$0xff]
        %v1575 = vld [vmem:[%s247 + $0x27f0] sm:$0xff]
        %v1576 = vld [vmem:[%s247 + $0x27f8] sm:$0xff]
        %v1577 = vld [vmem:[%s247 + $0x2800] sm:$0xff]
        %v1578 = vld [vmem:[%s247 + $0x2808] sm:$0xff]
        %v1579 = vld [vmem:[%s247 + $0x2810] sm:$0xff]
        %v1580 = vld [vmem:[%s247 + $0x2818] sm:$0xff]
        %v1581 = vld [vmem:[%s247 + $0x2820] sm:$0xff]
        %v1582 = vld [vmem:[%s247 + $0x2828] sm:$0xff]
        %v1583 = vld [vmem:[%s247 + $0x2830] sm:$0xff]
        %v1584 = vld [vmem:[%s247 + $0x2838] sm:$0xff]
        %v1585 = vld [vmem:[%s247 + $0x2840] sm:$0xff]
        %v1586 = vld [vmem:[%s247 + $0x2848] sm:$0xff]
        %v1587 = vld [vmem:[%s247 + $0x2850] sm:$0xff]
        %v1588 = vld [vmem:[%s247 + $0x2858] sm:$0xff]
        %v1589 = vld [vmem:[%s247 + $0x2860] sm:$0xff]
        %v1590 = vld [vmem:[%s247 + $0x2868] sm:$0xff]
        %v1591 = vld [vmem:[%s247 + $0x2870] sm:$0xff]
        %v1592 = vld [vmem:[%s247 + $0x2878] sm:$0xff]
        %v1593 = vld [vmem:[%s247 + $0x2880] sm:$0xff]
        %v1594 = vld [vmem:[%s247 + $0x2888] sm:$0xff]
        %v1595 = vld [vmem:[%s247 + $0x2890] sm:$0xff]
        %v1596 = vld [vmem:[%s247 + $0x2898] sm:$0xff]
        %v1597 = vld [vmem:[%s247 + $0x28a0] sm:$0xff]
        %v1598 = vld [vmem:[%s247 + $0x28a8] sm:$0xff]
        %v1599 = vld [vmem:[%s247 + $0x28b0] sm:$0xff]
        %v1600 = vld [vmem:[%s247 + $0x28b8] sm:$0xff]
        %v1601 = vld [vmem:[%s247 + $0x28c0] sm:$0xff]
        %v1602 = vld [vmem:[%s247 + $0x28c8] sm:$0xff]
        %v1603 = vld [vmem:[%s247 + $0x28d0] sm:$0xff]
        %v1604 = vld [vmem:[%s247 + $0x28d8] sm:$0xff]
        %v1605 = vld [vmem:[%s247 + $0x28e0] sm:$0xff]
        %v1606 = vld [vmem:[%s247 + $0x28e8] sm:$0xff]
        %v1607 = vld [vmem:[%s247 + $0x28f0] sm:$0xff]
        %v1608 = vld [vmem:[%s247 + $0x28f8] sm:$0xff]
        %v1609 = vld [vmem:[%s247 + $0x2900] sm:$0xff]
        %v1610 = vld [vmem:[%s247 + $0x2908] sm:$0xff]
        %v1611 = vld [vmem:[%s247 + $0x2910] sm:$0xff]
        %v1612 = vld [vmem:[%s247 + $0x2918] sm:$0xff]
        %v1613 = vld [vmem:[%s247 + $0x2920] sm:$0xff]
        %v1614 = vld [vmem:[%s247 + $0x2928] sm:$0xff]
        %v1615 = vld [vmem:[%s247 + $0x2930] sm:$0xff]
        %v1616 = vld [vmem:[%s247 + $0x2938] sm:$0xff]
        %v1617 = vld [vmem:[%s247 + $0x2940] sm:$0xff]
        %v1618 = vld [vmem:[%s247 + $0x2948] sm:$0xff]
        %v1619 = vld [vmem:[%s247 + $0x2950] sm:$0xff]
        %v1620 = vld [vmem:[%s247 + $0x2958] sm:$0xff]
        %v1621 = vld [vmem:[%s247 + $0x2960] sm:$0xff]
        %v1622 = vld [vmem:[%s247 + $0x2968] sm:$0xff]
        %v1623 = vld [vmem:[%s247 + $0x2970] sm:$0xff]
        %v1624 = vld [vmem:[%s247 + $0x2978] sm:$0xff]
        %v1625 = vld [vmem:[%s247 + $0x2980] sm:$0xff]
        %v1626 = vld [vmem:[%s247 + $0x2988] sm:$0xff]
        %v1627 = vld [vmem:[%s247 + $0x2990] sm:$0xff]
        %v1628 = vld [vmem:[%s247 + $0x2998] sm:$0xff]
        %v1629 = vld [vmem:[%s247 + $0x29a0] sm:$0xff]
        %v1630 = vld [vmem:[%s247 + $0x29a8] sm:$0xff]
        %v1631 = vld [vmem:[%s247 + $0x29b0] sm:$0xff]
        %v1632 = vld [vmem:[%s247 + $0x29b8] sm:$0xff]
        %v1633 = vld [vmem:[%s247 + $0x29c0] sm:$0xff]
        %v1634 = vld [vmem:[%s247 + $0x29c8] sm:$0xff]
        %v1635 = vld [vmem:[%s247 + $0x29d0] sm:$0xff]
        %v1636 = vld [vmem:[%s247 + $0x29d8] sm:$0xff]
        %v1637 = vld [vmem:[%s247 + $0x29e0] sm:$0xff]
        %v1638 = vld [vmem:[%s247 + $0x29e8] sm:$0xff]
        %v1639 = vld [vmem:[%s247 + $0x29f0] sm:$0xff]
        %v1640 = vld [vmem:[%s247 + $0x29f8] sm:$0xff]
        %v1641 = vld [vmem:[%s247 + $0x2a00] sm:$0xff]
        %v1642 = vld [vmem:[%s247 + $0x2a08] sm:$0xff]
        %v1643 = vld [vmem:[%s247 + $0x2a10] sm:$0xff]
        %v1644 = vld [vmem:[%s247 + $0x2a18] sm:$0xff]
        %v1645 = vld [vmem:[%s247 + $0x2a20] sm:$0xff]
        %v1646 = vld [vmem:[%s247 + $0x2a28] sm:$0xff]
        %v1647 = vld [vmem:[%s247 + $0x2a30] sm:$0xff]
        %v1648 = vld [vmem:[%s247 + $0x2a38] sm:$0xff]
        %v1649 = vld [vmem:[%s247 + $0x2a40] sm:$0xff]
        %v1650 = vld [vmem:[%s247 + $0x2a48] sm:$0xff]
        %v1651 = vld [vmem:[%s247 + $0x2a50] sm:$0xff]
        %v1652 = vld [vmem:[%s247 + $0x2a58] sm:$0xff]
        %v1653 = vld [vmem:[%s247 + $0x2a60] sm:$0xff]
        %v1654 = vld [vmem:[%s247 + $0x2a68] sm:$0xff]
        %v1655 = vld [vmem:[%s247 + $0x2a70] sm:$0xff]
        %v1656 = vld [vmem:[%s247 + $0x2a78] sm:$0xff]
        %v1657 = vld [vmem:[%s247 + $0x2a80] sm:$0xff]
        %v1658 = vld [vmem:[%s247 + $0x2a88] sm:$0xff]
        %v1659 = vld [vmem:[%s247 + $0x2a90] sm:$0xff]
        %v1660 = vld [vmem:[%s247 + $0x2a98] sm:$0xff]
        %v1661 = vld [vmem:[%s247 + $0x2aa0] sm:$0xff]
        %v1662 = vld [vmem:[%s247 + $0x2aa8] sm:$0xff]
        %v1663 = vld [vmem:[%s247 + $0x2ab0] sm:$0xff]
        %v1664 = vld [vmem:[%s247 + $0x2ab8] sm:$0xff]
        %v1665 = vld [vmem:[%s247 + $0x2ac0] sm:$0xff]
        %v1666 = vld [vmem:[%s247 + $0x2ac8] sm:$0xff]
        %v1667 = vld [vmem:[%s247 + $0x2ad0] sm:$0xff]
        %v1668 = vld [vmem:[%s247 + $0x2ad8] sm:$0xff]
        %v1669 = vld [vmem:[%s247 + $0x2ae0] sm:$0xff]
        %v1670 = vld [vmem:[%s247 + $0x2ae8] sm:$0xff]
        %v1671 = vld [vmem:[%s247 + $0x2af0] sm:$0xff]
        %v1672 = vld [vmem:[%s247 + $0x2af8] sm:$0xff]
        %v1673 = vld [vmem:[%s247 + $0x2b00] sm:$0xff]
        %v1674 = vld [vmem:[%s247 + $0x2b08] sm:$0xff]
        %v1675 = vld [vmem:[%s247 + $0x2b10] sm:$0xff]
        %v1676 = vld [vmem:[%s247 + $0x2b18] sm:$0xff]
        %v1677 = vld [vmem:[%s247 + $0x2b20] sm:$0xff]
        %v1678 = vld [vmem:[%s247 + $0x2b28] sm:$0xff]
        %v1679 = vld [vmem:[%s247 + $0x2b30] sm:$0xff]
        %v1680 = vld [vmem:[%s247 + $0x2b38] sm:$0xff]
        %v1681 = vld [vmem:[%s247 + $0x2b40] sm:$0xff]
        %v1682 = vld [vmem:[%s247 + $0x2b48] sm:$0xff]
        %v1683 = vld [vmem:[%s247 + $0x2b50] sm:$0xff]
        %v1684 = vld [vmem:[%s247 + $0x2b58] sm:$0xff]
        %v1685 = vld [vmem:[%s247 + $0x2b60] sm:$0xff]
        %v1686 = vld [vmem:[%s247 + $0x2b68] sm:$0xff]
        %v1687 = vld [vmem:[%s247 + $0x2b70] sm:$0xff]
        %v1688 = vld [vmem:[%s247 + $0x2b78] sm:$0xff]
        %v1689 = vld [vmem:[%s247 + $0x2b80] sm:$0xff]
        %v1690 = vld [vmem:[%s247 + $0x2b88] sm:$0xff]
        %v1691 = vld [vmem:[%s247 + $0x2b90] sm:$0xff]
        %v1692 = vld [vmem:[%s247 + $0x2b98] sm:$0xff]
        %v1693 = vld [vmem:[%s247 + $0x2ba0] sm:$0xff]
        %v1694 = vld [vmem:[%s247 + $0x2ba8] sm:$0xff]
        %v1695 = vld [vmem:[%s247 + $0x2bb0] sm:$0xff]
        %v1696 = vld [vmem:[%s247 + $0x2bb8] sm:$0xff]
        %v1697 = vld [vmem:[%s247 + $0x2bc0] sm:$0xff]
        %v1698 = vld [vmem:[%s247 + $0x2bc8] sm:$0xff]
        %v1699 = vld [vmem:[%s247 + $0x2bd0] sm:$0xff]
        %v1700 = vld [vmem:[%s247 + $0x2bd8] sm:$0xff]
        %v1701 = vld [vmem:[%s247 + $0x2be0] sm:$0xff]
        %v1702 = vld [vmem:[%s247 + $0x2be8] sm:$0xff]
        %v1703 = vld [vmem:[%s247 + $0x2bf0] sm:$0xff]
        %v1704 = vld [vmem:[%s247 + $0x2bf8] sm:$0xff]
        %v1705 = vld [vmem:[%s247 + $0x2c00] sm:$0xff]
        %v1706 = vld [vmem:[%s247 + $0x2c08] sm:$0xff]
        %v1707 = vld [vmem:[%s247 + $0x2c10] sm:$0xff]
        %v1708 = vld [vmem:[%s247 + $0x2c18] sm:$0xff]
        %v1709 = vld [vmem:[%s247 + $0x2c20] sm:$0xff]
        %v1710 = vld [vmem:[%s247 + $0x2c28] sm:$0xff]
        %v1711 = vld [vmem:[%s247 + $0x2c30] sm:$0xff]
        %v1712 = vld [vmem:[%s247 + $0x2c38] sm:$0xff]
        %v1713 = vld [vmem:[%s247 + $0x2c40] sm:$0xff]
        %v1714 = vld [vmem:[%s247 + $0x2c48] sm:$0xff]
        %v1715 = vld [vmem:[%s247 + $0x2c50] sm:$0xff]
        %v1716 = vld [vmem:[%s247 + $0x2c58] sm:$0xff]
        %v1717 = vld [vmem:[%s247 + $0x2c60] sm:$0xff]
        %v1718 = vld [vmem:[%s247 + $0x2c68] sm:$0xff]
        %v1719 = vld [vmem:[%s247 + $0x2c70] sm:$0xff]
        %v1720 = vld [vmem:[%s247 + $0x2c78] sm:$0xff]
        %v1721 = vld [vmem:[%s247 + $0x2c80] sm:$0xff]
        %v1722 = vld [vmem:[%s247 + $0x2c88] sm:$0xff]
        %v1723 = vld [vmem:[%s247 + $0x2c90] sm:$0xff]
        %v1724 = vld [vmem:[%s247 + $0x2c98] sm:$0xff]
        %v1725 = vld [vmem:[%s247 + $0x2ca0] sm:$0xff]
        %v1726 = vld [vmem:[%s247 + $0x2ca8] sm:$0xff]
        %v1727 = vld [vmem:[%s247 + $0x2cb0] sm:$0xff]
        %v1728 = vld [vmem:[%s247 + $0x2cb8] sm:$0xff]
        %v1729 = vld [vmem:[%s247 + $0x2cc0] sm:$0xff]
        %v1730 = vld [vmem:[%s247 + $0x2cc8] sm:$0xff]
        %v1731 = vld [vmem:[%s247 + $0x2cd0] sm:$0xff]
        %v1732 = vld [vmem:[%s247 + $0x2cd8] sm:$0xff]
        %v1733 = vld [vmem:[%s247 + $0x2ce0] sm:$0xff]
        %v1734 = vld [vmem:[%s247 + $0x2ce8] sm:$0xff]
        %v1735 = vld [vmem:[%s247 + $0x2cf0] sm:$0xff]
        %v1736 = vld [vmem:[%s247 + $0x2cf8] sm:$0xff]
        %v1737 = vld [vmem:[%s247 + $0x2d00] sm:$0xff]
        %v1738 = vld [vmem:[%s247 + $0x2d08] sm:$0xff]
        %v1739 = vld [vmem:[%s247 + $0x2d10] sm:$0xff]
        %v1740 = vld [vmem:[%s247 + $0x2d18] sm:$0xff]
        %v1741 = vld [vmem:[%s247 + $0x2d20] sm:$0xff]
        %v1742 = vld [vmem:[%s247 + $0x2d28] sm:$0xff]
        %v1743 = vld [vmem:[%s247 + $0x2d30] sm:$0xff]
        %v1744 = vld [vmem:[%s247 + $0x2d38] sm:$0xff]
        %v1745 = vld [vmem:[%s247 + $0x2d40] sm:$0xff]
        %v1746 = vld [vmem:[%s247 + $0x2d48] sm:$0xff]
        %v1747 = vld [vmem:[%s247 + $0x2d50] sm:$0xff]
        %v1748 = vld [vmem:[%s247 + $0x2d58] sm:$0xff]
        %v1749 = vld [vmem:[%s247 + $0x2d60] sm:$0xff]
        %v1750 = vld [vmem:[%s247 + $0x2d68] sm:$0xff]
        %v1751 = vld [vmem:[%s247 + $0x2d70] sm:$0xff]
        %v1752 = vld [vmem:[%s247 + $0x2d78] sm:$0xff]
        %v1753 = vld [vmem:[%s247 + $0x2d80] sm:$0xff]
        %v1754 = vld [vmem:[%s247 + $0x2d88] sm:$0xff]
        %v1755 = vld [vmem:[%s247 + $0x2d90] sm:$0xff]
        %v1756 = vld [vmem:[%s247 + $0x2d98] sm:$0xff]
        %v1757 = vld [vmem:[%s247 + $0x2da0] sm:$0xff]
        %v1758 = vld [vmem:[%s247 + $0x2da8] sm:$0xff]
        %v1759 = vld [vmem:[%s247 + $0x2db0] sm:$0xff]
        %v1760 = vld [vmem:[%s247 + $0x2db8] sm:$0xff]
        %v1761 = vld [vmem:[%s247 + $0x2dc0] sm:$0xff]
        %v1762 = vld [vmem:[%s247 + $0x2dc8] sm:$0xff]
        %v1763 = vld [vmem:[%s247 + $0x2dd0] sm:$0xff]
        %v1764 = vld [vmem:[%s247 + $0x2dd8] sm:$0xff]
        %v1765 = vld [vmem:[%s247 + $0x2de0] sm:$0xff]
        %v1766 = vld [vmem:[%s247 + $0x2de8] sm:$0xff]
        %v1767 = vld [vmem:[%s247 + $0x2df0] sm:$0xff]
        %v1768 = vld [vmem:[%s247 + $0x2df8] sm:$0xff]
        %v1769 = vld [vmem:[%s247 + $0x2e00] sm:$0xff]
        %v1770 = vld [vmem:[%s247 + $0x2e08] sm:$0xff]
        %v1771 = vld [vmem:[%s247 + $0x2e10] sm:$0xff]
        %v1772 = vld [vmem:[%s247 + $0x2e18] sm:$0xff]
        %v1773 = vld [vmem:[%s247 + $0x2e20] sm:$0xff]
        %v1774 = vld [vmem:[%s247 + $0x2e28] sm:$0xff]
        %v1775 = vld [vmem:[%s247 + $0x2e30] sm:$0xff]
        %v1776 = vld [vmem:[%s247 + $0x2e38] sm:$0xff]
        %v1777 = vld [vmem:[%s247 + $0x2e40] sm:$0xff]
        %v1778 = vld [vmem:[%s247 + $0x2e48] sm:$0xff]
        %v1779 = vld [vmem:[%s247 + $0x2e50] sm:$0xff]
        %v1780 = vld [vmem:[%s247 + $0x2e58] sm:$0xff]
        %v1781 = vld [vmem:[%s247 + $0x2e60] sm:$0xff]
        %v1782 = vld [vmem:[%s247 + $0x2e68] sm:$0xff]
        %v1783 = vld [vmem:[%s247 + $0x2e70] sm:$0xff]
        %v1784 = vld [vmem:[%s247 + $0x2e78] sm:$0xff]
        %v1785 = vld [vmem:[%s247 + $0x2e80] sm:$0xff]
        %v1786 = vld [vmem:[%s247 + $0x2e88] sm:$0xff]
        %v1787 = vld [vmem:[%s247 + $0x2e90] sm:$0xff]
        %v1788 = vld [vmem:[%s247 + $0x2e98] sm:$0xff]
        %v1789 = vld [vmem:[%s247 + $0x2ea0] sm:$0xff]
        %v1790 = vld [vmem:[%s247 + $0x2ea8] sm:$0xff]
        %v1791 = vld [vmem:[%s247 + $0x2eb0] sm:$0xff]
        %v1792 = vld [vmem:[%s247 + $0x2eb8] sm:$0xff]
        %v1793 = vld [vmem:[%s247 + $0x2ec0] sm:$0xff]
        %v1794 = vld [vmem:[%s247 + $0x2ec8] sm:$0xff]
        %v1795 = vld [vmem:[%s247 + $0x2ed0] sm:$0xff]
        %v1796 = vld [vmem:[%s247 + $0x2ed8] sm:$0xff]
        %v1797 = vld [vmem:[%s247 + $0x2ee0] sm:$0xff]
        %v1798 = vld [vmem:[%s247 + $0x2ee8] sm:$0xff]
        %v1799 = vld [vmem:[%s247 + $0x2ef0] sm:$0xff]
        %v1800 = vld [vmem:[%s247 + $0x2ef8] sm:$0xff]
        %v1801 = vld [vmem:[%s247 + $0x2f00] sm:$0xff]
        %v1802 = vld [vmem:[%s247 + $0x2f08] sm:$0xff]
        %v1803 = vld [vmem:[%s247 + $0x2f10] sm:$0xff]
        %v1804 = vld [vmem:[%s247 + $0x2f18] sm:$0xff]
        %v1805 = vld [vmem:[%s247 + $0x2f20] sm:$0xff]
        %v1806 = vld [vmem:[%s247 + $0x2f28] sm:$0xff]
        %v1807 = vld [vmem:[%s247 + $0x2f30] sm:$0xff]
        %v1808 = vld [vmem:[%s247 + $0x2f38] sm:$0xff]
        %v1809 = vld [vmem:[%s247 + $0x2f40] sm:$0xff]
        %v1810 = vld [vmem:[%s247 + $0x2f48] sm:$0xff]
        %v1811 = vld [vmem:[%s247 + $0x2f50] sm:$0xff]
        %v1812 = vld [vmem:[%s247 + $0x2f58] sm:$0xff]
        %v1813 = vld [vmem:[%s247 + $0x2f60] sm:$0xff]
        %v1814 = vld [vmem:[%s247 + $0x2f68] sm:$0xff]
        %v1815 = vld [vmem:[%s247 + $0x2f70] sm:$0xff]
        %v1816 = vld [vmem:[%s247 + $0x2f78] sm:$0xff]
        %v1817 = vld [vmem:[%s247 + $0x2f80] sm:$0xff]
        %v1818 = vld [vmem:[%s247 + $0x2f88] sm:$0xff]
        %v1819 = vld [vmem:[%s247 + $0x2f90] sm:$0xff]
        %v1820 = vld [vmem:[%s247 + $0x2f98] sm:$0xff]
        %v1821 = vld [vmem:[%s247 + $0x2fa0] sm:$0xff]
        %v1822 = vld [vmem:[%s247 + $0x2fa8] sm:$0xff]
        %v1823 = vld [vmem:[%s247 + $0x2fb0] sm:$0xff]
        %v1824 = vld [vmem:[%s247 + $0x2fb8] sm:$0xff]
        %v1825 = vld [vmem:[%s247 + $0x2fc0] sm:$0xff]
        %v1826 = vld [vmem:[%s247 + $0x2fc8] sm:$0xff]
        %v1827 = vld [vmem:[%s247 + $0x2fd0] sm:$0xff]
        %v1828 = vld [vmem:[%s247 + $0x2fd8] sm:$0xff]
        %v1829 = vld [vmem:[%s247 + $0x2fe0] sm:$0xff]
        %v1830 = vld [vmem:[%s247 + $0x2fe8] sm:$0xff]
        %v1831 = vld [vmem:[%s247 + $0x2ff0] sm:$0xff]
        %v1832 = vld [vmem:[%s247 + $0x2ff8] sm:$0xff]
        %v1833 = vld [vmem:[%s247 + $0x3000] sm:$0xff]
        %v1834 = vld [vmem:[%s247 + $0x3008] sm:$0xff]
        %v1835 = vld [vmem:[%s247 + $0x3010] sm:$0xff]
        %v1836 = vld [vmem:[%s247 + $0x3018] sm:$0xff]
        %v1837 = vld [vmem:[%s247 + $0x3020] sm:$0xff]
        %v1838 = vld [vmem:[%s247 + $0x3028] sm:$0xff]
        %v1839 = vld [vmem:[%s247 + $0x3030] sm:$0xff]
        %v1840 = vld [vmem:[%s247 + $0x3038] sm:$0xff]
        %v1841 = vld [vmem:[%s247 + $0x3040] sm:$0xff]
        %v1842 = vld [vmem:[%s247 + $0x3048] sm:$0xff]
        %v1843 = vld [vmem:[%s247 + $0x3050] sm:$0xff]
        %v1844 = vld [vmem:[%s247 + $0x3058] sm:$0xff]
        %v1845 = vld [vmem:[%s247 + $0x3060] sm:$0xff]
        %v1846 = vld [vmem:[%s247 + $0x3068] sm:$0xff]
        %v1847 = vld [vmem:[%s247 + $0x3070] sm:$0xff]
        %v1848 = vld [vmem:[%s247 + $0x3078] sm:$0xff]
        %v1849 = vld [vmem:[%s247 + $0x3080] sm:$0xff]
        %v1850 = vld [vmem:[%s247 + $0x3088] sm:$0xff]
        %v1851 = vld [vmem:[%s247 + $0x3090] sm:$0xff]
        %v1852 = vld [vmem:[%s247 + $0x3098] sm:$0xff]
        %v1853 = vld [vmem:[%s247 + $0x30a0] sm:$0xff]
        %v1854 = vld [vmem:[%s247 + $0x30a8] sm:$0xff]
        %v1855 = vld [vmem:[%s247 + $0x30b0] sm:$0xff]
        %v1856 = vld [vmem:[%s247 + $0x30b8] sm:$0xff]
        %v1857 = vld [vmem:[%s247 + $0x30c0] sm:$0xff]
        %v1858 = vld [vmem:[%s247 + $0x30c8] sm:$0xff]
        %v1859 = vld [vmem:[%s247 + $0x30d0] sm:$0xff]
        %v1860 = vld [vmem:[%s247 + $0x30d8] sm:$0xff]
        %v1861 = vld [vmem:[%s247 + $0x30e0] sm:$0xff]
        %v1862 = vld [vmem:[%s247 + $0x30e8] sm:$0xff]
        %v1863 = vld [vmem:[%s247 + $0x30f0] sm:$0xff]
        %v1864 = vld [vmem:[%s247 + $0x30f8] sm:$0xff]
        %v1865 = vld [vmem:[%s247 + $0x3100] sm:$0xff]
        %v1866 = vld [vmem:[%s247 + $0x3108] sm:$0xff]
        %v1867 = vld [vmem:[%s247 + $0x3110] sm:$0xff]
        %v1868 = vld [vmem:[%s247 + $0x3118] sm:$0xff]
        %v1869 = vld [vmem:[%s247 + $0x3120] sm:$0xff]
        %v1870 = vld [vmem:[%s247 + $0x3128] sm:$0xff]
        %v1871 = vld [vmem:[%s247 + $0x3130] sm:$0xff]
        %v1872 = vld [vmem:[%s247 + $0x3138] sm:$0xff]
        %v1873 = vld [vmem:[%s247 + $0x3140] sm:$0xff]
        %v1874 = vld [vmem:[%s247 + $0x3148] sm:$0xff]
        %v1875 = vld [vmem:[%s247 + $0x3150] sm:$0xff]
        %v1876 = vld [vmem:[%s247 + $0x3158] sm:$0xff]
        %v1877 = vld [vmem:[%s247 + $0x3160] sm:$0xff]
        %v1878 = vld [vmem:[%s247 + $0x3168] sm:$0xff]
        %v1879 = vld [vmem:[%s247 + $0x3170] sm:$0xff]
        %v1880 = vld [vmem:[%s247 + $0x3178] sm:$0xff]
        %v1881 = vld [vmem:[%s247 + $0x3180] sm:$0xff]
        %v1882 = vld [vmem:[%s247 + $0x3188] sm:$0xff]
        %v1883 = vld [vmem:[%s247 + $0x3190] sm:$0xff]
        %v1884 = vld [vmem:[%s247 + $0x3198] sm:$0xff]
        %v1885 = vld [vmem:[%s247 + $0x31a0] sm:$0xff]
        %v1886 = vld [vmem:[%s247 + $0x31a8] sm:$0xff]
        %v1887 = vld [vmem:[%s247 + $0x31b0] sm:$0xff]
        %v1888 = vld [vmem:[%s247 + $0x31b8] sm:$0xff]
        %v1889 = vld [vmem:[%s247 + $0x31c0] sm:$0xff]
        %v1890 = vld [vmem:[%s247 + $0x31c8] sm:$0xff]
        %v1891 = vld [vmem:[%s247 + $0x31d0] sm:$0xff]
        %v1892 = vld [vmem:[%s247 + $0x31d8] sm:$0xff]
        %v1893 = vld [vmem:[%s247 + $0x31e0] sm:$0xff]
        %v1894 = vld [vmem:[%s247 + $0x31e8] sm:$0xff]
        %v1895 = vld [vmem:[%s247 + $0x31f0] sm:$0xff]
        %v1896 = vld [vmem:[%s247 + $0x31f8] sm:$0xff]
        %v1897 = vld [vmem:[%s256] sm:$0xff]
        %v1899 = vlaneseq
        %v1900 = vshrl.u32 %v1899, 7
        %v1901 = vsub.s32 0, %v1900
        %v1902 = vrot.slane %v1897, %v1901
        %v1903 = vlaneseq
        %v1904 = vshrl.u32 %v1903, 7
        %v1905 = vsub.s32 1, %v1904
        %v1906 = vrot.slane %v1897, %v1905
        %v1907 = vlaneseq
        %v1908 = vshrl.u32 %v1907, 7
        %v1909 = vsub.s32 2, %v1908
        %v1910 = vrot.slane %v1897, %v1909
        %v1911 = vlaneseq
        %v1912 = vshrl.u32 %v1911, 7
        %v1913 = vsub.s32 3, %v1912
        %v1914 = vrot.slane %v1897, %v1913
        %v1915 = vlaneseq
        %v1916 = vshrl.u32 %v1915, 7
        %v1917 = vsub.s32 4, %v1916
        %v1918 = vrot.slane %v1897, %v1917
        %v1919 = vlaneseq
        %v1920 = vshrl.u32 %v1919, 7
        %v1921 = vsub.s32 5, %v1920
        %v1922 = vrot.slane %v1897, %v1921
        %v1923 = vlaneseq
        %v1924 = vshrl.u32 %v1923, 7
        %v1925 = vsub.s32 6, %v1924
        %v1926 = vrot.slane %v1897, %v1925
        %v1927 = vlaneseq
        %v1928 = vshrl.u32 %v1927, 7
        %v1929 = vsub.s32 7, %v1928
        %v1930 = vrot.slane %v1897, %v1929
        %v1943 = vcombine.high %v293, %v293
        %v1945 = vunpack.c.l.s4 1966171168
        %v1946 = vunpack.c.0.s8 %v1945
        %v1947 = vlaneseq
        %v1948 = vshrl.u32 %v1947, 7
        %v1949 = vsub.s32 %v1946, %v1948
        %v1950 = vrot.slane %v293, %v1949
        %v1952 = vunpack.c.l.s4 1966171168
        %v1953 = vunpack.c.0.s8 %v1952
        %v1954 = vlaneseq
        %v1955 = vshrl.u32 %v1954, 7
        %v1956 = vsub.s32 %v1953, %v1955
        %v1957 = vrot.slane %v1943, %v1956
        %v1958 = vcombine.high %v1950, %v1950
        %v1959 = vcombine.high %v1957, %v1957
        %v1961 = vunpack.c.l.s4 1966171168
        %v1962 = vunpack.c.0.s8 %v1961
        %v1963 = vlaneseq
        %v1964 = vshrl.u32 %v1963, 7
        %v1965 = vsub.s32 %v1962, %v1964
        %v1966 = vrot.slane %v1950, %v1965
        %v1968 = vunpack.c.l.s4 1966171168
        %v1969 = vunpack.c.0.s8 %v1968
        %v1970 = vlaneseq
        %v1971 = vshrl.u32 %v1970, 7
        %v1972 = vsub.s32 %v1969, %v1971
        %v1973 = vrot.slane %v1957, %v1972
        %v1975 = vunpack.c.l.s4 1966171168
        %v1976 = vunpack.c.0.s8 %v1975
        %v1977 = vlaneseq
        %v1978 = vshrl.u32 %v1977, 7
        %v1979 = vsub.s32 %v1976, %v1978
        %v1980 = vrot.slane %v1958, %v1979
        %v1982 = vunpack.c.l.s4 1966171168
        %v1983 = vunpack.c.0.s8 %v1982
        %v1984 = vlaneseq
        %v1985 = vshrl.u32 %v1984, 7
        %v1986 = vsub.s32 %v1983, %v1985
        %v1987 = vrot.slane %v1959, %v1986
        %v1988 = vcombine.high %v1966, %v1966
        %v1989 = vcombine.high %v1973, %v1973
        %v1990 = vcombine.high %v1980, %v1980
        %v1991 = vcombine.high %v1987, %v1987
        %v1992 = vcombine.high %v294, %v294
        %v1994 = vunpack.c.l.s4 1966171168
        %v1995 = vunpack.c.0.s8 %v1994
        %v1996 = vlaneseq
        %v1997 = vshrl.u32 %v1996, 7
        %v1998 = vsub.s32 %v1995, %v1997
        %v1999 = vrot.slane %v294, %v1998
        %v2001 = vunpack.c.l.s4 1966171168
        %v2002 = vunpack.c.0.s8 %v2001
        %v2003 = vlaneseq
        %v2004 = vshrl.u32 %v2003, 7
        %v2005 = vsub.s32 %v2002, %v2004
        %v2006 = vrot.slane %v1992, %v2005
        %v2007 = vcombine.high %v1999, %v1999
        %v2008 = vcombine.high %v2006, %v2006
        %v2010 = vunpack.c.l.s4 1966171168
        %v2011 = vunpack.c.0.s8 %v2010
        %v2012 = vlaneseq
        %v2013 = vshrl.u32 %v2012, 7
        %v2014 = vsub.s32 %v2011, %v2013
        %v2015 = vrot.slane %v1999, %v2014
        %v2017 = vunpack.c.l.s4 1966171168
        %v2018 = vunpack.c.0.s8 %v2017
        %v2019 = vlaneseq
        %v2020 = vshrl.u32 %v2019, 7
        %v2021 = vsub.s32 %v2018, %v2020
        %v2022 = vrot.slane %v2006, %v2021
        %v2024 = vunpack.c.l.s4 1966171168
        %v2025 = vunpack.c.0.s8 %v2024
        %v2026 = vlaneseq
        %v2027 = vshrl.u32 %v2026, 7
        %v2028 = vsub.s32 %v2025, %v2027
        %v2029 = vrot.slane %v2007, %v2028
        %v2031 = vunpack.c.l.s4 1966171168
        %v2032 = vunpack.c.0.s8 %v2031
        %v2033 = vlaneseq
        %v2034 = vshrl.u32 %v2033, 7
        %v2035 = vsub.s32 %v2032, %v2034
        %v2036 = vrot.slane %v2008, %v2035
        %v2037 = vcombine.high %v2015, %v2015
        %v2038 = vcombine.high %v2022, %v2022
        %v2039 = vcombine.high %v2029, %v2029
        %v2040 = vcombine.high %v2036, %v2036
        %v2041 = vcombine.high %v295, %v295
        %v2043 = vunpack.c.l.s4 1966171168
        %v2044 = vunpack.c.0.s8 %v2043
        %v2045 = vlaneseq
        %v2046 = vshrl.u32 %v2045, 7
        %v2047 = vsub.s32 %v2044, %v2046
        %v2048 = vrot.slane %v295, %v2047
        %v2050 = vunpack.c.l.s4 1966171168
        %v2051 = vunpack.c.0.s8 %v2050
        %v2052 = vlaneseq
        %v2053 = vshrl.u32 %v2052, 7
        %v2054 = vsub.s32 %v2051, %v2053
        %v2055 = vrot.slane %v2041, %v2054
        %v2056 = vcombine.high %v2048, %v2048
        %v2057 = vcombine.high %v2055, %v2055
        %v2059 = vunpack.c.l.s4 1966171168
        %v2060 = vunpack.c.0.s8 %v2059
        %v2061 = vlaneseq
        %v2062 = vshrl.u32 %v2061, 7
        %v2063 = vsub.s32 %v2060, %v2062
        %v2064 = vrot.slane %v2048, %v2063
        %v2066 = vunpack.c.l.s4 1966171168
        %v2067 = vunpack.c.0.s8 %v2066
        %v2068 = vlaneseq
        %v2069 = vshrl.u32 %v2068, 7
        %v2070 = vsub.s32 %v2067, %v2069
        %v2071 = vrot.slane %v2055, %v2070
        %v2073 = vunpack.c.l.s4 1966171168
        %v2074 = vunpack.c.0.s8 %v2073
        %v2075 = vlaneseq
        %v2076 = vshrl.u32 %v2075, 7
        %v2077 = vsub.s32 %v2074, %v2076
        %v2078 = vrot.slane %v2056, %v2077
        %v2080 = vunpack.c.l.s4 1966171168
        %v2081 = vunpack.c.0.s8 %v2080
        %v2082 = vlaneseq
        %v2083 = vshrl.u32 %v2082, 7
        %v2084 = vsub.s32 %v2081, %v2083
        %v2085 = vrot.slane %v2057, %v2084
        %v2086 = vcombine.high %v2064, %v2064
        %v2087 = vcombine.high %v2071, %v2071
        %v2088 = vcombine.high %v2078, %v2078
        %v2089 = vcombine.high %v2085, %v2085
        %v2091 = vunpack.c.l.s4 1966171168
        %v2092 = vunpack.c.0.s8 %v2091
        %v2093 = vlaneseq
        %v2094 = vshrl.u32 %v2093, 7
        %v2095 = vsub.s32 %v2092, %v2094
        %v2096 = vrot.slane %v296, %v2095
        %v2098 = vunpack.c.l.s4 1966171168
        %v2099 = vunpack.c.0.s8 %v2098
        %v2100 = vlaneseq
        %v2101 = vshrl.u32 %v2100, 7
        %v2102 = vsub.s32 %v2099, %v2101
        %v2103 = vrot.slane %v2096, %v2102
        %v3729 = vunpack.c.l.b16 %v297
        %v3730 = vunpack.c.h.b16 %v297
        %v3731 = vunpack.c.l.b16 %v298
        %v3732 = vunpack.c.h.b16 %v298
        %v3733 = vunpack.c.l.b16 %v299
        %v3734 = vunpack.c.h.b16 %v299
        %v3735 = vunpack.c.l.b16 %v300
        %v3736 = vunpack.c.h.b16 %v300
        %v3737 = vunpack.c.l.b16 %v301
        %v3738 = vunpack.c.h.b16 %v301
        %v3739 = vunpack.c.l.b16 %v302
        %v3740 = vunpack.c.h.b16 %v302
        %v3741 = vunpack.c.l.b16 %v303
        %v3742 = vunpack.c.h.b16 %v303
        %v3743 = vunpack.c.l.b16 %v304
        %v3744 = vunpack.c.h.b16 %v304
        %v3745 = vunpack.c.l.b16 %v305
        %v3746 = vunpack.c.h.b16 %v305
        %v3747 = vunpack.c.l.b16 %v306
        %v3748 = vunpack.c.h.b16 %v306
        %v3749 = vunpack.c.l.b16 %v307
        %v3750 = vunpack.c.h.b16 %v307
        %v3751 = vunpack.c.l.b16 %v308
        %v3752 = vunpack.c.h.b16 %v308
        %v3753 = vunpack.c.l.b16 %v309
        %v3754 = vunpack.c.h.b16 %v309
        %v3755 = vunpack.c.l.b16 %v310
        %v3756 = vunpack.c.h.b16 %v310
        %v3757 = vunpack.c.l.b16 %v311
        %v3758 = vunpack.c.h.b16 %v311
        %v3759 = vunpack.c.l.b16 %v312
        %v3760 = vunpack.c.h.b16 %v312
        %v3761 = vunpack.c.l.b16 %v313
        %v3762 = vunpack.c.h.b16 %v313
        %v3763 = vunpack.c.l.b16 %v314
        %v3764 = vunpack.c.h.b16 %v314
        %v3765 = vunpack.c.l.b16 %v315
        %v3766 = vunpack.c.h.b16 %v315
        %v3767 = vunpack.c.l.b16 %v316
        %v3768 = vunpack.c.h.b16 %v316
        %v3769 = vunpack.c.l.b16 %v317
        %v3770 = vunpack.c.h.b16 %v317
        %v3771 = vunpack.c.l.b16 %v318
        %v3772 = vunpack.c.h.b16 %v318
        %v3773 = vunpack.c.l.b16 %v319
        %v3774 = vunpack.c.h.b16 %v319
        %v3775 = vunpack.c.l.b16 %v320
        %v3776 = vunpack.c.h.b16 %v320
        %v3777 = vunpack.c.l.b16 %v321
        %v3778 = vunpack.c.h.b16 %v321
        %v3779 = vunpack.c.l.b16 %v322
        %v3780 = vunpack.c.h.b16 %v322
        %v3781 = vunpack.c.l.b16 %v323
        %v3782 = vunpack.c.h.b16 %v323
        %v3783 = vunpack.c.l.b16 %v324
        %v3784 = vunpack.c.h.b16 %v324
        %v3785 = vunpack.c.l.b16 %v325
        %v3786 = vunpack.c.h.b16 %v325
        %v3787 = vunpack.c.l.b16 %v326
        %v3788 = vunpack.c.h.b16 %v326
        %v3789 = vunpack.c.l.b16 %v327
        %v3790 = vunpack.c.h.b16 %v327
        %v3791 = vunpack.c.l.b16 %v328
        %v3792 = vunpack.c.h.b16 %v328
        %v3793 = vunpack.c.l.b16 %v329
        %v3794 = vunpack.c.h.b16 %v329
        %v3795 = vunpack.c.l.b16 %v330
        %v3796 = vunpack.c.h.b16 %v330
        %v3797 = vunpack.c.l.b16 %v331
        %v3798 = vunpack.c.h.b16 %v331
        %v3799 = vunpack.c.l.b16 %v332
        %v3800 = vunpack.c.h.b16 %v332
        %v3801 = vunpack.c.l.b16 %v333
        %v3802 = vunpack.c.h.b16 %v333
        %v3803 = vunpack.c.l.b16 %v334
        %v3804 = vunpack.c.h.b16 %v334
        %v3805 = vunpack.c.l.b16 %v335
        %v3806 = vunpack.c.h.b16 %v335
        %v3807 = vunpack.c.l.b16 %v336
        %v3808 = vunpack.c.h.b16 %v336
        %v3809 = vunpack.c.l.b16 %v337
        %v3810 = vunpack.c.h.b16 %v337
        %v3811 = vunpack.c.l.b16 %v338
        %v3812 = vunpack.c.h.b16 %v338
        %v3813 = vunpack.c.l.b16 %v339
        %v3814 = vunpack.c.h.b16 %v339
        %v3815 = vunpack.c.l.b16 %v340
        %v3816 = vunpack.c.h.b16 %v340
        %v3817 = vunpack.c.l.b16 %v341
        %v3818 = vunpack.c.h.b16 %v341
        %v3819 = vunpack.c.l.b16 %v342
        %v3820 = vunpack.c.h.b16 %v342
        %v3821 = vunpack.c.l.b16 %v343
        %v3822 = vunpack.c.h.b16 %v343
        %v3823 = vunpack.c.l.b16 %v344
        %v3824 = vunpack.c.h.b16 %v344
        %v3825 = vunpack.c.l.b16 %v345
        %v3826 = vunpack.c.h.b16 %v345
        %v3827 = vunpack.c.l.b16 %v346
        %v3828 = vunpack.c.h.b16 %v346
        %v3829 = vunpack.c.l.b16 %v347
        %v3830 = vunpack.c.h.b16 %v347
        %v3831 = vunpack.c.l.b16 %v348
        %v3832 = vunpack.c.h.b16 %v348
        %v3833 = vunpack.c.l.b16 %v349
        %v3834 = vunpack.c.h.b16 %v349
        %v3835 = vunpack.c.l.b16 %v350
        %v3836 = vunpack.c.h.b16 %v350
        %v3837 = vunpack.c.l.b16 %v351
        %v3838 = vunpack.c.h.b16 %v351
        %v3839 = vunpack.c.l.b16 %v352
        %v3840 = vunpack.c.h.b16 %v352
        %v3841 = vunpack.c.l.b16 %v353
        %v3842 = vunpack.c.h.b16 %v353
        %v3843 = vunpack.c.l.b16 %v354
        %v3844 = vunpack.c.h.b16 %v354
        %v3845 = vunpack.c.l.b16 %v355
        %v3846 = vunpack.c.h.b16 %v355
        %v3847 = vunpack.c.l.b16 %v356
        %v3848 = vunpack.c.h.b16 %v356
        %v3849 = vunpack.c.l.b16 %v357
        %v3850 = vunpack.c.h.b16 %v357
        %v3851 = vunpack.c.l.b16 %v358
        %v3852 = vunpack.c.h.b16 %v358
        %v3853 = vunpack.c.l.b16 %v359
        %v3854 = vunpack.c.h.b16 %v359
        %v3855 = vunpack.c.l.b16 %v360
        %v3856 = vunpack.c.h.b16 %v360
        %v3857 = vunpack.c.l.b16 %v361
        %v3858 = vunpack.c.h.b16 %v361
        %v3859 = vunpack.c.l.b16 %v362
        %v3860 = vunpack.c.h.b16 %v362
        %v3861 = vunpack.c.l.b16 %v363
        %v3862 = vunpack.c.h.b16 %v363
        %v3863 = vunpack.c.l.b16 %v364
        %v3864 = vunpack.c.h.b16 %v364
        %v3865 = vunpack.c.l.b16 %v365
        %v3866 = vunpack.c.h.b16 %v365
        %v3867 = vunpack.c.l.b16 %v366
        %v3868 = vunpack.c.h.b16 %v366
        %v3869 = vunpack.c.l.b16 %v367
        %v3870 = vunpack.c.h.b16 %v367
        %v3871 = vunpack.c.l.b16 %v368
        %v3872 = vunpack.c.h.b16 %v368
        %v3873 = vunpack.c.l.b16 %v369
        %v3874 = vunpack.c.h.b16 %v369
        %v3875 = vunpack.c.l.b16 %v370
        %v3876 = vunpack.c.h.b16 %v370
        %v3877 = vunpack.c.l.b16 %v371
        %v3878 = vunpack.c.h.b16 %v371
        %v3879 = vunpack.c.l.b16 %v372
        %v3880 = vunpack.c.h.b16 %v372
        %v3881 = vunpack.c.l.b16 %v373
        %v3882 = vunpack.c.h.b16 %v373
        %v3883 = vunpack.c.l.b16 %v374
        %v3884 = vunpack.c.h.b16 %v374
        %v3885 = vunpack.c.l.b16 %v375
        %v3886 = vunpack.c.h.b16 %v375
        %v3887 = vunpack.c.l.b16 %v376
        %v3888 = vunpack.c.h.b16 %v376
        %v3889 = vunpack.c.l.b16 %v377
        %v3890 = vunpack.c.h.b16 %v377
        %v3891 = vunpack.c.l.b16 %v378
        %v3892 = vunpack.c.h.b16 %v378
        %v3893 = vunpack.c.l.b16 %v379
        %v3894 = vunpack.c.h.b16 %v379
        %v3895 = vunpack.c.l.b16 %v380
        %v3896 = vunpack.c.h.b16 %v380
        %v3897 = vunpack.c.l.b16 %v381
        %v3898 = vunpack.c.h.b16 %v381
        %v3899 = vunpack.c.l.b16 %v382
        %v3900 = vunpack.c.h.b16 %v382
        %v3901 = vunpack.c.l.b16 %v383
        %v3902 = vunpack.c.h.b16 %v383
        %v3903 = vunpack.c.l.b16 %v384
        %v3904 = vunpack.c.h.b16 %v384
        %v3905 = vunpack.c.l.b16 %v385
        %v3906 = vunpack.c.h.b16 %v385
        %v3907 = vunpack.c.l.b16 %v386
        %v3908 = vunpack.c.h.b16 %v386
        %v3909 = vunpack.c.l.b16 %v387
        %v3910 = vunpack.c.h.b16 %v387
        %v3911 = vunpack.c.l.b16 %v388
        %v3912 = vunpack.c.h.b16 %v388
        %v3913 = vunpack.c.l.b16 %v389
        %v3914 = vunpack.c.h.b16 %v389
        %v3915 = vunpack.c.l.b16 %v390
        %v3916 = vunpack.c.h.b16 %v390
        %v3917 = vunpack.c.l.b16 %v391
        %v3918 = vunpack.c.h.b16 %v391
        %v3919 = vunpack.c.l.b16 %v392
        %v3920 = vunpack.c.h.b16 %v392
        %v3921 = vunpack.c.l.b16 %v393
        %v3922 = vunpack.c.h.b16 %v393
        %v3923 = vunpack.c.l.b16 %v394
        %v3924 = vunpack.c.h.b16 %v394
        %v3925 = vunpack.c.l.b16 %v395
        %v3926 = vunpack.c.h.b16 %v395
        %v3927 = vunpack.c.l.b16 %v396
        %v3928 = vunpack.c.h.b16 %v396
        %v3929 = vunpack.c.l.b16 %v397
        %v3930 = vunpack.c.h.b16 %v397
        %v3931 = vunpack.c.l.b16 %v398
        %v3932 = vunpack.c.h.b16 %v398
        %v3933 = vunpack.c.l.b16 %v399
        %v3934 = vunpack.c.h.b16 %v399
        %v3935 = vunpack.c.l.b16 %v400
        %v3936 = vunpack.c.h.b16 %v400
        %v3937 = vunpack.c.l.b16 %v401
        %v3938 = vunpack.c.h.b16 %v401
        %v3939 = vunpack.c.l.b16 %v402
        %v3940 = vunpack.c.h.b16 %v402
        %v3941 = vunpack.c.l.b16 %v403
        %v3942 = vunpack.c.h.b16 %v403
        %v3943 = vunpack.c.l.b16 %v404
        %v3944 = vunpack.c.h.b16 %v404
        %v3945 = vunpack.c.l.b16 %v405
        %v3946 = vunpack.c.h.b16 %v405
        %v3947 = vunpack.c.l.b16 %v406
        %v3948 = vunpack.c.h.b16 %v406
        %v3949 = vunpack.c.l.b16 %v407
        %v3950 = vunpack.c.h.b16 %v407
        %v3951 = vunpack.c.l.b16 %v408
        %v3952 = vunpack.c.h.b16 %v408
        %v3953 = vunpack.c.l.b16 %v409
        %v3954 = vunpack.c.h.b16 %v409
        %v3955 = vunpack.c.l.b16 %v410
        %v3956 = vunpack.c.h.b16 %v410
        %v3957 = vunpack.c.l.b16 %v411
        %v3958 = vunpack.c.h.b16 %v411
        %v3959 = vunpack.c.l.b16 %v412
        %v3960 = vunpack.c.h.b16 %v412
        %v3961 = vunpack.c.l.b16 %v413
        %v3962 = vunpack.c.h.b16 %v413
        %v3963 = vunpack.c.l.b16 %v414
        %v3964 = vunpack.c.h.b16 %v414
        %v3965 = vunpack.c.l.b16 %v415
        %v3966 = vunpack.c.h.b16 %v415
        %v3967 = vunpack.c.l.b16 %v416
        %v3968 = vunpack.c.h.b16 %v416
        %v3969 = vunpack.c.l.b16 %v417
        %v3970 = vunpack.c.h.b16 %v417
        %v3971 = vunpack.c.l.b16 %v418
        %v3972 = vunpack.c.h.b16 %v418
        %v3973 = vunpack.c.l.b16 %v419
        %v3974 = vunpack.c.h.b16 %v419
        %v3975 = vunpack.c.l.b16 %v420
        %v3976 = vunpack.c.h.b16 %v420
        %v3977 = vunpack.c.l.b16 %v421
        %v3978 = vunpack.c.h.b16 %v421
        %v3979 = vunpack.c.l.b16 %v422
        %v3980 = vunpack.c.h.b16 %v422
        %v3981 = vunpack.c.l.b16 %v423
        %v3982 = vunpack.c.h.b16 %v423
        %v3983 = vunpack.c.l.b16 %v424
        %v3984 = vunpack.c.h.b16 %v424
        %v3985 = vunpack.c.l.b16 %v425
        %v3986 = vunpack.c.h.b16 %v425
        %v3987 = vunpack.c.l.b16 %v426
        %v3988 = vunpack.c.h.b16 %v426
        %v3989 = vunpack.c.l.b16 %v427
        %v3990 = vunpack.c.h.b16 %v427
        %v3991 = vunpack.c.l.b16 %v428
        %v3992 = vunpack.c.h.b16 %v428
        %v3993 = vunpack.c.l.b16 %v429
        %v3994 = vunpack.c.h.b16 %v429
        %v3995 = vunpack.c.l.b16 %v430
        %v3996 = vunpack.c.h.b16 %v430
        %v3997 = vunpack.c.l.b16 %v431
        %v3998 = vunpack.c.h.b16 %v431
        %v3999 = vunpack.c.l.b16 %v432
        %v4000 = vunpack.c.h.b16 %v432
        %v4001 = vunpack.c.l.b16 %v433
        %v4002 = vunpack.c.h.b16 %v433
        %v4003 = vunpack.c.l.b16 %v434
        %v4004 = vunpack.c.h.b16 %v434
        %v4005 = vunpack.c.l.b16 %v435
        %v4006 = vunpack.c.h.b16 %v435
        %v4007 = vunpack.c.l.b16 %v436
        %v4008 = vunpack.c.h.b16 %v436
        %v4009 = vunpack.c.l.b16 %v437
        %v4010 = vunpack.c.h.b16 %v437
        %v4011 = vunpack.c.l.b16 %v438
        %v4012 = vunpack.c.h.b16 %v438
        %v4013 = vunpack.c.l.b16 %v439
        %v4014 = vunpack.c.h.b16 %v439
        %v4015 = vunpack.c.l.b16 %v440
        %v4016 = vunpack.c.h.b16 %v440
        %v4017 = vunpack.c.l.b16 %v441
        %v4018 = vunpack.c.h.b16 %v441
        %v4019 = vunpack.c.l.b16 %v442
        %v4020 = vunpack.c.h.b16 %v442
        %v4021 = vunpack.c.l.b16 %v443
        %v4022 = vunpack.c.h.b16 %v443
        %v4023 = vunpack.c.l.b16 %v444
        %v4024 = vunpack.c.h.b16 %v444
        %v4025 = vunpack.c.l.b16 %v445
        %v4026 = vunpack.c.h.b16 %v445
        %v4027 = vunpack.c.l.b16 %v446
        %v4028 = vunpack.c.h.b16 %v446
        %v4029 = vunpack.c.l.b16 %v447
        %v4030 = vunpack.c.h.b16 %v447
        %v4031 = vunpack.c.l.b16 %v448
        %v4032 = vunpack.c.h.b16 %v448
        %v4033 = vunpack.c.l.b16 %v449
        %v4034 = vunpack.c.h.b16 %v449
        %v4035 = vunpack.c.l.b16 %v450
        %v4036 = vunpack.c.h.b16 %v450
        %v4037 = vunpack.c.l.b16 %v451
        %v4038 = vunpack.c.h.b16 %v451
        %v4039 = vunpack.c.l.b16 %v452
        %v4040 = vunpack.c.h.b16 %v452
        %v4041 = vunpack.c.l.b16 %v453
        %v4042 = vunpack.c.h.b16 %v453
        %v4043 = vunpack.c.l.b16 %v454
        %v4044 = vunpack.c.h.b16 %v454
        %v4045 = vunpack.c.l.b16 %v455
        %v4046 = vunpack.c.h.b16 %v455
        %v4047 = vunpack.c.l.b16 %v456
        %v4048 = vunpack.c.h.b16 %v456
        %v4049 = vunpack.c.l.b16 %v457
        %v4050 = vunpack.c.h.b16 %v457
        %v4051 = vunpack.c.l.b16 %v458
        %v4052 = vunpack.c.h.b16 %v458
        %v4053 = vunpack.c.l.b16 %v459
        %v4054 = vunpack.c.h.b16 %v459
        %v4055 = vunpack.c.l.b16 %v460
        %v4056 = vunpack.c.h.b16 %v460
        %v4057 = vunpack.c.l.b16 %v461
        %v4058 = vunpack.c.h.b16 %v461
        %v4059 = vunpack.c.l.b16 %v462
        %v4060 = vunpack.c.h.b16 %v462
        %v4061 = vunpack.c.l.b16 %v463
        %v4062 = vunpack.c.h.b16 %v463
        %v4063 = vunpack.c.l.b16 %v464
        %v4064 = vunpack.c.h.b16 %v464
        %v4065 = vunpack.c.l.b16 %v465
        %v4066 = vunpack.c.h.b16 %v465
        %v4067 = vunpack.c.l.b16 %v466
        %v4068 = vunpack.c.h.b16 %v466
        %v4069 = vunpack.c.l.b16 %v467
        %v4070 = vunpack.c.h.b16 %v467
        %v4071 = vunpack.c.l.b16 %v468
        %v4072 = vunpack.c.h.b16 %v468
        %v4073 = vunpack.c.l.b16 %v469
        %v4074 = vunpack.c.h.b16 %v469
        %v4075 = vunpack.c.l.b16 %v470
        %v4076 = vunpack.c.h.b16 %v470
        %v4077 = vunpack.c.l.b16 %v471
        %v4078 = vunpack.c.h.b16 %v471
        %v4079 = vunpack.c.l.b16 %v472
        %v4080 = vunpack.c.h.b16 %v472
        %v4081 = vunpack.c.l.b16 %v473
        %v4082 = vunpack.c.h.b16 %v473
        %v4083 = vunpack.c.l.b16 %v474
        %v4084 = vunpack.c.h.b16 %v474
        %v4085 = vunpack.c.l.b16 %v475
        %v4086 = vunpack.c.h.b16 %v475
        %v4087 = vunpack.c.l.b16 %v476
        %v4088 = vunpack.c.h.b16 %v476
        %v4089 = vunpack.c.l.b16 %v477
        %v4090 = vunpack.c.h.b16 %v477
        %v4091 = vunpack.c.l.b16 %v478
        %v4092 = vunpack.c.h.b16 %v478
        %v4093 = vunpack.c.l.b16 %v479
        %v4094 = vunpack.c.h.b16 %v479
        %v4095 = vunpack.c.l.b16 %v480
        %v4096 = vunpack.c.h.b16 %v480
        %v4097 = vunpack.c.l.b16 %v481
        %v4098 = vunpack.c.h.b16 %v481
        %v4099 = vunpack.c.l.b16 %v482
        %v4100 = vunpack.c.h.b16 %v482
        %v4101 = vunpack.c.l.b16 %v483
        %v4102 = vunpack.c.h.b16 %v483
        %v4103 = vunpack.c.l.b16 %v484
        %v4104 = vunpack.c.h.b16 %v484
        %v4105 = vunpack.c.l.b16 %v485
        %v4106 = vunpack.c.h.b16 %v485
        %v4107 = vunpack.c.l.b16 %v486
        %v4108 = vunpack.c.h.b16 %v486
        %v4109 = vunpack.c.l.b16 %v487
        %v4110 = vunpack.c.h.b16 %v487
        %v4111 = vunpack.c.l.b16 %v488
        %v4112 = vunpack.c.h.b16 %v488
        %v4113 = vunpack.c.l.b16 %v489
        %v4114 = vunpack.c.h.b16 %v489
        %v4115 = vunpack.c.l.b16 %v490
        %v4116 = vunpack.c.h.b16 %v490
        %v4117 = vunpack.c.l.b16 %v491
        %v4118 = vunpack.c.h.b16 %v491
        %v4119 = vunpack.c.l.b16 %v492
        %v4120 = vunpack.c.h.b16 %v492
        %v4121 = vunpack.c.l.b16 %v493
        %v4122 = vunpack.c.h.b16 %v493
        %v4123 = vunpack.c.l.b16 %v494
        %v4124 = vunpack.c.h.b16 %v494
        %v4125 = vunpack.c.l.b16 %v495
        %v4126 = vunpack.c.h.b16 %v495
        %v4127 = vunpack.c.l.b16 %v496
        %v4128 = vunpack.c.h.b16 %v496
        %v4129 = vunpack.c.l.b16 %v497
        %v4130 = vunpack.c.h.b16 %v497
        %v4131 = vunpack.c.l.b16 %v498
        %v4132 = vunpack.c.h.b16 %v498
        %v4133 = vunpack.c.l.b16 %v499
        %v4134 = vunpack.c.h.b16 %v499
        %v4135 = vunpack.c.l.b16 %v500
        %v4136 = vunpack.c.h.b16 %v500
        %v4137 = vunpack.c.l.b16 %v501
        %v4138 = vunpack.c.h.b16 %v501
        %v4139 = vunpack.c.l.b16 %v502
        %v4140 = vunpack.c.h.b16 %v502
        %v4141 = vunpack.c.l.b16 %v503
        %v4142 = vunpack.c.h.b16 %v503
        %v4143 = vunpack.c.l.b16 %v504
        %v4144 = vunpack.c.h.b16 %v504
        %v4145 = vunpack.c.l.b16 %v505
        %v4146 = vunpack.c.h.b16 %v505
        %v4147 = vunpack.c.l.b16 %v506
        %v4148 = vunpack.c.h.b16 %v506
        %v4149 = vunpack.c.l.b16 %v507
        %v4150 = vunpack.c.h.b16 %v507
        %v4151 = vunpack.c.l.b16 %v508
        %v4152 = vunpack.c.h.b16 %v508
        %v4153 = vunpack.c.l.b16 %v509
        %v4154 = vunpack.c.h.b16 %v509
        %v4155 = vunpack.c.l.b16 %v510
        %v4156 = vunpack.c.h.b16 %v510
        %v4157 = vunpack.c.l.b16 %v511
        %v4158 = vunpack.c.h.b16 %v511
        %v4159 = vunpack.c.l.b16 %v512
        %v4160 = vunpack.c.h.b16 %v512
        %v4161 = vunpack.c.l.b16 %v513
        %v4162 = vunpack.c.h.b16 %v513
        %v4163 = vunpack.c.l.b16 %v514
        %v4164 = vunpack.c.h.b16 %v514
        %v4165 = vunpack.c.l.b16 %v515
        %v4166 = vunpack.c.h.b16 %v515
        %v4167 = vunpack.c.l.b16 %v516
        %v4168 = vunpack.c.h.b16 %v516
        %v4169 = vunpack.c.l.b16 %v517
        %v4170 = vunpack.c.h.b16 %v517
        %v4171 = vunpack.c.l.b16 %v518
        %v4172 = vunpack.c.h.b16 %v518
        %v4173 = vunpack.c.l.b16 %v519
        %v4174 = vunpack.c.h.b16 %v519
        %v4175 = vunpack.c.l.b16 %v520
        %v4176 = vunpack.c.h.b16 %v520
        %v4177 = vunpack.c.l.b16 %v521
        %v4178 = vunpack.c.h.b16 %v521
        %v4179 = vunpack.c.l.b16 %v522
        %v4180 = vunpack.c.h.b16 %v522
        %v4181 = vunpack.c.l.b16 %v523
        %v4182 = vunpack.c.h.b16 %v523
        %v4183 = vunpack.c.l.b16 %v524
        %v4184 = vunpack.c.h.b16 %v524
        %v4185 = vunpack.c.l.b16 %v525
        %v4186 = vunpack.c.h.b16 %v525
        %v4187 = vunpack.c.l.b16 %v526
        %v4188 = vunpack.c.h.b16 %v526
        %v4189 = vunpack.c.l.b16 %v527
        %v4190 = vunpack.c.h.b16 %v527
        %v4191 = vunpack.c.l.b16 %v528
        %v4192 = vunpack.c.h.b16 %v528
        %v4193 = vunpack.c.l.b16 %v529
        %v4194 = vunpack.c.h.b16 %v529
        %v4195 = vunpack.c.l.b16 %v530
        %v4196 = vunpack.c.h.b16 %v530
        %v4197 = vunpack.c.l.b16 %v531
        %v4198 = vunpack.c.h.b16 %v531
        %v4199 = vunpack.c.l.b16 %v532
        %v4200 = vunpack.c.h.b16 %v532
        %v4201 = vunpack.c.l.b16 %v533
        %v4202 = vunpack.c.h.b16 %v533
        %v4203 = vunpack.c.l.b16 %v534
        %v4204 = vunpack.c.h.b16 %v534
        %v4205 = vunpack.c.l.b16 %v535
        %v4206 = vunpack.c.h.b16 %v535
        %v4207 = vunpack.c.l.b16 %v536
        %v4208 = vunpack.c.h.b16 %v536
        %v4209 = vunpack.c.l.b16 %v537
        %v4210 = vunpack.c.h.b16 %v537
        %v4211 = vunpack.c.l.b16 %v538
        %v4212 = vunpack.c.h.b16 %v538
        %v4213 = vunpack.c.l.b16 %v539
        %v4214 = vunpack.c.h.b16 %v539
        %v4215 = vunpack.c.l.b16 %v540
        %v4216 = vunpack.c.h.b16 %v540
        %v4217 = vunpack.c.l.b16 %v541
        %v4218 = vunpack.c.h.b16 %v541
        %v4219 = vunpack.c.l.b16 %v542
        %v4220 = vunpack.c.h.b16 %v542
        %v4221 = vunpack.c.l.b16 %v543
        %v4222 = vunpack.c.h.b16 %v543
        %v4223 = vunpack.c.l.b16 %v544
        %v4224 = vunpack.c.h.b16 %v544
        %v4225 = vunpack.c.l.b16 %v545
        %v4226 = vunpack.c.h.b16 %v545
        %v4227 = vunpack.c.l.b16 %v546
        %v4228 = vunpack.c.h.b16 %v546
        %v4229 = vunpack.c.l.b16 %v547
        %v4230 = vunpack.c.h.b16 %v547
        %v4231 = vunpack.c.l.b16 %v548
        %v4232 = vunpack.c.h.b16 %v548
        %v4233 = vunpack.c.l.b16 %v549
        %v4234 = vunpack.c.h.b16 %v549
        %v4235 = vunpack.c.l.b16 %v550
        %v4236 = vunpack.c.h.b16 %v550
        %v4237 = vunpack.c.l.b16 %v551
        %v4238 = vunpack.c.h.b16 %v551
        %v4239 = vunpack.c.l.b16 %v552
        %v4240 = vunpack.c.h.b16 %v552
        %v4241 = vunpack.c.l.b16 %v553
        %v4242 = vunpack.c.h.b16 %v553
        %v4243 = vunpack.c.l.b16 %v554
        %v4244 = vunpack.c.h.b16 %v554
        %v4245 = vunpack.c.l.b16 %v555
        %v4246 = vunpack.c.h.b16 %v555
        %v4247 = vunpack.c.l.b16 %v556
        %v4248 = vunpack.c.h.b16 %v556
        %v4249 = vunpack.c.l.b16 %v557
        %v4250 = vunpack.c.h.b16 %v557
        %v4251 = vunpack.c.l.b16 %v558
        %v4252 = vunpack.c.h.b16 %v558
        %v4253 = vunpack.c.l.b16 %v559
        %v4254 = vunpack.c.h.b16 %v559
        %v4255 = vunpack.c.l.b16 %v560
        %v4256 = vunpack.c.h.b16 %v560
        %v4257 = vunpack.c.l.b16 %v561
        %v4258 = vunpack.c.h.b16 %v561
        %v4259 = vunpack.c.l.b16 %v562
        %v4260 = vunpack.c.h.b16 %v562
        %v4261 = vunpack.c.l.b16 %v563
        %v4262 = vunpack.c.h.b16 %v563
        %v4263 = vunpack.c.l.b16 %v564
        %v4264 = vunpack.c.h.b16 %v564
        %v4265 = vunpack.c.l.b16 %v565
        %v4266 = vunpack.c.h.b16 %v565
        %v4267 = vunpack.c.l.b16 %v566
        %v4268 = vunpack.c.h.b16 %v566
        %v4269 = vunpack.c.l.b16 %v567
        %v4270 = vunpack.c.h.b16 %v567
        %v4271 = vunpack.c.l.b16 %v568
        %v4272 = vunpack.c.h.b16 %v568
        %v4273 = vunpack.c.l.b16 %v569
        %v4274 = vunpack.c.h.b16 %v569
        %v4275 = vunpack.c.l.b16 %v570
        %v4276 = vunpack.c.h.b16 %v570
        %v4277 = vunpack.c.l.b16 %v571
        %v4278 = vunpack.c.h.b16 %v571
        %v4279 = vunpack.c.l.b16 %v572
        %v4280 = vunpack.c.h.b16 %v572
        %v4281 = vunpack.c.l.b16 %v573
        %v4282 = vunpack.c.h.b16 %v573
        %v4283 = vunpack.c.l.b16 %v574
        %v4284 = vunpack.c.h.b16 %v574
        %v4285 = vunpack.c.l.b16 %v575
        %v4286 = vunpack.c.h.b16 %v575
        %v4287 = vunpack.c.l.b16 %v576
        %v4288 = vunpack.c.h.b16 %v576
        %v4289 = vunpack.c.l.b16 %v577
        %v4290 = vunpack.c.h.b16 %v577
        %v4291 = vunpack.c.l.b16 %v578
        %v4292 = vunpack.c.h.b16 %v578
        %v4293 = vunpack.c.l.b16 %v579
        %v4294 = vunpack.c.h.b16 %v579
        %v4295 = vunpack.c.l.b16 %v580
        %v4296 = vunpack.c.h.b16 %v580
        %v4297 = vunpack.c.l.b16 %v581
        %v4298 = vunpack.c.h.b16 %v581
        %v4299 = vunpack.c.l.b16 %v582
        %v4300 = vunpack.c.h.b16 %v582
        %v4301 = vunpack.c.l.b16 %v583
        %v4302 = vunpack.c.h.b16 %v583
        %v4303 = vunpack.c.l.b16 %v584
        %v4304 = vunpack.c.h.b16 %v584
        %v4305 = vunpack.c.l.b16 %v585
        %v4306 = vunpack.c.h.b16 %v585
        %v4307 = vunpack.c.l.b16 %v586
        %v4308 = vunpack.c.h.b16 %v586
        %v4309 = vunpack.c.l.b16 %v587
        %v4310 = vunpack.c.h.b16 %v587
        %v4311 = vunpack.c.l.b16 %v588
        %v4312 = vunpack.c.h.b16 %v588
        %v4313 = vunpack.c.l.b16 %v589
        %v4314 = vunpack.c.h.b16 %v589
        %v4315 = vunpack.c.l.b16 %v590
        %v4316 = vunpack.c.h.b16 %v590
        %v4317 = vunpack.c.l.b16 %v591
        %v4318 = vunpack.c.h.b16 %v591
        %v4319 = vunpack.c.l.b16 %v592
        %v4320 = vunpack.c.h.b16 %v592
        %v4321 = vunpack.c.l.b16 %v593
        %v4322 = vunpack.c.h.b16 %v593
        %v4323 = vunpack.c.l.b16 %v594
        %v4324 = vunpack.c.h.b16 %v594
        %v4325 = vunpack.c.l.b16 %v595
        %v4326 = vunpack.c.h.b16 %v595
        %v4327 = vunpack.c.l.b16 %v596
        %v4328 = vunpack.c.h.b16 %v596
        %v4329 = vunpack.c.l.b16 %v597
        %v4330 = vunpack.c.h.b16 %v597
        %v4331 = vunpack.c.l.b16 %v598
        %v4332 = vunpack.c.h.b16 %v598
        %v4333 = vunpack.c.l.b16 %v599
        %v4334 = vunpack.c.h.b16 %v599
        %v4335 = vunpack.c.l.b16 %v600
        %v4336 = vunpack.c.h.b16 %v600
        %v4337 = vunpack.c.l.b16 %v601
        %v4338 = vunpack.c.h.b16 %v601
        %v4339 = vunpack.c.l.b16 %v602
        %v4340 = vunpack.c.h.b16 %v602
        %v4341 = vunpack.c.l.b16 %v603
        %v4342 = vunpack.c.h.b16 %v603
        %v4343 = vunpack.c.l.b16 %v604
        %v4344 = vunpack.c.h.b16 %v604
        %v4345 = vunpack.c.l.b16 %v605
        %v4346 = vunpack.c.h.b16 %v605
        %v4347 = vunpack.c.l.b16 %v606
        %v4348 = vunpack.c.h.b16 %v606
        %v4349 = vunpack.c.l.b16 %v607
        %v4350 = vunpack.c.h.b16 %v607
        %v4351 = vunpack.c.l.b16 %v608
        %v4352 = vunpack.c.h.b16 %v608
        %v4353 = vunpack.c.l.b16 %v609
        %v4354 = vunpack.c.h.b16 %v609
        %v4355 = vunpack.c.l.b16 %v610
        %v4356 = vunpack.c.h.b16 %v610
        %v4357 = vunpack.c.l.b16 %v611
        %v4358 = vunpack.c.h.b16 %v611
        %v4359 = vunpack.c.l.b16 %v612
        %v4360 = vunpack.c.h.b16 %v612
        %v4361 = vunpack.c.l.b16 %v613
        %v4362 = vunpack.c.h.b16 %v613
        %v4363 = vunpack.c.l.b16 %v614
        %v4364 = vunpack.c.h.b16 %v614
        %v4365 = vunpack.c.l.b16 %v615
        %v4366 = vunpack.c.h.b16 %v615
        %v4367 = vunpack.c.l.b16 %v616
        %v4368 = vunpack.c.h.b16 %v616
        %v4369 = vunpack.c.l.b16 %v617
        %v4370 = vunpack.c.h.b16 %v617
        %v4371 = vunpack.c.l.b16 %v618
        %v4372 = vunpack.c.h.b16 %v618
        %v4373 = vunpack.c.l.b16 %v619
        %v4374 = vunpack.c.h.b16 %v619
        %v4375 = vunpack.c.l.b16 %v620
        %v4376 = vunpack.c.h.b16 %v620
        %v4377 = vunpack.c.l.b16 %v621
        %v4378 = vunpack.c.h.b16 %v621
        %v4379 = vunpack.c.l.b16 %v622
        %v4380 = vunpack.c.h.b16 %v622
        %v4381 = vunpack.c.l.b16 %v623
        %v4382 = vunpack.c.h.b16 %v623
        %v4383 = vunpack.c.l.b16 %v624
        %v4384 = vunpack.c.h.b16 %v624
        %v4385 = vunpack.c.l.b16 %v625
        %v4386 = vunpack.c.h.b16 %v625
        %v4387 = vunpack.c.l.b16 %v626
        %v4388 = vunpack.c.h.b16 %v626
        %v4389 = vunpack.c.l.b16 %v627
        %v4390 = vunpack.c.h.b16 %v627
        %v4391 = vunpack.c.l.b16 %v628
        %v4392 = vunpack.c.h.b16 %v628
        %v4393 = vunpack.c.l.b16 %v629
        %v4394 = vunpack.c.h.b16 %v629
        %v4395 = vunpack.c.l.b16 %v630
        %v4396 = vunpack.c.h.b16 %v630
        %v4397 = vunpack.c.l.b16 %v631
        %v4398 = vunpack.c.h.b16 %v631
        %v4399 = vunpack.c.l.b16 %v632
        %v4400 = vunpack.c.h.b16 %v632
        %v4401 = vunpack.c.l.b16 %v633
        %v4402 = vunpack.c.h.b16 %v633
        %v4403 = vunpack.c.l.b16 %v634
        %v4404 = vunpack.c.h.b16 %v634
        %v4405 = vunpack.c.l.b16 %v635
        %v4406 = vunpack.c.h.b16 %v635
        %v4407 = vunpack.c.l.b16 %v636
        %v4408 = vunpack.c.h.b16 %v636
        %v4409 = vunpack.c.l.b16 %v637
        %v4410 = vunpack.c.h.b16 %v637
        %v4411 = vunpack.c.l.b16 %v638
        %v4412 = vunpack.c.h.b16 %v638
        %v4413 = vunpack.c.l.b16 %v639
        %v4414 = vunpack.c.h.b16 %v639
        %v4415 = vunpack.c.l.b16 %v640
        %v4416 = vunpack.c.h.b16 %v640
        %v4417 = vunpack.c.l.b16 %v641
        %v4418 = vunpack.c.h.b16 %v641
        %v4419 = vunpack.c.l.b16 %v642
        %v4420 = vunpack.c.h.b16 %v642
        %v4421 = vunpack.c.l.b16 %v643
        %v4422 = vunpack.c.h.b16 %v643
        %v4423 = vunpack.c.l.b16 %v644
        %v4424 = vunpack.c.h.b16 %v644
        %v4425 = vunpack.c.l.b16 %v645
        %v4426 = vunpack.c.h.b16 %v645
        %v4427 = vunpack.c.l.b16 %v646
        %v4428 = vunpack.c.h.b16 %v646
        %v4429 = vunpack.c.l.b16 %v647
        %v4430 = vunpack.c.h.b16 %v647
        %v4431 = vunpack.c.l.b16 %v648
        %v4432 = vunpack.c.h.b16 %v648
        %v4433 = vunpack.c.l.b16 %v649
        %v4434 = vunpack.c.h.b16 %v649
        %v4435 = vunpack.c.l.b16 %v650
        %v4436 = vunpack.c.h.b16 %v650
        %v4437 = vunpack.c.l.b16 %v651
        %v4438 = vunpack.c.h.b16 %v651
        %v4439 = vunpack.c.l.b16 %v652
        %v4440 = vunpack.c.h.b16 %v652
        %v4441 = vunpack.c.l.b16 %v653
        %v4442 = vunpack.c.h.b16 %v653
        %v4443 = vunpack.c.l.b16 %v654
        %v4444 = vunpack.c.h.b16 %v654
        %v4445 = vunpack.c.l.b16 %v655
        %v4446 = vunpack.c.h.b16 %v655
        %v4447 = vunpack.c.l.b16 %v656
        %v4448 = vunpack.c.h.b16 %v656
        %v4449 = vunpack.c.l.b16 %v657
        %v4450 = vunpack.c.h.b16 %v657
        %v4451 = vunpack.c.l.b16 %v658
        %v4452 = vunpack.c.h.b16 %v658
        %v4453 = vunpack.c.l.b16 %v659
        %v4454 = vunpack.c.h.b16 %v659
        %v4455 = vunpack.c.l.b16 %v660
        %v4456 = vunpack.c.h.b16 %v660
        %v4457 = vunpack.c.l.b16 %v661
        %v4458 = vunpack.c.h.b16 %v661
        %v4459 = vunpack.c.l.b16 %v662
        %v4460 = vunpack.c.h.b16 %v662
        %v4461 = vunpack.c.l.b16 %v663
        %v4462 = vunpack.c.h.b16 %v663
        %v4463 = vunpack.c.l.b16 %v664
        %v4464 = vunpack.c.h.b16 %v664
        %v4465 = vunpack.c.l.b16 %v665
        %v4466 = vunpack.c.h.b16 %v665
        %v4467 = vunpack.c.l.b16 %v666
        %v4468 = vunpack.c.h.b16 %v666
        %v4469 = vunpack.c.l.b16 %v667
        %v4470 = vunpack.c.h.b16 %v667
        %v4471 = vunpack.c.l.b16 %v668
        %v4472 = vunpack.c.h.b16 %v668
        %v4473 = vunpack.c.l.b16 %v669
        %v4474 = vunpack.c.h.b16 %v669
        %v4475 = vunpack.c.l.b16 %v670
        %v4476 = vunpack.c.h.b16 %v670
        %v4477 = vunpack.c.l.b16 %v671
        %v4478 = vunpack.c.h.b16 %v671
        %v4479 = vunpack.c.l.b16 %v672
        %v4480 = vunpack.c.h.b16 %v672
        %v4481 = vunpack.c.l.b16 %v673
        %v4482 = vunpack.c.h.b16 %v673
        %v4483 = vunpack.c.l.b16 %v674
        %v4484 = vunpack.c.h.b16 %v674
        %v4485 = vunpack.c.l.b16 %v675
        %v4486 = vunpack.c.h.b16 %v675
        %v4487 = vunpack.c.l.b16 %v676
        %v4488 = vunpack.c.h.b16 %v676
        %v4489 = vunpack.c.l.b16 %v677
        %v4490 = vunpack.c.h.b16 %v677
        %v4491 = vunpack.c.l.b16 %v678
        %v4492 = vunpack.c.h.b16 %v678
        %v4493 = vunpack.c.l.b16 %v679
        %v4494 = vunpack.c.h.b16 %v679
        %v4495 = vunpack.c.l.b16 %v680
        %v4496 = vunpack.c.h.b16 %v680
        %v4497 = vunpack.c.l.b16 %v681
        %v4498 = vunpack.c.h.b16 %v681
        %v4499 = vunpack.c.l.b16 %v682
        %v4500 = vunpack.c.h.b16 %v682
        %v4501 = vunpack.c.l.b16 %v683
        %v4502 = vunpack.c.h.b16 %v683
        %v4503 = vunpack.c.l.b16 %v684
        %v4504 = vunpack.c.h.b16 %v684
        %v4505 = vunpack.c.l.b16 %v685
        %v4506 = vunpack.c.h.b16 %v685
        %v4507 = vunpack.c.l.b16 %v686
        %v4508 = vunpack.c.h.b16 %v686
        %v4509 = vunpack.c.l.b16 %v687
        %v4510 = vunpack.c.h.b16 %v687
        %v4511 = vunpack.c.l.b16 %v688
        %v4512 = vunpack.c.h.b16 %v688
        %v4513 = vunpack.c.l.b16 %v689
        %v4514 = vunpack.c.h.b16 %v689
        %v4515 = vunpack.c.l.b16 %v690
        %v4516 = vunpack.c.h.b16 %v690
        %v4517 = vunpack.c.l.b16 %v691
        %v4518 = vunpack.c.h.b16 %v691
        %v4519 = vunpack.c.l.b16 %v692
        %v4520 = vunpack.c.h.b16 %v692
        %v4521 = vunpack.c.l.b16 %v693
        %v4522 = vunpack.c.h.b16 %v693
        %v4523 = vunpack.c.l.b16 %v694
        %v4524 = vunpack.c.h.b16 %v694
        %v4525 = vunpack.c.l.b16 %v695
        %v4526 = vunpack.c.h.b16 %v695
        %v4527 = vunpack.c.l.b16 %v696
        %v4528 = vunpack.c.h.b16 %v696
        %v4529 = vunpack.c.l.b16 %v697
        %v4530 = vunpack.c.h.b16 %v697
        %v4531 = vunpack.c.l.b16 %v698
        %v4532 = vunpack.c.h.b16 %v698
        %v4533 = vunpack.c.l.b16 %v699
        %v4534 = vunpack.c.h.b16 %v699
        %v4535 = vunpack.c.l.b16 %v700
        %v4536 = vunpack.c.h.b16 %v700
        %v4537 = vunpack.c.l.b16 %v701
        %v4538 = vunpack.c.h.b16 %v701
        %v4539 = vunpack.c.l.b16 %v702
        %v4540 = vunpack.c.h.b16 %v702
        %v4541 = vunpack.c.l.b16 %v703
        %v4542 = vunpack.c.h.b16 %v703
        %v4543 = vunpack.c.l.b16 %v704
        %v4544 = vunpack.c.h.b16 %v704
        %v4545 = vunpack.c.l.b16 %v705
        %v4546 = vunpack.c.h.b16 %v705
        %v4547 = vunpack.c.l.b16 %v706
        %v4548 = vunpack.c.h.b16 %v706
        %v4549 = vunpack.c.l.b16 %v707
        %v4550 = vunpack.c.h.b16 %v707
        %v4551 = vunpack.c.l.b16 %v708
        %v4552 = vunpack.c.h.b16 %v708
        %v4553 = vunpack.c.l.b16 %v709
        %v4554 = vunpack.c.h.b16 %v709
        %v4555 = vunpack.c.l.b16 %v710
        %v4556 = vunpack.c.h.b16 %v710
        %v4557 = vunpack.c.l.b16 %v711
        %v4558 = vunpack.c.h.b16 %v711
        %v4559 = vunpack.c.l.b16 %v712
        %v4560 = vunpack.c.h.b16 %v712
        %v4561 = vunpack.c.l.b16 %v713
        %v4562 = vunpack.c.h.b16 %v713
        %v4563 = vunpack.c.l.b16 %v714
        %v4564 = vunpack.c.h.b16 %v714
        %v4565 = vunpack.c.l.b16 %v715
        %v4566 = vunpack.c.h.b16 %v715
        %v4567 = vunpack.c.l.b16 %v716
        %v4568 = vunpack.c.h.b16 %v716
        %v4569 = vunpack.c.l.b16 %v717
        %v4570 = vunpack.c.h.b16 %v717
        %v4571 = vunpack.c.l.b16 %v718
        %v4572 = vunpack.c.h.b16 %v718
        %v4573 = vunpack.c.l.b16 %v719
        %v4574 = vunpack.c.h.b16 %v719
        %v4575 = vunpack.c.l.b16 %v720
        %v4576 = vunpack.c.h.b16 %v720
        %v4577 = vunpack.c.l.b16 %v721
        %v4578 = vunpack.c.h.b16 %v721
        %v4579 = vunpack.c.l.b16 %v722
        %v4580 = vunpack.c.h.b16 %v722
        %v4581 = vunpack.c.l.b16 %v723
        %v4582 = vunpack.c.h.b16 %v723
        %v4583 = vunpack.c.l.b16 %v724
        %v4584 = vunpack.c.h.b16 %v724
        %v4585 = vunpack.c.l.b16 %v725
        %v4586 = vunpack.c.h.b16 %v725
        %v4587 = vunpack.c.l.b16 %v726
        %v4588 = vunpack.c.h.b16 %v726
        %v4589 = vunpack.c.l.b16 %v727
        %v4590 = vunpack.c.h.b16 %v727
        %v4591 = vunpack.c.l.b16 %v728
        %v4592 = vunpack.c.h.b16 %v728
        %v4593 = vunpack.c.l.b16 %v729
        %v4594 = vunpack.c.h.b16 %v729
        %v4595 = vunpack.c.l.b16 %v730
        %v4596 = vunpack.c.h.b16 %v730
        %v4597 = vunpack.c.l.b16 %v731
        %v4598 = vunpack.c.h.b16 %v731
        %v4599 = vunpack.c.l.b16 %v732
        %v4600 = vunpack.c.h.b16 %v732
        %v4601 = vunpack.c.l.b16 %v733
        %v4602 = vunpack.c.h.b16 %v733
        %v4603 = vunpack.c.l.b16 %v734
        %v4604 = vunpack.c.h.b16 %v734
        %v4605 = vunpack.c.l.b16 %v735
        %v4606 = vunpack.c.h.b16 %v735
        %v4607 = vunpack.c.l.b16 %v736
        %v4608 = vunpack.c.h.b16 %v736
        %v4609 = vunpack.c.l.b16 %v737
        %v4610 = vunpack.c.h.b16 %v737
        %v4611 = vunpack.c.l.b16 %v738
        %v4612 = vunpack.c.h.b16 %v738
        %v4613 = vunpack.c.l.b16 %v739
        %v4614 = vunpack.c.h.b16 %v739
        %v4615 = vunpack.c.l.b16 %v740
        %v4616 = vunpack.c.h.b16 %v740
        %v4617 = vunpack.c.l.b16 %v741
        %v4618 = vunpack.c.h.b16 %v741
        %v4619 = vunpack.c.l.b16 %v742
        %v4620 = vunpack.c.h.b16 %v742
        %v4621 = vunpack.c.l.b16 %v743
        %v4622 = vunpack.c.h.b16 %v743
        %v4623 = vunpack.c.l.b16 %v744
        %v4624 = vunpack.c.h.b16 %v744
        %v4625 = vunpack.c.l.b16 %v745
        %v4626 = vunpack.c.h.b16 %v745
        %v4627 = vunpack.c.l.b16 %v746
        %v4628 = vunpack.c.h.b16 %v746
        %v4629 = vunpack.c.l.b16 %v747
        %v4630 = vunpack.c.h.b16 %v747
        %v4631 = vunpack.c.l.b16 %v748
        %v4632 = vunpack.c.h.b16 %v748
        %v4633 = vunpack.c.l.b16 %v749
        %v4634 = vunpack.c.h.b16 %v749
        %v4635 = vunpack.c.l.b16 %v750
        %v4636 = vunpack.c.h.b16 %v750
        %v4637 = vunpack.c.l.b16 %v751
        %v4638 = vunpack.c.h.b16 %v751
        %v4639 = vunpack.c.l.b16 %v752
        %v4640 = vunpack.c.h.b16 %v752
        %v4641 = vunpack.c.l.b16 %v753
        %v4642 = vunpack.c.h.b16 %v753
        %v4643 = vunpack.c.l.b16 %v754
        %v4644 = vunpack.c.h.b16 %v754
        %v4645 = vunpack.c.l.b16 %v755
        %v4646 = vunpack.c.h.b16 %v755
        %v4647 = vunpack.c.l.b16 %v756
        %v4648 = vunpack.c.h.b16 %v756
        %v4649 = vunpack.c.l.b16 %v757
        %v4650 = vunpack.c.h.b16 %v757
        %v4651 = vunpack.c.l.b16 %v758
        %v4652 = vunpack.c.h.b16 %v758
        %v4653 = vunpack.c.l.b16 %v759
        %v4654 = vunpack.c.h.b16 %v759
        %v4655 = vunpack.c.l.b16 %v760
        %v4656 = vunpack.c.h.b16 %v760
        %v4657 = vunpack.c.l.b16 %v761
        %v4658 = vunpack.c.h.b16 %v761
        %v4659 = vunpack.c.l.b16 %v762
        %v4660 = vunpack.c.h.b16 %v762
        %v4661 = vunpack.c.l.b16 %v763
        %v4662 = vunpack.c.h.b16 %v763
        %v4663 = vunpack.c.l.b16 %v764
        %v4664 = vunpack.c.h.b16 %v764
        %v4665 = vunpack.c.l.b16 %v765
        %v4666 = vunpack.c.h.b16 %v765
        %v4667 = vunpack.c.l.b16 %v766
        %v4668 = vunpack.c.h.b16 %v766
        %v4669 = vunpack.c.l.b16 %v767
        %v4670 = vunpack.c.h.b16 %v767
        %v4671 = vunpack.c.l.b16 %v768
        %v4672 = vunpack.c.h.b16 %v768
        %v4673 = vunpack.c.l.b16 %v769
        %v4674 = vunpack.c.h.b16 %v769
        %v4675 = vunpack.c.l.b16 %v770
        %v4676 = vunpack.c.h.b16 %v770
        %v4677 = vunpack.c.l.b16 %v771
        %v4678 = vunpack.c.h.b16 %v771
        %v4679 = vunpack.c.l.b16 %v772
        %v4680 = vunpack.c.h.b16 %v772
        %v4681 = vunpack.c.l.b16 %v773
        %v4682 = vunpack.c.h.b16 %v773
        %v4683 = vunpack.c.l.b16 %v774
        %v4684 = vunpack.c.h.b16 %v774
        %v4685 = vunpack.c.l.b16 %v775
        %v4686 = vunpack.c.h.b16 %v775
        %v4687 = vunpack.c.l.b16 %v776
        %v4688 = vunpack.c.h.b16 %v776
        %v4689 = vunpack.c.l.b16 %v777
        %v4690 = vunpack.c.h.b16 %v777
        %v4691 = vunpack.c.l.b16 %v778
        %v4692 = vunpack.c.h.b16 %v778
        %v4693 = vunpack.c.l.b16 %v779
        %v4694 = vunpack.c.h.b16 %v779
        %v4695 = vunpack.c.l.b16 %v780
        %v4696 = vunpack.c.h.b16 %v780
        %v4697 = vunpack.c.l.b16 %v781
        %v4698 = vunpack.c.h.b16 %v781
        %v4699 = vunpack.c.l.b16 %v782
        %v4700 = vunpack.c.h.b16 %v782
        %v4701 = vunpack.c.l.b16 %v783
        %v4702 = vunpack.c.h.b16 %v783
        %v4703 = vunpack.c.l.b16 %v784
        %v4704 = vunpack.c.h.b16 %v784
        %v4705 = vunpack.c.l.b16 %v785
        %v4706 = vunpack.c.h.b16 %v785
        %v4707 = vunpack.c.l.b16 %v786
        %v4708 = vunpack.c.h.b16 %v786
        %v4709 = vunpack.c.l.b16 %v787
        %v4710 = vunpack.c.h.b16 %v787
        %v4711 = vunpack.c.l.b16 %v788
        %v4712 = vunpack.c.h.b16 %v788
        %v4713 = vunpack.c.l.b16 %v789
        %v4714 = vunpack.c.h.b16 %v789
        %v4715 = vunpack.c.l.b16 %v790
        %v4716 = vunpack.c.h.b16 %v790
        %v4717 = vunpack.c.l.b16 %v791
        %v4718 = vunpack.c.h.b16 %v791
        %v4719 = vunpack.c.l.b16 %v792
        %v4720 = vunpack.c.h.b16 %v792
        %v4721 = vunpack.c.l.b16 %v793
        %v4722 = vunpack.c.h.b16 %v793
        %v4723 = vunpack.c.l.b16 %v794
        %v4724 = vunpack.c.h.b16 %v794
        %v4725 = vunpack.c.l.b16 %v795
        %v4726 = vunpack.c.h.b16 %v795
        %v4727 = vunpack.c.l.b16 %v796
        %v4728 = vunpack.c.h.b16 %v796
        %v4729 = vunpack.c.l.b16 %v797
        %v4730 = vunpack.c.h.b16 %v797
        %v4731 = vunpack.c.l.b16 %v798
        %v4732 = vunpack.c.h.b16 %v798
        %v4733 = vunpack.c.l.b16 %v799
        %v4734 = vunpack.c.h.b16 %v799
        %v4735 = vunpack.c.l.b16 %v800
        %v4736 = vunpack.c.h.b16 %v800
        %v4737 = vunpack.c.l.b16 %v801
        %v4738 = vunpack.c.h.b16 %v801
        %v4739 = vunpack.c.l.b16 %v802
        %v4740 = vunpack.c.h.b16 %v802
        %v4741 = vunpack.c.l.b16 %v803
        %v4742 = vunpack.c.h.b16 %v803
        %v4743 = vunpack.c.l.b16 %v804
        %v4744 = vunpack.c.h.b16 %v804
        %v4745 = vunpack.c.l.b16 %v805
        %v4746 = vunpack.c.h.b16 %v805
        %v4747 = vunpack.c.l.b16 %v806
        %v4748 = vunpack.c.h.b16 %v806
        %v4749 = vunpack.c.l.b16 %v807
        %v4750 = vunpack.c.h.b16 %v807
        %v4751 = vunpack.c.l.b16 %v808
        %v4752 = vunpack.c.h.b16 %v808
        %v4753 = vunpack.c.l.b16 %v809
        %v4754 = vunpack.c.h.b16 %v809
        %v4755 = vunpack.c.l.b16 %v810
        %v4756 = vunpack.c.h.b16 %v810
        %v4757 = vunpack.c.l.b16 %v811
        %v4758 = vunpack.c.h.b16 %v811
        %v4759 = vunpack.c.l.b16 %v812
        %v4760 = vunpack.c.h.b16 %v812
        %v4761 = vunpack.c.l.b16 %v813
        %v4762 = vunpack.c.h.b16 %v813
        %v4763 = vunpack.c.l.b16 %v814
        %v4764 = vunpack.c.h.b16 %v814
        %v4765 = vunpack.c.l.b16 %v815
        %v4766 = vunpack.c.h.b16 %v815
        %v4767 = vunpack.c.l.b16 %v816
        %v4768 = vunpack.c.h.b16 %v816
        %v4769 = vunpack.c.l.b16 %v817
        %v4770 = vunpack.c.h.b16 %v817
        %v4771 = vunpack.c.l.b16 %v818
        %v4772 = vunpack.c.h.b16 %v818
        %v4773 = vunpack.c.l.b16 %v819
        %v4774 = vunpack.c.h.b16 %v819
        %v4775 = vunpack.c.l.b16 %v820
        %v4776 = vunpack.c.h.b16 %v820
        %v4777 = vunpack.c.l.b16 %v821
        %v4778 = vunpack.c.h.b16 %v821
        %v4779 = vunpack.c.l.b16 %v822
        %v4780 = vunpack.c.h.b16 %v822
        %v4781 = vunpack.c.l.b16 %v823
        %v4782 = vunpack.c.h.b16 %v823
        %v4783 = vunpack.c.l.b16 %v824
        %v4784 = vunpack.c.h.b16 %v824
        %v4785 = vunpack.c.l.b16 %v825
        %v4786 = vunpack.c.h.b16 %v825
        %v4787 = vunpack.c.l.b16 %v826
        %v4788 = vunpack.c.h.b16 %v826
        %v4789 = vunpack.c.l.b16 %v827
        %v4790 = vunpack.c.h.b16 %v827
        %v4791 = vunpack.c.l.b16 %v828
        %v4792 = vunpack.c.h.b16 %v828
        %v4793 = vunpack.c.l.b16 %v829
        %v4794 = vunpack.c.h.b16 %v829
        %v4795 = vunpack.c.l.b16 %v830
        %v4796 = vunpack.c.h.b16 %v830
        %v4797 = vunpack.c.l.b16 %v831
        %v4798 = vunpack.c.h.b16 %v831
        %v4799 = vunpack.c.l.b16 %v832
        %v4800 = vunpack.c.h.b16 %v832
        %v4801 = vunpack.c.l.b16 %v833
        %v4802 = vunpack.c.h.b16 %v833
        %v4803 = vunpack.c.l.b16 %v834
        %v4804 = vunpack.c.h.b16 %v834
        %v4805 = vunpack.c.l.b16 %v835
        %v4806 = vunpack.c.h.b16 %v835
        %v4807 = vunpack.c.l.b16 %v836
        %v4808 = vunpack.c.h.b16 %v836
        %v4809 = vunpack.c.l.b16 %v837
        %v4810 = vunpack.c.h.b16 %v837
        %v4811 = vunpack.c.l.b16 %v838
        %v4812 = vunpack.c.h.b16 %v838
        %v4813 = vunpack.c.l.b16 %v839
        %v4814 = vunpack.c.h.b16 %v839
        %v4815 = vunpack.c.l.b16 %v840
        %v4816 = vunpack.c.h.b16 %v840
        %v4817 = vunpack.c.l.b16 %v841
        %v4818 = vunpack.c.h.b16 %v841
        %v4819 = vunpack.c.l.b16 %v842
        %v4820 = vunpack.c.h.b16 %v842
        %v4821 = vunpack.c.l.b16 %v843
        %v4822 = vunpack.c.h.b16 %v843
        %v4823 = vunpack.c.l.b16 %v844
        %v4824 = vunpack.c.h.b16 %v844
        %v4825 = vunpack.c.l.b16 %v845
        %v4826 = vunpack.c.h.b16 %v845
        %v4827 = vunpack.c.l.b16 %v846
        %v4828 = vunpack.c.h.b16 %v846
        %v4829 = vunpack.c.l.b16 %v847
        %v4830 = vunpack.c.h.b16 %v847
        %v4831 = vunpack.c.l.b16 %v848
        %v4832 = vunpack.c.h.b16 %v848
        %v4833 = vunpack.c.l.b16 %v849
        %v4834 = vunpack.c.h.b16 %v849
        %v4835 = vunpack.c.l.b16 %v850
        %v4836 = vunpack.c.h.b16 %v850
        %v4837 = vunpack.c.l.b16 %v851
        %v4838 = vunpack.c.h.b16 %v851
        %v4839 = vunpack.c.l.b16 %v852
        %v4840 = vunpack.c.h.b16 %v852
        %v4841 = vunpack.c.l.b16 %v853
        %v4842 = vunpack.c.h.b16 %v853
        %v4843 = vunpack.c.l.b16 %v854
        %v4844 = vunpack.c.h.b16 %v854
        %v4845 = vunpack.c.l.b16 %v855
        %v4846 = vunpack.c.h.b16 %v855
        %v4847 = vunpack.c.l.b16 %v856
        %v4848 = vunpack.c.h.b16 %v856
        %v4849 = vunpack.c.l.b16 %v857
        %v4850 = vunpack.c.h.b16 %v857
        %v4851 = vunpack.c.l.b16 %v858
        %v4852 = vunpack.c.h.b16 %v858
        %v4853 = vunpack.c.l.b16 %v859
        %v4854 = vunpack.c.h.b16 %v859
        %v4855 = vunpack.c.l.b16 %v860
        %v4856 = vunpack.c.h.b16 %v860
        %v4857 = vunpack.c.l.b16 %v861
        %v4858 = vunpack.c.h.b16 %v861
        %v4859 = vunpack.c.l.b16 %v862
        %v4860 = vunpack.c.h.b16 %v862
        %v4861 = vunpack.c.l.b16 %v863
        %v4862 = vunpack.c.h.b16 %v863
        %v4863 = vunpack.c.l.b16 %v864
        %v4864 = vunpack.c.h.b16 %v864
        %v4865 = vunpack.c.l.b16 %v865
        %v4866 = vunpack.c.h.b16 %v865
        %v4867 = vunpack.c.l.b16 %v866
        %v4868 = vunpack.c.h.b16 %v866
        %v4869 = vunpack.c.l.b16 %v867
        %v4870 = vunpack.c.h.b16 %v867
        %v4871 = vunpack.c.l.b16 %v868
        %v4872 = vunpack.c.h.b16 %v868
        %v4873 = vunpack.c.l.b16 %v869
        %v4874 = vunpack.c.h.b16 %v869
        %v4875 = vunpack.c.l.b16 %v870
        %v4876 = vunpack.c.h.b16 %v870
        %v4877 = vunpack.c.l.b16 %v871
        %v4878 = vunpack.c.h.b16 %v871
        %v4879 = vunpack.c.l.b16 %v872
        %v4880 = vunpack.c.h.b16 %v872
        %v4881 = vunpack.c.l.b16 %v873
        %v4882 = vunpack.c.h.b16 %v873
        %v4883 = vunpack.c.l.b16 %v874
        %v4884 = vunpack.c.h.b16 %v874
        %v4885 = vunpack.c.l.b16 %v875
        %v4886 = vunpack.c.h.b16 %v875
        %v4887 = vunpack.c.l.b16 %v876
        %v4888 = vunpack.c.h.b16 %v876
        %v4889 = vunpack.c.l.b16 %v877
        %v4890 = vunpack.c.h.b16 %v877
        %v4891 = vunpack.c.l.b16 %v878
        %v4892 = vunpack.c.h.b16 %v878
        %v4893 = vunpack.c.l.b16 %v879
        %v4894 = vunpack.c.h.b16 %v879
        %v4895 = vunpack.c.l.b16 %v880
        %v4896 = vunpack.c.h.b16 %v880
        %v4897 = vunpack.c.l.b16 %v881
        %v4898 = vunpack.c.h.b16 %v881
        %v4899 = vunpack.c.l.b16 %v882
        %v4900 = vunpack.c.h.b16 %v882
        %v4901 = vunpack.c.l.b16 %v883
        %v4902 = vunpack.c.h.b16 %v883
        %v4903 = vunpack.c.l.b16 %v884
        %v4904 = vunpack.c.h.b16 %v884
        %v4905 = vunpack.c.l.b16 %v885
        %v4906 = vunpack.c.h.b16 %v885
        %v4907 = vunpack.c.l.b16 %v886
        %v4908 = vunpack.c.h.b16 %v886
        %v4909 = vunpack.c.l.b16 %v887
        %v4910 = vunpack.c.h.b16 %v887
        %v4911 = vunpack.c.l.b16 %v888
        %v4912 = vunpack.c.h.b16 %v888
        %v4913 = vunpack.c.l.b16 %v889
        %v4914 = vunpack.c.h.b16 %v889
        %v4915 = vunpack.c.l.b16 %v890
        %v4916 = vunpack.c.h.b16 %v890
        %v4917 = vunpack.c.l.b16 %v891
        %v4918 = vunpack.c.h.b16 %v891
        %v4919 = vunpack.c.l.b16 %v892
        %v4920 = vunpack.c.h.b16 %v892
        %v4921 = vunpack.c.l.b16 %v893
        %v4922 = vunpack.c.h.b16 %v893
        %v4923 = vunpack.c.l.b16 %v894
        %v4924 = vunpack.c.h.b16 %v894
        %v4925 = vunpack.c.l.b16 %v895
        %v4926 = vunpack.c.h.b16 %v895
        %v4927 = vunpack.c.l.b16 %v896
        %v4928 = vunpack.c.h.b16 %v896
        %v4929 = vunpack.c.l.b16 %v897
        %v4930 = vunpack.c.h.b16 %v897
        %v4931 = vunpack.c.l.b16 %v898
        %v4932 = vunpack.c.h.b16 %v898
        %v4933 = vunpack.c.l.b16 %v899
        %v4934 = vunpack.c.h.b16 %v899
        %v4935 = vunpack.c.l.b16 %v900
        %v4936 = vunpack.c.h.b16 %v900
        %v4937 = vunpack.c.l.b16 %v901
        %v4938 = vunpack.c.h.b16 %v901
        %v4939 = vunpack.c.l.b16 %v902
        %v4940 = vunpack.c.h.b16 %v902
        %v4941 = vunpack.c.l.b16 %v903
        %v4942 = vunpack.c.h.b16 %v903
        %v4943 = vunpack.c.l.b16 %v904
        %v4944 = vunpack.c.h.b16 %v904
        %v4945 = vunpack.c.l.b16 %v905
        %v4946 = vunpack.c.h.b16 %v905
        %v4947 = vunpack.c.l.b16 %v906
        %v4948 = vunpack.c.h.b16 %v906
        %v4949 = vunpack.c.l.b16 %v907
        %v4950 = vunpack.c.h.b16 %v907
        %v4951 = vunpack.c.l.b16 %v908
        %v4952 = vunpack.c.h.b16 %v908
        %v4953 = vunpack.c.l.b16 %v909
        %v4954 = vunpack.c.h.b16 %v909
        %v4955 = vunpack.c.l.b16 %v910
        %v4956 = vunpack.c.h.b16 %v910
        %v4957 = vunpack.c.l.b16 %v911
        %v4958 = vunpack.c.h.b16 %v911
        %v4959 = vunpack.c.l.b16 %v912
        %v4960 = vunpack.c.h.b16 %v912
        %v4961 = vunpack.c.l.b16 %v913
        %v4962 = vunpack.c.h.b16 %v913
        %v4963 = vunpack.c.l.b16 %v914
        %v4964 = vunpack.c.h.b16 %v914
        %v4965 = vunpack.c.l.b16 %v915
        %v4966 = vunpack.c.h.b16 %v915
        %v4967 = vunpack.c.l.b16 %v916
        %v4968 = vunpack.c.h.b16 %v916
        %v4969 = vunpack.c.l.b16 %v917
        %v4970 = vunpack.c.h.b16 %v917
        %v4971 = vunpack.c.l.b16 %v918
        %v4972 = vunpack.c.h.b16 %v918
        %v4973 = vunpack.c.l.b16 %v919
        %v4974 = vunpack.c.h.b16 %v919
        %v4975 = vunpack.c.l.b16 %v920
        %v4976 = vunpack.c.h.b16 %v920
        %v4977 = vunpack.c.l.b16 %v921
        %v4978 = vunpack.c.h.b16 %v921
        %v4979 = vunpack.c.l.b16 %v922
        %v4980 = vunpack.c.h.b16 %v922
        %v4981 = vunpack.c.l.b16 %v923
        %v4982 = vunpack.c.h.b16 %v923
        %v4983 = vunpack.c.l.b16 %v924
        %v4984 = vunpack.c.h.b16 %v924
        %v4985 = vunpack.c.l.b16 %v925
        %v4986 = vunpack.c.h.b16 %v925
        %v4987 = vunpack.c.l.b16 %v926
        %v4988 = vunpack.c.h.b16 %v926
        %v4989 = vunpack.c.l.b16 %v927
        %v4990 = vunpack.c.h.b16 %v927
        %v4991 = vunpack.c.l.b16 %v928
        %v4992 = vunpack.c.h.b16 %v928
        %v4993 = vunpack.c.l.b16 %v929
        %v4994 = vunpack.c.h.b16 %v929
        %v4995 = vunpack.c.l.b16 %v930
        %v4996 = vunpack.c.h.b16 %v930
        %v4997 = vunpack.c.l.b16 %v931
        %v4998 = vunpack.c.h.b16 %v931
        %v4999 = vunpack.c.l.b16 %v932
        %v5000 = vunpack.c.h.b16 %v932
        %v5001 = vunpack.c.l.b16 %v933
        %v5002 = vunpack.c.h.b16 %v933
        %v5003 = vunpack.c.l.b16 %v934
        %v5004 = vunpack.c.h.b16 %v934
        %v5005 = vunpack.c.l.b16 %v935
        %v5006 = vunpack.c.h.b16 %v935
        %v5007 = vunpack.c.l.b16 %v936
        %v5008 = vunpack.c.h.b16 %v936
        %v5009 = vunpack.c.l.b16 %v937
        %v5010 = vunpack.c.h.b16 %v937
        %v5011 = vunpack.c.l.b16 %v938
        %v5012 = vunpack.c.h.b16 %v938
        %v5013 = vunpack.c.l.b16 %v939
        %v5014 = vunpack.c.h.b16 %v939
        %v5015 = vunpack.c.l.b16 %v940
        %v5016 = vunpack.c.h.b16 %v940
        %v5017 = vunpack.c.l.b16 %v941
        %v5018 = vunpack.c.h.b16 %v941
        %v5019 = vunpack.c.l.b16 %v942
        %v5020 = vunpack.c.h.b16 %v942
        %v5021 = vunpack.c.l.b16 %v943
        %v5022 = vunpack.c.h.b16 %v943
        %v5023 = vunpack.c.l.b16 %v944
        %v5024 = vunpack.c.h.b16 %v944
        %v5025 = vunpack.c.l.b16 %v945
        %v5026 = vunpack.c.h.b16 %v945
        %v5027 = vunpack.c.l.b16 %v946
        %v5028 = vunpack.c.h.b16 %v946
        %v5029 = vunpack.c.l.b16 %v947
        %v5030 = vunpack.c.h.b16 %v947
        %v5031 = vunpack.c.l.b16 %v948
        %v5032 = vunpack.c.h.b16 %v948
        %v5033 = vunpack.c.l.b16 %v949
        %v5034 = vunpack.c.h.b16 %v949
        %v5035 = vunpack.c.l.b16 %v950
        %v5036 = vunpack.c.h.b16 %v950
        %v5037 = vunpack.c.l.b16 %v951
        %v5038 = vunpack.c.h.b16 %v951
        %v5039 = vunpack.c.l.b16 %v952
        %v5040 = vunpack.c.h.b16 %v952
        %v5041 = vunpack.c.l.b16 %v953
        %v5042 = vunpack.c.h.b16 %v953
        %v5043 = vunpack.c.l.b16 %v954
        %v5044 = vunpack.c.h.b16 %v954
        %v5045 = vunpack.c.l.b16 %v955
        %v5046 = vunpack.c.h.b16 %v955
        %v5047 = vunpack.c.l.b16 %v956
        %v5048 = vunpack.c.h.b16 %v956
        %v5049 = vunpack.c.l.b16 %v957
        %v5050 = vunpack.c.h.b16 %v957
        %v5051 = vunpack.c.l.b16 %v958
        %v5052 = vunpack.c.h.b16 %v958
        %v5053 = vunpack.c.l.b16 %v959
        %v5054 = vunpack.c.h.b16 %v959
        %v5055 = vunpack.c.l.b16 %v960
        %v5056 = vunpack.c.h.b16 %v960
        %v5057 = vunpack.c.l.b16 %v961
        %v5058 = vunpack.c.h.b16 %v961
        %v5059 = vunpack.c.l.b16 %v962
        %v5060 = vunpack.c.h.b16 %v962
        %v5061 = vunpack.c.l.b16 %v963
        %v5062 = vunpack.c.h.b16 %v963
        %v5063 = vunpack.c.l.b16 %v964
        %v5064 = vunpack.c.h.b16 %v964
        %v5065 = vunpack.c.l.b16 %v965
        %v5066 = vunpack.c.h.b16 %v965
        %v5067 = vunpack.c.l.b16 %v966
        %v5068 = vunpack.c.h.b16 %v966
        %v5069 = vunpack.c.l.b16 %v967
        %v5070 = vunpack.c.h.b16 %v967
        %v5071 = vunpack.c.l.b16 %v968
        %v5072 = vunpack.c.h.b16 %v968
        %v5073 = vunpack.c.l.b16 %v969
        %v5074 = vunpack.c.h.b16 %v969
        %v5075 = vunpack.c.l.b16 %v970
        %v5076 = vunpack.c.h.b16 %v970
        %v5077 = vunpack.c.l.b16 %v971
        %v5078 = vunpack.c.h.b16 %v971
        %v5079 = vunpack.c.l.b16 %v972
        %v5080 = vunpack.c.h.b16 %v972
        %v5081 = vunpack.c.l.b16 %v973
        %v5082 = vunpack.c.h.b16 %v973
        %v5083 = vunpack.c.l.b16 %v974
        %v5084 = vunpack.c.h.b16 %v974
        %v5085 = vunpack.c.l.b16 %v975
        %v5086 = vunpack.c.h.b16 %v975
        %v5087 = vunpack.c.l.b16 %v976
        %v5088 = vunpack.c.h.b16 %v976
        %v5089 = vunpack.c.l.b16 %v977
        %v5090 = vunpack.c.h.b16 %v977
        %v5091 = vunpack.c.l.b16 %v978
        %v5092 = vunpack.c.h.b16 %v978
        %v5093 = vunpack.c.l.b16 %v979
        %v5094 = vunpack.c.h.b16 %v979
        %v5095 = vunpack.c.l.b16 %v980
        %v5096 = vunpack.c.h.b16 %v980
        %v5097 = vunpack.c.l.b16 %v981
        %v5098 = vunpack.c.h.b16 %v981
        %v5099 = vunpack.c.l.b16 %v982
        %v5100 = vunpack.c.h.b16 %v982
        %v5101 = vunpack.c.l.b16 %v983
        %v5102 = vunpack.c.h.b16 %v983
        %v5103 = vunpack.c.l.b16 %v984
        %v5104 = vunpack.c.h.b16 %v984
        %v5105 = vunpack.c.l.b16 %v985
        %v5106 = vunpack.c.h.b16 %v985
        %v5107 = vunpack.c.l.b16 %v986
        %v5108 = vunpack.c.h.b16 %v986
        %v5109 = vunpack.c.l.b16 %v987
        %v5110 = vunpack.c.h.b16 %v987
        %v5111 = vunpack.c.l.b16 %v988
        %v5112 = vunpack.c.h.b16 %v988
        %v5113 = vunpack.c.l.b16 %v989
        %v5114 = vunpack.c.h.b16 %v989
        %v5115 = vunpack.c.l.b16 %v990
        %v5116 = vunpack.c.h.b16 %v990
        %v5117 = vunpack.c.l.b16 %v991
        %v5118 = vunpack.c.h.b16 %v991
        %v5119 = vunpack.c.l.b16 %v992
        %v5120 = vunpack.c.h.b16 %v992
        %v5121 = vunpack.c.l.b16 %v993
        %v5122 = vunpack.c.h.b16 %v993
        %v5123 = vunpack.c.l.b16 %v994
        %v5124 = vunpack.c.h.b16 %v994
        %v5125 = vunpack.c.l.b16 %v995
        %v5126 = vunpack.c.h.b16 %v995
        %v5127 = vunpack.c.l.b16 %v996
        %v5128 = vunpack.c.h.b16 %v996
        %v5129 = vunpack.c.l.b16 %v997
        %v5130 = vunpack.c.h.b16 %v997
        %v5131 = vunpack.c.l.b16 %v998
        %v5132 = vunpack.c.h.b16 %v998
        %v5133 = vunpack.c.l.b16 %v999
        %v5134 = vunpack.c.h.b16 %v999
        %v5135 = vunpack.c.l.b16 %v1000
        %v5136 = vunpack.c.h.b16 %v1000
        %v5137 = vunpack.c.l.b16 %v1001
        %v5138 = vunpack.c.h.b16 %v1001
        %v5139 = vunpack.c.l.b16 %v1002
        %v5140 = vunpack.c.h.b16 %v1002
        %v5141 = vunpack.c.l.b16 %v1003
        %v5142 = vunpack.c.h.b16 %v1003
        %v5143 = vunpack.c.l.b16 %v1004
        %v5144 = vunpack.c.h.b16 %v1004
        %v5145 = vunpack.c.l.b16 %v1005
        %v5146 = vunpack.c.h.b16 %v1005
        %v5147 = vunpack.c.l.b16 %v1006
        %v5148 = vunpack.c.h.b16 %v1006
        %v5149 = vunpack.c.l.b16 %v1007
        %v5150 = vunpack.c.h.b16 %v1007
        %v5151 = vunpack.c.l.b16 %v1008
        %v5152 = vunpack.c.h.b16 %v1008
        %v5153 = vunpack.c.l.b16 %v1009
        %v5154 = vunpack.c.h.b16 %v1009
        %v5155 = vunpack.c.l.b16 %v1010
        %v5156 = vunpack.c.h.b16 %v1010
        %v5157 = vunpack.c.l.b16 %v1011
        %v5158 = vunpack.c.h.b16 %v1011
        %v5159 = vunpack.c.l.b16 %v1012
        %v5160 = vunpack.c.h.b16 %v1012
        %v5161 = vunpack.c.l.b16 %v1013
        %v5162 = vunpack.c.h.b16 %v1013
        %v5163 = vunpack.c.l.b16 %v1014
        %v5164 = vunpack.c.h.b16 %v1014
        %v5165 = vunpack.c.l.b16 %v1015
        %v5166 = vunpack.c.h.b16 %v1015
        %v5167 = vunpack.c.l.b16 %v1016
        %v5168 = vunpack.c.h.b16 %v1016
        %v5169 = vunpack.c.l.b16 %v1017
        %v5170 = vunpack.c.h.b16 %v1017
        %v5171 = vunpack.c.l.b16 %v1018
        %v5172 = vunpack.c.h.b16 %v1018
        %v5173 = vunpack.c.l.b16 %v1019
        %v5174 = vunpack.c.h.b16 %v1019
        %v5175 = vunpack.c.l.b16 %v1020
        %v5176 = vunpack.c.h.b16 %v1020
        %v5177 = vunpack.c.l.b16 %v1021
        %v5178 = vunpack.c.h.b16 %v1021
        %v5179 = vunpack.c.l.b16 %v1022
        %v5180 = vunpack.c.h.b16 %v1022
        %v5181 = vunpack.c.l.b16 %v1023
        %v5182 = vunpack.c.h.b16 %v1023
        %v5183 = vunpack.c.l.b16 %v1024
        %v5184 = vunpack.c.h.b16 %v1024
        %v5185 = vunpack.c.l.b16 %v1025
        %v5186 = vunpack.c.h.b16 %v1025
        %v5187 = vunpack.c.l.b16 %v1026
        %v5188 = vunpack.c.h.b16 %v1026
        %v5189 = vunpack.c.l.b16 %v1027
        %v5190 = vunpack.c.h.b16 %v1027
        %v5191 = vunpack.c.l.b16 %v1028
        %v5192 = vunpack.c.h.b16 %v1028
        %v5193 = vunpack.c.l.b16 %v1029
        %v5194 = vunpack.c.h.b16 %v1029
        %v5195 = vunpack.c.l.b16 %v1030
        %v5196 = vunpack.c.h.b16 %v1030
        %v5197 = vunpack.c.l.b16 %v1031
        %v5198 = vunpack.c.h.b16 %v1031
        %v5199 = vunpack.c.l.b16 %v1032
        %v5200 = vunpack.c.h.b16 %v1032
        %v5201 = vunpack.c.l.b16 %v1033
        %v5202 = vunpack.c.h.b16 %v1033
        %v5203 = vunpack.c.l.b16 %v1034
        %v5204 = vunpack.c.h.b16 %v1034
        %v5205 = vunpack.c.l.b16 %v1035
        %v5206 = vunpack.c.h.b16 %v1035
        %v5207 = vunpack.c.l.b16 %v1036
        %v5208 = vunpack.c.h.b16 %v1036
        %v5209 = vunpack.c.l.b16 %v1037
        %v5210 = vunpack.c.h.b16 %v1037
        %v5211 = vunpack.c.l.b16 %v1038
        %v5212 = vunpack.c.h.b16 %v1038
        %v5213 = vunpack.c.l.b16 %v1039
        %v5214 = vunpack.c.h.b16 %v1039
        %v5215 = vunpack.c.l.b16 %v1040
        %v5216 = vunpack.c.h.b16 %v1040
        %v5217 = vunpack.c.l.b16 %v1041
        %v5218 = vunpack.c.h.b16 %v1041
        %v5219 = vunpack.c.l.b16 %v1042
        %v5220 = vunpack.c.h.b16 %v1042
        %v5221 = vunpack.c.l.b16 %v1043
        %v5222 = vunpack.c.h.b16 %v1043
        %v5223 = vunpack.c.l.b16 %v1044
        %v5224 = vunpack.c.h.b16 %v1044
        %v5225 = vunpack.c.l.b16 %v1045
        %v5226 = vunpack.c.h.b16 %v1045
        %v5227 = vunpack.c.l.b16 %v1046
        %v5228 = vunpack.c.h.b16 %v1046
        %v5229 = vunpack.c.l.b16 %v1047
        %v5230 = vunpack.c.h.b16 %v1047
        %v5231 = vunpack.c.l.b16 %v1048
        %v5232 = vunpack.c.h.b16 %v1048
        %v5233 = vunpack.c.l.b16 %v1049
        %v5234 = vunpack.c.h.b16 %v1049
        %v5235 = vunpack.c.l.b16 %v1050
        %v5236 = vunpack.c.h.b16 %v1050
        %v5237 = vunpack.c.l.b16 %v1051
        %v5238 = vunpack.c.h.b16 %v1051
        %v5239 = vunpack.c.l.b16 %v1052
        %v5240 = vunpack.c.h.b16 %v1052
        %v5241 = vunpack.c.l.b16 %v1053
        %v5242 = vunpack.c.h.b16 %v1053
        %v5243 = vunpack.c.l.b16 %v1054
        %v5244 = vunpack.c.h.b16 %v1054
        %v5245 = vunpack.c.l.b16 %v1055
        %v5246 = vunpack.c.h.b16 %v1055
        %v5247 = vunpack.c.l.b16 %v1056
        %v5248 = vunpack.c.h.b16 %v1056
        %v5249 = vunpack.c.l.b16 %v1057
        %v5250 = vunpack.c.h.b16 %v1057
        %v5251 = vunpack.c.l.b16 %v1058
        %v5252 = vunpack.c.h.b16 %v1058
        %v5253 = vunpack.c.l.b16 %v1059
        %v5254 = vunpack.c.h.b16 %v1059
        %v5255 = vunpack.c.l.b16 %v1060
        %v5256 = vunpack.c.h.b16 %v1060
        %v5257 = vunpack.c.l.b16 %v1061
        %v5258 = vunpack.c.h.b16 %v1061
        %v5259 = vunpack.c.l.b16 %v1062
        %v5260 = vunpack.c.h.b16 %v1062
        %v5261 = vunpack.c.l.b16 %v1063
        %v5262 = vunpack.c.h.b16 %v1063
        %v5263 = vunpack.c.l.b16 %v1064
        %v5264 = vunpack.c.h.b16 %v1064
        %v5265 = vunpack.c.l.b16 %v1065
        %v5266 = vunpack.c.h.b16 %v1065
        %v5267 = vunpack.c.l.b16 %v1066
        %v5268 = vunpack.c.h.b16 %v1066
        %v5269 = vunpack.c.l.b16 %v1067
        %v5270 = vunpack.c.h.b16 %v1067
        %v5271 = vunpack.c.l.b16 %v1068
        %v5272 = vunpack.c.h.b16 %v1068
        %v5273 = vunpack.c.l.b16 %v1069
        %v5274 = vunpack.c.h.b16 %v1069
        %v5275 = vunpack.c.l.b16 %v1070
        %v5276 = vunpack.c.h.b16 %v1070
        %v5277 = vunpack.c.l.b16 %v1071
        %v5278 = vunpack.c.h.b16 %v1071
        %v5279 = vunpack.c.l.b16 %v1072
        %v5280 = vunpack.c.h.b16 %v1072
        %v5281 = vunpack.c.l.b16 %v1073
        %v5282 = vunpack.c.h.b16 %v1073
        %v5283 = vunpack.c.l.b16 %v1074
        %v5284 = vunpack.c.h.b16 %v1074
        %v5285 = vunpack.c.l.b16 %v1075
        %v5286 = vunpack.c.h.b16 %v1075
        %v5287 = vunpack.c.l.b16 %v1076
        %v5288 = vunpack.c.h.b16 %v1076
        %v5289 = vunpack.c.l.b16 %v1077
        %v5290 = vunpack.c.h.b16 %v1077
        %v5291 = vunpack.c.l.b16 %v1078
        %v5292 = vunpack.c.h.b16 %v1078
        %v5293 = vunpack.c.l.b16 %v1079
        %v5294 = vunpack.c.h.b16 %v1079
        %v5295 = vunpack.c.l.b16 %v1080
        %v5296 = vunpack.c.h.b16 %v1080
        %v5297 = vunpack.c.l.b16 %v1081
        %v5298 = vunpack.c.h.b16 %v1081
        %v5299 = vunpack.c.l.b16 %v1082
        %v5300 = vunpack.c.h.b16 %v1082
        %v5301 = vunpack.c.l.b16 %v1083
        %v5302 = vunpack.c.h.b16 %v1083
        %v5303 = vunpack.c.l.b16 %v1084
        %v5304 = vunpack.c.h.b16 %v1084
        %v5305 = vunpack.c.l.b16 %v1085
        %v5306 = vunpack.c.h.b16 %v1085
        %v5307 = vunpack.c.l.b16 %v1086
        %v5308 = vunpack.c.h.b16 %v1086
        %v5309 = vunpack.c.l.b16 %v1087
        %v5310 = vunpack.c.h.b16 %v1087
        %v5311 = vunpack.c.l.b16 %v1088
        %v5312 = vunpack.c.h.b16 %v1088
        %v5313 = vunpack.c.l.b16 %v1089
        %v5314 = vunpack.c.h.b16 %v1089
        %v5315 = vunpack.c.l.b16 %v1090
        %v5316 = vunpack.c.h.b16 %v1090
        %v5317 = vunpack.c.l.b16 %v1091
        %v5318 = vunpack.c.h.b16 %v1091
        %v5319 = vunpack.c.l.b16 %v1092
        %v5320 = vunpack.c.h.b16 %v1092
        %v5321 = vunpack.c.l.b16 %v1093
        %v5322 = vunpack.c.h.b16 %v1093
        %v5323 = vunpack.c.l.b16 %v1094
        %v5324 = vunpack.c.h.b16 %v1094
        %v5325 = vunpack.c.l.b16 %v1095
        %v5326 = vunpack.c.h.b16 %v1095
        %v5327 = vunpack.c.l.b16 %v1096
        %v5328 = vunpack.c.h.b16 %v1096
        %v5329 = vunpack.c.l.b16 %v1097
        %v5330 = vunpack.c.h.b16 %v1097
        %v5331 = vunpack.c.l.b16 %v1098
        %v5332 = vunpack.c.h.b16 %v1098
        %v5333 = vunpack.c.l.b16 %v1099
        %v5334 = vunpack.c.h.b16 %v1099
        %v5335 = vunpack.c.l.b16 %v1100
        %v5336 = vunpack.c.h.b16 %v1100
        %v5337 = vunpack.c.l.b16 %v1101
        %v5338 = vunpack.c.h.b16 %v1101
        %v5339 = vunpack.c.l.b16 %v1102
        %v5340 = vunpack.c.h.b16 %v1102
        %v5341 = vunpack.c.l.b16 %v1103
        %v5342 = vunpack.c.h.b16 %v1103
        %v5343 = vunpack.c.l.b16 %v1104
        %v5344 = vunpack.c.h.b16 %v1104
        %v5345 = vunpack.c.l.b16 %v1105
        %v5346 = vunpack.c.h.b16 %v1105
        %v5347 = vunpack.c.l.b16 %v1106
        %v5348 = vunpack.c.h.b16 %v1106
        %v5349 = vunpack.c.l.b16 %v1107
        %v5350 = vunpack.c.h.b16 %v1107
        %v5351 = vunpack.c.l.b16 %v1108
        %v5352 = vunpack.c.h.b16 %v1108
        %v5353 = vunpack.c.l.b16 %v1109
        %v5354 = vunpack.c.h.b16 %v1109
        %v5355 = vunpack.c.l.b16 %v1110
        %v5356 = vunpack.c.h.b16 %v1110
        %v5357 = vunpack.c.l.b16 %v1111
        %v5358 = vunpack.c.h.b16 %v1111
        %v5359 = vunpack.c.l.b16 %v1112
        %v5360 = vunpack.c.h.b16 %v1112
        %v5361 = vunpack.c.l.b16 %v1113
        %v5362 = vunpack.c.h.b16 %v1113
        %v5363 = vunpack.c.l.b16 %v1114
        %v5364 = vunpack.c.h.b16 %v1114
        %v5365 = vunpack.c.l.b16 %v1115
        %v5366 = vunpack.c.h.b16 %v1115
        %v5367 = vunpack.c.l.b16 %v1116
        %v5368 = vunpack.c.h.b16 %v1116
        %v5369 = vunpack.c.l.b16 %v1117
        %v5370 = vunpack.c.h.b16 %v1117
        %v5371 = vunpack.c.l.b16 %v1118
        %v5372 = vunpack.c.h.b16 %v1118
        %v5373 = vunpack.c.l.b16 %v1119
        %v5374 = vunpack.c.h.b16 %v1119
        %v5375 = vunpack.c.l.b16 %v1120
        %v5376 = vunpack.c.h.b16 %v1120
        %v5377 = vunpack.c.l.b16 %v1121
        %v5378 = vunpack.c.h.b16 %v1121
        %v5379 = vunpack.c.l.b16 %v1122
        %v5380 = vunpack.c.h.b16 %v1122
        %v5381 = vunpack.c.l.b16 %v1123
        %v5382 = vunpack.c.h.b16 %v1123
        %v5383 = vunpack.c.l.b16 %v1124
        %v5384 = vunpack.c.h.b16 %v1124
        %v5385 = vunpack.c.l.b16 %v1125
        %v5386 = vunpack.c.h.b16 %v1125
        %v5387 = vunpack.c.l.b16 %v1126
        %v5388 = vunpack.c.h.b16 %v1126
        %v5389 = vunpack.c.l.b16 %v1127
        %v5390 = vunpack.c.h.b16 %v1127
        %v5391 = vunpack.c.l.b16 %v1128
        %v5392 = vunpack.c.h.b16 %v1128
        %v5393 = vunpack.c.l.b16 %v1129
        %v5394 = vunpack.c.h.b16 %v1129
        %v5395 = vunpack.c.l.b16 %v1130
        %v5396 = vunpack.c.h.b16 %v1130
        %v5397 = vunpack.c.l.b16 %v1131
        %v5398 = vunpack.c.h.b16 %v1131
        %v5399 = vunpack.c.l.b16 %v1132
        %v5400 = vunpack.c.h.b16 %v1132
        %v5401 = vunpack.c.l.b16 %v1133
        %v5402 = vunpack.c.h.b16 %v1133
        %v5403 = vunpack.c.l.b16 %v1134
        %v5404 = vunpack.c.h.b16 %v1134
        %v5405 = vunpack.c.l.b16 %v1135
        %v5406 = vunpack.c.h.b16 %v1135
        %v5407 = vunpack.c.l.b16 %v1136
        %v5408 = vunpack.c.h.b16 %v1136
        %v5409 = vunpack.c.l.b16 %v1137
        %v5410 = vunpack.c.h.b16 %v1137
        %v5411 = vunpack.c.l.b16 %v1138
        %v5412 = vunpack.c.h.b16 %v1138
        %v5413 = vunpack.c.l.b16 %v1139
        %v5414 = vunpack.c.h.b16 %v1139
        %v5415 = vunpack.c.l.b16 %v1140
        %v5416 = vunpack.c.h.b16 %v1140
        %v5417 = vunpack.c.l.b16 %v1141
        %v5418 = vunpack.c.h.b16 %v1141
        %v5419 = vunpack.c.l.b16 %v1142
        %v5420 = vunpack.c.h.b16 %v1142
        %v5421 = vunpack.c.l.b16 %v1143
        %v5422 = vunpack.c.h.b16 %v1143
        %v5423 = vunpack.c.l.b16 %v1144
        %v5424 = vunpack.c.h.b16 %v1144
        %v5425 = vunpack.c.l.b16 %v1145
        %v5426 = vunpack.c.h.b16 %v1145
        %v5427 = vunpack.c.l.b16 %v1146
        %v5428 = vunpack.c.h.b16 %v1146
        %v5429 = vunpack.c.l.b16 %v1147
        %v5430 = vunpack.c.h.b16 %v1147
        %v5431 = vunpack.c.l.b16 %v1148
        %v5432 = vunpack.c.h.b16 %v1148
        %v5433 = vunpack.c.l.b16 %v1149
        %v5434 = vunpack.c.h.b16 %v1149
        %v5435 = vunpack.c.l.b16 %v1150
        %v5436 = vunpack.c.h.b16 %v1150
        %v5437 = vunpack.c.l.b16 %v1151
        %v5438 = vunpack.c.h.b16 %v1151
        %v5439 = vunpack.c.l.b16 %v1152
        %v5440 = vunpack.c.h.b16 %v1152
        %v5441 = vunpack.c.l.b16 %v1153
        %v5442 = vunpack.c.h.b16 %v1153
        %v5443 = vunpack.c.l.b16 %v1154
        %v5444 = vunpack.c.h.b16 %v1154
        %v5445 = vunpack.c.l.b16 %v1155
        %v5446 = vunpack.c.h.b16 %v1155
        %v5447 = vunpack.c.l.b16 %v1156
        %v5448 = vunpack.c.h.b16 %v1156
        %v5449 = vunpack.c.l.b16 %v1157
        %v5450 = vunpack.c.h.b16 %v1157
        %v5451 = vunpack.c.l.b16 %v1158
        %v5452 = vunpack.c.h.b16 %v1158
        %v5453 = vunpack.c.l.b16 %v1159
        %v5454 = vunpack.c.h.b16 %v1159
        %v5455 = vunpack.c.l.b16 %v1160
        %v5456 = vunpack.c.h.b16 %v1160
        %v5457 = vunpack.c.l.b16 %v1161
        %v5458 = vunpack.c.h.b16 %v1161
        %v5459 = vunpack.c.l.b16 %v1162
        %v5460 = vunpack.c.h.b16 %v1162
        %v5461 = vunpack.c.l.b16 %v1163
        %v5462 = vunpack.c.h.b16 %v1163
        %v5463 = vunpack.c.l.b16 %v1164
        %v5464 = vunpack.c.h.b16 %v1164
        %v5465 = vunpack.c.l.b16 %v1165
        %v5466 = vunpack.c.h.b16 %v1165
        %v5467 = vunpack.c.l.b16 %v1166
        %v5468 = vunpack.c.h.b16 %v1166
        %v5469 = vunpack.c.l.b16 %v1167
        %v5470 = vunpack.c.h.b16 %v1167
        %v5471 = vunpack.c.l.b16 %v1168
        %v5472 = vunpack.c.h.b16 %v1168
        %v5473 = vunpack.c.l.b16 %v1169
        %v5474 = vunpack.c.h.b16 %v1169
        %v5475 = vunpack.c.l.b16 %v1170
        %v5476 = vunpack.c.h.b16 %v1170
        %v5477 = vunpack.c.l.b16 %v1171
        %v5478 = vunpack.c.h.b16 %v1171
        %v5479 = vunpack.c.l.b16 %v1172
        %v5480 = vunpack.c.h.b16 %v1172
        %v5481 = vunpack.c.l.b16 %v1173
        %v5482 = vunpack.c.h.b16 %v1173
        %v5483 = vunpack.c.l.b16 %v1174
        %v5484 = vunpack.c.h.b16 %v1174
        %v5485 = vunpack.c.l.b16 %v1175
        %v5486 = vunpack.c.h.b16 %v1175
        %v5487 = vunpack.c.l.b16 %v1176
        %v5488 = vunpack.c.h.b16 %v1176
        %v5489 = vunpack.c.l.b16 %v1177
        %v5490 = vunpack.c.h.b16 %v1177
        %v5491 = vunpack.c.l.b16 %v1178
        %v5492 = vunpack.c.h.b16 %v1178
        %v5493 = vunpack.c.l.b16 %v1179
        %v5494 = vunpack.c.h.b16 %v1179
        %v5495 = vunpack.c.l.b16 %v1180
        %v5496 = vunpack.c.h.b16 %v1180
        %v5497 = vunpack.c.l.b16 %v1181
        %v5498 = vunpack.c.h.b16 %v1181
        %v5499 = vunpack.c.l.b16 %v1182
        %v5500 = vunpack.c.h.b16 %v1182
        %v5501 = vunpack.c.l.b16 %v1183
        %v5502 = vunpack.c.h.b16 %v1183
        %v5503 = vunpack.c.l.b16 %v1184
        %v5504 = vunpack.c.h.b16 %v1184
        %v5505 = vunpack.c.l.b16 %v1185
        %v5506 = vunpack.c.h.b16 %v1185
        %v5507 = vunpack.c.l.b16 %v1186
        %v5508 = vunpack.c.h.b16 %v1186
        %v5509 = vunpack.c.l.b16 %v1187
        %v5510 = vunpack.c.h.b16 %v1187
        %v5511 = vunpack.c.l.b16 %v1188
        %v5512 = vunpack.c.h.b16 %v1188
        %v5513 = vunpack.c.l.b16 %v1189
        %v5514 = vunpack.c.h.b16 %v1189
        %v5515 = vunpack.c.l.b16 %v1190
        %v5516 = vunpack.c.h.b16 %v1190
        %v5517 = vunpack.c.l.b16 %v1191
        %v5518 = vunpack.c.h.b16 %v1191
        %v5519 = vunpack.c.l.b16 %v1192
        %v5520 = vunpack.c.h.b16 %v1192
        %v5521 = vunpack.c.l.b16 %v1193
        %v5522 = vunpack.c.h.b16 %v1193
        %v5523 = vunpack.c.l.b16 %v1194
        %v5524 = vunpack.c.h.b16 %v1194
        %v5525 = vunpack.c.l.b16 %v1195
        %v5526 = vunpack.c.h.b16 %v1195
        %v5527 = vunpack.c.l.b16 %v1196
        %v5528 = vunpack.c.h.b16 %v1196
        %v5529 = vunpack.c.l.b16 %v1197
        %v5530 = vunpack.c.h.b16 %v1197
        %v5531 = vunpack.c.l.b16 %v1198
        %v5532 = vunpack.c.h.b16 %v1198
        %v5533 = vunpack.c.l.b16 %v1199
        %v5534 = vunpack.c.h.b16 %v1199
        %v5535 = vunpack.c.l.b16 %v1200
        %v5536 = vunpack.c.h.b16 %v1200
        %v5537 = vunpack.c.l.b16 %v1201
        %v5538 = vunpack.c.h.b16 %v1201
        %v5539 = vunpack.c.l.b16 %v1202
        %v5540 = vunpack.c.h.b16 %v1202
        %v5541 = vunpack.c.l.b16 %v1203
        %v5542 = vunpack.c.h.b16 %v1203
        %v5543 = vunpack.c.l.b16 %v1204
        %v5544 = vunpack.c.h.b16 %v1204
        %v5545 = vunpack.c.l.b16 %v1205
        %v5546 = vunpack.c.h.b16 %v1205
        %v5547 = vunpack.c.l.b16 %v1206
        %v5548 = vunpack.c.h.b16 %v1206
        %v5549 = vunpack.c.l.b16 %v1207
        %v5550 = vunpack.c.h.b16 %v1207
        %v5551 = vunpack.c.l.b16 %v1208
        %v5552 = vunpack.c.h.b16 %v1208
        %v5553 = vunpack.c.l.b16 %v1209
        %v5554 = vunpack.c.h.b16 %v1209
        %v5555 = vunpack.c.l.b16 %v1210
        %v5556 = vunpack.c.h.b16 %v1210
        %v5557 = vunpack.c.l.b16 %v1211
        %v5558 = vunpack.c.h.b16 %v1211
        %v5559 = vunpack.c.l.b16 %v1212
        %v5560 = vunpack.c.h.b16 %v1212
        %v5561 = vunpack.c.l.b16 %v1213
        %v5562 = vunpack.c.h.b16 %v1213
        %v5563 = vunpack.c.l.b16 %v1214
        %v5564 = vunpack.c.h.b16 %v1214
        %v5565 = vunpack.c.l.b16 %v1215
        %v5566 = vunpack.c.h.b16 %v1215
        %v5567 = vunpack.c.l.b16 %v1216
        %v5568 = vunpack.c.h.b16 %v1216
        %v5569 = vunpack.c.l.b16 %v1217
        %v5570 = vunpack.c.h.b16 %v1217
        %v5571 = vunpack.c.l.b16 %v1218
        %v5572 = vunpack.c.h.b16 %v1218
        %v5573 = vunpack.c.l.b16 %v1219
        %v5574 = vunpack.c.h.b16 %v1219
        %v5575 = vunpack.c.l.b16 %v1220
        %v5576 = vunpack.c.h.b16 %v1220
        %v5577 = vunpack.c.l.b16 %v1221
        %v5578 = vunpack.c.h.b16 %v1221
        %v5579 = vunpack.c.l.b16 %v1222
        %v5580 = vunpack.c.h.b16 %v1222
        %v5581 = vunpack.c.l.b16 %v1223
        %v5582 = vunpack.c.h.b16 %v1223
        %v5583 = vunpack.c.l.b16 %v1224
        %v5584 = vunpack.c.h.b16 %v1224
        %v5585 = vunpack.c.l.b16 %v1225
        %v5586 = vunpack.c.h.b16 %v1225
        %v5587 = vunpack.c.l.b16 %v1226
        %v5588 = vunpack.c.h.b16 %v1226
        %v5589 = vunpack.c.l.b16 %v1227
        %v5590 = vunpack.c.h.b16 %v1227
        %v5591 = vunpack.c.l.b16 %v1228
        %v5592 = vunpack.c.h.b16 %v1228
        %v5593 = vunpack.c.l.b16 %v1229
        %v5594 = vunpack.c.h.b16 %v1229
        %v5595 = vunpack.c.l.b16 %v1230
        %v5596 = vunpack.c.h.b16 %v1230
        %v5597 = vunpack.c.l.b16 %v1231
        %v5598 = vunpack.c.h.b16 %v1231
        %v5599 = vunpack.c.l.b16 %v1232
        %v5600 = vunpack.c.h.b16 %v1232
        %v5601 = vunpack.c.l.b16 %v1233
        %v5602 = vunpack.c.h.b16 %v1233
        %v5603 = vunpack.c.l.b16 %v1234
        %v5604 = vunpack.c.h.b16 %v1234
        %v5605 = vunpack.c.l.b16 %v1235
        %v5606 = vunpack.c.h.b16 %v1235
        %v5607 = vunpack.c.l.b16 %v1236
        %v5608 = vunpack.c.h.b16 %v1236
        %v5609 = vunpack.c.l.b16 %v1237
        %v5610 = vunpack.c.h.b16 %v1237
        %v5611 = vunpack.c.l.b16 %v1238
        %v5612 = vunpack.c.h.b16 %v1238
        %v5613 = vunpack.c.l.b16 %v1239
        %v5614 = vunpack.c.h.b16 %v1239
        %v5615 = vunpack.c.l.b16 %v1240
        %v5616 = vunpack.c.h.b16 %v1240
        %v5617 = vunpack.c.l.b16 %v1241
        %v5618 = vunpack.c.h.b16 %v1241
        %v5619 = vunpack.c.l.b16 %v1242
        %v5620 = vunpack.c.h.b16 %v1242
        %v5621 = vunpack.c.l.b16 %v1243
        %v5622 = vunpack.c.h.b16 %v1243
        %v5623 = vunpack.c.l.b16 %v1244
        %v5624 = vunpack.c.h.b16 %v1244
        %v5625 = vunpack.c.l.b16 %v1245
        %v5626 = vunpack.c.h.b16 %v1245
        %v5627 = vunpack.c.l.b16 %v1246
        %v5628 = vunpack.c.h.b16 %v1246
        %v5629 = vunpack.c.l.b16 %v1247
        %v5630 = vunpack.c.h.b16 %v1247
        %v5631 = vunpack.c.l.b16 %v1248
        %v5632 = vunpack.c.h.b16 %v1248
        %v5633 = vunpack.c.l.b16 %v1249
        %v5634 = vunpack.c.h.b16 %v1249
        %v5635 = vunpack.c.l.b16 %v1250
        %v5636 = vunpack.c.h.b16 %v1250
        %v5637 = vunpack.c.l.b16 %v1251
        %v5638 = vunpack.c.h.b16 %v1251
        %v5639 = vunpack.c.l.b16 %v1252
        %v5640 = vunpack.c.h.b16 %v1252
        %v5641 = vunpack.c.l.b16 %v1253
        %v5642 = vunpack.c.h.b16 %v1253
        %v5643 = vunpack.c.l.b16 %v1254
        %v5644 = vunpack.c.h.b16 %v1254
        %v5645 = vunpack.c.l.b16 %v1255
        %v5646 = vunpack.c.h.b16 %v1255
        %v5647 = vunpack.c.l.b16 %v1256
        %v5648 = vunpack.c.h.b16 %v1256
        %v5649 = vunpack.c.l.b16 %v1257
        %v5650 = vunpack.c.h.b16 %v1257
        %v5651 = vunpack.c.l.b16 %v1258
        %v5652 = vunpack.c.h.b16 %v1258
        %v5653 = vunpack.c.l.b16 %v1259
        %v5654 = vunpack.c.h.b16 %v1259
        %v5655 = vunpack.c.l.b16 %v1260
        %v5656 = vunpack.c.h.b16 %v1260
        %v5657 = vunpack.c.l.b16 %v1261
        %v5658 = vunpack.c.h.b16 %v1261
        %v5659 = vunpack.c.l.b16 %v1262
        %v5660 = vunpack.c.h.b16 %v1262
        %v5661 = vunpack.c.l.b16 %v1263
        %v5662 = vunpack.c.h.b16 %v1263
        %v5663 = vunpack.c.l.b16 %v1264
        %v5664 = vunpack.c.h.b16 %v1264
        %v5665 = vunpack.c.l.b16 %v1265
        %v5666 = vunpack.c.h.b16 %v1265
        %v5667 = vunpack.c.l.b16 %v1266
        %v5668 = vunpack.c.h.b16 %v1266
        %v5669 = vunpack.c.l.b16 %v1267
        %v5670 = vunpack.c.h.b16 %v1267
        %v5671 = vunpack.c.l.b16 %v1268
        %v5672 = vunpack.c.h.b16 %v1268
        %v5673 = vunpack.c.l.b16 %v1269
        %v5674 = vunpack.c.h.b16 %v1269
        %v5675 = vunpack.c.l.b16 %v1270
        %v5676 = vunpack.c.h.b16 %v1270
        %v5677 = vunpack.c.l.b16 %v1271
        %v5678 = vunpack.c.h.b16 %v1271
        %v5679 = vunpack.c.l.b16 %v1272
        %v5680 = vunpack.c.h.b16 %v1272
        %v5681 = vunpack.c.l.b16 %v1273
        %v5682 = vunpack.c.h.b16 %v1273
        %v5683 = vunpack.c.l.b16 %v1274
        %v5684 = vunpack.c.h.b16 %v1274
        %v5685 = vunpack.c.l.b16 %v1275
        %v5686 = vunpack.c.h.b16 %v1275
        %v5687 = vunpack.c.l.b16 %v1276
        %v5688 = vunpack.c.h.b16 %v1276
        %v5689 = vunpack.c.l.b16 %v1277
        %v5690 = vunpack.c.h.b16 %v1277
        %v5691 = vunpack.c.l.b16 %v1278
        %v5692 = vunpack.c.h.b16 %v1278
        %v5693 = vunpack.c.l.b16 %v1279
        %v5694 = vunpack.c.h.b16 %v1279
        %v5695 = vunpack.c.l.b16 %v1280
        %v5696 = vunpack.c.h.b16 %v1280
        %v5697 = vunpack.c.l.b16 %v1281
        %v5698 = vunpack.c.h.b16 %v1281
        %v5699 = vunpack.c.l.b16 %v1282
        %v5700 = vunpack.c.h.b16 %v1282
        %v5701 = vunpack.c.l.b16 %v1283
        %v5702 = vunpack.c.h.b16 %v1283
        %v5703 = vunpack.c.l.b16 %v1284
        %v5704 = vunpack.c.h.b16 %v1284
        %v5705 = vunpack.c.l.b16 %v1285
        %v5706 = vunpack.c.h.b16 %v1285
        %v5707 = vunpack.c.l.b16 %v1286
        %v5708 = vunpack.c.h.b16 %v1286
        %v5709 = vunpack.c.l.b16 %v1287
        %v5710 = vunpack.c.h.b16 %v1287
        %v5711 = vunpack.c.l.b16 %v1288
        %v5712 = vunpack.c.h.b16 %v1288
        %v5713 = vunpack.c.l.b16 %v1289
        %v5714 = vunpack.c.h.b16 %v1289
        %v5715 = vunpack.c.l.b16 %v1290
        %v5716 = vunpack.c.h.b16 %v1290
        %v5717 = vunpack.c.l.b16 %v1291
        %v5718 = vunpack.c.h.b16 %v1291
        %v5719 = vunpack.c.l.b16 %v1292
        %v5720 = vunpack.c.h.b16 %v1292
        %v5721 = vunpack.c.l.b16 %v1293
        %v5722 = vunpack.c.h.b16 %v1293
        %v5723 = vunpack.c.l.b16 %v1294
        %v5724 = vunpack.c.h.b16 %v1294
        %v5725 = vunpack.c.l.b16 %v1295
        %v5726 = vunpack.c.h.b16 %v1295
        %v5727 = vunpack.c.l.b16 %v1296
        %v5728 = vunpack.c.h.b16 %v1296
        %v5729 = vunpack.c.l.b16 %v1297
        %v5730 = vunpack.c.h.b16 %v1297
        %v5731 = vunpack.c.l.b16 %v1298
        %v5732 = vunpack.c.h.b16 %v1298
        %v5733 = vunpack.c.l.b16 %v1299
        %v5734 = vunpack.c.h.b16 %v1299
        %v5735 = vunpack.c.l.b16 %v1300
        %v5736 = vunpack.c.h.b16 %v1300
        %v5737 = vunpack.c.l.b16 %v1301
        %v5738 = vunpack.c.h.b16 %v1301
        %v5739 = vunpack.c.l.b16 %v1302
        %v5740 = vunpack.c.h.b16 %v1302
        %v5741 = vunpack.c.l.b16 %v1303
        %v5742 = vunpack.c.h.b16 %v1303
        %v5743 = vunpack.c.l.b16 %v1304
        %v5744 = vunpack.c.h.b16 %v1304
        %v5745 = vunpack.c.l.b16 %v1305
        %v5746 = vunpack.c.h.b16 %v1305
        %v5747 = vunpack.c.l.b16 %v1306
        %v5748 = vunpack.c.h.b16 %v1306
        %v5749 = vunpack.c.l.b16 %v1307
        %v5750 = vunpack.c.h.b16 %v1307
        %v5751 = vunpack.c.l.b16 %v1308
        %v5752 = vunpack.c.h.b16 %v1308
        %v5753 = vunpack.c.l.b16 %v1309
        %v5754 = vunpack.c.h.b16 %v1309
        %v5755 = vunpack.c.l.b16 %v1310
        %v5756 = vunpack.c.h.b16 %v1310
        %v5757 = vunpack.c.l.b16 %v1311
        %v5758 = vunpack.c.h.b16 %v1311
        %v5759 = vunpack.c.l.b16 %v1312
        %v5760 = vunpack.c.h.b16 %v1312
        %v5761 = vunpack.c.l.b16 %v1313
        %v5762 = vunpack.c.h.b16 %v1313
        %v5763 = vunpack.c.l.b16 %v1314
        %v5764 = vunpack.c.h.b16 %v1314
        %v5765 = vunpack.c.l.b16 %v1315
        %v5766 = vunpack.c.h.b16 %v1315
        %v5767 = vunpack.c.l.b16 %v1316
        %v5768 = vunpack.c.h.b16 %v1316
        %v5769 = vunpack.c.l.b16 %v1317
        %v5770 = vunpack.c.h.b16 %v1317
        %v5771 = vunpack.c.l.b16 %v1318
        %v5772 = vunpack.c.h.b16 %v1318
        %v5773 = vunpack.c.l.b16 %v1319
        %v5774 = vunpack.c.h.b16 %v1319
        %v5775 = vunpack.c.l.b16 %v1320
        %v5776 = vunpack.c.h.b16 %v1320
        %v5777 = vunpack.c.l.b16 %v1321
        %v5778 = vunpack.c.h.b16 %v1321
        %v5779 = vunpack.c.l.b16 %v1322
        %v5780 = vunpack.c.h.b16 %v1322
        %v5781 = vunpack.c.l.b16 %v1323
        %v5782 = vunpack.c.h.b16 %v1323
        %v5783 = vunpack.c.l.b16 %v1324
        %v5784 = vunpack.c.h.b16 %v1324
        %v5785 = vunpack.c.l.b16 %v1325
        %v5786 = vunpack.c.h.b16 %v1325
        %v5787 = vunpack.c.l.b16 %v1326
        %v5788 = vunpack.c.h.b16 %v1326
        %v5789 = vunpack.c.l.b16 %v1327
        %v5790 = vunpack.c.h.b16 %v1327
        %v5791 = vunpack.c.l.b16 %v1328
        %v5792 = vunpack.c.h.b16 %v1328
        %v5793 = vunpack.c.l.b16 %v1329
        %v5794 = vunpack.c.h.b16 %v1329
        %v5795 = vunpack.c.l.b16 %v1330
        %v5796 = vunpack.c.h.b16 %v1330
        %v5797 = vunpack.c.l.b16 %v1331
        %v5798 = vunpack.c.h.b16 %v1331
        %v5799 = vunpack.c.l.b16 %v1332
        %v5800 = vunpack.c.h.b16 %v1332
        %v5801 = vunpack.c.l.b16 %v1333
        %v5802 = vunpack.c.h.b16 %v1333
        %v5803 = vunpack.c.l.b16 %v1334
        %v5804 = vunpack.c.h.b16 %v1334
        %v5805 = vunpack.c.l.b16 %v1335
        %v5806 = vunpack.c.h.b16 %v1335
        %v5807 = vunpack.c.l.b16 %v1336
        %v5808 = vunpack.c.h.b16 %v1336
        %v5809 = vunpack.c.l.b16 %v1337
        %v5810 = vunpack.c.h.b16 %v1337
        %v5811 = vunpack.c.l.b16 %v1338
        %v5812 = vunpack.c.h.b16 %v1338
        %v5813 = vunpack.c.l.b16 %v1339
        %v5814 = vunpack.c.h.b16 %v1339
        %v5815 = vunpack.c.l.b16 %v1340
        %v5816 = vunpack.c.h.b16 %v1340
        %v5817 = vunpack.c.l.b16 %v1341
        %v5818 = vunpack.c.h.b16 %v1341
        %v5819 = vunpack.c.l.b16 %v1342
        %v5820 = vunpack.c.h.b16 %v1342
        %v5821 = vunpack.c.l.b16 %v1343
        %v5822 = vunpack.c.h.b16 %v1343
        %v5823 = vunpack.c.l.b16 %v1344
        %v5824 = vunpack.c.h.b16 %v1344
        %v5825 = vunpack.c.l.b16 %v1345
        %v5826 = vunpack.c.h.b16 %v1345
        %v5827 = vunpack.c.l.b16 %v1346
        %v5828 = vunpack.c.h.b16 %v1346
        %v5829 = vunpack.c.l.b16 %v1347
        %v5830 = vunpack.c.h.b16 %v1347
        %v5831 = vunpack.c.l.b16 %v1348
        %v5832 = vunpack.c.h.b16 %v1348
        %v5833 = vunpack.c.l.b16 %v1349
        %v5834 = vunpack.c.h.b16 %v1349
        %v5835 = vunpack.c.l.b16 %v1350
        %v5836 = vunpack.c.h.b16 %v1350
        %v5837 = vunpack.c.l.b16 %v1351
        %v5838 = vunpack.c.h.b16 %v1351
        %v5839 = vunpack.c.l.b16 %v1352
        %v5840 = vunpack.c.h.b16 %v1352
        %v5841 = vunpack.c.l.b16 %v1353
        %v5842 = vunpack.c.h.b16 %v1353
        %v5843 = vunpack.c.l.b16 %v1354
        %v5844 = vunpack.c.h.b16 %v1354
        %v5845 = vunpack.c.l.b16 %v1355
        %v5846 = vunpack.c.h.b16 %v1355
        %v5847 = vunpack.c.l.b16 %v1356
        %v5848 = vunpack.c.h.b16 %v1356
        %v5849 = vunpack.c.l.b16 %v1357
        %v5850 = vunpack.c.h.b16 %v1357
        %v5851 = vunpack.c.l.b16 %v1358
        %v5852 = vunpack.c.h.b16 %v1358
        %v5853 = vunpack.c.l.b16 %v1359
        %v5854 = vunpack.c.h.b16 %v1359
        %v5855 = vunpack.c.l.b16 %v1360
        %v5856 = vunpack.c.h.b16 %v1360
        %v5857 = vunpack.c.l.b16 %v1361
        %v5858 = vunpack.c.h.b16 %v1361
        %v5859 = vunpack.c.l.b16 %v1362
        %v5860 = vunpack.c.h.b16 %v1362
        %v5861 = vunpack.c.l.b16 %v1363
        %v5862 = vunpack.c.h.b16 %v1363
        %v5863 = vunpack.c.l.b16 %v1364
        %v5864 = vunpack.c.h.b16 %v1364
        %v5865 = vunpack.c.l.b16 %v1365
        %v5866 = vunpack.c.h.b16 %v1365
        %v5867 = vunpack.c.l.b16 %v1366
        %v5868 = vunpack.c.h.b16 %v1366
        %v5869 = vunpack.c.l.b16 %v1367
        %v5870 = vunpack.c.h.b16 %v1367
        %v5871 = vunpack.c.l.b16 %v1368
        %v5872 = vunpack.c.h.b16 %v1368
        %v5873 = vunpack.c.l.b16 %v1369
        %v5874 = vunpack.c.h.b16 %v1369
        %v5875 = vunpack.c.l.b16 %v1370
        %v5876 = vunpack.c.h.b16 %v1370
        %v5877 = vunpack.c.l.b16 %v1371
        %v5878 = vunpack.c.h.b16 %v1371
        %v5879 = vunpack.c.l.b16 %v1372
        %v5880 = vunpack.c.h.b16 %v1372
        %v5881 = vunpack.c.l.b16 %v1373
        %v5882 = vunpack.c.h.b16 %v1373
        %v5883 = vunpack.c.l.b16 %v1374
        %v5884 = vunpack.c.h.b16 %v1374
        %v5885 = vunpack.c.l.b16 %v1375
        %v5886 = vunpack.c.h.b16 %v1375
        %v5887 = vunpack.c.l.b16 %v1376
        %v5888 = vunpack.c.h.b16 %v1376
        %v5889 = vunpack.c.l.b16 %v1377
        %v5890 = vunpack.c.h.b16 %v1377
        %v5891 = vunpack.c.l.b16 %v1378
        %v5892 = vunpack.c.h.b16 %v1378
        %v5893 = vunpack.c.l.b16 %v1379
        %v5894 = vunpack.c.h.b16 %v1379
        %v5895 = vunpack.c.l.b16 %v1380
        %v5896 = vunpack.c.h.b16 %v1380
        %v5897 = vunpack.c.l.b16 %v1381
        %v5898 = vunpack.c.h.b16 %v1381
        %v5899 = vunpack.c.l.b16 %v1382
        %v5900 = vunpack.c.h.b16 %v1382
        %v5901 = vunpack.c.l.b16 %v1383
        %v5902 = vunpack.c.h.b16 %v1383
        %v5903 = vunpack.c.l.b16 %v1384
        %v5904 = vunpack.c.h.b16 %v1384
        %v5905 = vunpack.c.l.b16 %v1385
        %v5906 = vunpack.c.h.b16 %v1385
        %v5907 = vunpack.c.l.b16 %v1386
        %v5908 = vunpack.c.h.b16 %v1386
        %v5909 = vunpack.c.l.b16 %v1387
        %v5910 = vunpack.c.h.b16 %v1387
        %v5911 = vunpack.c.l.b16 %v1388
        %v5912 = vunpack.c.h.b16 %v1388
        %v5913 = vunpack.c.l.b16 %v1389
        %v5914 = vunpack.c.h.b16 %v1389
        %v5915 = vunpack.c.l.b16 %v1390
        %v5916 = vunpack.c.h.b16 %v1390
        %v5917 = vunpack.c.l.b16 %v1391
        %v5918 = vunpack.c.h.b16 %v1391
        %v5919 = vunpack.c.l.b16 %v1392
        %v5920 = vunpack.c.h.b16 %v1392
        %v5921 = vunpack.c.l.b16 %v1393
        %v5922 = vunpack.c.h.b16 %v1393
        %v5923 = vunpack.c.l.b16 %v1394
        %v5924 = vunpack.c.h.b16 %v1394
        %v5925 = vunpack.c.l.b16 %v1395
        %v5926 = vunpack.c.h.b16 %v1395
        %v5927 = vunpack.c.l.b16 %v1396
        %v5928 = vunpack.c.h.b16 %v1396
        %v5929 = vunpack.c.l.b16 %v1397
        %v5930 = vunpack.c.h.b16 %v1397
        %v5931 = vunpack.c.l.b16 %v1398
        %v5932 = vunpack.c.h.b16 %v1398
        %v5933 = vunpack.c.l.b16 %v1399
        %v5934 = vunpack.c.h.b16 %v1399
        %v5935 = vunpack.c.l.b16 %v1400
        %v5936 = vunpack.c.h.b16 %v1400
        %v5937 = vunpack.c.l.b16 %v1401
        %v5938 = vunpack.c.h.b16 %v1401
        %v5939 = vunpack.c.l.b16 %v1402
        %v5940 = vunpack.c.h.b16 %v1402
        %v5941 = vunpack.c.l.b16 %v1403
        %v5942 = vunpack.c.h.b16 %v1403
        %v5943 = vunpack.c.l.b16 %v1404
        %v5944 = vunpack.c.h.b16 %v1404
        %v5945 = vunpack.c.l.b16 %v1405
        %v5946 = vunpack.c.h.b16 %v1405
        %v5947 = vunpack.c.l.b16 %v1406
        %v5948 = vunpack.c.h.b16 %v1406
        %v5949 = vunpack.c.l.b16 %v1407
        %v5950 = vunpack.c.h.b16 %v1407
        %v5951 = vunpack.c.l.b16 %v1408
        %v5952 = vunpack.c.h.b16 %v1408
        %v5953 = vunpack.c.l.b16 %v1409
        %v5954 = vunpack.c.h.b16 %v1409
        %v5955 = vunpack.c.l.b16 %v1410
        %v5956 = vunpack.c.h.b16 %v1410
        %v5957 = vunpack.c.l.b16 %v1411
        %v5958 = vunpack.c.h.b16 %v1411
        %v5959 = vunpack.c.l.b16 %v1412
        %v5960 = vunpack.c.h.b16 %v1412
        %v5961 = vunpack.c.l.b16 %v1413
        %v5962 = vunpack.c.h.b16 %v1413
        %v5963 = vunpack.c.l.b16 %v1414
        %v5964 = vunpack.c.h.b16 %v1414
        %v5965 = vunpack.c.l.b16 %v1415
        %v5966 = vunpack.c.h.b16 %v1415
        %v5967 = vunpack.c.l.b16 %v1416
        %v5968 = vunpack.c.h.b16 %v1416
        %v5969 = vunpack.c.l.b16 %v1417
        %v5970 = vunpack.c.h.b16 %v1417
        %v5971 = vunpack.c.l.b16 %v1418
        %v5972 = vunpack.c.h.b16 %v1418
        %v5973 = vunpack.c.l.b16 %v1419
        %v5974 = vunpack.c.h.b16 %v1419
        %v5975 = vunpack.c.l.b16 %v1420
        %v5976 = vunpack.c.h.b16 %v1420
        %v5977 = vunpack.c.l.b16 %v1421
        %v5978 = vunpack.c.h.b16 %v1421
        %v5979 = vunpack.c.l.b16 %v1422
        %v5980 = vunpack.c.h.b16 %v1422
        %v5981 = vunpack.c.l.b16 %v1423
        %v5982 = vunpack.c.h.b16 %v1423
        %v5983 = vunpack.c.l.b16 %v1424
        %v5984 = vunpack.c.h.b16 %v1424
        %v5985 = vunpack.c.l.b16 %v1425
        %v5986 = vunpack.c.h.b16 %v1425
        %v5987 = vunpack.c.l.b16 %v1426
        %v5988 = vunpack.c.h.b16 %v1426
        %v5989 = vunpack.c.l.b16 %v1427
        %v5990 = vunpack.c.h.b16 %v1427
        %v5991 = vunpack.c.l.b16 %v1428
        %v5992 = vunpack.c.h.b16 %v1428
        %v5993 = vunpack.c.l.b16 %v1429
        %v5994 = vunpack.c.h.b16 %v1429
        %v5995 = vunpack.c.l.b16 %v1430
        %v5996 = vunpack.c.h.b16 %v1430
        %v5997 = vunpack.c.l.b16 %v1431
        %v5998 = vunpack.c.h.b16 %v1431
        %v5999 = vunpack.c.l.b16 %v1432
        %v6000 = vunpack.c.h.b16 %v1432
        %v6001 = vunpack.c.l.b16 %v1433
        %v6002 = vunpack.c.h.b16 %v1433
        %v6003 = vunpack.c.l.b16 %v1434
        %v6004 = vunpack.c.h.b16 %v1434
        %v6005 = vunpack.c.l.b16 %v1435
        %v6006 = vunpack.c.h.b16 %v1435
        %v6007 = vunpack.c.l.b16 %v1436
        %v6008 = vunpack.c.h.b16 %v1436
        %v6009 = vunpack.c.l.b16 %v1437
        %v6010 = vunpack.c.h.b16 %v1437
        %v6011 = vunpack.c.l.b16 %v1438
        %v6012 = vunpack.c.h.b16 %v1438
        %v6013 = vunpack.c.l.b16 %v1439
        %v6014 = vunpack.c.h.b16 %v1439
        %v6015 = vunpack.c.l.b16 %v1440
        %v6016 = vunpack.c.h.b16 %v1440
        %v6017 = vunpack.c.l.b16 %v1441
        %v6018 = vunpack.c.h.b16 %v1441
        %v6019 = vunpack.c.l.b16 %v1442
        %v6020 = vunpack.c.h.b16 %v1442
        %v6021 = vunpack.c.l.b16 %v1443
        %v6022 = vunpack.c.h.b16 %v1443
        %v6023 = vunpack.c.l.b16 %v1444
        %v6024 = vunpack.c.h.b16 %v1444
        %v6025 = vunpack.c.l.b16 %v1445
        %v6026 = vunpack.c.h.b16 %v1445
        %v6027 = vunpack.c.l.b16 %v1446
        %v6028 = vunpack.c.h.b16 %v1446
        %v6029 = vunpack.c.l.b16 %v1447
        %v6030 = vunpack.c.h.b16 %v1447
        %v6031 = vunpack.c.l.b16 %v1448
        %v6032 = vunpack.c.h.b16 %v1448
        %v6033 = vunpack.c.l.b16 %v1449
        %v6034 = vunpack.c.h.b16 %v1449
        %v6035 = vunpack.c.l.b16 %v1450
        %v6036 = vunpack.c.h.b16 %v1450
        %v6037 = vunpack.c.l.b16 %v1451
        %v6038 = vunpack.c.h.b16 %v1451
        %v6039 = vunpack.c.l.b16 %v1452
        %v6040 = vunpack.c.h.b16 %v1452
        %v6041 = vunpack.c.l.b16 %v1453
        %v6042 = vunpack.c.h.b16 %v1453
        %v6043 = vunpack.c.l.b16 %v1454
        %v6044 = vunpack.c.h.b16 %v1454
        %v6045 = vunpack.c.l.b16 %v1455
        %v6046 = vunpack.c.h.b16 %v1455
        %v6047 = vunpack.c.l.b16 %v1456
        %v6048 = vunpack.c.h.b16 %v1456
        %v6049 = vunpack.c.l.b16 %v1457
        %v6050 = vunpack.c.h.b16 %v1457
        %v6051 = vunpack.c.l.b16 %v1458
        %v6052 = vunpack.c.h.b16 %v1458
        %v6053 = vunpack.c.l.b16 %v1459
        %v6054 = vunpack.c.h.b16 %v1459
        %v6055 = vunpack.c.l.b16 %v1460
        %v6056 = vunpack.c.h.b16 %v1460
        %v6057 = vunpack.c.l.b16 %v1461
        %v6058 = vunpack.c.h.b16 %v1461
        %v6059 = vunpack.c.l.b16 %v1462
        %v6060 = vunpack.c.h.b16 %v1462
        %v6061 = vunpack.c.l.b16 %v1463
        %v6062 = vunpack.c.h.b16 %v1463
        %v6063 = vunpack.c.l.b16 %v1464
        %v6064 = vunpack.c.h.b16 %v1464
        %v6065 = vunpack.c.l.b16 %v1465
        %v6066 = vunpack.c.h.b16 %v1465
        %v6067 = vunpack.c.l.b16 %v1466
        %v6068 = vunpack.c.h.b16 %v1466
        %v6069 = vunpack.c.l.b16 %v1467
        %v6070 = vunpack.c.h.b16 %v1467
        %v6071 = vunpack.c.l.b16 %v1468
        %v6072 = vunpack.c.h.b16 %v1468
        %v6073 = vunpack.c.l.b16 %v1469
        %v6074 = vunpack.c.h.b16 %v1469
        %v6075 = vunpack.c.l.b16 %v1470
        %v6076 = vunpack.c.h.b16 %v1470
        %v6077 = vunpack.c.l.b16 %v1471
        %v6078 = vunpack.c.h.b16 %v1471
        %v6079 = vunpack.c.l.b16 %v1472
        %v6080 = vunpack.c.h.b16 %v1472
        %v6081 = vunpack.c.l.b16 %v1473
        %v6082 = vunpack.c.h.b16 %v1473
        %v6083 = vunpack.c.l.b16 %v1474
        %v6084 = vunpack.c.h.b16 %v1474
        %v6085 = vunpack.c.l.b16 %v1475
        %v6086 = vunpack.c.h.b16 %v1475
        %v6087 = vunpack.c.l.b16 %v1476
        %v6088 = vunpack.c.h.b16 %v1476
        %v6089 = vunpack.c.l.b16 %v1477
        %v6090 = vunpack.c.h.b16 %v1477
        %v6091 = vunpack.c.l.b16 %v1478
        %v6092 = vunpack.c.h.b16 %v1478
        %v6093 = vunpack.c.l.b16 %v1479
        %v6094 = vunpack.c.h.b16 %v1479
        %v6095 = vunpack.c.l.b16 %v1480
        %v6096 = vunpack.c.h.b16 %v1480
        %v6097 = vunpack.c.l.b16 %v1481
        %v6098 = vunpack.c.h.b16 %v1481
        %v6099 = vunpack.c.l.b16 %v1482
        %v6100 = vunpack.c.h.b16 %v1482
        %v6101 = vunpack.c.l.b16 %v1483
        %v6102 = vunpack.c.h.b16 %v1483
        %v6103 = vunpack.c.l.b16 %v1484
        %v6104 = vunpack.c.h.b16 %v1484
        %v6105 = vunpack.c.l.b16 %v1485
        %v6106 = vunpack.c.h.b16 %v1485
        %v6107 = vunpack.c.l.b16 %v1486
        %v6108 = vunpack.c.h.b16 %v1486
        %v6109 = vunpack.c.l.b16 %v1487
        %v6110 = vunpack.c.h.b16 %v1487
        %v6111 = vunpack.c.l.b16 %v1488
        %v6112 = vunpack.c.h.b16 %v1488
        %v6113 = vunpack.c.l.b16 %v1489
        %v6114 = vunpack.c.h.b16 %v1489
        %v6115 = vunpack.c.l.b16 %v1490
        %v6116 = vunpack.c.h.b16 %v1490
        %v6117 = vunpack.c.l.b16 %v1491
        %v6118 = vunpack.c.h.b16 %v1491
        %v6119 = vunpack.c.l.b16 %v1492
        %v6120 = vunpack.c.h.b16 %v1492
        %v6121 = vunpack.c.l.b16 %v1493
        %v6122 = vunpack.c.h.b16 %v1493
        %v6123 = vunpack.c.l.b16 %v1494
        %v6124 = vunpack.c.h.b16 %v1494
        %v6125 = vunpack.c.l.b16 %v1495
        %v6126 = vunpack.c.h.b16 %v1495
        %v6127 = vunpack.c.l.b16 %v1496
        %v6128 = vunpack.c.h.b16 %v1496
        %v6129 = vunpack.c.l.b16 %v1497
        %v6130 = vunpack.c.h.b16 %v1497
        %v6131 = vunpack.c.l.b16 %v1498
        %v6132 = vunpack.c.h.b16 %v1498
        %v6133 = vunpack.c.l.b16 %v1499
        %v6134 = vunpack.c.h.b16 %v1499
        %v6135 = vunpack.c.l.b16 %v1500
        %v6136 = vunpack.c.h.b16 %v1500
        %v6137 = vunpack.c.l.b16 %v1501
        %v6138 = vunpack.c.h.b16 %v1501
        %v6139 = vunpack.c.l.b16 %v1502
        %v6140 = vunpack.c.h.b16 %v1502
        %v6141 = vunpack.c.l.b16 %v1503
        %v6142 = vunpack.c.h.b16 %v1503
        %v6143 = vunpack.c.l.b16 %v1504
        %v6144 = vunpack.c.h.b16 %v1504
        %v6145 = vunpack.c.l.b16 %v1505
        %v6146 = vunpack.c.h.b16 %v1505
        %v6147 = vunpack.c.l.b16 %v1506
        %v6148 = vunpack.c.h.b16 %v1506
        %v6149 = vunpack.c.l.b16 %v1507
        %v6150 = vunpack.c.h.b16 %v1507
        %v6151 = vunpack.c.l.b16 %v1508
        %v6152 = vunpack.c.h.b16 %v1508
        %v6153 = vunpack.c.l.b16 %v1509
        %v6154 = vunpack.c.h.b16 %v1509
        %v6155 = vunpack.c.l.b16 %v1510
        %v6156 = vunpack.c.h.b16 %v1510
        %v6157 = vunpack.c.l.b16 %v1511
        %v6158 = vunpack.c.h.b16 %v1511
        %v6159 = vunpack.c.l.b16 %v1512
        %v6160 = vunpack.c.h.b16 %v1512
        %v6161 = vunpack.c.l.b16 %v1513
        %v6162 = vunpack.c.h.b16 %v1513
        %v6163 = vunpack.c.l.b16 %v1514
        %v6164 = vunpack.c.h.b16 %v1514
        %v6165 = vunpack.c.l.b16 %v1515
        %v6166 = vunpack.c.h.b16 %v1515
        %v6167 = vunpack.c.l.b16 %v1516
        %v6168 = vunpack.c.h.b16 %v1516
        %v6169 = vunpack.c.l.b16 %v1517
        %v6170 = vunpack.c.h.b16 %v1517
        %v6171 = vunpack.c.l.b16 %v1518
        %v6172 = vunpack.c.h.b16 %v1518
        %v6173 = vunpack.c.l.b16 %v1519
        %v6174 = vunpack.c.h.b16 %v1519
        %v6175 = vunpack.c.l.b16 %v1520
        %v6176 = vunpack.c.h.b16 %v1520
        %v6177 = vunpack.c.l.b16 %v1521
        %v6178 = vunpack.c.h.b16 %v1521
        %v6179 = vunpack.c.l.b16 %v1522
        %v6180 = vunpack.c.h.b16 %v1522
        %v6181 = vunpack.c.l.b16 %v1523
        %v6182 = vunpack.c.h.b16 %v1523
        %v6183 = vunpack.c.l.b16 %v1524
        %v6184 = vunpack.c.h.b16 %v1524
        %v6185 = vunpack.c.l.b16 %v1525
        %v6186 = vunpack.c.h.b16 %v1525
        %v6187 = vunpack.c.l.b16 %v1526
        %v6188 = vunpack.c.h.b16 %v1526
        %v6189 = vunpack.c.l.b16 %v1527
        %v6190 = vunpack.c.h.b16 %v1527
        %v6191 = vunpack.c.l.b16 %v1528
        %v6192 = vunpack.c.h.b16 %v1528
        %v6193 = vunpack.c.l.b16 %v1529
        %v6194 = vunpack.c.h.b16 %v1529
        %v6195 = vunpack.c.l.b16 %v1530
        %v6196 = vunpack.c.h.b16 %v1530
        %v6197 = vunpack.c.l.b16 %v1531
        %v6198 = vunpack.c.h.b16 %v1531
        %v6199 = vunpack.c.l.b16 %v1532
        %v6200 = vunpack.c.h.b16 %v1532
        %v6201 = vunpack.c.l.b16 %v1533
        %v6202 = vunpack.c.h.b16 %v1533
        %v6203 = vunpack.c.l.b16 %v1534
        %v6204 = vunpack.c.h.b16 %v1534
        %v6205 = vunpack.c.l.b16 %v1535
        %v6206 = vunpack.c.h.b16 %v1535
        %v6207 = vunpack.c.l.b16 %v1536
        %v6208 = vunpack.c.h.b16 %v1536
        %v6209 = vunpack.c.l.b16 %v1537
        %v6210 = vunpack.c.h.b16 %v1537
        %v6211 = vunpack.c.l.b16 %v1538
        %v6212 = vunpack.c.h.b16 %v1538
        %v6213 = vunpack.c.l.b16 %v1539
        %v6214 = vunpack.c.h.b16 %v1539
        %v6215 = vunpack.c.l.b16 %v1540
        %v6216 = vunpack.c.h.b16 %v1540
        %v6217 = vunpack.c.l.b16 %v1541
        %v6218 = vunpack.c.h.b16 %v1541
        %v6219 = vunpack.c.l.b16 %v1542
        %v6220 = vunpack.c.h.b16 %v1542
        %v6221 = vunpack.c.l.b16 %v1543
        %v6222 = vunpack.c.h.b16 %v1543
        %v6223 = vunpack.c.l.b16 %v1544
        %v6224 = vunpack.c.h.b16 %v1544
        %v6225 = vunpack.c.l.b16 %v1545
        %v6226 = vunpack.c.h.b16 %v1545
        %v6227 = vunpack.c.l.b16 %v1546
        %v6228 = vunpack.c.h.b16 %v1546
        %v6229 = vunpack.c.l.b16 %v1547
        %v6230 = vunpack.c.h.b16 %v1547
        %v6231 = vunpack.c.l.b16 %v1548
        %v6232 = vunpack.c.h.b16 %v1548
        %v6233 = vunpack.c.l.b16 %v1549
        %v6234 = vunpack.c.h.b16 %v1549
        %v6235 = vunpack.c.l.b16 %v1550
        %v6236 = vunpack.c.h.b16 %v1550
        %v6237 = vunpack.c.l.b16 %v1551
        %v6238 = vunpack.c.h.b16 %v1551
        %v6239 = vunpack.c.l.b16 %v1552
        %v6240 = vunpack.c.h.b16 %v1552
        %v6241 = vunpack.c.l.b16 %v1553
        %v6242 = vunpack.c.h.b16 %v1553
        %v6243 = vunpack.c.l.b16 %v1554
        %v6244 = vunpack.c.h.b16 %v1554
        %v6245 = vunpack.c.l.b16 %v1555
        %v6246 = vunpack.c.h.b16 %v1555
        %v6247 = vunpack.c.l.b16 %v1556
        %v6248 = vunpack.c.h.b16 %v1556
        %v6249 = vunpack.c.l.b16 %v1557
        %v6250 = vunpack.c.h.b16 %v1557
        %v6251 = vunpack.c.l.b16 %v1558
        %v6252 = vunpack.c.h.b16 %v1558
        %v6253 = vunpack.c.l.b16 %v1559
        %v6254 = vunpack.c.h.b16 %v1559
        %v6255 = vunpack.c.l.b16 %v1560
        %v6256 = vunpack.c.h.b16 %v1560
        %v6257 = vunpack.c.l.b16 %v1561
        %v6258 = vunpack.c.h.b16 %v1561
        %v6259 = vunpack.c.l.b16 %v1562
        %v6260 = vunpack.c.h.b16 %v1562
        %v6261 = vunpack.c.l.b16 %v1563
        %v6262 = vunpack.c.h.b16 %v1563
        %v6263 = vunpack.c.l.b16 %v1564
        %v6264 = vunpack.c.h.b16 %v1564
        %v6265 = vunpack.c.l.b16 %v1565
        %v6266 = vunpack.c.h.b16 %v1565
        %v6267 = vunpack.c.l.b16 %v1566
        %v6268 = vunpack.c.h.b16 %v1566
        %v6269 = vunpack.c.l.b16 %v1567
        %v6270 = vunpack.c.h.b16 %v1567
        %v6271 = vunpack.c.l.b16 %v1568
        %v6272 = vunpack.c.h.b16 %v1568
        %v6273 = vunpack.c.l.b16 %v1569
        %v6274 = vunpack.c.h.b16 %v1569
        %v6275 = vunpack.c.l.b16 %v1570
        %v6276 = vunpack.c.h.b16 %v1570
        %v6277 = vunpack.c.l.b16 %v1571
        %v6278 = vunpack.c.h.b16 %v1571
        %v6279 = vunpack.c.l.b16 %v1572
        %v6280 = vunpack.c.h.b16 %v1572
        %v6281 = vunpack.c.l.b16 %v1573
        %v6282 = vunpack.c.h.b16 %v1573
        %v6283 = vunpack.c.l.b16 %v1574
        %v6284 = vunpack.c.h.b16 %v1574
        %v6285 = vunpack.c.l.b16 %v1575
        %v6286 = vunpack.c.h.b16 %v1575
        %v6287 = vunpack.c.l.b16 %v1576
        %v6288 = vunpack.c.h.b16 %v1576
        %v6289 = vunpack.c.l.b16 %v1577
        %v6290 = vunpack.c.h.b16 %v1577
        %v6291 = vunpack.c.l.b16 %v1578
        %v6292 = vunpack.c.h.b16 %v1578
        %v6293 = vunpack.c.l.b16 %v1579
        %v6294 = vunpack.c.h.b16 %v1579
        %v6295 = vunpack.c.l.b16 %v1580
        %v6296 = vunpack.c.h.b16 %v1580
        %v6297 = vunpack.c.l.b16 %v1581
        %v6298 = vunpack.c.h.b16 %v1581
        %v6299 = vunpack.c.l.b16 %v1582
        %v6300 = vunpack.c.h.b16 %v1582
        %v6301 = vunpack.c.l.b16 %v1583
        %v6302 = vunpack.c.h.b16 %v1583
        %v6303 = vunpack.c.l.b16 %v1584
        %v6304 = vunpack.c.h.b16 %v1584
        %v6305 = vunpack.c.l.b16 %v1585
        %v6306 = vunpack.c.h.b16 %v1585
        %v6307 = vunpack.c.l.b16 %v1586
        %v6308 = vunpack.c.h.b16 %v1586
        %v6309 = vunpack.c.l.b16 %v1587
        %v6310 = vunpack.c.h.b16 %v1587
        %v6311 = vunpack.c.l.b16 %v1588
        %v6312 = vunpack.c.h.b16 %v1588
        %v6313 = vunpack.c.l.b16 %v1589
        %v6314 = vunpack.c.h.b16 %v1589
        %v6315 = vunpack.c.l.b16 %v1590
        %v6316 = vunpack.c.h.b16 %v1590
        %v6317 = vunpack.c.l.b16 %v1591
        %v6318 = vunpack.c.h.b16 %v1591
        %v6319 = vunpack.c.l.b16 %v1592
        %v6320 = vunpack.c.h.b16 %v1592
        %v6321 = vunpack.c.l.b16 %v1593
        %v6322 = vunpack.c.h.b16 %v1593
        %v6323 = vunpack.c.l.b16 %v1594
        %v6324 = vunpack.c.h.b16 %v1594
        %v6325 = vunpack.c.l.b16 %v1595
        %v6326 = vunpack.c.h.b16 %v1595
        %v6327 = vunpack.c.l.b16 %v1596
        %v6328 = vunpack.c.h.b16 %v1596
        %v6329 = vunpack.c.l.b16 %v1597
        %v6330 = vunpack.c.h.b16 %v1597
        %v6331 = vunpack.c.l.b16 %v1598
        %v6332 = vunpack.c.h.b16 %v1598
        %v6333 = vunpack.c.l.b16 %v1599
        %v6334 = vunpack.c.h.b16 %v1599
        %v6335 = vunpack.c.l.b16 %v1600
        %v6336 = vunpack.c.h.b16 %v1600
        %v6337 = vunpack.c.l.b16 %v1601
        %v6338 = vunpack.c.h.b16 %v1601
        %v6339 = vunpack.c.l.b16 %v1602
        %v6340 = vunpack.c.h.b16 %v1602
        %v6341 = vunpack.c.l.b16 %v1603
        %v6342 = vunpack.c.h.b16 %v1603
        %v6343 = vunpack.c.l.b16 %v1604
        %v6344 = vunpack.c.h.b16 %v1604
        %v6345 = vunpack.c.l.b16 %v1605
        %v6346 = vunpack.c.h.b16 %v1605
        %v6347 = vunpack.c.l.b16 %v1606
        %v6348 = vunpack.c.h.b16 %v1606
        %v6349 = vunpack.c.l.b16 %v1607
        %v6350 = vunpack.c.h.b16 %v1607
        %v6351 = vunpack.c.l.b16 %v1608
        %v6352 = vunpack.c.h.b16 %v1608
        %v6353 = vunpack.c.l.b16 %v1609
        %v6354 = vunpack.c.h.b16 %v1609
        %v6355 = vunpack.c.l.b16 %v1610
        %v6356 = vunpack.c.h.b16 %v1610
        %v6357 = vunpack.c.l.b16 %v1611
        %v6358 = vunpack.c.h.b16 %v1611
        %v6359 = vunpack.c.l.b16 %v1612
        %v6360 = vunpack.c.h.b16 %v1612
        %v6361 = vunpack.c.l.b16 %v1613
        %v6362 = vunpack.c.h.b16 %v1613
        %v6363 = vunpack.c.l.b16 %v1614
        %v6364 = vunpack.c.h.b16 %v1614
        %v6365 = vunpack.c.l.b16 %v1615
        %v6366 = vunpack.c.h.b16 %v1615
        %v6367 = vunpack.c.l.b16 %v1616
        %v6368 = vunpack.c.h.b16 %v1616
        %v6369 = vunpack.c.l.b16 %v1617
        %v6370 = vunpack.c.h.b16 %v1617
        %v6371 = vunpack.c.l.b16 %v1618
        %v6372 = vunpack.c.h.b16 %v1618
        %v6373 = vunpack.c.l.b16 %v1619
        %v6374 = vunpack.c.h.b16 %v1619
        %v6375 = vunpack.c.l.b16 %v1620
        %v6376 = vunpack.c.h.b16 %v1620
        %v6377 = vunpack.c.l.b16 %v1621
        %v6378 = vunpack.c.h.b16 %v1621
        %v6379 = vunpack.c.l.b16 %v1622
        %v6380 = vunpack.c.h.b16 %v1622
        %v6381 = vunpack.c.l.b16 %v1623
        %v6382 = vunpack.c.h.b16 %v1623
        %v6383 = vunpack.c.l.b16 %v1624
        %v6384 = vunpack.c.h.b16 %v1624
        %v6385 = vunpack.c.l.b16 %v1625
        %v6386 = vunpack.c.h.b16 %v1625
        %v6387 = vunpack.c.l.b16 %v1626
        %v6388 = vunpack.c.h.b16 %v1626
        %v6389 = vunpack.c.l.b16 %v1627
        %v6390 = vunpack.c.h.b16 %v1627
        %v6391 = vunpack.c.l.b16 %v1628
        %v6392 = vunpack.c.h.b16 %v1628
        %v6393 = vunpack.c.l.b16 %v1629
        %v6394 = vunpack.c.h.b16 %v1629
        %v6395 = vunpack.c.l.b16 %v1630
        %v6396 = vunpack.c.h.b16 %v1630
        %v6397 = vunpack.c.l.b16 %v1631
        %v6398 = vunpack.c.h.b16 %v1631
        %v6399 = vunpack.c.l.b16 %v1632
        %v6400 = vunpack.c.h.b16 %v1632
        %v6401 = vunpack.c.l.b16 %v1633
        %v6402 = vunpack.c.h.b16 %v1633
        %v6403 = vunpack.c.l.b16 %v1634
        %v6404 = vunpack.c.h.b16 %v1634
        %v6405 = vunpack.c.l.b16 %v1635
        %v6406 = vunpack.c.h.b16 %v1635
        %v6407 = vunpack.c.l.b16 %v1636
        %v6408 = vunpack.c.h.b16 %v1636
        %v6409 = vunpack.c.l.b16 %v1637
        %v6410 = vunpack.c.h.b16 %v1637
        %v6411 = vunpack.c.l.b16 %v1638
        %v6412 = vunpack.c.h.b16 %v1638
        %v6413 = vunpack.c.l.b16 %v1639
        %v6414 = vunpack.c.h.b16 %v1639
        %v6415 = vunpack.c.l.b16 %v1640
        %v6416 = vunpack.c.h.b16 %v1640
        %v6417 = vunpack.c.l.b16 %v1641
        %v6418 = vunpack.c.h.b16 %v1641
        %v6419 = vunpack.c.l.b16 %v1642
        %v6420 = vunpack.c.h.b16 %v1642
        %v6421 = vunpack.c.l.b16 %v1643
        %v6422 = vunpack.c.h.b16 %v1643
        %v6423 = vunpack.c.l.b16 %v1644
        %v6424 = vunpack.c.h.b16 %v1644
        %v6425 = vunpack.c.l.b16 %v1645
        %v6426 = vunpack.c.h.b16 %v1645
        %v6427 = vunpack.c.l.b16 %v1646
        %v6428 = vunpack.c.h.b16 %v1646
        %v6429 = vunpack.c.l.b16 %v1647
        %v6430 = vunpack.c.h.b16 %v1647
        %v6431 = vunpack.c.l.b16 %v1648
        %v6432 = vunpack.c.h.b16 %v1648
        %v6433 = vunpack.c.l.b16 %v1649
        %v6434 = vunpack.c.h.b16 %v1649
        %v6435 = vunpack.c.l.b16 %v1650
        %v6436 = vunpack.c.h.b16 %v1650
        %v6437 = vunpack.c.l.b16 %v1651
        %v6438 = vunpack.c.h.b16 %v1651
        %v6439 = vunpack.c.l.b16 %v1652
        %v6440 = vunpack.c.h.b16 %v1652
        %v6441 = vunpack.c.l.b16 %v1653
        %v6442 = vunpack.c.h.b16 %v1653
        %v6443 = vunpack.c.l.b16 %v1654
        %v6444 = vunpack.c.h.b16 %v1654
        %v6445 = vunpack.c.l.b16 %v1655
        %v6446 = vunpack.c.h.b16 %v1655
        %v6447 = vunpack.c.l.b16 %v1656
        %v6448 = vunpack.c.h.b16 %v1656
        %v6449 = vunpack.c.l.b16 %v1657
        %v6450 = vunpack.c.h.b16 %v1657
        %v6451 = vunpack.c.l.b16 %v1658
        %v6452 = vunpack.c.h.b16 %v1658
        %v6453 = vunpack.c.l.b16 %v1659
        %v6454 = vunpack.c.h.b16 %v1659
        %v6455 = vunpack.c.l.b16 %v1660
        %v6456 = vunpack.c.h.b16 %v1660
        %v6457 = vunpack.c.l.b16 %v1661
        %v6458 = vunpack.c.h.b16 %v1661
        %v6459 = vunpack.c.l.b16 %v1662
        %v6460 = vunpack.c.h.b16 %v1662
        %v6461 = vunpack.c.l.b16 %v1663
        %v6462 = vunpack.c.h.b16 %v1663
        %v6463 = vunpack.c.l.b16 %v1664
        %v6464 = vunpack.c.h.b16 %v1664
        %v6465 = vunpack.c.l.b16 %v1665
        %v6466 = vunpack.c.h.b16 %v1665
        %v6467 = vunpack.c.l.b16 %v1666
        %v6468 = vunpack.c.h.b16 %v1666
        %v6469 = vunpack.c.l.b16 %v1667
        %v6470 = vunpack.c.h.b16 %v1667
        %v6471 = vunpack.c.l.b16 %v1668
        %v6472 = vunpack.c.h.b16 %v1668
        %v6473 = vunpack.c.l.b16 %v1669
        %v6474 = vunpack.c.h.b16 %v1669
        %v6475 = vunpack.c.l.b16 %v1670
        %v6476 = vunpack.c.h.b16 %v1670
        %v6477 = vunpack.c.l.b16 %v1671
        %v6478 = vunpack.c.h.b16 %v1671
        %v6479 = vunpack.c.l.b16 %v1672
        %v6480 = vunpack.c.h.b16 %v1672
        %v6481 = vunpack.c.l.b16 %v1673
        %v6482 = vunpack.c.h.b16 %v1673
        %v6483 = vunpack.c.l.b16 %v1674
        %v6484 = vunpack.c.h.b16 %v1674
        %v6485 = vunpack.c.l.b16 %v1675
        %v6486 = vunpack.c.h.b16 %v1675
        %v6487 = vunpack.c.l.b16 %v1676
        %v6488 = vunpack.c.h.b16 %v1676
        %v6489 = vunpack.c.l.b16 %v1677
        %v6490 = vunpack.c.h.b16 %v1677
        %v6491 = vunpack.c.l.b16 %v1678
        %v6492 = vunpack.c.h.b16 %v1678
        %v6493 = vunpack.c.l.b16 %v1679
        %v6494 = vunpack.c.h.b16 %v1679
        %v6495 = vunpack.c.l.b16 %v1680
        %v6496 = vunpack.c.h.b16 %v1680
        %v6497 = vunpack.c.l.b16 %v1681
        %v6498 = vunpack.c.h.b16 %v1681
        %v6499 = vunpack.c.l.b16 %v1682
        %v6500 = vunpack.c.h.b16 %v1682
        %v6501 = vunpack.c.l.b16 %v1683
        %v6502 = vunpack.c.h.b16 %v1683
        %v6503 = vunpack.c.l.b16 %v1684
        %v6504 = vunpack.c.h.b16 %v1684
        %v6505 = vunpack.c.l.b16 %v1685
        %v6506 = vunpack.c.h.b16 %v1685
        %v6507 = vunpack.c.l.b16 %v1686
        %v6508 = vunpack.c.h.b16 %v1686
        %v6509 = vunpack.c.l.b16 %v1687
        %v6510 = vunpack.c.h.b16 %v1687
        %v6511 = vunpack.c.l.b16 %v1688
        %v6512 = vunpack.c.h.b16 %v1688
        %v6513 = vunpack.c.l.b16 %v1689
        %v6514 = vunpack.c.h.b16 %v1689
        %v6515 = vunpack.c.l.b16 %v1690
        %v6516 = vunpack.c.h.b16 %v1690
        %v6517 = vunpack.c.l.b16 %v1691
        %v6518 = vunpack.c.h.b16 %v1691
        %v6519 = vunpack.c.l.b16 %v1692
        %v6520 = vunpack.c.h.b16 %v1692
        %v6521 = vunpack.c.l.b16 %v1693
        %v6522 = vunpack.c.h.b16 %v1693
        %v6523 = vunpack.c.l.b16 %v1694
        %v6524 = vunpack.c.h.b16 %v1694
        %v6525 = vunpack.c.l.b16 %v1695
        %v6526 = vunpack.c.h.b16 %v1695
        %v6527 = vunpack.c.l.b16 %v1696
        %v6528 = vunpack.c.h.b16 %v1696
        %v6529 = vunpack.c.l.b16 %v1697
        %v6530 = vunpack.c.h.b16 %v1697
        %v6531 = vunpack.c.l.b16 %v1698
        %v6532 = vunpack.c.h.b16 %v1698
        %v6533 = vunpack.c.l.b16 %v1699
        %v6534 = vunpack.c.h.b16 %v1699
        %v6535 = vunpack.c.l.b16 %v1700
        %v6536 = vunpack.c.h.b16 %v1700
        %v6537 = vunpack.c.l.b16 %v1701
        %v6538 = vunpack.c.h.b16 %v1701
        %v6539 = vunpack.c.l.b16 %v1702
        %v6540 = vunpack.c.h.b16 %v1702
        %v6541 = vunpack.c.l.b16 %v1703
        %v6542 = vunpack.c.h.b16 %v1703
        %v6543 = vunpack.c.l.b16 %v1704
        %v6544 = vunpack.c.h.b16 %v1704
        %v6545 = vunpack.c.l.b16 %v1705
        %v6546 = vunpack.c.h.b16 %v1705
        %v6547 = vunpack.c.l.b16 %v1706
        %v6548 = vunpack.c.h.b16 %v1706
        %v6549 = vunpack.c.l.b16 %v1707
        %v6550 = vunpack.c.h.b16 %v1707
        %v6551 = vunpack.c.l.b16 %v1708
        %v6552 = vunpack.c.h.b16 %v1708
        %v6553 = vunpack.c.l.b16 %v1709
        %v6554 = vunpack.c.h.b16 %v1709
        %v6555 = vunpack.c.l.b16 %v1710
        %v6556 = vunpack.c.h.b16 %v1710
        %v6557 = vunpack.c.l.b16 %v1711
        %v6558 = vunpack.c.h.b16 %v1711
        %v6559 = vunpack.c.l.b16 %v1712
        %v6560 = vunpack.c.h.b16 %v1712
        %v6561 = vunpack.c.l.b16 %v1713
        %v6562 = vunpack.c.h.b16 %v1713
        %v6563 = vunpack.c.l.b16 %v1714
        %v6564 = vunpack.c.h.b16 %v1714
        %v6565 = vunpack.c.l.b16 %v1715
        %v6566 = vunpack.c.h.b16 %v1715
        %v6567 = vunpack.c.l.b16 %v1716
        %v6568 = vunpack.c.h.b16 %v1716
        %v6569 = vunpack.c.l.b16 %v1717
        %v6570 = vunpack.c.h.b16 %v1717
        %v6571 = vunpack.c.l.b16 %v1718
        %v6572 = vunpack.c.h.b16 %v1718
        %v6573 = vunpack.c.l.b16 %v1719
        %v6574 = vunpack.c.h.b16 %v1719
        %v6575 = vunpack.c.l.b16 %v1720
        %v6576 = vunpack.c.h.b16 %v1720
        %v6577 = vunpack.c.l.b16 %v1721
        %v6578 = vunpack.c.h.b16 %v1721
        %v6579 = vunpack.c.l.b16 %v1722
        %v6580 = vunpack.c.h.b16 %v1722
        %v6581 = vunpack.c.l.b16 %v1723
        %v6582 = vunpack.c.h.b16 %v1723
        %v6583 = vunpack.c.l.b16 %v1724
        %v6584 = vunpack.c.h.b16 %v1724
        %v6585 = vunpack.c.l.b16 %v1725
        %v6586 = vunpack.c.h.b16 %v1725
        %v6587 = vunpack.c.l.b16 %v1726
        %v6588 = vunpack.c.h.b16 %v1726
        %v6589 = vunpack.c.l.b16 %v1727
        %v6590 = vunpack.c.h.b16 %v1727
        %v6591 = vunpack.c.l.b16 %v1728
        %v6592 = vunpack.c.h.b16 %v1728
        %v6593 = vunpack.c.l.b16 %v1729
        %v6594 = vunpack.c.h.b16 %v1729
        %v6595 = vunpack.c.l.b16 %v1730
        %v6596 = vunpack.c.h.b16 %v1730
        %v6597 = vunpack.c.l.b16 %v1731
        %v6598 = vunpack.c.h.b16 %v1731
        %v6599 = vunpack.c.l.b16 %v1732
        %v6600 = vunpack.c.h.b16 %v1732
        %v6601 = vunpack.c.l.b16 %v1733
        %v6602 = vunpack.c.h.b16 %v1733
        %v6603 = vunpack.c.l.b16 %v1734
        %v6604 = vunpack.c.h.b16 %v1734
        %v6605 = vunpack.c.l.b16 %v1735
        %v6606 = vunpack.c.h.b16 %v1735
        %v6607 = vunpack.c.l.b16 %v1736
        %v6608 = vunpack.c.h.b16 %v1736
        %v6609 = vunpack.c.l.b16 %v1737
        %v6610 = vunpack.c.h.b16 %v1737
        %v6611 = vunpack.c.l.b16 %v1738
        %v6612 = vunpack.c.h.b16 %v1738
        %v6613 = vunpack.c.l.b16 %v1739
        %v6614 = vunpack.c.h.b16 %v1739
        %v6615 = vunpack.c.l.b16 %v1740
        %v6616 = vunpack.c.h.b16 %v1740
        %v6617 = vunpack.c.l.b16 %v1741
        %v6618 = vunpack.c.h.b16 %v1741
        %v6619 = vunpack.c.l.b16 %v1742
        %v6620 = vunpack.c.h.b16 %v1742
        %v6621 = vunpack.c.l.b16 %v1743
        %v6622 = vunpack.c.h.b16 %v1743
        %v6623 = vunpack.c.l.b16 %v1744
        %v6624 = vunpack.c.h.b16 %v1744
        %v6625 = vunpack.c.l.b16 %v1745
        %v6626 = vunpack.c.h.b16 %v1745
        %v6627 = vunpack.c.l.b16 %v1746
        %v6628 = vunpack.c.h.b16 %v1746
        %v6629 = vunpack.c.l.b16 %v1747
        %v6630 = vunpack.c.h.b16 %v1747
        %v6631 = vunpack.c.l.b16 %v1748
        %v6632 = vunpack.c.h.b16 %v1748
        %v6633 = vunpack.c.l.b16 %v1749
        %v6634 = vunpack.c.h.b16 %v1749
        %v6635 = vunpack.c.l.b16 %v1750
        %v6636 = vunpack.c.h.b16 %v1750
        %v6637 = vunpack.c.l.b16 %v1751
        %v6638 = vunpack.c.h.b16 %v1751
        %v6639 = vunpack.c.l.b16 %v1752
        %v6640 = vunpack.c.h.b16 %v1752
        %v6641 = vunpack.c.l.b16 %v1753
        %v6642 = vunpack.c.h.b16 %v1753
        %v6643 = vunpack.c.l.b16 %v1754
        %v6644 = vunpack.c.h.b16 %v1754
        %v6645 = vunpack.c.l.b16 %v1755
        %v6646 = vunpack.c.h.b16 %v1755
        %v6647 = vunpack.c.l.b16 %v1756
        %v6648 = vunpack.c.h.b16 %v1756
        %v6649 = vunpack.c.l.b16 %v1757
        %v6650 = vunpack.c.h.b16 %v1757
        %v6651 = vunpack.c.l.b16 %v1758
        %v6652 = vunpack.c.h.b16 %v1758
        %v6653 = vunpack.c.l.b16 %v1759
        %v6654 = vunpack.c.h.b16 %v1759
        %v6655 = vunpack.c.l.b16 %v1760
        %v6656 = vunpack.c.h.b16 %v1760
        %v6657 = vunpack.c.l.b16 %v1761
        %v6658 = vunpack.c.h.b16 %v1761
        %v6659 = vunpack.c.l.b16 %v1762
        %v6660 = vunpack.c.h.b16 %v1762
        %v6661 = vunpack.c.l.b16 %v1763
        %v6662 = vunpack.c.h.b16 %v1763
        %v6663 = vunpack.c.l.b16 %v1764
        %v6664 = vunpack.c.h.b16 %v1764
        %v6665 = vunpack.c.l.b16 %v1765
        %v6666 = vunpack.c.h.b16 %v1765
        %v6667 = vunpack.c.l.b16 %v1766
        %v6668 = vunpack.c.h.b16 %v1766
        %v6669 = vunpack.c.l.b16 %v1767
        %v6670 = vunpack.c.h.b16 %v1767
        %v6671 = vunpack.c.l.b16 %v1768
        %v6672 = vunpack.c.h.b16 %v1768
        %v6673 = vunpack.c.l.b16 %v1769
        %v6674 = vunpack.c.h.b16 %v1769
        %v6675 = vunpack.c.l.b16 %v1770
        %v6676 = vunpack.c.h.b16 %v1770
        %v6677 = vunpack.c.l.b16 %v1771
        %v6678 = vunpack.c.h.b16 %v1771
        %v6679 = vunpack.c.l.b16 %v1772
        %v6680 = vunpack.c.h.b16 %v1772
        %v6681 = vunpack.c.l.b16 %v1773
        %v6682 = vunpack.c.h.b16 %v1773
        %v6683 = vunpack.c.l.b16 %v1774
        %v6684 = vunpack.c.h.b16 %v1774
        %v6685 = vunpack.c.l.b16 %v1775
        %v6686 = vunpack.c.h.b16 %v1775
        %v6687 = vunpack.c.l.b16 %v1776
        %v6688 = vunpack.c.h.b16 %v1776
        %v6689 = vunpack.c.l.b16 %v1777
        %v6690 = vunpack.c.h.b16 %v1777
        %v6691 = vunpack.c.l.b16 %v1778
        %v6692 = vunpack.c.h.b16 %v1778
        %v6693 = vunpack.c.l.b16 %v1779
        %v6694 = vunpack.c.h.b16 %v1779
        %v6695 = vunpack.c.l.b16 %v1780
        %v6696 = vunpack.c.h.b16 %v1780
        %v6697 = vunpack.c.l.b16 %v1781
        %v6698 = vunpack.c.h.b16 %v1781
        %v6699 = vunpack.c.l.b16 %v1782
        %v6700 = vunpack.c.h.b16 %v1782
        %v6701 = vunpack.c.l.b16 %v1783
        %v6702 = vunpack.c.h.b16 %v1783
        %v6703 = vunpack.c.l.b16 %v1784
        %v6704 = vunpack.c.h.b16 %v1784
        %v6705 = vunpack.c.l.b16 %v1785
        %v6706 = vunpack.c.h.b16 %v1785
        %v6707 = vunpack.c.l.b16 %v1786
        %v6708 = vunpack.c.h.b16 %v1786
        %v6709 = vunpack.c.l.b16 %v1787
        %v6710 = vunpack.c.h.b16 %v1787
        %v6711 = vunpack.c.l.b16 %v1788
        %v6712 = vunpack.c.h.b16 %v1788
        %v6713 = vunpack.c.l.b16 %v1789
        %v6714 = vunpack.c.h.b16 %v1789
        %v6715 = vunpack.c.l.b16 %v1790
        %v6716 = vunpack.c.h.b16 %v1790
        %v6717 = vunpack.c.l.b16 %v1791
        %v6718 = vunpack.c.h.b16 %v1791
        %v6719 = vunpack.c.l.b16 %v1792
        %v6720 = vunpack.c.h.b16 %v1792
        %v6721 = vunpack.c.l.b16 %v1793
        %v6722 = vunpack.c.h.b16 %v1793
        %v6723 = vunpack.c.l.b16 %v1794
        %v6724 = vunpack.c.h.b16 %v1794
        %v6725 = vunpack.c.l.b16 %v1795
        %v6726 = vunpack.c.h.b16 %v1795
        %v6727 = vunpack.c.l.b16 %v1796
        %v6728 = vunpack.c.h.b16 %v1796
        %v6729 = vunpack.c.l.b16 %v1797
        %v6730 = vunpack.c.h.b16 %v1797
        %v6731 = vunpack.c.l.b16 %v1798
        %v6732 = vunpack.c.h.b16 %v1798
        %v6733 = vunpack.c.l.b16 %v1799
        %v6734 = vunpack.c.h.b16 %v1799
        %v6735 = vunpack.c.l.b16 %v1800
        %v6736 = vunpack.c.h.b16 %v1800
        %v6737 = vunpack.c.l.b16 %v1801
        %v6738 = vunpack.c.h.b16 %v1801
        %v6739 = vunpack.c.l.b16 %v1802
        %v6740 = vunpack.c.h.b16 %v1802
        %v6741 = vunpack.c.l.b16 %v1803
        %v6742 = vunpack.c.h.b16 %v1803
        %v6743 = vunpack.c.l.b16 %v1804
        %v6744 = vunpack.c.h.b16 %v1804
        %v6745 = vunpack.c.l.b16 %v1805
        %v6746 = vunpack.c.h.b16 %v1805
        %v6747 = vunpack.c.l.b16 %v1806
        %v6748 = vunpack.c.h.b16 %v1806
        %v6749 = vunpack.c.l.b16 %v1807
        %v6750 = vunpack.c.h.b16 %v1807
        %v6751 = vunpack.c.l.b16 %v1808
        %v6752 = vunpack.c.h.b16 %v1808
        %v6753 = vunpack.c.l.b16 %v1809
        %v6754 = vunpack.c.h.b16 %v1809
        %v6755 = vunpack.c.l.b16 %v1810
        %v6756 = vunpack.c.h.b16 %v1810
        %v6757 = vunpack.c.l.b16 %v1811
        %v6758 = vunpack.c.h.b16 %v1811
        %v6759 = vunpack.c.l.b16 %v1812
        %v6760 = vunpack.c.h.b16 %v1812
        %v6761 = vunpack.c.l.b16 %v1813
        %v6762 = vunpack.c.h.b16 %v1813
        %v6763 = vunpack.c.l.b16 %v1814
        %v6764 = vunpack.c.h.b16 %v1814
        %v6765 = vunpack.c.l.b16 %v1815
        %v6766 = vunpack.c.h.b16 %v1815
        %v6767 = vunpack.c.l.b16 %v1816
        %v6768 = vunpack.c.h.b16 %v1816
        %v6769 = vunpack.c.l.b16 %v1817
        %v6770 = vunpack.c.h.b16 %v1817
        %v6771 = vunpack.c.l.b16 %v1818
        %v6772 = vunpack.c.h.b16 %v1818
        %v6773 = vunpack.c.l.b16 %v1819
        %v6774 = vunpack.c.h.b16 %v1819
        %v6775 = vunpack.c.l.b16 %v1820
        %v6776 = vunpack.c.h.b16 %v1820
        %v6777 = vunpack.c.l.b16 %v1821
        %v6778 = vunpack.c.h.b16 %v1821
        %v6779 = vunpack.c.l.b16 %v1822
        %v6780 = vunpack.c.h.b16 %v1822
        %v6781 = vunpack.c.l.b16 %v1823
        %v6782 = vunpack.c.h.b16 %v1823
        %v6783 = vunpack.c.l.b16 %v1824
        %v6784 = vunpack.c.h.b16 %v1824
        %v6785 = vunpack.c.l.b16 %v1825
        %v6786 = vunpack.c.h.b16 %v1825
        %v6787 = vunpack.c.l.b16 %v1826
        %v6788 = vunpack.c.h.b16 %v1826
        %v6789 = vunpack.c.l.b16 %v1827
        %v6790 = vunpack.c.h.b16 %v1827
        %v6791 = vunpack.c.l.b16 %v1828
        %v6792 = vunpack.c.h.b16 %v1828
        %v6793 = vunpack.c.l.b16 %v1829
        %v6794 = vunpack.c.h.b16 %v1829
        %v6795 = vunpack.c.l.b16 %v1830
        %v6796 = vunpack.c.h.b16 %v1830
        %v6797 = vunpack.c.l.b16 %v1831
        %v6798 = vunpack.c.h.b16 %v1831
        %v6799 = vunpack.c.l.b16 %v1832
        %v6800 = vunpack.c.h.b16 %v1832
        %v6801 = vunpack.c.l.b16 %v1833
        %v6802 = vunpack.c.h.b16 %v1833
        %v6803 = vunpack.c.l.b16 %v1834
        %v6804 = vunpack.c.h.b16 %v1834
        %v6805 = vunpack.c.l.b16 %v1835
        %v6806 = vunpack.c.h.b16 %v1835
        %v6807 = vunpack.c.l.b16 %v1836
        %v6808 = vunpack.c.h.b16 %v1836
        %v6809 = vunpack.c.l.b16 %v1837
        %v6810 = vunpack.c.h.b16 %v1837
        %v6811 = vunpack.c.l.b16 %v1838
        %v6812 = vunpack.c.h.b16 %v1838
        %v6813 = vunpack.c.l.b16 %v1839
        %v6814 = vunpack.c.h.b16 %v1839
        %v6815 = vunpack.c.l.b16 %v1840
        %v6816 = vunpack.c.h.b16 %v1840
        %v6817 = vunpack.c.l.b16 %v1841
        %v6818 = vunpack.c.h.b16 %v1841
        %v6819 = vunpack.c.l.b16 %v1842
        %v6820 = vunpack.c.h.b16 %v1842
        %v6821 = vunpack.c.l.b16 %v1843
        %v6822 = vunpack.c.h.b16 %v1843
        %v6823 = vunpack.c.l.b16 %v1844
        %v6824 = vunpack.c.h.b16 %v1844
        %v6825 = vunpack.c.l.b16 %v1845
        %v6826 = vunpack.c.h.b16 %v1845
        %v6827 = vunpack.c.l.b16 %v1846
        %v6828 = vunpack.c.h.b16 %v1846
        %v6829 = vunpack.c.l.b16 %v1847
        %v6830 = vunpack.c.h.b16 %v1847
        %v6831 = vunpack.c.l.b16 %v1848
        %v6832 = vunpack.c.h.b16 %v1848
        %v6833 = vunpack.c.l.b16 %v1849
        %v6834 = vunpack.c.h.b16 %v1849
        %v6835 = vunpack.c.l.b16 %v1850
        %v6836 = vunpack.c.h.b16 %v1850
        %v6837 = vunpack.c.l.b16 %v1851
        %v6838 = vunpack.c.h.b16 %v1851
        %v6839 = vunpack.c.l.b16 %v1852
        %v6840 = vunpack.c.h.b16 %v1852
        %v6841 = vunpack.c.l.b16 %v1853
        %v6842 = vunpack.c.h.b16 %v1853
        %v6843 = vunpack.c.l.b16 %v1854
        %v6844 = vunpack.c.h.b16 %v1854
        %v6845 = vunpack.c.l.b16 %v1855
        %v6846 = vunpack.c.h.b16 %v1855
        %v6847 = vunpack.c.l.b16 %v1856
        %v6848 = vunpack.c.h.b16 %v1856
        %v6849 = vunpack.c.l.b16 %v1857
        %v6850 = vunpack.c.h.b16 %v1857
        %v6851 = vunpack.c.l.b16 %v1858
        %v6852 = vunpack.c.h.b16 %v1858
        %v6853 = vunpack.c.l.b16 %v1859
        %v6854 = vunpack.c.h.b16 %v1859
        %v6855 = vunpack.c.l.b16 %v1860
        %v6856 = vunpack.c.h.b16 %v1860
        %v6857 = vunpack.c.l.b16 %v1861
        %v6858 = vunpack.c.h.b16 %v1861
        %v6859 = vunpack.c.l.b16 %v1862
        %v6860 = vunpack.c.h.b16 %v1862
        %v6861 = vunpack.c.l.b16 %v1863
        %v6862 = vunpack.c.h.b16 %v1863
        %v6863 = vunpack.c.l.b16 %v1864
        %v6864 = vunpack.c.h.b16 %v1864
        %v6865 = vunpack.c.l.b16 %v1865
        %v6866 = vunpack.c.h.b16 %v1865
        %v6867 = vunpack.c.l.b16 %v1866
        %v6868 = vunpack.c.h.b16 %v1866
        %v6869 = vunpack.c.l.b16 %v1867
        %v6870 = vunpack.c.h.b16 %v1867
        %v6871 = vunpack.c.l.b16 %v1868
        %v6872 = vunpack.c.h.b16 %v1868
        %v6873 = vunpack.c.l.b16 %v1869
        %v6874 = vunpack.c.h.b16 %v1869
        %v6875 = vunpack.c.l.b16 %v1870
        %v6876 = vunpack.c.h.b16 %v1870
        %v6877 = vunpack.c.l.b16 %v1871
        %v6878 = vunpack.c.h.b16 %v1871
        %v6879 = vunpack.c.l.b16 %v1872
        %v6880 = vunpack.c.h.b16 %v1872
        %v6881 = vunpack.c.l.b16 %v1873
        %v6882 = vunpack.c.h.b16 %v1873
        %v6883 = vunpack.c.l.b16 %v1874
        %v6884 = vunpack.c.h.b16 %v1874
        %v6885 = vunpack.c.l.b16 %v1875
        %v6886 = vunpack.c.h.b16 %v1875
        %v6887 = vunpack.c.l.b16 %v1876
        %v6888 = vunpack.c.h.b16 %v1876
        %v6889 = vunpack.c.l.b16 %v1877
        %v6890 = vunpack.c.h.b16 %v1877
        %v6891 = vunpack.c.l.b16 %v1878
        %v6892 = vunpack.c.h.b16 %v1878
        %v6893 = vunpack.c.l.b16 %v1879
        %v6894 = vunpack.c.h.b16 %v1879
        %v6895 = vunpack.c.l.b16 %v1880
        %v6896 = vunpack.c.h.b16 %v1880
        %v6897 = vunpack.c.l.b16 %v1881
        %v6898 = vunpack.c.h.b16 %v1881
        %v6899 = vunpack.c.l.b16 %v1882
        %v6900 = vunpack.c.h.b16 %v1882
        %v6901 = vunpack.c.l.b16 %v1883
        %v6902 = vunpack.c.h.b16 %v1883
        %v6903 = vunpack.c.l.b16 %v1884
        %v6904 = vunpack.c.h.b16 %v1884
        %v6905 = vunpack.c.l.b16 %v1885
        %v6906 = vunpack.c.h.b16 %v1885
        %v6907 = vunpack.c.l.b16 %v1886
        %v6908 = vunpack.c.h.b16 %v1886
        %v6909 = vunpack.c.l.b16 %v1887
        %v6910 = vunpack.c.h.b16 %v1887
        %v6911 = vunpack.c.l.b16 %v1888
        %v6912 = vunpack.c.h.b16 %v1888
        %v6913 = vunpack.c.l.b16 %v1889
        %v6914 = vunpack.c.h.b16 %v1889
        %v6915 = vunpack.c.l.b16 %v1890
        %v6916 = vunpack.c.h.b16 %v1890
        %v6917 = vunpack.c.l.b16 %v1891
        %v6918 = vunpack.c.h.b16 %v1891
        %v6919 = vunpack.c.l.b16 %v1892
        %v6920 = vunpack.c.h.b16 %v1892
        %v6921 = vunpack.c.l.b16 %v1893
        %v6922 = vunpack.c.h.b16 %v1893
        %v6923 = vunpack.c.l.b16 %v1894
        %v6924 = vunpack.c.h.b16 %v1894
        %v6925 = vunpack.c.l.b16 %v1895
        %v6926 = vunpack.c.h.b16 %v1895
        %v6927 = vunpack.c.l.b16 %v1896
        %v6928 = vunpack.c.h.b16 %v1896
        %v6929 = vpack.c.b16 %v3737, %v3729
        %v6930 = vpack.c.b16 %v3738, %v3730
        %v6931 = vpack.c.b16 %v3739, %v3731
        %v6932 = vpack.c.b16 %v3740, %v3732
        %v6933 = vpack.c.b16 %v3741, %v3733
        %v6934 = vpack.c.b16 %v3742, %v3734
        %v6935 = vpack.c.b16 %v3743, %v3735
        %v6936 = vpack.c.b16 %v3744, %v3736
        %v6937 = vpack.c.b16 %v3753, %v3745
        %v6938 = vpack.c.b16 %v3754, %v3746
        %v6939 = vpack.c.b16 %v3755, %v3747
        %v6940 = vpack.c.b16 %v3756, %v3748
        %v6941 = vpack.c.b16 %v3757, %v3749
        %v6942 = vpack.c.b16 %v3758, %v3750
        %v6943 = vpack.c.b16 %v3759, %v3751
        %v6944 = vpack.c.b16 %v3760, %v3752
        %v6945 = vpack.c.b16 %v3769, %v3761
        %v6946 = vpack.c.b16 %v3770, %v3762
        %v6947 = vpack.c.b16 %v3771, %v3763
        %v6948 = vpack.c.b16 %v3772, %v3764
        %v6949 = vpack.c.b16 %v3773, %v3765
        %v6950 = vpack.c.b16 %v3774, %v3766
        %v6951 = vpack.c.b16 %v3775, %v3767
        %v6952 = vpack.c.b16 %v3776, %v3768
        %v6953 = vpack.c.b16 %v3785, %v3777
        %v6954 = vpack.c.b16 %v3786, %v3778
        %v6955 = vpack.c.b16 %v3787, %v3779
        %v6956 = vpack.c.b16 %v3788, %v3780
        %v6957 = vpack.c.b16 %v3789, %v3781
        %v6958 = vpack.c.b16 %v3790, %v3782
        %v6959 = vpack.c.b16 %v3791, %v3783
        %v6960 = vpack.c.b16 %v3792, %v3784
        %v6961 = vpack.c.b16 %v3801, %v3793
        %v6962 = vpack.c.b16 %v3802, %v3794
        %v6963 = vpack.c.b16 %v3803, %v3795
        %v6964 = vpack.c.b16 %v3804, %v3796
        %v6965 = vpack.c.b16 %v3805, %v3797
        %v6966 = vpack.c.b16 %v3806, %v3798
        %v6967 = vpack.c.b16 %v3807, %v3799
        %v6968 = vpack.c.b16 %v3808, %v3800
        %v6969 = vpack.c.b16 %v3817, %v3809
        %v6970 = vpack.c.b16 %v3818, %v3810
        %v6971 = vpack.c.b16 %v3819, %v3811
        %v6972 = vpack.c.b16 %v3820, %v3812
        %v6973 = vpack.c.b16 %v3821, %v3813
        %v6974 = vpack.c.b16 %v3822, %v3814
        %v6975 = vpack.c.b16 %v3823, %v3815
        %v6976 = vpack.c.b16 %v3824, %v3816
        %v6977 = vpack.c.b16 %v3833, %v3825
        %v6978 = vpack.c.b16 %v3834, %v3826
        %v6979 = vpack.c.b16 %v3835, %v3827
        %v6980 = vpack.c.b16 %v3836, %v3828
        %v6981 = vpack.c.b16 %v3837, %v3829
        %v6982 = vpack.c.b16 %v3838, %v3830
        %v6983 = vpack.c.b16 %v3839, %v3831
        %v6984 = vpack.c.b16 %v3840, %v3832
        %v6985 = vpack.c.b16 %v3849, %v3841
        %v6986 = vpack.c.b16 %v3850, %v3842
        %v6987 = vpack.c.b16 %v3851, %v3843
        %v6988 = vpack.c.b16 %v3852, %v3844
        %v6989 = vpack.c.b16 %v3853, %v3845
        %v6990 = vpack.c.b16 %v3854, %v3846
        %v6991 = vpack.c.b16 %v3855, %v3847
        %v6992 = vpack.c.b16 %v3856, %v3848
        %v6993 = vpack.c.b16 %v3865, %v3857
        %v6994 = vpack.c.b16 %v3866, %v3858
        %v6995 = vpack.c.b16 %v3867, %v3859
        %v6996 = vpack.c.b16 %v3868, %v3860
        %v6997 = vpack.c.b16 %v3869, %v3861
        %v6998 = vpack.c.b16 %v3870, %v3862
        %v6999 = vpack.c.b16 %v3871, %v3863
        %v7000 = vpack.c.b16 %v3872, %v3864
        %v7001 = vpack.c.b16 %v3881, %v3873
        %v7002 = vpack.c.b16 %v3882, %v3874
        %v7003 = vpack.c.b16 %v3883, %v3875
        %v7004 = vpack.c.b16 %v3884, %v3876
        %v7005 = vpack.c.b16 %v3885, %v3877
        %v7006 = vpack.c.b16 %v3886, %v3878
        %v7007 = vpack.c.b16 %v3887, %v3879
        %v7008 = vpack.c.b16 %v3888, %v3880
        %v7009 = vpack.c.b16 %v3897, %v3889
        %v7010 = vpack.c.b16 %v3898, %v3890
        %v7011 = vpack.c.b16 %v3899, %v3891
        %v7012 = vpack.c.b16 %v3900, %v3892
        %v7013 = vpack.c.b16 %v3901, %v3893
        %v7014 = vpack.c.b16 %v3902, %v3894
        %v7015 = vpack.c.b16 %v3903, %v3895
        %v7016 = vpack.c.b16 %v3904, %v3896
        %v7017 = vpack.c.b16 %v3913, %v3905
        %v7018 = vpack.c.b16 %v3914, %v3906
        %v7019 = vpack.c.b16 %v3915, %v3907
        %v7020 = vpack.c.b16 %v3916, %v3908
        %v7021 = vpack.c.b16 %v3917, %v3909
        %v7022 = vpack.c.b16 %v3918, %v3910
        %v7023 = vpack.c.b16 %v3919, %v3911
        %v7024 = vpack.c.b16 %v3920, %v3912
        %v7025 = vpack.c.b16 %v3929, %v3921
        %v7026 = vpack.c.b16 %v3930, %v3922
        %v7027 = vpack.c.b16 %v3931, %v3923
        %v7028 = vpack.c.b16 %v3932, %v3924
        %v7029 = vpack.c.b16 %v3933, %v3925
        %v7030 = vpack.c.b16 %v3934, %v3926
        %v7031 = vpack.c.b16 %v3935, %v3927
        %v7032 = vpack.c.b16 %v3936, %v3928
        %v7033 = vpack.c.b16 %v3945, %v3937
        %v7034 = vpack.c.b16 %v3946, %v3938
        %v7035 = vpack.c.b16 %v3947, %v3939
        %v7036 = vpack.c.b16 %v3948, %v3940
        %v7037 = vpack.c.b16 %v3949, %v3941
        %v7038 = vpack.c.b16 %v3950, %v3942
        %v7039 = vpack.c.b16 %v3951, %v3943
        %v7040 = vpack.c.b16 %v3952, %v3944
        %v7041 = vpack.c.b16 %v3961, %v3953
        %v7042 = vpack.c.b16 %v3962, %v3954
        %v7043 = vpack.c.b16 %v3963, %v3955
        %v7044 = vpack.c.b16 %v3964, %v3956
        %v7045 = vpack.c.b16 %v3965, %v3957
        %v7046 = vpack.c.b16 %v3966, %v3958
        %v7047 = vpack.c.b16 %v3967, %v3959
        %v7048 = vpack.c.b16 %v3968, %v3960
        %v7049 = vpack.c.b16 %v3977, %v3969
        %v7050 = vpack.c.b16 %v3978, %v3970
        %v7051 = vpack.c.b16 %v3979, %v3971
        %v7052 = vpack.c.b16 %v3980, %v3972
        %v7053 = vpack.c.b16 %v3981, %v3973
        %v7054 = vpack.c.b16 %v3982, %v3974
        %v7055 = vpack.c.b16 %v3983, %v3975
        %v7056 = vpack.c.b16 %v3984, %v3976
        %v7057 = vpack.c.b16 %v3993, %v3985
        %v7058 = vpack.c.b16 %v3994, %v3986
        %v7059 = vpack.c.b16 %v3995, %v3987
        %v7060 = vpack.c.b16 %v3996, %v3988
        %v7061 = vpack.c.b16 %v3997, %v3989
        %v7062 = vpack.c.b16 %v3998, %v3990
        %v7063 = vpack.c.b16 %v3999, %v3991
        %v7064 = vpack.c.b16 %v4000, %v3992
        %v7065 = vpack.c.b16 %v4009, %v4001
        %v7066 = vpack.c.b16 %v4010, %v4002
        %v7067 = vpack.c.b16 %v4011, %v4003
        %v7068 = vpack.c.b16 %v4012, %v4004
        %v7069 = vpack.c.b16 %v4013, %v4005
        %v7070 = vpack.c.b16 %v4014, %v4006
        %v7071 = vpack.c.b16 %v4015, %v4007
        %v7072 = vpack.c.b16 %v4016, %v4008
        %v7073 = vpack.c.b16 %v4025, %v4017
        %v7074 = vpack.c.b16 %v4026, %v4018
        %v7075 = vpack.c.b16 %v4027, %v4019
        %v7076 = vpack.c.b16 %v4028, %v4020
        %v7077 = vpack.c.b16 %v4029, %v4021
        %v7078 = vpack.c.b16 %v4030, %v4022
        %v7079 = vpack.c.b16 %v4031, %v4023
        %v7080 = vpack.c.b16 %v4032, %v4024
        %v7081 = vpack.c.b16 %v4041, %v4033
        %v7082 = vpack.c.b16 %v4042, %v4034
        %v7083 = vpack.c.b16 %v4043, %v4035
        %v7084 = vpack.c.b16 %v4044, %v4036
        %v7085 = vpack.c.b16 %v4045, %v4037
        %v7086 = vpack.c.b16 %v4046, %v4038
        %v7087 = vpack.c.b16 %v4047, %v4039
        %v7088 = vpack.c.b16 %v4048, %v4040
        %v7089 = vpack.c.b16 %v4057, %v4049
        %v7090 = vpack.c.b16 %v4058, %v4050
        %v7091 = vpack.c.b16 %v4059, %v4051
        %v7092 = vpack.c.b16 %v4060, %v4052
        %v7093 = vpack.c.b16 %v4061, %v4053
        %v7094 = vpack.c.b16 %v4062, %v4054
        %v7095 = vpack.c.b16 %v4063, %v4055
        %v7096 = vpack.c.b16 %v4064, %v4056
        %v7097 = vpack.c.b16 %v4073, %v4065
        %v7098 = vpack.c.b16 %v4074, %v4066
        %v7099 = vpack.c.b16 %v4075, %v4067
        %v7100 = vpack.c.b16 %v4076, %v4068
        %v7101 = vpack.c.b16 %v4077, %v4069
        %v7102 = vpack.c.b16 %v4078, %v4070
        %v7103 = vpack.c.b16 %v4079, %v4071
        %v7104 = vpack.c.b16 %v4080, %v4072
        %v7105 = vpack.c.b16 %v4089, %v4081
        %v7106 = vpack.c.b16 %v4090, %v4082
        %v7107 = vpack.c.b16 %v4091, %v4083
        %v7108 = vpack.c.b16 %v4092, %v4084
        %v7109 = vpack.c.b16 %v4093, %v4085
        %v7110 = vpack.c.b16 %v4094, %v4086
        %v7111 = vpack.c.b16 %v4095, %v4087
        %v7112 = vpack.c.b16 %v4096, %v4088
        %v7113 = vpack.c.b16 %v4105, %v4097
        %v7114 = vpack.c.b16 %v4106, %v4098
        %v7115 = vpack.c.b16 %v4107, %v4099
        %v7116 = vpack.c.b16 %v4108, %v4100
        %v7117 = vpack.c.b16 %v4109, %v4101
        %v7118 = vpack.c.b16 %v4110, %v4102
        %v7119 = vpack.c.b16 %v4111, %v4103
        %v7120 = vpack.c.b16 %v4112, %v4104
        %v7121 = vpack.c.b16 %v4121, %v4113
        %v7122 = vpack.c.b16 %v4122, %v4114
        %v7123 = vpack.c.b16 %v4123, %v4115
        %v7124 = vpack.c.b16 %v4124, %v4116
        %v7125 = vpack.c.b16 %v4125, %v4117
        %v7126 = vpack.c.b16 %v4126, %v4118
        %v7127 = vpack.c.b16 %v4127, %v4119
        %v7128 = vpack.c.b16 %v4128, %v4120
        %v7129 = vpack.c.b16 %v4137, %v4129
        %v7130 = vpack.c.b16 %v4138, %v4130
        %v7131 = vpack.c.b16 %v4139, %v4131
        %v7132 = vpack.c.b16 %v4140, %v4132
        %v7133 = vpack.c.b16 %v4141, %v4133
        %v7134 = vpack.c.b16 %v4142, %v4134
        %v7135 = vpack.c.b16 %v4143, %v4135
        %v7136 = vpack.c.b16 %v4144, %v4136
        %v7137 = vpack.c.b16 %v4153, %v4145
        %v7138 = vpack.c.b16 %v4154, %v4146
        %v7139 = vpack.c.b16 %v4155, %v4147
        %v7140 = vpack.c.b16 %v4156, %v4148
        %v7141 = vpack.c.b16 %v4157, %v4149
        %v7142 = vpack.c.b16 %v4158, %v4150
        %v7143 = vpack.c.b16 %v4159, %v4151
        %v7144 = vpack.c.b16 %v4160, %v4152
        %v7145 = vpack.c.b16 %v4169, %v4161
        %v7146 = vpack.c.b16 %v4170, %v4162
        %v7147 = vpack.c.b16 %v4171, %v4163
        %v7148 = vpack.c.b16 %v4172, %v4164
        %v7149 = vpack.c.b16 %v4173, %v4165
        %v7150 = vpack.c.b16 %v4174, %v4166
        %v7151 = vpack.c.b16 %v4175, %v4167
        %v7152 = vpack.c.b16 %v4176, %v4168
        %v7153 = vpack.c.b16 %v4185, %v4177
        %v7154 = vpack.c.b16 %v4186, %v4178
        %v7155 = vpack.c.b16 %v4187, %v4179
        %v7156 = vpack.c.b16 %v4188, %v4180
        %v7157 = vpack.c.b16 %v4189, %v4181
        %v7158 = vpack.c.b16 %v4190, %v4182
        %v7159 = vpack.c.b16 %v4191, %v4183
        %v7160 = vpack.c.b16 %v4192, %v4184
        %v7161 = vpack.c.b16 %v4201, %v4193
        %v7162 = vpack.c.b16 %v4202, %v4194
        %v7163 = vpack.c.b16 %v4203, %v4195
        %v7164 = vpack.c.b16 %v4204, %v4196
        %v7165 = vpack.c.b16 %v4205, %v4197
        %v7166 = vpack.c.b16 %v4206, %v4198
        %v7167 = vpack.c.b16 %v4207, %v4199
        %v7168 = vpack.c.b16 %v4208, %v4200
        %v7169 = vpack.c.b16 %v4217, %v4209
        %v7170 = vpack.c.b16 %v4218, %v4210
        %v7171 = vpack.c.b16 %v4219, %v4211
        %v7172 = vpack.c.b16 %v4220, %v4212
        %v7173 = vpack.c.b16 %v4221, %v4213
        %v7174 = vpack.c.b16 %v4222, %v4214
        %v7175 = vpack.c.b16 %v4223, %v4215
        %v7176 = vpack.c.b16 %v4224, %v4216
        %v7177 = vpack.c.b16 %v4233, %v4225
        %v7178 = vpack.c.b16 %v4234, %v4226
        %v7179 = vpack.c.b16 %v4235, %v4227
        %v7180 = vpack.c.b16 %v4236, %v4228
        %v7181 = vpack.c.b16 %v4237, %v4229
        %v7182 = vpack.c.b16 %v4238, %v4230
        %v7183 = vpack.c.b16 %v4239, %v4231
        %v7184 = vpack.c.b16 %v4240, %v4232
        %v7185 = vpack.c.b16 %v4249, %v4241
        %v7186 = vpack.c.b16 %v4250, %v4242
        %v7187 = vpack.c.b16 %v4251, %v4243
        %v7188 = vpack.c.b16 %v4252, %v4244
        %v7189 = vpack.c.b16 %v4253, %v4245
        %v7190 = vpack.c.b16 %v4254, %v4246
        %v7191 = vpack.c.b16 %v4255, %v4247
        %v7192 = vpack.c.b16 %v4256, %v4248
        %v7193 = vpack.c.b16 %v4265, %v4257
        %v7194 = vpack.c.b16 %v4266, %v4258
        %v7195 = vpack.c.b16 %v4267, %v4259
        %v7196 = vpack.c.b16 %v4268, %v4260
        %v7197 = vpack.c.b16 %v4269, %v4261
        %v7198 = vpack.c.b16 %v4270, %v4262
        %v7199 = vpack.c.b16 %v4271, %v4263
        %v7200 = vpack.c.b16 %v4272, %v4264
        %v7201 = vpack.c.b16 %v4281, %v4273
        %v7202 = vpack.c.b16 %v4282, %v4274
        %v7203 = vpack.c.b16 %v4283, %v4275
        %v7204 = vpack.c.b16 %v4284, %v4276
        %v7205 = vpack.c.b16 %v4285, %v4277
        %v7206 = vpack.c.b16 %v4286, %v4278
        %v7207 = vpack.c.b16 %v4287, %v4279
        %v7208 = vpack.c.b16 %v4288, %v4280
        %v7209 = vpack.c.b16 %v4297, %v4289
        %v7210 = vpack.c.b16 %v4298, %v4290
        %v7211 = vpack.c.b16 %v4299, %v4291
        %v7212 = vpack.c.b16 %v4300, %v4292
        %v7213 = vpack.c.b16 %v4301, %v4293
        %v7214 = vpack.c.b16 %v4302, %v4294
        %v7215 = vpack.c.b16 %v4303, %v4295
        %v7216 = vpack.c.b16 %v4304, %v4296
        %v7217 = vpack.c.b16 %v4313, %v4305
        %v7218 = vpack.c.b16 %v4314, %v4306
        %v7219 = vpack.c.b16 %v4315, %v4307
        %v7220 = vpack.c.b16 %v4316, %v4308
        %v7221 = vpack.c.b16 %v4317, %v4309
        %v7222 = vpack.c.b16 %v4318, %v4310
        %v7223 = vpack.c.b16 %v4319, %v4311
        %v7224 = vpack.c.b16 %v4320, %v4312
        %v7225 = vpack.c.b16 %v4329, %v4321
        %v7226 = vpack.c.b16 %v4330, %v4322
        %v7227 = vpack.c.b16 %v4331, %v4323
        %v7228 = vpack.c.b16 %v4332, %v4324
        %v7229 = vpack.c.b16 %v4333, %v4325
        %v7230 = vpack.c.b16 %v4334, %v4326
        %v7231 = vpack.c.b16 %v4335, %v4327
        %v7232 = vpack.c.b16 %v4336, %v4328
        %v7233 = vpack.c.b16 %v4345, %v4337
        %v7234 = vpack.c.b16 %v4346, %v4338
        %v7235 = vpack.c.b16 %v4347, %v4339
        %v7236 = vpack.c.b16 %v4348, %v4340
        %v7237 = vpack.c.b16 %v4349, %v4341
        %v7238 = vpack.c.b16 %v4350, %v4342
        %v7239 = vpack.c.b16 %v4351, %v4343
        %v7240 = vpack.c.b16 %v4352, %v4344
        %v7241 = vpack.c.b16 %v4361, %v4353
        %v7242 = vpack.c.b16 %v4362, %v4354
        %v7243 = vpack.c.b16 %v4363, %v4355
        %v7244 = vpack.c.b16 %v4364, %v4356
        %v7245 = vpack.c.b16 %v4365, %v4357
        %v7246 = vpack.c.b16 %v4366, %v4358
        %v7247 = vpack.c.b16 %v4367, %v4359
        %v7248 = vpack.c.b16 %v4368, %v4360
        %v7249 = vpack.c.b16 %v4377, %v4369
        %v7250 = vpack.c.b16 %v4378, %v4370
        %v7251 = vpack.c.b16 %v4379, %v4371
        %v7252 = vpack.c.b16 %v4380, %v4372
        %v7253 = vpack.c.b16 %v4381, %v4373
        %v7254 = vpack.c.b16 %v4382, %v4374
        %v7255 = vpack.c.b16 %v4383, %v4375
        %v7256 = vpack.c.b16 %v4384, %v4376
        %v7257 = vpack.c.b16 %v4393, %v4385
        %v7258 = vpack.c.b16 %v4394, %v4386
        %v7259 = vpack.c.b16 %v4395, %v4387
        %v7260 = vpack.c.b16 %v4396, %v4388
        %v7261 = vpack.c.b16 %v4397, %v4389
        %v7262 = vpack.c.b16 %v4398, %v4390
        %v7263 = vpack.c.b16 %v4399, %v4391
        %v7264 = vpack.c.b16 %v4400, %v4392
        %v7265 = vpack.c.b16 %v4409, %v4401
        %v7266 = vpack.c.b16 %v4410, %v4402
        %v7267 = vpack.c.b16 %v4411, %v4403
        %v7268 = vpack.c.b16 %v4412, %v4404
        %v7269 = vpack.c.b16 %v4413, %v4405
        %v7270 = vpack.c.b16 %v4414, %v4406
        %v7271 = vpack.c.b16 %v4415, %v4407
        %v7272 = vpack.c.b16 %v4416, %v4408
        %v7273 = vpack.c.b16 %v4425, %v4417
        %v7274 = vpack.c.b16 %v4426, %v4418
        %v7275 = vpack.c.b16 %v4427, %v4419
        %v7276 = vpack.c.b16 %v4428, %v4420
        %v7277 = vpack.c.b16 %v4429, %v4421
        %v7278 = vpack.c.b16 %v4430, %v4422
        %v7279 = vpack.c.b16 %v4431, %v4423
        %v7280 = vpack.c.b16 %v4432, %v4424
        %v7281 = vpack.c.b16 %v4441, %v4433
        %v7282 = vpack.c.b16 %v4442, %v4434
        %v7283 = vpack.c.b16 %v4443, %v4435
        %v7284 = vpack.c.b16 %v4444, %v4436
        %v7285 = vpack.c.b16 %v4445, %v4437
        %v7286 = vpack.c.b16 %v4446, %v4438
        %v7287 = vpack.c.b16 %v4447, %v4439
        %v7288 = vpack.c.b16 %v4448, %v4440
        %v7289 = vpack.c.b16 %v4457, %v4449
        %v7290 = vpack.c.b16 %v4458, %v4450
        %v7291 = vpack.c.b16 %v4459, %v4451
        %v7292 = vpack.c.b16 %v4460, %v4452
        %v7293 = vpack.c.b16 %v4461, %v4453
        %v7294 = vpack.c.b16 %v4462, %v4454
        %v7295 = vpack.c.b16 %v4463, %v4455
        %v7296 = vpack.c.b16 %v4464, %v4456
        %v7297 = vpack.c.b16 %v4473, %v4465
        %v7298 = vpack.c.b16 %v4474, %v4466
        %v7299 = vpack.c.b16 %v4475, %v4467
        %v7300 = vpack.c.b16 %v4476, %v4468
        %v7301 = vpack.c.b16 %v4477, %v4469
        %v7302 = vpack.c.b16 %v4478, %v4470
        %v7303 = vpack.c.b16 %v4479, %v4471
        %v7304 = vpack.c.b16 %v4480, %v4472
        %v7305 = vpack.c.b16 %v4489, %v4481
        %v7306 = vpack.c.b16 %v4490, %v4482
        %v7307 = vpack.c.b16 %v4491, %v4483
        %v7308 = vpack.c.b16 %v4492, %v4484
        %v7309 = vpack.c.b16 %v4493, %v4485
        %v7310 = vpack.c.b16 %v4494, %v4486
        %v7311 = vpack.c.b16 %v4495, %v4487
        %v7312 = vpack.c.b16 %v4496, %v4488
        %v7313 = vpack.c.b16 %v4505, %v4497
        %v7314 = vpack.c.b16 %v4506, %v4498
        %v7315 = vpack.c.b16 %v4507, %v4499
        %v7316 = vpack.c.b16 %v4508, %v4500
        %v7317 = vpack.c.b16 %v4509, %v4501
        %v7318 = vpack.c.b16 %v4510, %v4502
        %v7319 = vpack.c.b16 %v4511, %v4503
        %v7320 = vpack.c.b16 %v4512, %v4504
        %v7321 = vpack.c.b16 %v4521, %v4513
        %v7322 = vpack.c.b16 %v4522, %v4514
        %v7323 = vpack.c.b16 %v4523, %v4515
        %v7324 = vpack.c.b16 %v4524, %v4516
        %v7325 = vpack.c.b16 %v4525, %v4517
        %v7326 = vpack.c.b16 %v4526, %v4518
        %v7327 = vpack.c.b16 %v4527, %v4519
        %v7328 = vpack.c.b16 %v4528, %v4520
        %v7329 = vpack.c.b16 %v4537, %v4529
        %v7330 = vpack.c.b16 %v4538, %v4530
        %v7331 = vpack.c.b16 %v4539, %v4531
        %v7332 = vpack.c.b16 %v4540, %v4532
        %v7333 = vpack.c.b16 %v4541, %v4533
        %v7334 = vpack.c.b16 %v4542, %v4534
        %v7335 = vpack.c.b16 %v4543, %v4535
        %v7336 = vpack.c.b16 %v4544, %v4536
        %v7337 = vpack.c.b16 %v4553, %v4545
        %v7338 = vpack.c.b16 %v4554, %v4546
        %v7339 = vpack.c.b16 %v4555, %v4547
        %v7340 = vpack.c.b16 %v4556, %v4548
        %v7341 = vpack.c.b16 %v4557, %v4549
        %v7342 = vpack.c.b16 %v4558, %v4550
        %v7343 = vpack.c.b16 %v4559, %v4551
        %v7344 = vpack.c.b16 %v4560, %v4552
        %v7345 = vpack.c.b16 %v4569, %v4561
        %v7346 = vpack.c.b16 %v4570, %v4562
        %v7347 = vpack.c.b16 %v4571, %v4563
        %v7348 = vpack.c.b16 %v4572, %v4564
        %v7349 = vpack.c.b16 %v4573, %v4565
        %v7350 = vpack.c.b16 %v4574, %v4566
        %v7351 = vpack.c.b16 %v4575, %v4567
        %v7352 = vpack.c.b16 %v4576, %v4568
        %v7353 = vpack.c.b16 %v4585, %v4577
        %v7354 = vpack.c.b16 %v4586, %v4578
        %v7355 = vpack.c.b16 %v4587, %v4579
        %v7356 = vpack.c.b16 %v4588, %v4580
        %v7357 = vpack.c.b16 %v4589, %v4581
        %v7358 = vpack.c.b16 %v4590, %v4582
        %v7359 = vpack.c.b16 %v4591, %v4583
        %v7360 = vpack.c.b16 %v4592, %v4584
        %v7361 = vpack.c.b16 %v4601, %v4593
        %v7362 = vpack.c.b16 %v4602, %v4594
        %v7363 = vpack.c.b16 %v4603, %v4595
        %v7364 = vpack.c.b16 %v4604, %v4596
        %v7365 = vpack.c.b16 %v4605, %v4597
        %v7366 = vpack.c.b16 %v4606, %v4598
        %v7367 = vpack.c.b16 %v4607, %v4599
        %v7368 = vpack.c.b16 %v4608, %v4600
        %v7369 = vpack.c.b16 %v4617, %v4609
        %v7370 = vpack.c.b16 %v4618, %v4610
        %v7371 = vpack.c.b16 %v4619, %v4611
        %v7372 = vpack.c.b16 %v4620, %v4612
        %v7373 = vpack.c.b16 %v4621, %v4613
        %v7374 = vpack.c.b16 %v4622, %v4614
        %v7375 = vpack.c.b16 %v4623, %v4615
        %v7376 = vpack.c.b16 %v4624, %v4616
        %v7377 = vpack.c.b16 %v4633, %v4625
        %v7378 = vpack.c.b16 %v4634, %v4626
        %v7379 = vpack.c.b16 %v4635, %v4627
        %v7380 = vpack.c.b16 %v4636, %v4628
        %v7381 = vpack.c.b16 %v4637, %v4629
        %v7382 = vpack.c.b16 %v4638, %v4630
        %v7383 = vpack.c.b16 %v4639, %v4631
        %v7384 = vpack.c.b16 %v4640, %v4632
        %v7385 = vpack.c.b16 %v4649, %v4641
        %v7386 = vpack.c.b16 %v4650, %v4642
        %v7387 = vpack.c.b16 %v4651, %v4643
        %v7388 = vpack.c.b16 %v4652, %v4644
        %v7389 = vpack.c.b16 %v4653, %v4645
        %v7390 = vpack.c.b16 %v4654, %v4646
        %v7391 = vpack.c.b16 %v4655, %v4647
        %v7392 = vpack.c.b16 %v4656, %v4648
        %v7393 = vpack.c.b16 %v4665, %v4657
        %v7394 = vpack.c.b16 %v4666, %v4658
        %v7395 = vpack.c.b16 %v4667, %v4659
        %v7396 = vpack.c.b16 %v4668, %v4660
        %v7397 = vpack.c.b16 %v4669, %v4661
        %v7398 = vpack.c.b16 %v4670, %v4662
        %v7399 = vpack.c.b16 %v4671, %v4663
        %v7400 = vpack.c.b16 %v4672, %v4664
        %v7401 = vpack.c.b16 %v4681, %v4673
        %v7402 = vpack.c.b16 %v4682, %v4674
        %v7403 = vpack.c.b16 %v4683, %v4675
        %v7404 = vpack.c.b16 %v4684, %v4676
        %v7405 = vpack.c.b16 %v4685, %v4677
        %v7406 = vpack.c.b16 %v4686, %v4678
        %v7407 = vpack.c.b16 %v4687, %v4679
        %v7408 = vpack.c.b16 %v4688, %v4680
        %v7409 = vpack.c.b16 %v4697, %v4689
        %v7410 = vpack.c.b16 %v4698, %v4690
        %v7411 = vpack.c.b16 %v4699, %v4691
        %v7412 = vpack.c.b16 %v4700, %v4692
        %v7413 = vpack.c.b16 %v4701, %v4693
        %v7414 = vpack.c.b16 %v4702, %v4694
        %v7415 = vpack.c.b16 %v4703, %v4695
        %v7416 = vpack.c.b16 %v4704, %v4696
        %v7417 = vpack.c.b16 %v4713, %v4705
        %v7418 = vpack.c.b16 %v4714, %v4706
        %v7419 = vpack.c.b16 %v4715, %v4707
        %v7420 = vpack.c.b16 %v4716, %v4708
        %v7421 = vpack.c.b16 %v4717, %v4709
        %v7422 = vpack.c.b16 %v4718, %v4710
        %v7423 = vpack.c.b16 %v4719, %v4711
        %v7424 = vpack.c.b16 %v4720, %v4712
        %v7425 = vpack.c.b16 %v4729, %v4721
        %v7426 = vpack.c.b16 %v4730, %v4722
        %v7427 = vpack.c.b16 %v4731, %v4723
        %v7428 = vpack.c.b16 %v4732, %v4724
        %v7429 = vpack.c.b16 %v4733, %v4725
        %v7430 = vpack.c.b16 %v4734, %v4726
        %v7431 = vpack.c.b16 %v4735, %v4727
        %v7432 = vpack.c.b16 %v4736, %v4728
        %v7433 = vpack.c.b16 %v4745, %v4737
        %v7434 = vpack.c.b16 %v4746, %v4738
        %v7435 = vpack.c.b16 %v4747, %v4739
        %v7436 = vpack.c.b16 %v4748, %v4740
        %v7437 = vpack.c.b16 %v4749, %v4741
        %v7438 = vpack.c.b16 %v4750, %v4742
        %v7439 = vpack.c.b16 %v4751, %v4743
        %v7440 = vpack.c.b16 %v4752, %v4744
        %v7441 = vpack.c.b16 %v4761, %v4753
        %v7442 = vpack.c.b16 %v4762, %v4754
        %v7443 = vpack.c.b16 %v4763, %v4755
        %v7444 = vpack.c.b16 %v4764, %v4756
        %v7445 = vpack.c.b16 %v4765, %v4757
        %v7446 = vpack.c.b16 %v4766, %v4758
        %v7447 = vpack.c.b16 %v4767, %v4759
        %v7448 = vpack.c.b16 %v4768, %v4760
        %v7449 = vpack.c.b16 %v4777, %v4769
        %v7450 = vpack.c.b16 %v4778, %v4770
        %v7451 = vpack.c.b16 %v4779, %v4771
        %v7452 = vpack.c.b16 %v4780, %v4772
        %v7453 = vpack.c.b16 %v4781, %v4773
        %v7454 = vpack.c.b16 %v4782, %v4774
        %v7455 = vpack.c.b16 %v4783, %v4775
        %v7456 = vpack.c.b16 %v4784, %v4776
        %v7457 = vpack.c.b16 %v4793, %v4785
        %v7458 = vpack.c.b16 %v4794, %v4786
        %v7459 = vpack.c.b16 %v4795, %v4787
        %v7460 = vpack.c.b16 %v4796, %v4788
        %v7461 = vpack.c.b16 %v4797, %v4789
        %v7462 = vpack.c.b16 %v4798, %v4790
        %v7463 = vpack.c.b16 %v4799, %v4791
        %v7464 = vpack.c.b16 %v4800, %v4792
        %v7465 = vpack.c.b16 %v4809, %v4801
        %v7466 = vpack.c.b16 %v4810, %v4802
        %v7467 = vpack.c.b16 %v4811, %v4803
        %v7468 = vpack.c.b16 %v4812, %v4804
        %v7469 = vpack.c.b16 %v4813, %v4805
        %v7470 = vpack.c.b16 %v4814, %v4806
        %v7471 = vpack.c.b16 %v4815, %v4807
        %v7472 = vpack.c.b16 %v4816, %v4808
        %v7473 = vpack.c.b16 %v4825, %v4817
        %v7474 = vpack.c.b16 %v4826, %v4818
        %v7475 = vpack.c.b16 %v4827, %v4819
        %v7476 = vpack.c.b16 %v4828, %v4820
        %v7477 = vpack.c.b16 %v4829, %v4821
        %v7478 = vpack.c.b16 %v4830, %v4822
        %v7479 = vpack.c.b16 %v4831, %v4823
        %v7480 = vpack.c.b16 %v4832, %v4824
        %v7481 = vpack.c.b16 %v4841, %v4833
        %v7482 = vpack.c.b16 %v4842, %v4834
        %v7483 = vpack.c.b16 %v4843, %v4835
        %v7484 = vpack.c.b16 %v4844, %v4836
        %v7485 = vpack.c.b16 %v4845, %v4837
        %v7486 = vpack.c.b16 %v4846, %v4838
        %v7487 = vpack.c.b16 %v4847, %v4839
        %v7488 = vpack.c.b16 %v4848, %v4840
        %v7489 = vpack.c.b16 %v4857, %v4849
        %v7490 = vpack.c.b16 %v4858, %v4850
        %v7491 = vpack.c.b16 %v4859, %v4851
        %v7492 = vpack.c.b16 %v4860, %v4852
        %v7493 = vpack.c.b16 %v4861, %v4853
        %v7494 = vpack.c.b16 %v4862, %v4854
        %v7495 = vpack.c.b16 %v4863, %v4855
        %v7496 = vpack.c.b16 %v4864, %v4856
        %v7497 = vpack.c.b16 %v4873, %v4865
        %v7498 = vpack.c.b16 %v4874, %v4866
        %v7499 = vpack.c.b16 %v4875, %v4867
        %v7500 = vpack.c.b16 %v4876, %v4868
        %v7501 = vpack.c.b16 %v4877, %v4869
        %v7502 = vpack.c.b16 %v4878, %v4870
        %v7503 = vpack.c.b16 %v4879, %v4871
        %v7504 = vpack.c.b16 %v4880, %v4872
        %v7505 = vpack.c.b16 %v4889, %v4881
        %v7506 = vpack.c.b16 %v4890, %v4882
        %v7507 = vpack.c.b16 %v4891, %v4883
        %v7508 = vpack.c.b16 %v4892, %v4884
        %v7509 = vpack.c.b16 %v4893, %v4885
        %v7510 = vpack.c.b16 %v4894, %v4886
        %v7511 = vpack.c.b16 %v4895, %v4887
        %v7512 = vpack.c.b16 %v4896, %v4888
        %v7513 = vpack.c.b16 %v4905, %v4897
        %v7514 = vpack.c.b16 %v4906, %v4898
        %v7515 = vpack.c.b16 %v4907, %v4899
        %v7516 = vpack.c.b16 %v4908, %v4900
        %v7517 = vpack.c.b16 %v4909, %v4901
        %v7518 = vpack.c.b16 %v4910, %v4902
        %v7519 = vpack.c.b16 %v4911, %v4903
        %v7520 = vpack.c.b16 %v4912, %v4904
        %v7521 = vpack.c.b16 %v4921, %v4913
        %v7522 = vpack.c.b16 %v4922, %v4914
        %v7523 = vpack.c.b16 %v4923, %v4915
        %v7524 = vpack.c.b16 %v4924, %v4916
        %v7525 = vpack.c.b16 %v4925, %v4917
        %v7526 = vpack.c.b16 %v4926, %v4918
        %v7527 = vpack.c.b16 %v4927, %v4919
        %v7528 = vpack.c.b16 %v4928, %v4920
        %v7529 = vpack.c.b16 %v4937, %v4929
        %v7530 = vpack.c.b16 %v4938, %v4930
        %v7531 = vpack.c.b16 %v4939, %v4931
        %v7532 = vpack.c.b16 %v4940, %v4932
        %v7533 = vpack.c.b16 %v4941, %v4933
        %v7534 = vpack.c.b16 %v4942, %v4934
        %v7535 = vpack.c.b16 %v4943, %v4935
        %v7536 = vpack.c.b16 %v4944, %v4936
        %v7537 = vpack.c.b16 %v4953, %v4945
        %v7538 = vpack.c.b16 %v4954, %v4946
        %v7539 = vpack.c.b16 %v4955, %v4947
        %v7540 = vpack.c.b16 %v4956, %v4948
        %v7541 = vpack.c.b16 %v4957, %v4949
        %v7542 = vpack.c.b16 %v4958, %v4950
        %v7543 = vpack.c.b16 %v4959, %v4951
        %v7544 = vpack.c.b16 %v4960, %v4952
        %v7545 = vpack.c.b16 %v4969, %v4961
        %v7546 = vpack.c.b16 %v4970, %v4962
        %v7547 = vpack.c.b16 %v4971, %v4963
        %v7548 = vpack.c.b16 %v4972, %v4964
        %v7549 = vpack.c.b16 %v4973, %v4965
        %v7550 = vpack.c.b16 %v4974, %v4966
        %v7551 = vpack.c.b16 %v4975, %v4967
        %v7552 = vpack.c.b16 %v4976, %v4968
        %v7553 = vpack.c.b16 %v4985, %v4977
        %v7554 = vpack.c.b16 %v4986, %v4978
        %v7555 = vpack.c.b16 %v4987, %v4979
        %v7556 = vpack.c.b16 %v4988, %v4980
        %v7557 = vpack.c.b16 %v4989, %v4981
        %v7558 = vpack.c.b16 %v4990, %v4982
        %v7559 = vpack.c.b16 %v4991, %v4983
        %v7560 = vpack.c.b16 %v4992, %v4984
        %v7561 = vpack.c.b16 %v5001, %v4993
        %v7562 = vpack.c.b16 %v5002, %v4994
        %v7563 = vpack.c.b16 %v5003, %v4995
        %v7564 = vpack.c.b16 %v5004, %v4996
        %v7565 = vpack.c.b16 %v5005, %v4997
        %v7566 = vpack.c.b16 %v5006, %v4998
        %v7567 = vpack.c.b16 %v5007, %v4999
        %v7568 = vpack.c.b16 %v5008, %v5000
        %v7569 = vpack.c.b16 %v5017, %v5009
        %v7570 = vpack.c.b16 %v5018, %v5010
        %v7571 = vpack.c.b16 %v5019, %v5011
        %v7572 = vpack.c.b16 %v5020, %v5012
        %v7573 = vpack.c.b16 %v5021, %v5013
        %v7574 = vpack.c.b16 %v5022, %v5014
        %v7575 = vpack.c.b16 %v5023, %v5015
        %v7576 = vpack.c.b16 %v5024, %v5016
        %v7577 = vpack.c.b16 %v5033, %v5025
        %v7578 = vpack.c.b16 %v5034, %v5026
        %v7579 = vpack.c.b16 %v5035, %v5027
        %v7580 = vpack.c.b16 %v5036, %v5028
        %v7581 = vpack.c.b16 %v5037, %v5029
        %v7582 = vpack.c.b16 %v5038, %v5030
        %v7583 = vpack.c.b16 %v5039, %v5031
        %v7584 = vpack.c.b16 %v5040, %v5032
        %v7585 = vpack.c.b16 %v5049, %v5041
        %v7586 = vpack.c.b16 %v5050, %v5042
        %v7587 = vpack.c.b16 %v5051, %v5043
        %v7588 = vpack.c.b16 %v5052, %v5044
        %v7589 = vpack.c.b16 %v5053, %v5045
        %v7590 = vpack.c.b16 %v5054, %v5046
        %v7591 = vpack.c.b16 %v5055, %v5047
        %v7592 = vpack.c.b16 %v5056, %v5048
        %v7593 = vpack.c.b16 %v5065, %v5057
        %v7594 = vpack.c.b16 %v5066, %v5058
        %v7595 = vpack.c.b16 %v5067, %v5059
        %v7596 = vpack.c.b16 %v5068, %v5060
        %v7597 = vpack.c.b16 %v5069, %v5061
        %v7598 = vpack.c.b16 %v5070, %v5062
        %v7599 = vpack.c.b16 %v5071, %v5063
        %v7600 = vpack.c.b16 %v5072, %v5064
        %v7601 = vpack.c.b16 %v5081, %v5073
        %v7602 = vpack.c.b16 %v5082, %v5074
        %v7603 = vpack.c.b16 %v5083, %v5075
        %v7604 = vpack.c.b16 %v5084, %v5076
        %v7605 = vpack.c.b16 %v5085, %v5077
        %v7606 = vpack.c.b16 %v5086, %v5078
        %v7607 = vpack.c.b16 %v5087, %v5079
        %v7608 = vpack.c.b16 %v5088, %v5080
        %v7609 = vpack.c.b16 %v5097, %v5089
        %v7610 = vpack.c.b16 %v5098, %v5090
        %v7611 = vpack.c.b16 %v5099, %v5091
        %v7612 = vpack.c.b16 %v5100, %v5092
        %v7613 = vpack.c.b16 %v5101, %v5093
        %v7614 = vpack.c.b16 %v5102, %v5094
        %v7615 = vpack.c.b16 %v5103, %v5095
        %v7616 = vpack.c.b16 %v5104, %v5096
        %v7617 = vpack.c.b16 %v5113, %v5105
        %v7618 = vpack.c.b16 %v5114, %v5106
        %v7619 = vpack.c.b16 %v5115, %v5107
        %v7620 = vpack.c.b16 %v5116, %v5108
        %v7621 = vpack.c.b16 %v5117, %v5109
        %v7622 = vpack.c.b16 %v5118, %v5110
        %v7623 = vpack.c.b16 %v5119, %v5111
        %v7624 = vpack.c.b16 %v5120, %v5112
        %v7625 = vpack.c.b16 %v5129, %v5121
        %v7626 = vpack.c.b16 %v5130, %v5122
        %v7627 = vpack.c.b16 %v5131, %v5123
        %v7628 = vpack.c.b16 %v5132, %v5124
        %v7629 = vpack.c.b16 %v5133, %v5125
        %v7630 = vpack.c.b16 %v5134, %v5126
        %v7631 = vpack.c.b16 %v5135, %v5127
        %v7632 = vpack.c.b16 %v5136, %v5128
        %v7633 = vpack.c.b16 %v5145, %v5137
        %v7634 = vpack.c.b16 %v5146, %v5138
        %v7635 = vpack.c.b16 %v5147, %v5139
        %v7636 = vpack.c.b16 %v5148, %v5140
        %v7637 = vpack.c.b16 %v5149, %v5141
        %v7638 = vpack.c.b16 %v5150, %v5142
        %v7639 = vpack.c.b16 %v5151, %v5143
        %v7640 = vpack.c.b16 %v5152, %v5144
        %v7641 = vpack.c.b16 %v5161, %v5153
        %v7642 = vpack.c.b16 %v5162, %v5154
        %v7643 = vpack.c.b16 %v5163, %v5155
        %v7644 = vpack.c.b16 %v5164, %v5156
        %v7645 = vpack.c.b16 %v5165, %v5157
        %v7646 = vpack.c.b16 %v5166, %v5158
        %v7647 = vpack.c.b16 %v5167, %v5159
        %v7648 = vpack.c.b16 %v5168, %v5160
        %v7649 = vpack.c.b16 %v5177, %v5169
        %v7650 = vpack.c.b16 %v5178, %v5170
        %v7651 = vpack.c.b16 %v5179, %v5171
        %v7652 = vpack.c.b16 %v5180, %v5172
        %v7653 = vpack.c.b16 %v5181, %v5173
        %v7654 = vpack.c.b16 %v5182, %v5174
        %v7655 = vpack.c.b16 %v5183, %v5175
        %v7656 = vpack.c.b16 %v5184, %v5176
        %v7657 = vpack.c.b16 %v5193, %v5185
        %v7658 = vpack.c.b16 %v5194, %v5186
        %v7659 = vpack.c.b16 %v5195, %v5187
        %v7660 = vpack.c.b16 %v5196, %v5188
        %v7661 = vpack.c.b16 %v5197, %v5189
        %v7662 = vpack.c.b16 %v5198, %v5190
        %v7663 = vpack.c.b16 %v5199, %v5191
        %v7664 = vpack.c.b16 %v5200, %v5192
        %v7665 = vpack.c.b16 %v5209, %v5201
        %v7666 = vpack.c.b16 %v5210, %v5202
        %v7667 = vpack.c.b16 %v5211, %v5203
        %v7668 = vpack.c.b16 %v5212, %v5204
        %v7669 = vpack.c.b16 %v5213, %v5205
        %v7670 = vpack.c.b16 %v5214, %v5206
        %v7671 = vpack.c.b16 %v5215, %v5207
        %v7672 = vpack.c.b16 %v5216, %v5208
        %v7673 = vpack.c.b16 %v5225, %v5217
        %v7674 = vpack.c.b16 %v5226, %v5218
        %v7675 = vpack.c.b16 %v5227, %v5219
        %v7676 = vpack.c.b16 %v5228, %v5220
        %v7677 = vpack.c.b16 %v5229, %v5221
        %v7678 = vpack.c.b16 %v5230, %v5222
        %v7679 = vpack.c.b16 %v5231, %v5223
        %v7680 = vpack.c.b16 %v5232, %v5224
        %v7681 = vpack.c.b16 %v5241, %v5233
        %v7682 = vpack.c.b16 %v5242, %v5234
        %v7683 = vpack.c.b16 %v5243, %v5235
        %v7684 = vpack.c.b16 %v5244, %v5236
        %v7685 = vpack.c.b16 %v5245, %v5237
        %v7686 = vpack.c.b16 %v5246, %v5238
        %v7687 = vpack.c.b16 %v5247, %v5239
        %v7688 = vpack.c.b16 %v5248, %v5240
        %v7689 = vpack.c.b16 %v5257, %v5249
        %v7690 = vpack.c.b16 %v5258, %v5250
        %v7691 = vpack.c.b16 %v5259, %v5251
        %v7692 = vpack.c.b16 %v5260, %v5252
        %v7693 = vpack.c.b16 %v5261, %v5253
        %v7694 = vpack.c.b16 %v5262, %v5254
        %v7695 = vpack.c.b16 %v5263, %v5255
        %v7696 = vpack.c.b16 %v5264, %v5256
        %v7697 = vpack.c.b16 %v5273, %v5265
        %v7698 = vpack.c.b16 %v5274, %v5266
        %v7699 = vpack.c.b16 %v5275, %v5267
        %v7700 = vpack.c.b16 %v5276, %v5268
        %v7701 = vpack.c.b16 %v5277, %v5269
        %v7702 = vpack.c.b16 %v5278, %v5270
        %v7703 = vpack.c.b16 %v5279, %v5271
        %v7704 = vpack.c.b16 %v5280, %v5272
        %v7705 = vpack.c.b16 %v5289, %v5281
        %v7706 = vpack.c.b16 %v5290, %v5282
        %v7707 = vpack.c.b16 %v5291, %v5283
        %v7708 = vpack.c.b16 %v5292, %v5284
        %v7709 = vpack.c.b16 %v5293, %v5285
        %v7710 = vpack.c.b16 %v5294, %v5286
        %v7711 = vpack.c.b16 %v5295, %v5287
        %v7712 = vpack.c.b16 %v5296, %v5288
        %v7713 = vpack.c.b16 %v5305, %v5297
        %v7714 = vpack.c.b16 %v5306, %v5298
        %v7715 = vpack.c.b16 %v5307, %v5299
        %v7716 = vpack.c.b16 %v5308, %v5300
        %v7717 = vpack.c.b16 %v5309, %v5301
        %v7718 = vpack.c.b16 %v5310, %v5302
        %v7719 = vpack.c.b16 %v5311, %v5303
        %v7720 = vpack.c.b16 %v5312, %v5304
        %v7721 = vpack.c.b16 %v5321, %v5313
        %v7722 = vpack.c.b16 %v5322, %v5314
        %v7723 = vpack.c.b16 %v5323, %v5315
        %v7724 = vpack.c.b16 %v5324, %v5316
        %v7725 = vpack.c.b16 %v5325, %v5317
        %v7726 = vpack.c.b16 %v5326, %v5318
        %v7727 = vpack.c.b16 %v5327, %v5319
        %v7728 = vpack.c.b16 %v5328, %v5320
        %v7729 = vpack.c.b16 %v5337, %v5329
        %v7730 = vpack.c.b16 %v5338, %v5330
        %v7731 = vpack.c.b16 %v5339, %v5331
        %v7732 = vpack.c.b16 %v5340, %v5332
        %v7733 = vpack.c.b16 %v5341, %v5333
        %v7734 = vpack.c.b16 %v5342, %v5334
        %v7735 = vpack.c.b16 %v5343, %v5335
        %v7736 = vpack.c.b16 %v5344, %v5336
        %v7737 = vpack.c.b16 %v5353, %v5345
        %v7738 = vpack.c.b16 %v5354, %v5346
        %v7739 = vpack.c.b16 %v5355, %v5347
        %v7740 = vpack.c.b16 %v5356, %v5348
        %v7741 = vpack.c.b16 %v5357, %v5349
        %v7742 = vpack.c.b16 %v5358, %v5350
        %v7743 = vpack.c.b16 %v5359, %v5351
        %v7744 = vpack.c.b16 %v5360, %v5352
        %v7745 = vpack.c.b16 %v5369, %v5361
        %v7746 = vpack.c.b16 %v5370, %v5362
        %v7747 = vpack.c.b16 %v5371, %v5363
        %v7748 = vpack.c.b16 %v5372, %v5364
        %v7749 = vpack.c.b16 %v5373, %v5365
        %v7750 = vpack.c.b16 %v5374, %v5366
        %v7751 = vpack.c.b16 %v5375, %v5367
        %v7752 = vpack.c.b16 %v5376, %v5368
        %v7753 = vpack.c.b16 %v5385, %v5377
        %v7754 = vpack.c.b16 %v5386, %v5378
        %v7755 = vpack.c.b16 %v5387, %v5379
        %v7756 = vpack.c.b16 %v5388, %v5380
        %v7757 = vpack.c.b16 %v5389, %v5381
        %v7758 = vpack.c.b16 %v5390, %v5382
        %v7759 = vpack.c.b16 %v5391, %v5383
        %v7760 = vpack.c.b16 %v5392, %v5384
        %v7761 = vpack.c.b16 %v5401, %v5393
        %v7762 = vpack.c.b16 %v5402, %v5394
        %v7763 = vpack.c.b16 %v5403, %v5395
        %v7764 = vpack.c.b16 %v5404, %v5396
        %v7765 = vpack.c.b16 %v5405, %v5397
        %v7766 = vpack.c.b16 %v5406, %v5398
        %v7767 = vpack.c.b16 %v5407, %v5399
        %v7768 = vpack.c.b16 %v5408, %v5400
        %v7769 = vpack.c.b16 %v5417, %v5409
        %v7770 = vpack.c.b16 %v5418, %v5410
        %v7771 = vpack.c.b16 %v5419, %v5411
        %v7772 = vpack.c.b16 %v5420, %v5412
        %v7773 = vpack.c.b16 %v5421, %v5413
        %v7774 = vpack.c.b16 %v5422, %v5414
        %v7775 = vpack.c.b16 %v5423, %v5415
        %v7776 = vpack.c.b16 %v5424, %v5416
        %v7777 = vpack.c.b16 %v5433, %v5425
        %v7778 = vpack.c.b16 %v5434, %v5426
        %v7779 = vpack.c.b16 %v5435, %v5427
        %v7780 = vpack.c.b16 %v5436, %v5428
        %v7781 = vpack.c.b16 %v5437, %v5429
        %v7782 = vpack.c.b16 %v5438, %v5430
        %v7783 = vpack.c.b16 %v5439, %v5431
        %v7784 = vpack.c.b16 %v5440, %v5432
        %v7785 = vpack.c.b16 %v5449, %v5441
        %v7786 = vpack.c.b16 %v5450, %v5442
        %v7787 = vpack.c.b16 %v5451, %v5443
        %v7788 = vpack.c.b16 %v5452, %v5444
        %v7789 = vpack.c.b16 %v5453, %v5445
        %v7790 = vpack.c.b16 %v5454, %v5446
        %v7791 = vpack.c.b16 %v5455, %v5447
        %v7792 = vpack.c.b16 %v5456, %v5448
        %v7793 = vpack.c.b16 %v5465, %v5457
        %v7794 = vpack.c.b16 %v5466, %v5458
        %v7795 = vpack.c.b16 %v5467, %v5459
        %v7796 = vpack.c.b16 %v5468, %v5460
        %v7797 = vpack.c.b16 %v5469, %v5461
        %v7798 = vpack.c.b16 %v5470, %v5462
        %v7799 = vpack.c.b16 %v5471, %v5463
        %v7800 = vpack.c.b16 %v5472, %v5464
        %v7801 = vpack.c.b16 %v5481, %v5473
        %v7802 = vpack.c.b16 %v5482, %v5474
        %v7803 = vpack.c.b16 %v5483, %v5475
        %v7804 = vpack.c.b16 %v5484, %v5476
        %v7805 = vpack.c.b16 %v5485, %v5477
        %v7806 = vpack.c.b16 %v5486, %v5478
        %v7807 = vpack.c.b16 %v5487, %v5479
        %v7808 = vpack.c.b16 %v5488, %v5480
        %v7809 = vpack.c.b16 %v5497, %v5489
        %v7810 = vpack.c.b16 %v5498, %v5490
        %v7811 = vpack.c.b16 %v5499, %v5491
        %v7812 = vpack.c.b16 %v5500, %v5492
        %v7813 = vpack.c.b16 %v5501, %v5493
        %v7814 = vpack.c.b16 %v5502, %v5494
        %v7815 = vpack.c.b16 %v5503, %v5495
        %v7816 = vpack.c.b16 %v5504, %v5496
        %v7817 = vpack.c.b16 %v5513, %v5505
        %v7818 = vpack.c.b16 %v5514, %v5506
        %v7819 = vpack.c.b16 %v5515, %v5507
        %v7820 = vpack.c.b16 %v5516, %v5508
        %v7821 = vpack.c.b16 %v5517, %v5509
        %v7822 = vpack.c.b16 %v5518, %v5510
        %v7823 = vpack.c.b16 %v5519, %v5511
        %v7824 = vpack.c.b16 %v5520, %v5512
        %v7825 = vpack.c.b16 %v5529, %v5521
        %v7826 = vpack.c.b16 %v5530, %v5522
        %v7827 = vpack.c.b16 %v5531, %v5523
        %v7828 = vpack.c.b16 %v5532, %v5524
        %v7829 = vpack.c.b16 %v5533, %v5525
        %v7830 = vpack.c.b16 %v5534, %v5526
        %v7831 = vpack.c.b16 %v5535, %v5527
        %v7832 = vpack.c.b16 %v5536, %v5528
        %v7833 = vpack.c.b16 %v5545, %v5537
        %v7834 = vpack.c.b16 %v5546, %v5538
        %v7835 = vpack.c.b16 %v5547, %v5539
        %v7836 = vpack.c.b16 %v5548, %v5540
        %v7837 = vpack.c.b16 %v5549, %v5541
        %v7838 = vpack.c.b16 %v5550, %v5542
        %v7839 = vpack.c.b16 %v5551, %v5543
        %v7840 = vpack.c.b16 %v5552, %v5544
        %v7841 = vpack.c.b16 %v5561, %v5553
        %v7842 = vpack.c.b16 %v5562, %v5554
        %v7843 = vpack.c.b16 %v5563, %v5555
        %v7844 = vpack.c.b16 %v5564, %v5556
        %v7845 = vpack.c.b16 %v5565, %v5557
        %v7846 = vpack.c.b16 %v5566, %v5558
        %v7847 = vpack.c.b16 %v5567, %v5559
        %v7848 = vpack.c.b16 %v5568, %v5560
        %v7849 = vpack.c.b16 %v5577, %v5569
        %v7850 = vpack.c.b16 %v5578, %v5570
        %v7851 = vpack.c.b16 %v5579, %v5571
        %v7852 = vpack.c.b16 %v5580, %v5572
        %v7853 = vpack.c.b16 %v5581, %v5573
        %v7854 = vpack.c.b16 %v5582, %v5574
        %v7855 = vpack.c.b16 %v5583, %v5575
        %v7856 = vpack.c.b16 %v5584, %v5576
        %v7857 = vpack.c.b16 %v5593, %v5585
        %v7858 = vpack.c.b16 %v5594, %v5586
        %v7859 = vpack.c.b16 %v5595, %v5587
        %v7860 = vpack.c.b16 %v5596, %v5588
        %v7861 = vpack.c.b16 %v5597, %v5589
        %v7862 = vpack.c.b16 %v5598, %v5590
        %v7863 = vpack.c.b16 %v5599, %v5591
        %v7864 = vpack.c.b16 %v5600, %v5592
        %v7865 = vpack.c.b16 %v5609, %v5601
        %v7866 = vpack.c.b16 %v5610, %v5602
        %v7867 = vpack.c.b16 %v5611, %v5603
        %v7868 = vpack.c.b16 %v5612, %v5604
        %v7869 = vpack.c.b16 %v5613, %v5605
        %v7870 = vpack.c.b16 %v5614, %v5606
        %v7871 = vpack.c.b16 %v5615, %v5607
        %v7872 = vpack.c.b16 %v5616, %v5608
        %v7873 = vpack.c.b16 %v5625, %v5617
        %v7874 = vpack.c.b16 %v5626, %v5618
        %v7875 = vpack.c.b16 %v5627, %v5619
        %v7876 = vpack.c.b16 %v5628, %v5620
        %v7877 = vpack.c.b16 %v5629, %v5621
        %v7878 = vpack.c.b16 %v5630, %v5622
        %v7879 = vpack.c.b16 %v5631, %v5623
        %v7880 = vpack.c.b16 %v5632, %v5624
        %v7881 = vpack.c.b16 %v5641, %v5633
        %v7882 = vpack.c.b16 %v5642, %v5634
        %v7883 = vpack.c.b16 %v5643, %v5635
        %v7884 = vpack.c.b16 %v5644, %v5636
        %v7885 = vpack.c.b16 %v5645, %v5637
        %v7886 = vpack.c.b16 %v5646, %v5638
        %v7887 = vpack.c.b16 %v5647, %v5639
        %v7888 = vpack.c.b16 %v5648, %v5640
        %v7889 = vpack.c.b16 %v5657, %v5649
        %v7890 = vpack.c.b16 %v5658, %v5650
        %v7891 = vpack.c.b16 %v5659, %v5651
        %v7892 = vpack.c.b16 %v5660, %v5652
        %v7893 = vpack.c.b16 %v5661, %v5653
        %v7894 = vpack.c.b16 %v5662, %v5654
        %v7895 = vpack.c.b16 %v5663, %v5655
        %v7896 = vpack.c.b16 %v5664, %v5656
        %v7897 = vpack.c.b16 %v5673, %v5665
        %v7898 = vpack.c.b16 %v5674, %v5666
        %v7899 = vpack.c.b16 %v5675, %v5667
        %v7900 = vpack.c.b16 %v5676, %v5668
        %v7901 = vpack.c.b16 %v5677, %v5669
        %v7902 = vpack.c.b16 %v5678, %v5670
        %v7903 = vpack.c.b16 %v5679, %v5671
        %v7904 = vpack.c.b16 %v5680, %v5672
        %v7905 = vpack.c.b16 %v5689, %v5681
        %v7906 = vpack.c.b16 %v5690, %v5682
        %v7907 = vpack.c.b16 %v5691, %v5683
        %v7908 = vpack.c.b16 %v5692, %v5684
        %v7909 = vpack.c.b16 %v5693, %v5685
        %v7910 = vpack.c.b16 %v5694, %v5686
        %v7911 = vpack.c.b16 %v5695, %v5687
        %v7912 = vpack.c.b16 %v5696, %v5688
        %v7913 = vpack.c.b16 %v5705, %v5697
        %v7914 = vpack.c.b16 %v5706, %v5698
        %v7915 = vpack.c.b16 %v5707, %v5699
        %v7916 = vpack.c.b16 %v5708, %v5700
        %v7917 = vpack.c.b16 %v5709, %v5701
        %v7918 = vpack.c.b16 %v5710, %v5702
        %v7919 = vpack.c.b16 %v5711, %v5703
        %v7920 = vpack.c.b16 %v5712, %v5704
        %v7921 = vpack.c.b16 %v5721, %v5713
        %v7922 = vpack.c.b16 %v5722, %v5714
        %v7923 = vpack.c.b16 %v5723, %v5715
        %v7924 = vpack.c.b16 %v5724, %v5716
        %v7925 = vpack.c.b16 %v5725, %v5717
        %v7926 = vpack.c.b16 %v5726, %v5718
        %v7927 = vpack.c.b16 %v5727, %v5719
        %v7928 = vpack.c.b16 %v5728, %v5720
        %v7929 = vpack.c.b16 %v5737, %v5729
        %v7930 = vpack.c.b16 %v5738, %v5730
        %v7931 = vpack.c.b16 %v5739, %v5731
        %v7932 = vpack.c.b16 %v5740, %v5732
        %v7933 = vpack.c.b16 %v5741, %v5733
        %v7934 = vpack.c.b16 %v5742, %v5734
        %v7935 = vpack.c.b16 %v5743, %v5735
        %v7936 = vpack.c.b16 %v5744, %v5736
        %v7937 = vpack.c.b16 %v5753, %v5745
        %v7938 = vpack.c.b16 %v5754, %v5746
        %v7939 = vpack.c.b16 %v5755, %v5747
        %v7940 = vpack.c.b16 %v5756, %v5748
        %v7941 = vpack.c.b16 %v5757, %v5749
        %v7942 = vpack.c.b16 %v5758, %v5750
        %v7943 = vpack.c.b16 %v5759, %v5751
        %v7944 = vpack.c.b16 %v5760, %v5752
        %v7945 = vpack.c.b16 %v5769, %v5761
        %v7946 = vpack.c.b16 %v5770, %v5762
        %v7947 = vpack.c.b16 %v5771, %v5763
        %v7948 = vpack.c.b16 %v5772, %v5764
        %v7949 = vpack.c.b16 %v5773, %v5765
        %v7950 = vpack.c.b16 %v5774, %v5766
        %v7951 = vpack.c.b16 %v5775, %v5767
        %v7952 = vpack.c.b16 %v5776, %v5768
        %v7953 = vpack.c.b16 %v5785, %v5777
        %v7954 = vpack.c.b16 %v5786, %v5778
        %v7955 = vpack.c.b16 %v5787, %v5779
        %v7956 = vpack.c.b16 %v5788, %v5780
        %v7957 = vpack.c.b16 %v5789, %v5781
        %v7958 = vpack.c.b16 %v5790, %v5782
        %v7959 = vpack.c.b16 %v5791, %v5783
        %v7960 = vpack.c.b16 %v5792, %v5784
        %v7961 = vpack.c.b16 %v5801, %v5793
        %v7962 = vpack.c.b16 %v5802, %v5794
        %v7963 = vpack.c.b16 %v5803, %v5795
        %v7964 = vpack.c.b16 %v5804, %v5796
        %v7965 = vpack.c.b16 %v5805, %v5797
        %v7966 = vpack.c.b16 %v5806, %v5798
        %v7967 = vpack.c.b16 %v5807, %v5799
        %v7968 = vpack.c.b16 %v5808, %v5800
        %v7969 = vpack.c.b16 %v5817, %v5809
        %v7970 = vpack.c.b16 %v5818, %v5810
        %v7971 = vpack.c.b16 %v5819, %v5811
        %v7972 = vpack.c.b16 %v5820, %v5812
        %v7973 = vpack.c.b16 %v5821, %v5813
        %v7974 = vpack.c.b16 %v5822, %v5814
        %v7975 = vpack.c.b16 %v5823, %v5815
        %v7976 = vpack.c.b16 %v5824, %v5816
        %v7977 = vpack.c.b16 %v5833, %v5825
        %v7978 = vpack.c.b16 %v5834, %v5826
        %v7979 = vpack.c.b16 %v5835, %v5827
        %v7980 = vpack.c.b16 %v5836, %v5828
        %v7981 = vpack.c.b16 %v5837, %v5829
        %v7982 = vpack.c.b16 %v5838, %v5830
        %v7983 = vpack.c.b16 %v5839, %v5831
        %v7984 = vpack.c.b16 %v5840, %v5832
        %v7985 = vpack.c.b16 %v5849, %v5841
        %v7986 = vpack.c.b16 %v5850, %v5842
        %v7987 = vpack.c.b16 %v5851, %v5843
        %v7988 = vpack.c.b16 %v5852, %v5844
        %v7989 = vpack.c.b16 %v5853, %v5845
        %v7990 = vpack.c.b16 %v5854, %v5846
        %v7991 = vpack.c.b16 %v5855, %v5847
        %v7992 = vpack.c.b16 %v5856, %v5848
        %v7993 = vpack.c.b16 %v5865, %v5857
        %v7994 = vpack.c.b16 %v5866, %v5858
        %v7995 = vpack.c.b16 %v5867, %v5859
        %v7996 = vpack.c.b16 %v5868, %v5860
        %v7997 = vpack.c.b16 %v5869, %v5861
        %v7998 = vpack.c.b16 %v5870, %v5862
        %v7999 = vpack.c.b16 %v5871, %v5863
        %v8000 = vpack.c.b16 %v5872, %v5864
        %v8001 = vpack.c.b16 %v5881, %v5873
        %v8002 = vpack.c.b16 %v5882, %v5874
        %v8003 = vpack.c.b16 %v5883, %v5875
        %v8004 = vpack.c.b16 %v5884, %v5876
        %v8005 = vpack.c.b16 %v5885, %v5877
        %v8006 = vpack.c.b16 %v5886, %v5878
        %v8007 = vpack.c.b16 %v5887, %v5879
        %v8008 = vpack.c.b16 %v5888, %v5880
        %v8009 = vpack.c.b16 %v5897, %v5889
        %v8010 = vpack.c.b16 %v5898, %v5890
        %v8011 = vpack.c.b16 %v5899, %v5891
        %v8012 = vpack.c.b16 %v5900, %v5892
        %v8013 = vpack.c.b16 %v5901, %v5893
        %v8014 = vpack.c.b16 %v5902, %v5894
        %v8015 = vpack.c.b16 %v5903, %v5895
        %v8016 = vpack.c.b16 %v5904, %v5896
        %v8017 = vpack.c.b16 %v5913, %v5905
        %v8018 = vpack.c.b16 %v5914, %v5906
        %v8019 = vpack.c.b16 %v5915, %v5907
        %v8020 = vpack.c.b16 %v5916, %v5908
        %v8021 = vpack.c.b16 %v5917, %v5909
        %v8022 = vpack.c.b16 %v5918, %v5910
        %v8023 = vpack.c.b16 %v5919, %v5911
        %v8024 = vpack.c.b16 %v5920, %v5912
        %v8025 = vpack.c.b16 %v5929, %v5921
        %v8026 = vpack.c.b16 %v5930, %v5922
        %v8027 = vpack.c.b16 %v5931, %v5923
        %v8028 = vpack.c.b16 %v5932, %v5924
        %v8029 = vpack.c.b16 %v5933, %v5925
        %v8030 = vpack.c.b16 %v5934, %v5926
        %v8031 = vpack.c.b16 %v5935, %v5927
        %v8032 = vpack.c.b16 %v5936, %v5928
        %v8033 = vpack.c.b16 %v5945, %v5937
        %v8034 = vpack.c.b16 %v5946, %v5938
        %v8035 = vpack.c.b16 %v5947, %v5939
        %v8036 = vpack.c.b16 %v5948, %v5940
        %v8037 = vpack.c.b16 %v5949, %v5941
        %v8038 = vpack.c.b16 %v5950, %v5942
        %v8039 = vpack.c.b16 %v5951, %v5943
        %v8040 = vpack.c.b16 %v5952, %v5944
        %v8041 = vpack.c.b16 %v5961, %v5953
        %v8042 = vpack.c.b16 %v5962, %v5954
        %v8043 = vpack.c.b16 %v5963, %v5955
        %v8044 = vpack.c.b16 %v5964, %v5956
        %v8045 = vpack.c.b16 %v5965, %v5957
        %v8046 = vpack.c.b16 %v5966, %v5958
        %v8047 = vpack.c.b16 %v5967, %v5959
        %v8048 = vpack.c.b16 %v5968, %v5960
        %v8049 = vpack.c.b16 %v5977, %v5969
        %v8050 = vpack.c.b16 %v5978, %v5970
        %v8051 = vpack.c.b16 %v5979, %v5971
        %v8052 = vpack.c.b16 %v5980, %v5972
        %v8053 = vpack.c.b16 %v5981, %v5973
        %v8054 = vpack.c.b16 %v5982, %v5974
        %v8055 = vpack.c.b16 %v5983, %v5975
        %v8056 = vpack.c.b16 %v5984, %v5976
        %v8057 = vpack.c.b16 %v5993, %v5985
        %v8058 = vpack.c.b16 %v5994, %v5986
        %v8059 = vpack.c.b16 %v5995, %v5987
        %v8060 = vpack.c.b16 %v5996, %v5988
        %v8061 = vpack.c.b16 %v5997, %v5989
        %v8062 = vpack.c.b16 %v5998, %v5990
        %v8063 = vpack.c.b16 %v5999, %v5991
        %v8064 = vpack.c.b16 %v6000, %v5992
        %v8065 = vpack.c.b16 %v6009, %v6001
        %v8066 = vpack.c.b16 %v6010, %v6002
        %v8067 = vpack.c.b16 %v6011, %v6003
        %v8068 = vpack.c.b16 %v6012, %v6004
        %v8069 = vpack.c.b16 %v6013, %v6005
        %v8070 = vpack.c.b16 %v6014, %v6006
        %v8071 = vpack.c.b16 %v6015, %v6007
        %v8072 = vpack.c.b16 %v6016, %v6008
        %v8073 = vpack.c.b16 %v6025, %v6017
        %v8074 = vpack.c.b16 %v6026, %v6018
        %v8075 = vpack.c.b16 %v6027, %v6019
        %v8076 = vpack.c.b16 %v6028, %v6020
        %v8077 = vpack.c.b16 %v6029, %v6021
        %v8078 = vpack.c.b16 %v6030, %v6022
        %v8079 = vpack.c.b16 %v6031, %v6023
        %v8080 = vpack.c.b16 %v6032, %v6024
        %v8081 = vpack.c.b16 %v6041, %v6033
        %v8082 = vpack.c.b16 %v6042, %v6034
        %v8083 = vpack.c.b16 %v6043, %v6035
        %v8084 = vpack.c.b16 %v6044, %v6036
        %v8085 = vpack.c.b16 %v6045, %v6037
        %v8086 = vpack.c.b16 %v6046, %v6038
        %v8087 = vpack.c.b16 %v6047, %v6039
        %v8088 = vpack.c.b16 %v6048, %v6040
        %v8089 = vpack.c.b16 %v6057, %v6049
        %v8090 = vpack.c.b16 %v6058, %v6050
        %v8091 = vpack.c.b16 %v6059, %v6051
        %v8092 = vpack.c.b16 %v6060, %v6052
        %v8093 = vpack.c.b16 %v6061, %v6053
        %v8094 = vpack.c.b16 %v6062, %v6054
        %v8095 = vpack.c.b16 %v6063, %v6055
        %v8096 = vpack.c.b16 %v6064, %v6056
        %v8097 = vpack.c.b16 %v6073, %v6065
        %v8098 = vpack.c.b16 %v6074, %v6066
        %v8099 = vpack.c.b16 %v6075, %v6067
        %v8100 = vpack.c.b16 %v6076, %v6068
        %v8101 = vpack.c.b16 %v6077, %v6069
        %v8102 = vpack.c.b16 %v6078, %v6070
        %v8103 = vpack.c.b16 %v6079, %v6071
        %v8104 = vpack.c.b16 %v6080, %v6072
        %v8105 = vpack.c.b16 %v6089, %v6081
        %v8106 = vpack.c.b16 %v6090, %v6082
        %v8107 = vpack.c.b16 %v6091, %v6083
        %v8108 = vpack.c.b16 %v6092, %v6084
        %v8109 = vpack.c.b16 %v6093, %v6085
        %v8110 = vpack.c.b16 %v6094, %v6086
        %v8111 = vpack.c.b16 %v6095, %v6087
        %v8112 = vpack.c.b16 %v6096, %v6088
        %v8113 = vpack.c.b16 %v6105, %v6097
        %v8114 = vpack.c.b16 %v6106, %v6098
        %v8115 = vpack.c.b16 %v6107, %v6099
        %v8116 = vpack.c.b16 %v6108, %v6100
        %v8117 = vpack.c.b16 %v6109, %v6101
        %v8118 = vpack.c.b16 %v6110, %v6102
        %v8119 = vpack.c.b16 %v6111, %v6103
        %v8120 = vpack.c.b16 %v6112, %v6104
        %v8121 = vpack.c.b16 %v6121, %v6113
        %v8122 = vpack.c.b16 %v6122, %v6114
        %v8123 = vpack.c.b16 %v6123, %v6115
        %v8124 = vpack.c.b16 %v6124, %v6116
        %v8125 = vpack.c.b16 %v6125, %v6117
        %v8126 = vpack.c.b16 %v6126, %v6118
        %v8127 = vpack.c.b16 %v6127, %v6119
        %v8128 = vpack.c.b16 %v6128, %v6120
        %v8129 = vpack.c.b16 %v6137, %v6129
        %v8130 = vpack.c.b16 %v6138, %v6130
        %v8131 = vpack.c.b16 %v6139, %v6131
        %v8132 = vpack.c.b16 %v6140, %v6132
        %v8133 = vpack.c.b16 %v6141, %v6133
        %v8134 = vpack.c.b16 %v6142, %v6134
        %v8135 = vpack.c.b16 %v6143, %v6135
        %v8136 = vpack.c.b16 %v6144, %v6136
        %v8137 = vpack.c.b16 %v6153, %v6145
        %v8138 = vpack.c.b16 %v6154, %v6146
        %v8139 = vpack.c.b16 %v6155, %v6147
        %v8140 = vpack.c.b16 %v6156, %v6148
        %v8141 = vpack.c.b16 %v6157, %v6149
        %v8142 = vpack.c.b16 %v6158, %v6150
        %v8143 = vpack.c.b16 %v6159, %v6151
        %v8144 = vpack.c.b16 %v6160, %v6152
        %v8145 = vpack.c.b16 %v6169, %v6161
        %v8146 = vpack.c.b16 %v6170, %v6162
        %v8147 = vpack.c.b16 %v6171, %v6163
        %v8148 = vpack.c.b16 %v6172, %v6164
        %v8149 = vpack.c.b16 %v6173, %v6165
        %v8150 = vpack.c.b16 %v6174, %v6166
        %v8151 = vpack.c.b16 %v6175, %v6167
        %v8152 = vpack.c.b16 %v6176, %v6168
        %v8153 = vpack.c.b16 %v6185, %v6177
        %v8154 = vpack.c.b16 %v6186, %v6178
        %v8155 = vpack.c.b16 %v6187, %v6179
        %v8156 = vpack.c.b16 %v6188, %v6180
        %v8157 = vpack.c.b16 %v6189, %v6181
        %v8158 = vpack.c.b16 %v6190, %v6182
        %v8159 = vpack.c.b16 %v6191, %v6183
        %v8160 = vpack.c.b16 %v6192, %v6184
        %v8161 = vpack.c.b16 %v6201, %v6193
        %v8162 = vpack.c.b16 %v6202, %v6194
        %v8163 = vpack.c.b16 %v6203, %v6195
        %v8164 = vpack.c.b16 %v6204, %v6196
        %v8165 = vpack.c.b16 %v6205, %v6197
        %v8166 = vpack.c.b16 %v6206, %v6198
        %v8167 = vpack.c.b16 %v6207, %v6199
        %v8168 = vpack.c.b16 %v6208, %v6200
        %v8169 = vpack.c.b16 %v6217, %v6209
        %v8170 = vpack.c.b16 %v6218, %v6210
        %v8171 = vpack.c.b16 %v6219, %v6211
        %v8172 = vpack.c.b16 %v6220, %v6212
        %v8173 = vpack.c.b16 %v6221, %v6213
        %v8174 = vpack.c.b16 %v6222, %v6214
        %v8175 = vpack.c.b16 %v6223, %v6215
        %v8176 = vpack.c.b16 %v6224, %v6216
        %v8177 = vpack.c.b16 %v6233, %v6225
        %v8178 = vpack.c.b16 %v6234, %v6226
        %v8179 = vpack.c.b16 %v6235, %v6227
        %v8180 = vpack.c.b16 %v6236, %v6228
        %v8181 = vpack.c.b16 %v6237, %v6229
        %v8182 = vpack.c.b16 %v6238, %v6230
        %v8183 = vpack.c.b16 %v6239, %v6231
        %v8184 = vpack.c.b16 %v6240, %v6232
        %v8185 = vpack.c.b16 %v6249, %v6241
        %v8186 = vpack.c.b16 %v6250, %v6242
        %v8187 = vpack.c.b16 %v6251, %v6243
        %v8188 = vpack.c.b16 %v6252, %v6244
        %v8189 = vpack.c.b16 %v6253, %v6245
        %v8190 = vpack.c.b16 %v6254, %v6246
        %v8191 = vpack.c.b16 %v6255, %v6247
        %v8192 = vpack.c.b16 %v6256, %v6248
        %v8193 = vpack.c.b16 %v6265, %v6257
        %v8194 = vpack.c.b16 %v6266, %v6258
        %v8195 = vpack.c.b16 %v6267, %v6259
        %v8196 = vpack.c.b16 %v6268, %v6260
        %v8197 = vpack.c.b16 %v6269, %v6261
        %v8198 = vpack.c.b16 %v6270, %v6262
        %v8199 = vpack.c.b16 %v6271, %v6263
        %v8200 = vpack.c.b16 %v6272, %v6264
        %v8201 = vpack.c.b16 %v6281, %v6273
        %v8202 = vpack.c.b16 %v6282, %v6274
        %v8203 = vpack.c.b16 %v6283, %v6275
        %v8204 = vpack.c.b16 %v6284, %v6276
        %v8205 = vpack.c.b16 %v6285, %v6277
        %v8206 = vpack.c.b16 %v6286, %v6278
        %v8207 = vpack.c.b16 %v6287, %v6279
        %v8208 = vpack.c.b16 %v6288, %v6280
        %v8209 = vpack.c.b16 %v6297, %v6289
        %v8210 = vpack.c.b16 %v6298, %v6290
        %v8211 = vpack.c.b16 %v6299, %v6291
        %v8212 = vpack.c.b16 %v6300, %v6292
        %v8213 = vpack.c.b16 %v6301, %v6293
        %v8214 = vpack.c.b16 %v6302, %v6294
        %v8215 = vpack.c.b16 %v6303, %v6295
        %v8216 = vpack.c.b16 %v6304, %v6296
        %v8217 = vpack.c.b16 %v6313, %v6305
        %v8218 = vpack.c.b16 %v6314, %v6306
        %v8219 = vpack.c.b16 %v6315, %v6307
        %v8220 = vpack.c.b16 %v6316, %v6308
        %v8221 = vpack.c.b16 %v6317, %v6309
        %v8222 = vpack.c.b16 %v6318, %v6310
        %v8223 = vpack.c.b16 %v6319, %v6311
        %v8224 = vpack.c.b16 %v6320, %v6312
        %v8225 = vpack.c.b16 %v6329, %v6321
        %v8226 = vpack.c.b16 %v6330, %v6322
        %v8227 = vpack.c.b16 %v6331, %v6323
        %v8228 = vpack.c.b16 %v6332, %v6324
        %v8229 = vpack.c.b16 %v6333, %v6325
        %v8230 = vpack.c.b16 %v6334, %v6326
        %v8231 = vpack.c.b16 %v6335, %v6327
        %v8232 = vpack.c.b16 %v6336, %v6328
        %v8233 = vpack.c.b16 %v6345, %v6337
        %v8234 = vpack.c.b16 %v6346, %v6338
        %v8235 = vpack.c.b16 %v6347, %v6339
        %v8236 = vpack.c.b16 %v6348, %v6340
        %v8237 = vpack.c.b16 %v6349, %v6341
        %v8238 = vpack.c.b16 %v6350, %v6342
        %v8239 = vpack.c.b16 %v6351, %v6343
        %v8240 = vpack.c.b16 %v6352, %v6344
        %v8241 = vpack.c.b16 %v6361, %v6353
        %v8242 = vpack.c.b16 %v6362, %v6354
        %v8243 = vpack.c.b16 %v6363, %v6355
        %v8244 = vpack.c.b16 %v6364, %v6356
        %v8245 = vpack.c.b16 %v6365, %v6357
        %v8246 = vpack.c.b16 %v6366, %v6358
        %v8247 = vpack.c.b16 %v6367, %v6359
        %v8248 = vpack.c.b16 %v6368, %v6360
        %v8249 = vpack.c.b16 %v6377, %v6369
        %v8250 = vpack.c.b16 %v6378, %v6370
        %v8251 = vpack.c.b16 %v6379, %v6371
        %v8252 = vpack.c.b16 %v6380, %v6372
        %v8253 = vpack.c.b16 %v6381, %v6373
        %v8254 = vpack.c.b16 %v6382, %v6374
        %v8255 = vpack.c.b16 %v6383, %v6375
        %v8256 = vpack.c.b16 %v6384, %v6376
        %v8257 = vpack.c.b16 %v6393, %v6385
        %v8258 = vpack.c.b16 %v6394, %v6386
        %v8259 = vpack.c.b16 %v6395, %v6387
        %v8260 = vpack.c.b16 %v6396, %v6388
        %v8261 = vpack.c.b16 %v6397, %v6389
        %v8262 = vpack.c.b16 %v6398, %v6390
        %v8263 = vpack.c.b16 %v6399, %v6391
        %v8264 = vpack.c.b16 %v6400, %v6392
        %v8265 = vpack.c.b16 %v6409, %v6401
        %v8266 = vpack.c.b16 %v6410, %v6402
        %v8267 = vpack.c.b16 %v6411, %v6403
        %v8268 = vpack.c.b16 %v6412, %v6404
        %v8269 = vpack.c.b16 %v6413, %v6405
        %v8270 = vpack.c.b16 %v6414, %v6406
        %v8271 = vpack.c.b16 %v6415, %v6407
        %v8272 = vpack.c.b16 %v6416, %v6408
        %v8273 = vpack.c.b16 %v6425, %v6417
        %v8274 = vpack.c.b16 %v6426, %v6418
        %v8275 = vpack.c.b16 %v6427, %v6419
        %v8276 = vpack.c.b16 %v6428, %v6420
        %v8277 = vpack.c.b16 %v6429, %v6421
        %v8278 = vpack.c.b16 %v6430, %v6422
        %v8279 = vpack.c.b16 %v6431, %v6423
        %v8280 = vpack.c.b16 %v6432, %v6424
        %v8281 = vpack.c.b16 %v6441, %v6433
        %v8282 = vpack.c.b16 %v6442, %v6434
        %v8283 = vpack.c.b16 %v6443, %v6435
        %v8284 = vpack.c.b16 %v6444, %v6436
        %v8285 = vpack.c.b16 %v6445, %v6437
        %v8286 = vpack.c.b16 %v6446, %v6438
        %v8287 = vpack.c.b16 %v6447, %v6439
        %v8288 = vpack.c.b16 %v6448, %v6440
        %v8289 = vpack.c.b16 %v6457, %v6449
        %v8290 = vpack.c.b16 %v6458, %v6450
        %v8291 = vpack.c.b16 %v6459, %v6451
        %v8292 = vpack.c.b16 %v6460, %v6452
        %v8293 = vpack.c.b16 %v6461, %v6453
        %v8294 = vpack.c.b16 %v6462, %v6454
        %v8295 = vpack.c.b16 %v6463, %v6455
        %v8296 = vpack.c.b16 %v6464, %v6456
        %v8297 = vpack.c.b16 %v6473, %v6465
        %v8298 = vpack.c.b16 %v6474, %v6466
        %v8299 = vpack.c.b16 %v6475, %v6467
        %v8300 = vpack.c.b16 %v6476, %v6468
        %v8301 = vpack.c.b16 %v6477, %v6469
        %v8302 = vpack.c.b16 %v6478, %v6470
        %v8303 = vpack.c.b16 %v6479, %v6471
        %v8304 = vpack.c.b16 %v6480, %v6472
        %v8305 = vpack.c.b16 %v6489, %v6481
        %v8306 = vpack.c.b16 %v6490, %v6482
        %v8307 = vpack.c.b16 %v6491, %v6483
        %v8308 = vpack.c.b16 %v6492, %v6484
        %v8309 = vpack.c.b16 %v6493, %v6485
        %v8310 = vpack.c.b16 %v6494, %v6486
        %v8311 = vpack.c.b16 %v6495, %v6487
        %v8312 = vpack.c.b16 %v6496, %v6488
        %v8313 = vpack.c.b16 %v6505, %v6497
        %v8314 = vpack.c.b16 %v6506, %v6498
        %v8315 = vpack.c.b16 %v6507, %v6499
        %v8316 = vpack.c.b16 %v6508, %v6500
        %v8317 = vpack.c.b16 %v6509, %v6501
        %v8318 = vpack.c.b16 %v6510, %v6502
        %v8319 = vpack.c.b16 %v6511, %v6503
        %v8320 = vpack.c.b16 %v6512, %v6504
        %v8321 = vpack.c.b16 %v6521, %v6513
        %v8322 = vpack.c.b16 %v6522, %v6514
        %v8323 = vpack.c.b16 %v6523, %v6515
        %v8324 = vpack.c.b16 %v6524, %v6516
        %v8325 = vpack.c.b16 %v6525, %v6517
        %v8326 = vpack.c.b16 %v6526, %v6518
        %v8327 = vpack.c.b16 %v6527, %v6519
        %v8328 = vpack.c.b16 %v6528, %v6520
        %v8329 = vpack.c.b16 %v6537, %v6529
        %v8330 = vpack.c.b16 %v6538, %v6530
        %v8331 = vpack.c.b16 %v6539, %v6531
        %v8332 = vpack.c.b16 %v6540, %v6532
        %v8333 = vpack.c.b16 %v6541, %v6533
        %v8334 = vpack.c.b16 %v6542, %v6534
        %v8335 = vpack.c.b16 %v6543, %v6535
        %v8336 = vpack.c.b16 %v6544, %v6536
        %v8337 = vpack.c.b16 %v6553, %v6545
        %v8338 = vpack.c.b16 %v6554, %v6546
        %v8339 = vpack.c.b16 %v6555, %v6547
        %v8340 = vpack.c.b16 %v6556, %v6548
        %v8341 = vpack.c.b16 %v6557, %v6549
        %v8342 = vpack.c.b16 %v6558, %v6550
        %v8343 = vpack.c.b16 %v6559, %v6551
        %v8344 = vpack.c.b16 %v6560, %v6552
        %v8345 = vpack.c.b16 %v6569, %v6561
        %v8346 = vpack.c.b16 %v6570, %v6562
        %v8347 = vpack.c.b16 %v6571, %v6563
        %v8348 = vpack.c.b16 %v6572, %v6564
        %v8349 = vpack.c.b16 %v6573, %v6565
        %v8350 = vpack.c.b16 %v6574, %v6566
        %v8351 = vpack.c.b16 %v6575, %v6567
        %v8352 = vpack.c.b16 %v6576, %v6568
        %v8353 = vpack.c.b16 %v6585, %v6577
        %v8354 = vpack.c.b16 %v6586, %v6578
        %v8355 = vpack.c.b16 %v6587, %v6579
        %v8356 = vpack.c.b16 %v6588, %v6580
        %v8357 = vpack.c.b16 %v6589, %v6581
        %v8358 = vpack.c.b16 %v6590, %v6582
        %v8359 = vpack.c.b16 %v6591, %v6583
        %v8360 = vpack.c.b16 %v6592, %v6584
        %v8361 = vpack.c.b16 %v6601, %v6593
        %v8362 = vpack.c.b16 %v6602, %v6594
        %v8363 = vpack.c.b16 %v6603, %v6595
        %v8364 = vpack.c.b16 %v6604, %v6596
        %v8365 = vpack.c.b16 %v6605, %v6597
        %v8366 = vpack.c.b16 %v6606, %v6598
        %v8367 = vpack.c.b16 %v6607, %v6599
        %v8368 = vpack.c.b16 %v6608, %v6600
        %v8369 = vpack.c.b16 %v6617, %v6609
        %v8370 = vpack.c.b16 %v6618, %v6610
        %v8371 = vpack.c.b16 %v6619, %v6611
        %v8372 = vpack.c.b16 %v6620, %v6612
        %v8373 = vpack.c.b16 %v6621, %v6613
        %v8374 = vpack.c.b16 %v6622, %v6614
        %v8375 = vpack.c.b16 %v6623, %v6615
        %v8376 = vpack.c.b16 %v6624, %v6616
        %v8377 = vpack.c.b16 %v6633, %v6625
        %v8378 = vpack.c.b16 %v6634, %v6626
        %v8379 = vpack.c.b16 %v6635, %v6627
        %v8380 = vpack.c.b16 %v6636, %v6628
        %v8381 = vpack.c.b16 %v6637, %v6629
        %v8382 = vpack.c.b16 %v6638, %v6630
        %v8383 = vpack.c.b16 %v6639, %v6631
        %v8384 = vpack.c.b16 %v6640, %v6632
        %v8385 = vpack.c.b16 %v6649, %v6641
        %v8386 = vpack.c.b16 %v6650, %v6642
        %v8387 = vpack.c.b16 %v6651, %v6643
        %v8388 = vpack.c.b16 %v6652, %v6644
        %v8389 = vpack.c.b16 %v6653, %v6645
        %v8390 = vpack.c.b16 %v6654, %v6646
        %v8391 = vpack.c.b16 %v6655, %v6647
        %v8392 = vpack.c.b16 %v6656, %v6648
        %v8393 = vpack.c.b16 %v6665, %v6657
        %v8394 = vpack.c.b16 %v6666, %v6658
        %v8395 = vpack.c.b16 %v6667, %v6659
        %v8396 = vpack.c.b16 %v6668, %v6660
        %v8397 = vpack.c.b16 %v6669, %v6661
        %v8398 = vpack.c.b16 %v6670, %v6662
        %v8399 = vpack.c.b16 %v6671, %v6663
        %v8400 = vpack.c.b16 %v6672, %v6664
        %v8401 = vpack.c.b16 %v6681, %v6673
        %v8402 = vpack.c.b16 %v6682, %v6674
        %v8403 = vpack.c.b16 %v6683, %v6675
        %v8404 = vpack.c.b16 %v6684, %v6676
        %v8405 = vpack.c.b16 %v6685, %v6677
        %v8406 = vpack.c.b16 %v6686, %v6678
        %v8407 = vpack.c.b16 %v6687, %v6679
        %v8408 = vpack.c.b16 %v6688, %v6680
        %v8409 = vpack.c.b16 %v6697, %v6689
        %v8410 = vpack.c.b16 %v6698, %v6690
        %v8411 = vpack.c.b16 %v6699, %v6691
        %v8412 = vpack.c.b16 %v6700, %v6692
        %v8413 = vpack.c.b16 %v6701, %v6693
        %v8414 = vpack.c.b16 %v6702, %v6694
        %v8415 = vpack.c.b16 %v6703, %v6695
        %v8416 = vpack.c.b16 %v6704, %v6696
        %v8417 = vpack.c.b16 %v6713, %v6705
        %v8418 = vpack.c.b16 %v6714, %v6706
        %v8419 = vpack.c.b16 %v6715, %v6707
        %v8420 = vpack.c.b16 %v6716, %v6708
        %v8421 = vpack.c.b16 %v6717, %v6709
        %v8422 = vpack.c.b16 %v6718, %v6710
        %v8423 = vpack.c.b16 %v6719, %v6711
        %v8424 = vpack.c.b16 %v6720, %v6712
        %v8425 = vpack.c.b16 %v6729, %v6721
        %v8426 = vpack.c.b16 %v6730, %v6722
        %v8427 = vpack.c.b16 %v6731, %v6723
        %v8428 = vpack.c.b16 %v6732, %v6724
        %v8429 = vpack.c.b16 %v6733, %v6725
        %v8430 = vpack.c.b16 %v6734, %v6726
        %v8431 = vpack.c.b16 %v6735, %v6727
        %v8432 = vpack.c.b16 %v6736, %v6728
        %v8433 = vpack.c.b16 %v6745, %v6737
        %v8434 = vpack.c.b16 %v6746, %v6738
        %v8435 = vpack.c.b16 %v6747, %v6739
        %v8436 = vpack.c.b16 %v6748, %v6740
        %v8437 = vpack.c.b16 %v6749, %v6741
        %v8438 = vpack.c.b16 %v6750, %v6742
        %v8439 = vpack.c.b16 %v6751, %v6743
        %v8440 = vpack.c.b16 %v6752, %v6744
        %v8441 = vpack.c.b16 %v6761, %v6753
        %v8442 = vpack.c.b16 %v6762, %v6754
        %v8443 = vpack.c.b16 %v6763, %v6755
        %v8444 = vpack.c.b16 %v6764, %v6756
        %v8445 = vpack.c.b16 %v6765, %v6757
        %v8446 = vpack.c.b16 %v6766, %v6758
        %v8447 = vpack.c.b16 %v6767, %v6759
        %v8448 = vpack.c.b16 %v6768, %v6760
        %v8449 = vpack.c.b16 %v6777, %v6769
        %v8450 = vpack.c.b16 %v6778, %v6770
        %v8451 = vpack.c.b16 %v6779, %v6771
        %v8452 = vpack.c.b16 %v6780, %v6772
        %v8453 = vpack.c.b16 %v6781, %v6773
        %v8454 = vpack.c.b16 %v6782, %v6774
        %v8455 = vpack.c.b16 %v6783, %v6775
        %v8456 = vpack.c.b16 %v6784, %v6776
        %v8457 = vpack.c.b16 %v6793, %v6785
        %v8458 = vpack.c.b16 %v6794, %v6786
        %v8459 = vpack.c.b16 %v6795, %v6787
        %v8460 = vpack.c.b16 %v6796, %v6788
        %v8461 = vpack.c.b16 %v6797, %v6789
        %v8462 = vpack.c.b16 %v6798, %v6790
        %v8463 = vpack.c.b16 %v6799, %v6791
        %v8464 = vpack.c.b16 %v6800, %v6792
        %v8465 = vpack.c.b16 %v6809, %v6801
        %v8466 = vpack.c.b16 %v6810, %v6802
        %v8467 = vpack.c.b16 %v6811, %v6803
        %v8468 = vpack.c.b16 %v6812, %v6804
        %v8469 = vpack.c.b16 %v6813, %v6805
        %v8470 = vpack.c.b16 %v6814, %v6806
        %v8471 = vpack.c.b16 %v6815, %v6807
        %v8472 = vpack.c.b16 %v6816, %v6808
        %v8473 = vpack.c.b16 %v6825, %v6817
        %v8474 = vpack.c.b16 %v6826, %v6818
        %v8475 = vpack.c.b16 %v6827, %v6819
        %v8476 = vpack.c.b16 %v6828, %v6820
        %v8477 = vpack.c.b16 %v6829, %v6821
        %v8478 = vpack.c.b16 %v6830, %v6822
        %v8479 = vpack.c.b16 %v6831, %v6823
        %v8480 = vpack.c.b16 %v6832, %v6824
        %v8481 = vpack.c.b16 %v6841, %v6833
        %v8482 = vpack.c.b16 %v6842, %v6834
        %v8483 = vpack.c.b16 %v6843, %v6835
        %v8484 = vpack.c.b16 %v6844, %v6836
        %v8485 = vpack.c.b16 %v6845, %v6837
        %v8486 = vpack.c.b16 %v6846, %v6838
        %v8487 = vpack.c.b16 %v6847, %v6839
        %v8488 = vpack.c.b16 %v6848, %v6840
        %v8489 = vpack.c.b16 %v6857, %v6849
        %v8490 = vpack.c.b16 %v6858, %v6850
        %v8491 = vpack.c.b16 %v6859, %v6851
        %v8492 = vpack.c.b16 %v6860, %v6852
        %v8493 = vpack.c.b16 %v6861, %v6853
        %v8494 = vpack.c.b16 %v6862, %v6854
        %v8495 = vpack.c.b16 %v6863, %v6855
        %v8496 = vpack.c.b16 %v6864, %v6856
        %v8497 = vpack.c.b16 %v6873, %v6865
        %v8498 = vpack.c.b16 %v6874, %v6866
        %v8499 = vpack.c.b16 %v6875, %v6867
        %v8500 = vpack.c.b16 %v6876, %v6868
        %v8501 = vpack.c.b16 %v6877, %v6869
        %v8502 = vpack.c.b16 %v6878, %v6870
        %v8503 = vpack.c.b16 %v6879, %v6871
        %v8504 = vpack.c.b16 %v6880, %v6872
        %v8505 = vpack.c.b16 %v6889, %v6881
        %v8506 = vpack.c.b16 %v6890, %v6882
        %v8507 = vpack.c.b16 %v6891, %v6883
        %v8508 = vpack.c.b16 %v6892, %v6884
        %v8509 = vpack.c.b16 %v6893, %v6885
        %v8510 = vpack.c.b16 %v6894, %v6886
        %v8511 = vpack.c.b16 %v6895, %v6887
        %v8512 = vpack.c.b16 %v6896, %v6888
        %v8513 = vpack.c.b16 %v6905, %v6897
        %v8514 = vpack.c.b16 %v6906, %v6898
        %v8515 = vpack.c.b16 %v6907, %v6899
        %v8516 = vpack.c.b16 %v6908, %v6900
        %v8517 = vpack.c.b16 %v6909, %v6901
        %v8518 = vpack.c.b16 %v6910, %v6902
        %v8519 = vpack.c.b16 %v6911, %v6903
        %v8520 = vpack.c.b16 %v6912, %v6904
        %v8521 = vpack.c.b16 %v6921, %v6913
        %v8522 = vpack.c.b16 %v6922, %v6914
        %v8523 = vpack.c.b16 %v6923, %v6915
        %v8524 = vpack.c.b16 %v6924, %v6916
        %v8525 = vpack.c.b16 %v6925, %v6917
        %v8526 = vpack.c.b16 %v6926, %v6918
        %v8527 = vpack.c.b16 %v6927, %v6919
        %v8528 = vpack.c.b16 %v6928, %v6920
        %10129 = vmatprep.subr.bf16.mxu0 %v6930
        %10130 = vmatpush1.bf16.msra.mxu0 %v6929
        %10131 = vmatprep.subr.bf16.mxu0 %v6938
        %10132 = vmatpush1.bf16.msra.mxu0 %v6937
        %10133 = vmatprep.subr.bf16.mxu0 %v6946
        %10134 = vmatpush1.bf16.msra.mxu0 %v6945
        %10135 = vmatprep.subr.bf16.mxu0 %v6954
        %10136 = vmatpush1.bf16.msra.mxu0 %v6953
        %10137 = vmatprep.subr.bf16.mxu0 %v6962
        %10138 = vmatpush1.bf16.msra.mxu0 %v6961
        %10139 = vmatprep.subr.bf16.mxu0 %v6970
        %10140 = vmatpush1.bf16.msra.mxu0 %v6969
        %10141 = vmatprep.subr.bf16.mxu0 %v6978
        %10142 = vmatpush1.bf16.msra.mxu0 %v6977
        %10143 = vmatprep.subr.bf16.mxu0 %v6986
        %10144 = vmatpush1.bf16.msra.mxu0 %v6985
        %10145 = vmatprep.subr.bf16.mxu0 %v6994
        %10146 = vmatpush1.bf16.msra.mxu0 %v6993
        %10147 = vmatprep.subr.bf16.mxu0 %v7002
        %10148 = vmatpush1.bf16.msra.mxu0 %v7001
        %10149 = vmatprep.subr.bf16.mxu0 %v7010
        %10150 = vmatpush1.bf16.msra.mxu0 %v7009
        %10151 = vmatprep.subr.bf16.mxu0 %v7018
        %10152 = vmatpush1.bf16.msra.mxu0 %v7017
        %10153 = vmatprep.subr.bf16.mxu0 %v7026
        %10154 = vmatpush1.bf16.msra.mxu0 %v7025
        %10155 = vmatprep.subr.bf16.mxu0 %v7034
        %10156 = vmatpush1.bf16.msra.mxu0 %v7033
        %10157 = vmatprep.subr.bf16.mxu0 %v7042
        %10158 = vmatpush1.bf16.msra.mxu0 %v7041
        %10159 = vmatprep.subr.bf16.mxu0 %v7050
        %10160 = vmatpush1.bf16.msra.mxu0 %v7049
        %10161 = vmatprep.mubr.bf16.mxu0 %v1980
        %10162 = vmatmul.mubr.bf16.gmra.mrb[0].mxu0 %v1966
        %v10163 = vpop.f32.mrb[0].mxu0
        %v10164 = vadd.f32 %v1902, %v10163
        %v10165 = vpop.f32.mrb[0].mxu0
        %v10166 = vadd.f32 %v1906, %v10165
        %v10167 = vpop.f32.mrb[0].mxu0
        %v10168 = vpop.f32.mrb[0].mxu0
        %10169 = vdwg.mxu0
        %10170 = vmatprep.subr.bf16.mxu0 %v7058
        %10171 = vmatpush1.bf16.msra.mxu0 %v7057
        %10172 = vmatprep.subr.bf16.mxu0 %v7066
        %10173 = vmatpush1.bf16.msra.mxu0 %v7065
        %10174 = vmatprep.subr.bf16.mxu0 %v7074
        %10175 = vmatpush1.bf16.msra.mxu0 %v7073
        %10176 = vmatprep.subr.bf16.mxu0 %v7082
        %10177 = vmatpush1.bf16.msra.mxu0 %v7081
        %10178 = vmatprep.subr.bf16.mxu0 %v7090
        %10179 = vmatpush1.bf16.msra.mxu0 %v7089
        %10180 = vmatprep.subr.bf16.mxu0 %v7098
        %10181 = vmatpush1.bf16.msra.mxu0 %v7097
        %10182 = vmatprep.subr.bf16.mxu0 %v7106
        %10183 = vmatpush1.bf16.msra.mxu0 %v7105
        %10184 = vmatprep.subr.bf16.mxu0 %v7114
        %10185 = vmatpush1.bf16.msra.mxu0 %v7113
        %10186 = vmatprep.subr.bf16.mxu0 %v7122
        %10187 = vmatpush1.bf16.msra.mxu0 %v7121
        %10188 = vmatprep.subr.bf16.mxu0 %v7130
        %10189 = vmatpush1.bf16.msra.mxu0 %v7129
        %10190 = vmatprep.subr.bf16.mxu0 %v7138
        %10191 = vmatpush1.bf16.msra.mxu0 %v7137
        %10192 = vmatprep.subr.bf16.mxu0 %v7146
        %10193 = vmatpush1.bf16.msra.mxu0 %v7145
        %10194 = vmatprep.subr.bf16.mxu0 %v7154
        %10195 = vmatpush1.bf16.msra.mxu0 %v7153
        %10196 = vmatprep.subr.bf16.mxu0 %v7162
        %10197 = vmatpush1.bf16.msra.mxu0 %v7161
        %10198 = vmatprep.subr.bf16.mxu0 %v7170
        %10199 = vmatpush1.bf16.msra.mxu0 %v7169
        %10200 = vmatprep.subr.bf16.mxu0 %v7178
        %10201 = vmatpush1.bf16.msra.mxu0 %v7177
        %10202 = vmatprep.mubr.bf16.mxu0 %v1990
        %10203 = vmatmul.mubr.bf16.gmra.mrb[0].mxu0 %v1988
        %v10204 = vpop.f32.mrb[0].mxu0
        %v10205 = vadd.f32 %v10164, %v10204
        %v10206 = vpop.f32.mrb[0].mxu0
        %v10207 = vadd.f32 %v10166, %v10206
        %v10208 = vpop.f32.mrb[0].mxu0
        %v10209 = vpop.f32.mrb[0].mxu0
        %10210 = vdwg.mxu0
        %10211 = vmatprep.subr.bf16.mxu0 %v7186
        %10212 = vmatpush1.bf16.msra.mxu0 %v7185
        %10213 = vmatprep.subr.bf16.mxu0 %v7194
        %10214 = vmatpush1.bf16.msra.mxu0 %v7193
        %10215 = vmatprep.subr.bf16.mxu0 %v7202
        %10216 = vmatpush1.bf16.msra.mxu0 %v7201
        %10217 = vmatprep.subr.bf16.mxu0 %v7210
        %10218 = vmatpush1.bf16.msra.mxu0 %v7209
        %10219 = vmatprep.subr.bf16.mxu0 %v7218
        %10220 = vmatpush1.bf16.msra.mxu0 %v7217
        %10221 = vmatprep.subr.bf16.mxu0 %v7226
        %10222 = vmatpush1.bf16.msra.mxu0 %v7225
        %10223 = vmatprep.subr.bf16.mxu0 %v7234
        %10224 = vmatpush1.bf16.msra.mxu0 %v7233
        %10225 = vmatprep.subr.bf16.mxu0 %v7242
        %10226 = vmatpush1.bf16.msra.mxu0 %v7241
        %10227 = vmatprep.subr.bf16.mxu0 %v7250
        %10228 = vmatpush1.bf16.msra.mxu0 %v7249
        %10229 = vmatprep.subr.bf16.mxu0 %v7258
        %10230 = vmatpush1.bf16.msra.mxu0 %v7257
        %10231 = vmatprep.subr.bf16.mxu0 %v7266
        %10232 = vmatpush1.bf16.msra.mxu0 %v7265
        %10233 = vmatprep.subr.bf16.mxu0 %v7274
        %10234 = vmatpush1.bf16.msra.mxu0 %v7273
        %10235 = vmatprep.subr.bf16.mxu0 %v7282
        %10236 = vmatpush1.bf16.msra.mxu0 %v7281
        %10237 = vmatprep.subr.bf16.mxu0 %v7290
        %10238 = vmatpush1.bf16.msra.mxu0 %v7289
        %10239 = vmatprep.subr.bf16.mxu0 %v7298
        %10240 = vmatpush1.bf16.msra.mxu0 %v7297
        %10241 = vmatprep.subr.bf16.mxu0 %v7306
        %10242 = vmatpush1.bf16.msra.mxu0 %v7305
        %10243 = vmatprep.mubr.bf16.mxu0 %v1987
        %10244 = vmatmul.mubr.bf16.gmra.mrb[0].mxu0 %v1973
        %v10245 = vpop.f32.mrb[0].mxu0
        %v10246 = vadd.f32 %v10205, %v10245
        %v10247 = vpop.f32.mrb[0].mxu0
        %v10248 = vadd.f32 %v10207, %v10247
        %v10249 = vpop.f32.mrb[0].mxu0
        %v10250 = vpop.f32.mrb[0].mxu0
        %10251 = vdwg.mxu0
        %10252 = vmatprep.subr.bf16.mxu0 %v7314
        %10253 = vmatpush1.bf16.msra.mxu0 %v7313
        %10254 = vmatprep.subr.bf16.mxu0 %v7322
        %10255 = vmatpush1.bf16.msra.mxu0 %v7321
        %10256 = vmatprep.subr.bf16.mxu0 %v7330
        %10257 = vmatpush1.bf16.msra.mxu0 %v7329
        %10258 = vmatprep.subr.bf16.mxu0 %v7338
        %10259 = vmatpush1.bf16.msra.mxu0 %v7337
        %10260 = vmatprep.subr.bf16.mxu0 %v7346
        %10261 = vmatpush1.bf16.msra.mxu0 %v7345
        %10262 = vmatprep.subr.bf16.mxu0 %v7354
        %10263 = vmatpush1.bf16.msra.mxu0 %v7353
        %10264 = vmatprep.subr.bf16.mxu0 %v7362
        %10265 = vmatpush1.bf16.msra.mxu0 %v7361
        %10266 = vmatprep.subr.bf16.mxu0 %v7370
        %10267 = vmatpush1.bf16.msra.mxu0 %v7369
        %10268 = vmatprep.subr.bf16.mxu0 %v7378
        %10269 = vmatpush1.bf16.msra.mxu0 %v7377
        %10270 = vmatprep.subr.bf16.mxu0 %v7386
        %10271 = vmatpush1.bf16.msra.mxu0 %v7385
        %10272 = vmatprep.subr.bf16.mxu0 %v7394
        %10273 = vmatpush1.bf16.msra.mxu0 %v7393
        %10274 = vmatprep.subr.bf16.mxu0 %v7402
        %10275 = vmatpush1.bf16.msra.mxu0 %v7401
        %10276 = vmatprep.subr.bf16.mxu0 %v7410
        %10277 = vmatpush1.bf16.msra.mxu0 %v7409
        %10278 = vmatprep.subr.bf16.mxu0 %v7418
        %10279 = vmatpush1.bf16.msra.mxu0 %v7417
        %10280 = vmatprep.subr.bf16.mxu0 %v7426
        %10281 = vmatpush1.bf16.msra.mxu0 %v7425
        %10282 = vmatprep.subr.bf16.mxu0 %v7434
        %10283 = vmatpush1.bf16.msra.mxu0 %v7433
        %10284 = vmatprep.mubr.bf16.mxu0 %v1991
        %10285 = vmatmul.mubr.bf16.gmra.mrb[0].mxu0 %v1989
        %v10286 = vpop.f32.mrb[0].mxu0
        %v10287 = vadd.f32 %v10246, %v10286
        %v10288 = vpop.f32.mrb[0].mxu0
        %v10289 = vadd.f32 %v10248, %v10288
        %v10290 = vpop.f32.mrb[0].mxu0
        %v10291 = vpop.f32.mrb[0].mxu0
        %10292 = vdwg.mxu0
        %10293 = vmatprep.subr.bf16.mxu0 %v7442
        %10294 = vmatpush1.bf16.msra.mxu0 %v7441
        %10295 = vmatprep.subr.bf16.mxu0 %v7450
        %10296 = vmatpush1.bf16.msra.mxu0 %v7449
        %10297 = vmatprep.subr.bf16.mxu0 %v7458
        %10298 = vmatpush1.bf16.msra.mxu0 %v7457
        %10299 = vmatprep.subr.bf16.mxu0 %v7466
        %10300 = vmatpush1.bf16.msra.mxu0 %v7465
        %10301 = vmatprep.subr.bf16.mxu0 %v7474
        %10302 = vmatpush1.bf16.msra.mxu0 %v7473
        %10303 = vmatprep.subr.bf16.mxu0 %v7482
        %10304 = vmatpush1.bf16.msra.mxu0 %v7481
        %10305 = vmatprep.subr.bf16.mxu0 %v7490
        %10306 = vmatpush1.bf16.msra.mxu0 %v7489
        %10307 = vmatprep.subr.bf16.mxu0 %v7498
        %10308 = vmatpush1.bf16.msra.mxu0 %v7497
        %10309 = vmatprep.subr.bf16.mxu0 %v7506
        %10310 = vmatpush1.bf16.msra.mxu0 %v7505
        %10311 = vmatprep.subr.bf16.mxu0 %v7514
        %10312 = vmatpush1.bf16.msra.mxu0 %v7513
        %10313 = vmatprep.subr.bf16.mxu0 %v7522
        %10314 = vmatpush1.bf16.msra.mxu0 %v7521
        %10315 = vmatprep.subr.bf16.mxu0 %v7530
        %10316 = vmatpush1.bf16.msra.mxu0 %v7529
        %10317 = vmatprep.subr.bf16.mxu0 %v7538
        %10318 = vmatpush1.bf16.msra.mxu0 %v7537
        %10319 = vmatprep.subr.bf16.mxu0 %v7546
        %10320 = vmatpush1.bf16.msra.mxu0 %v7545
        %10321 = vmatprep.subr.bf16.mxu0 %v7554
        %10322 = vmatpush1.bf16.msra.mxu0 %v7553
        %10323 = vmatprep.subr.bf16.mxu0 %v7562
        %10324 = vmatpush1.bf16.msra.mxu0 %v7561
        %10325 = vmatprep.mubr.bf16.mxu0 %v2029
        %10326 = vmatmul.mubr.bf16.gmra.mrb[0].mxu0 %v2015
        %v10327 = vpop.f32.mrb[0].mxu0
        %v10328 = vadd.f32 %v10287, %v10327
        %v10329 = vpop.f32.mrb[0].mxu0
        %v10330 = vadd.f32 %v10289, %v10329
        %v10331 = vpop.f32.mrb[0].mxu0
        %v10332 = vpop.f32.mrb[0].mxu0
        %10333 = vdwg.mxu0
        %10334 = vmatprep.subr.bf16.mxu0 %v7570
        %10335 = vmatpush1.bf16.msra.mxu0 %v7569
        %10336 = vmatprep.subr.bf16.mxu0 %v7578
        %10337 = vmatpush1.bf16.msra.mxu0 %v7577
        %10338 = vmatprep.subr.bf16.mxu0 %v7586
        %10339 = vmatpush1.bf16.msra.mxu0 %v7585
        %10340 = vmatprep.subr.bf16.mxu0 %v7594
        %10341 = vmatpush1.bf16.msra.mxu0 %v7593
        %10342 = vmatprep.subr.bf16.mxu0 %v7602
        %10343 = vmatpush1.bf16.msra.mxu0 %v7601
        %10344 = vmatprep.subr.bf16.mxu0 %v7610
        %10345 = vmatpush1.bf16.msra.mxu0 %v7609
        %10346 = vmatprep.subr.bf16.mxu0 %v7618
        %10347 = vmatpush1.bf16.msra.mxu0 %v7617
        %10348 = vmatprep.subr.bf16.mxu0 %v7626
        %10349 = vmatpush1.bf16.msra.mxu0 %v7625
        %10350 = vmatprep.subr.bf16.mxu0 %v7634
        %10351 = vmatpush1.bf16.msra.mxu0 %v7633
        %10352 = vmatprep.subr.bf16.mxu0 %v7642
        %10353 = vmatpush1.bf16.msra.mxu0 %v7641
        %10354 = vmatprep.subr.bf16.mxu0 %v7650
        %10355 = vmatpush1.bf16.msra.mxu0 %v7649
        %10356 = vmatprep.subr.bf16.mxu0 %v7658
        %10357 = vmatpush1.bf16.msra.mxu0 %v7657
        %10358 = vmatprep.subr.bf16.mxu0 %v7666
        %10359 = vmatpush1.bf16.msra.mxu0 %v7665
        %10360 = vmatprep.subr.bf16.mxu0 %v7674
        %10361 = vmatpush1.bf16.msra.mxu0 %v7673
        %10362 = vmatprep.subr.bf16.mxu0 %v7682
        %10363 = vmatpush1.bf16.msra.mxu0 %v7681
        %10364 = vmatprep.subr.bf16.mxu0 %v7690
        %10365 = vmatpush1.bf16.msra.mxu0 %v7689
        %10366 = vmatprep.mubr.bf16.mxu0 %v2039
        %10367 = vmatmul.mubr.bf16.gmra.mrb[0].mxu0 %v2037
        %v10368 = vpop.f32.mrb[0].mxu0
        %v10369 = vadd.f32 %v10328, %v10368
        %v10370 = vpop.f32.mrb[0].mxu0
        %v10371 = vadd.f32 %v10330, %v10370
        %v10372 = vpop.f32.mrb[0].mxu0
        %v10373 = vpop.f32.mrb[0].mxu0
        %10374 = vdwg.mxu0
        %10375 = vmatprep.subr.bf16.mxu0 %v7698
        %10376 = vmatpush1.bf16.msra.mxu0 %v7697
        %10377 = vmatprep.subr.bf16.mxu0 %v7706
        %10378 = vmatpush1.bf16.msra.mxu0 %v7705
        %10379 = vmatprep.subr.bf16.mxu0 %v7714
        %10380 = vmatpush1.bf16.msra.mxu0 %v7713
        %10381 = vmatprep.subr.bf16.mxu0 %v7722
        %10382 = vmatpush1.bf16.msra.mxu0 %v7721
        %10383 = vmatprep.subr.bf16.mxu0 %v7730
        %10384 = vmatpush1.bf16.msra.mxu0 %v7729
        %10385 = vmatprep.subr.bf16.mxu0 %v7738
        %10386 = vmatpush1.bf16.msra.mxu0 %v7737
        %10387 = vmatprep.subr.bf16.mxu0 %v7746
        %10388 = vmatpush1.bf16.msra.mxu0 %v7745
        %10389 = vmatprep.subr.bf16.mxu0 %v7754
        %10390 = vmatpush1.bf16.msra.mxu0 %v7753
        %10391 = vmatprep.subr.bf16.mxu0 %v7762
        %10392 = vmatpush1.bf16.msra.mxu0 %v7761
        %10393 = vmatprep.subr.bf16.mxu0 %v7770
        %10394 = vmatpush1.bf16.msra.mxu0 %v7769
        %10395 = vmatprep.subr.bf16.mxu0 %v7778
        %10396 = vmatpush1.bf16.msra.mxu0 %v7777
        %10397 = vmatprep.subr.bf16.mxu0 %v7786
        %10398 = vmatpush1.bf16.msra.mxu0 %v7785
        %10399 = vmatprep.subr.bf16.mxu0 %v7794
        %10400 = vmatpush1.bf16.msra.mxu0 %v7793
        %10401 = vmatprep.subr.bf16.mxu0 %v7802
        %10402 = vmatpush1.bf16.msra.mxu0 %v7801
        %10403 = vmatprep.subr.bf16.mxu0 %v7810
        %10404 = vmatpush1.bf16.msra.mxu0 %v7809
        %10405 = vmatprep.subr.bf16.mxu0 %v7818
        %10406 = vmatpush1.bf16.msra.mxu0 %v7817
        %10407 = vmatprep.mubr.bf16.mxu0 %v2036
        %10408 = vmatmul.mubr.bf16.gmra.mrb[0].mxu0 %v2022
        %v10409 = vpop.f32.mrb[0].mxu0
        %v10410 = vadd.f32 %v10369, %v10409
        %v10411 = vpop.f32.mrb[0].mxu0
        %v10412 = vadd.f32 %v10371, %v10411
        %v10413 = vpop.f32.mrb[0].mxu0
        %v10414 = vpop.f32.mrb[0].mxu0
        %10415 = vdwg.mxu0
        %10416 = vmatprep.subr.bf16.mxu0 %v7826
        %10417 = vmatpush1.bf16.msra.mxu0 %v7825
        %10418 = vmatprep.subr.bf16.mxu0 %v7834
        %10419 = vmatpush1.bf16.msra.mxu0 %v7833
        %10420 = vmatprep.subr.bf16.mxu0 %v7842
        %10421 = vmatpush1.bf16.msra.mxu0 %v7841
        %10422 = vmatprep.subr.bf16.mxu0 %v7850
        %10423 = vmatpush1.bf16.msra.mxu0 %v7849
        %10424 = vmatprep.subr.bf16.mxu0 %v7858
        %10425 = vmatpush1.bf16.msra.mxu0 %v7857
        %10426 = vmatprep.subr.bf16.mxu0 %v7866
        %10427 = vmatpush1.bf16.msra.mxu0 %v7865
        %10428 = vmatprep.subr.bf16.mxu0 %v7874
        %10429 = vmatpush1.bf16.msra.mxu0 %v7873
        %10430 = vmatprep.subr.bf16.mxu0 %v7882
        %10431 = vmatpush1.bf16.msra.mxu0 %v7881
        %10432 = vmatprep.subr.bf16.mxu0 %v7890
        %10433 = vmatpush1.bf16.msra.mxu0 %v7889
        %10434 = vmatprep.subr.bf16.mxu0 %v7898
        %10435 = vmatpush1.bf16.msra.mxu0 %v7897
        %10436 = vmatprep.subr.bf16.mxu0 %v7906
        %10437 = vmatpush1.bf16.msra.mxu0 %v7905
        %10438 = vmatprep.subr.bf16.mxu0 %v7914
        %10439 = vmatpush1.bf16.msra.mxu0 %v7913
        %10440 = vmatprep.subr.bf16.mxu0 %v7922
        %10441 = vmatpush1.bf16.msra.mxu0 %v7921
        %10442 = vmatprep.subr.bf16.mxu0 %v7930
        %10443 = vmatpush1.bf16.msra.mxu0 %v7929
        %10444 = vmatprep.subr.bf16.mxu0 %v7938
        %10445 = vmatpush1.bf16.msra.mxu0 %v7937
        %10446 = vmatprep.subr.bf16.mxu0 %v7946
        %10447 = vmatpush1.bf16.msra.mxu0 %v7945
        %10448 = vmatprep.mubr.bf16.mxu0 %v2040
        %10449 = vmatmul.mubr.bf16.gmra.mrb[0].mxu0 %v2038
        %v10450 = vpop.f32.mrb[0].mxu0
        %v10451 = vadd.f32 %v10410, %v10450
        %v10452 = vpop.f32.mrb[0].mxu0
        %v10453 = vadd.f32 %v10412, %v10452
        %v10454 = vpop.f32.mrb[0].mxu0
        %v10455 = vpop.f32.mrb[0].mxu0
        %10456 = vdwg.mxu0
        %10457 = vmatprep.subr.bf16.mxu0 %v7954
        %10458 = vmatpush1.bf16.msra.mxu0 %v7953
        %10459 = vmatprep.subr.bf16.mxu0 %v7962
        %10460 = vmatpush1.bf16.msra.mxu0 %v7961
        %10461 = vmatprep.subr.bf16.mxu0 %v7970
        %10462 = vmatpush1.bf16.msra.mxu0 %v7969
        %10463 = vmatprep.subr.bf16.mxu0 %v7978
        %10464 = vmatpush1.bf16.msra.mxu0 %v7977
        %10465 = vmatprep.subr.bf16.mxu0 %v7986
        %10466 = vmatpush1.bf16.msra.mxu0 %v7985
        %10467 = vmatprep.subr.bf16.mxu0 %v7994
        %10468 = vmatpush1.bf16.msra.mxu0 %v7993
        %10469 = vmatprep.subr.bf16.mxu0 %v8002
        %10470 = vmatpush1.bf16.msra.mxu0 %v8001
        %10471 = vmatprep.subr.bf16.mxu0 %v8010
        %10472 = vmatpush1.bf16.msra.mxu0 %v8009
        %10473 = vmatprep.subr.bf16.mxu0 %v8018
        %10474 = vmatpush1.bf16.msra.mxu0 %v8017
        %10475 = vmatprep.subr.bf16.mxu0 %v8026
        %10476 = vmatpush1.bf16.msra.mxu0 %v8025
        %10477 = vmatprep.subr.bf16.mxu0 %v8034
        %10478 = vmatpush1.bf16.msra.mxu0 %v8033
        %10479 = vmatprep.subr.bf16.mxu0 %v8042
        %10480 = vmatpush1.bf16.msra.mxu0 %v8041
        %10481 = vmatprep.subr.bf16.mxu0 %v8050
        %10482 = vmatpush1.bf16.msra.mxu0 %v8049
        %10483 = vmatprep.subr.bf16.mxu0 %v8058
        %10484 = vmatpush1.bf16.msra.mxu0 %v8057
        %10485 = vmatprep.subr.bf16.mxu0 %v8066
        %10486 = vmatpush1.bf16.msra.mxu0 %v8065
        %10487 = vmatprep.subr.bf16.mxu0 %v8074
        %10488 = vmatpush1.bf16.msra.mxu0 %v8073
        %10489 = vmatprep.mubr.bf16.mxu0 %v2078
        %10490 = vmatmul.mubr.bf16.gmra.mrb[0].mxu0 %v2064
        %v10491 = vpop.f32.mrb[0].mxu0
        %v10492 = vadd.f32 %v10451, %v10491
        %v10493 = vpop.f32.mrb[0].mxu0
        %v10494 = vadd.f32 %v10453, %v10493
        %v10495 = vpop.f32.mrb[0].mxu0
        %v10496 = vpop.f32.mrb[0].mxu0
        %10497 = vdwg.mxu0
        %10498 = vmatprep.subr.bf16.mxu0 %v8082
        %10499 = vmatpush1.bf16.msra.mxu0 %v8081
        %10500 = vmatprep.subr.bf16.mxu0 %v8090
        %10501 = vmatpush1.bf16.msra.mxu0 %v8089
        %10502 = vmatprep.subr.bf16.mxu0 %v8098
        %10503 = vmatpush1.bf16.msra.mxu0 %v8097
        %10504 = vmatprep.subr.bf16.mxu0 %v8106
        %10505 = vmatpush1.bf16.msra.mxu0 %v8105
        %10506 = vmatprep.subr.bf16.mxu0 %v8114
        %10507 = vmatpush1.bf16.msra.mxu0 %v8113
        %10508 = vmatprep.subr.bf16.mxu0 %v8122
        %10509 = vmatpush1.bf16.msra.mxu0 %v8121
        %10510 = vmatprep.subr.bf16.mxu0 %v8130
        %10511 = vmatpush1.bf16.msra.mxu0 %v8129
        %10512 = vmatprep.subr.bf16.mxu0 %v8138
        %10513 = vmatpush1.bf16.msra.mxu0 %v8137
        %10514 = vmatprep.subr.bf16.mxu0 %v8146
        %10515 = vmatpush1.bf16.msra.mxu0 %v8145
        %10516 = vmatprep.subr.bf16.mxu0 %v8154
        %10517 = vmatpush1.bf16.msra.mxu0 %v8153
        %10518 = vmatprep.subr.bf16.mxu0 %v8162
        %10519 = vmatpush1.bf16.msra.mxu0 %v8161
        %10520 = vmatprep.subr.bf16.mxu0 %v8170
        %10521 = vmatpush1.bf16.msra.mxu0 %v8169
        %10522 = vmatprep.subr.bf16.mxu0 %v8178
        %10523 = vmatpush1.bf16.msra.mxu0 %v8177
        %10524 = vmatprep.subr.bf16.mxu0 %v8186
        %10525 = vmatpush1.bf16.msra.mxu0 %v8185
        %10526 = vmatprep.subr.bf16.mxu0 %v8194
        %10527 = vmatpush1.bf16.msra.mxu0 %v8193
        %10528 = vmatprep.subr.bf16.mxu0 %v8202
        %10529 = vmatpush1.bf16.msra.mxu0 %v8201
        %10530 = vmatprep.mubr.bf16.mxu0 %v2088
        %10531 = vmatmul.mubr.bf16.gmra.mrb[0].mxu0 %v2086
        %v10532 = vpop.f32.mrb[0].mxu0
        %v10533 = vadd.f32 %v10492, %v10532
        %v10534 = vpop.f32.mrb[0].mxu0
        %v10535 = vadd.f32 %v10494, %v10534
        %v10536 = vpop.f32.mrb[0].mxu0
        %v10537 = vpop.f32.mrb[0].mxu0
        %10538 = vdwg.mxu0
        %10539 = vmatprep.subr.bf16.mxu0 %v8210
        %10540 = vmatpush1.bf16.msra.mxu0 %v8209
        %10541 = vmatprep.subr.bf16.mxu0 %v8218
        %10542 = vmatpush1.bf16.msra.mxu0 %v8217
        %10543 = vmatprep.subr.bf16.mxu0 %v8226
        %10544 = vmatpush1.bf16.msra.mxu0 %v8225
        %10545 = vmatprep.subr.bf16.mxu0 %v8234
        %10546 = vmatpush1.bf16.msra.mxu0 %v8233
        %10547 = vmatprep.subr.bf16.mxu0 %v8242
        %10548 = vmatpush1.bf16.msra.mxu0 %v8241
        %10549 = vmatprep.subr.bf16.mxu0 %v8250
        %10550 = vmatpush1.bf16.msra.mxu0 %v8249
        %10551 = vmatprep.subr.bf16.mxu0 %v8258
        %10552 = vmatpush1.bf16.msra.mxu0 %v8257
        %10553 = vmatprep.subr.bf16.mxu0 %v8266
        %10554 = vmatpush1.bf16.msra.mxu0 %v8265
        %10555 = vmatprep.subr.bf16.mxu0 %v8274
        %10556 = vmatpush1.bf16.msra.mxu0 %v8273
        %10557 = vmatprep.subr.bf16.mxu0 %v8282
        %10558 = vmatpush1.bf16.msra.mxu0 %v8281
        %10559 = vmatprep.subr.bf16.mxu0 %v8290
        %10560 = vmatpush1.bf16.msra.mxu0 %v8289
        %10561 = vmatprep.subr.bf16.mxu0 %v8298
        %10562 = vmatpush1.bf16.msra.mxu0 %v8297
        %10563 = vmatprep.subr.bf16.mxu0 %v8306
        %10564 = vmatpush1.bf16.msra.mxu0 %v8305
        %10565 = vmatprep.subr.bf16.mxu0 %v8314
        %10566 = vmatpush1.bf16.msra.mxu0 %v8313
        %10567 = vmatprep.subr.bf16.mxu0 %v8322
        %10568 = vmatpush1.bf16.msra.mxu0 %v8321
        %10569 = vmatprep.subr.bf16.mxu0 %v8330
        %10570 = vmatpush1.bf16.msra.mxu0 %v8329
        %10571 = vmatprep.mubr.bf16.mxu0 %v2085
        %10572 = vmatmul.mubr.bf16.gmra.mrb[0].mxu0 %v2071
        %v10573 = vpop.f32.mrb[0].mxu0
        %v10574 = vadd.f32 %v10533, %v10573
        %v10575 = vpop.f32.mrb[0].mxu0
        %v10576 = vadd.f32 %v10535, %v10575
        %v10577 = vpop.f32.mrb[0].mxu0
        %v10578 = vpop.f32.mrb[0].mxu0
        %10579 = vdwg.mxu0
        %10580 = vmatprep.subr.bf16.mxu0 %v8338
        %10581 = vmatpush1.bf16.msra.mxu0 %v8337
        %10582 = vmatprep.subr.bf16.mxu0 %v8346
        %10583 = vmatpush1.bf16.msra.mxu0 %v8345
        %10584 = vmatprep.subr.bf16.mxu0 %v8354
        %10585 = vmatpush1.bf16.msra.mxu0 %v8353
        %10586 = vmatprep.subr.bf16.mxu0 %v8362
        %10587 = vmatpush1.bf16.msra.mxu0 %v8361
        %10588 = vmatprep.subr.bf16.mxu0 %v8370
        %10589 = vmatpush1.bf16.msra.mxu0 %v8369
        %10590 = vmatprep.subr.bf16.mxu0 %v8378
        %10591 = vmatpush1.bf16.msra.mxu0 %v8377
        %10592 = vmatprep.subr.bf16.mxu0 %v8386
        %10593 = vmatpush1.bf16.msra.mxu0 %v8385
        %10594 = vmatprep.subr.bf16.mxu0 %v8394
        %10595 = vmatpush1.bf16.msra.mxu0 %v8393
        %10596 = vmatprep.subr.bf16.mxu0 %v8402
        %10597 = vmatpush1.bf16.msra.mxu0 %v8401
        %10598 = vmatprep.subr.bf16.mxu0 %v8410
        %10599 = vmatpush1.bf16.msra.mxu0 %v8409
        %10600 = vmatprep.subr.bf16.mxu0 %v8418
        %10601 = vmatpush1.bf16.msra.mxu0 %v8417
        %10602 = vmatprep.subr.bf16.mxu0 %v8426
        %10603 = vmatpush1.bf16.msra.mxu0 %v8425
        %10604 = vmatprep.subr.bf16.mxu0 %v8434
        %10605 = vmatpush1.bf16.msra.mxu0 %v8433
        %10606 = vmatprep.subr.bf16.mxu0 %v8442
        %10607 = vmatpush1.bf16.msra.mxu0 %v8441
        %10608 = vmatprep.subr.bf16.mxu0 %v8450
        %10609 = vmatpush1.bf16.msra.mxu0 %v8449
        %10610 = vmatprep.subr.bf16.mxu0 %v8458
        %10611 = vmatpush1.bf16.msra.mxu0 %v8457
        %10612 = vmatprep.mubr.bf16.mxu0 %v2089
        %10613 = vmatmul.mubr.bf16.gmra.mrb[0].mxu0 %v2087
        %v10614 = vpop.f32.mrb[0].mxu0
        %v10615 = vadd.f32 %v10574, %v10614
        %v10616 = vpop.f32.mrb[0].mxu0
        %v10617 = vadd.f32 %v10576, %v10616
        %v10618 = vpop.f32.mrb[0].mxu0
        %v10619 = vpop.f32.mrb[0].mxu0
        %10620 = vdwg.mxu0
        %10621 = vmatprep.subr.bf16.mxu0 %v8466
        %10622 = vmatpush1.bf16.msra.mxu0 %v8465
        %10623 = vmatprep.subr.bf16.mxu0 %v8474
        %10624 = vmatpush1.bf16.msra.mxu0 %v8473
        %10625 = vmatprep.subr.bf16.mxu0 %v8482
        %10626 = vmatpush1.bf16.msra.mxu0 %v8481
        %10627 = vmatprep.subr.bf16.mxu0 %v8490
        %10628 = vmatpush1.bf16.msra.mxu0 %v8489
        %10629 = vmatprep.subr.bf16.mxu0 %v8498
        %10630 = vmatpush1.bf16.msra.mxu0 %v8497
        %10631 = vmatprep.subr.bf16.mxu0 %v8506
        %10632 = vmatpush1.bf16.msra.mxu0 %v8505
        %10633 = vmatprep.subr.bf16.mxu0 %v8514
        %10634 = vmatpush1.bf16.msra.mxu0 %v8513
        %10635 = vmatprep.subr.bf16.mxu0 %v8522
        %10636 = vmatpush1.bf16.msra.mxu0 %v8521
        %10637 = vmatprep.subr.bf16.mxu0 0
        %10638 = vmatpush1.bf16.msra.mxu0 0
        %10639 = vmatprep.subr.bf16.mxu0 0
        %10640 = vmatpush1.bf16.msra.mxu0 0
        %10641 = vmatprep.subr.bf16.mxu0 0
        %10642 = vmatpush1.bf16.msra.mxu0 0
        %10643 = vmatprep.subr.bf16.mxu0 0
        %10644 = vmatpush1.bf16.msra.mxu0 0
        %10645 = vmatprep.subr.bf16.mxu0 0
        %10646 = vmatpush1.bf16.msra.mxu0 0
        %10647 = vmatprep.subr.bf16.mxu0 0
        %10648 = vmatpush1.bf16.msra.mxu0 0
        %10649 = vmatprep.subr.bf16.mxu0 0
        %10650 = vmatpush1.bf16.msra.mxu0 0
        %10651 = vmatprep.subr.bf16.mxu0 0
        %10652 = vmatpush1.bf16.msra.mxu0 0
        %10653 = vmatprep.mubr.bf16.mxu0 0
        %10654 = vmatmul.mubr.bf16.gmra.mrb[0].mxu0 %v2103
        %v10655 = vpop.f32.mrb[0].mxu0
        %v10656 = vadd.f32 %v10615, %v10655
        %v10657 = vpop.f32.mrb[0].mxu0
        %v10658 = vadd.f32 %v10617, %v10657
        %v10659 = vpop.f32.mrb[0].mxu0
        %v10660 = vpop.f32.mrb[0].mxu0
        %10661 = vdwg.mxu0
        %10662 = vmatprep.subr.bf16.mxu0 %v6932
        %10663 = vmatpush1.bf16.msra.mxu0 %v6931
        %10664 = vmatprep.subr.bf16.mxu0 %v6940
        %10665 = vmatpush1.bf16.msra.mxu0 %v6939
        %10666 = vmatprep.subr.bf16.mxu0 %v6948
        %10667 = vmatpush1.bf16.msra.mxu0 %v6947
        %10668 = vmatprep.subr.bf16.mxu0 %v6956
        %10669 = vmatpush1.bf16.msra.mxu0 %v6955
        %10670 = vmatprep.subr.bf16.mxu0 %v6964
        %10671 = vmatpush1.bf16.msra.mxu0 %v6963
        %10672 = vmatprep.subr.bf16.mxu0 %v6972
        %10673 = vmatpush1.bf16.msra.mxu0 %v6971
        %10674 = vmatprep.subr.bf16.mxu0 %v6980
        %10675 = vmatpush1.bf16.msra.mxu0 %v6979
        %10676 = vmatprep.subr.bf16.mxu0 %v6988
        %10677 = vmatpush1.bf16.msra.mxu0 %v6987
        %10678 = vmatprep.subr.bf16.mxu0 %v6996
        %10679 = vmatpush1.bf16.msra.mxu0 %v6995
        %10680 = vmatprep.subr.bf16.mxu0 %v7004
        %10681 = vmatpush1.bf16.msra.mxu0 %v7003
        %10682 = vmatprep.subr.bf16.mxu0 %v7012
        %10683 = vmatpush1.bf16.msra.mxu0 %v7011
        %10684 = vmatprep.subr.bf16.mxu0 %v7020
        %10685 = vmatpush1.bf16.msra.mxu0 %v7019
        %10686 = vmatprep.subr.bf16.mxu0 %v7028
        %10687 = vmatpush1.bf16.msra.mxu0 %v7027
        %10688 = vmatprep.subr.bf16.mxu0 %v7036
        %10689 = vmatpush1.bf16.msra.mxu0 %v7035
        %10690 = vmatprep.subr.bf16.mxu0 %v7044
        %10691 = vmatpush1.bf16.msra.mxu0 %v7043
        %10692 = vmatprep.subr.bf16.mxu0 %v7052
        %10693 = vmatpush1.bf16.msra.mxu0 %v7051
        %10694 = vmatprep.mubr.bf16.mxu0 %v1980
        %10695 = vmatmul.mubr.bf16.gmra.mrb[0].mxu0 %v1966
        %v10696 = vpop.f32.mrb[0].mxu0
        %v10697 = vadd.f32 %v1910, %v10696
        %v10698 = vpop.f32.mrb[0].mxu0
        %v10699 = vadd.f32 %v1914, %v10698
        %v10700 = vpop.f32.mrb[0].mxu0
        %v10701 = vpop.f32.mrb[0].mxu0
        %10702 = vdwg.mxu0
        %10703 = vmatprep.subr.bf16.mxu0 %v7060
        %10704 = vmatpush1.bf16.msra.mxu0 %v7059
        %10705 = vmatprep.subr.bf16.mxu0 %v7068
        %10706 = vmatpush1.bf16.msra.mxu0 %v7067
        %10707 = vmatprep.subr.bf16.mxu0 %v7076
        %10708 = vmatpush1.bf16.msra.mxu0 %v7075
        %10709 = vmatprep.subr.bf16.mxu0 %v7084
        %10710 = vmatpush1.bf16.msra.mxu0 %v7083
        %10711 = vmatprep.subr.bf16.mxu0 %v7092
        %10712 = vmatpush1.bf16.msra.mxu0 %v7091
        %10713 = vmatprep.subr.bf16.mxu0 %v7100
        %10714 = vmatpush1.bf16.msra.mxu0 %v7099
        %10715 = vmatprep.subr.bf16.mxu0 %v7108
        %10716 = vmatpush1.bf16.msra.mxu0 %v7107
        %10717 = vmatprep.subr.bf16.mxu0 %v7116
        %10718 = vmatpush1.bf16.msra.mxu0 %v7115
        %10719 = vmatprep.subr.bf16.mxu0 %v7124
        %10720 = vmatpush1.bf16.msra.mxu0 %v7123
        %10721 = vmatprep.subr.bf16.mxu0 %v7132
        %10722 = vmatpush1.bf16.msra.mxu0 %v7131
        %10723 = vmatprep.subr.bf16.mxu0 %v7140
        %10724 = vmatpush1.bf16.msra.mxu0 %v7139
        %10725 = vmatprep.subr.bf16.mxu0 %v7148
        %10726 = vmatpush1.bf16.msra.mxu0 %v7147
        %10727 = vmatprep.subr.bf16.mxu0 %v7156
        %10728 = vmatpush1.bf16.msra.mxu0 %v7155
        %10729 = vmatprep.subr.bf16.mxu0 %v7164
        %10730 = vmatpush1.bf16.msra.mxu0 %v7163
        %10731 = vmatprep.subr.bf16.mxu0 %v7172
        %10732 = vmatpush1.bf16.msra.mxu0 %v7171
        %10733 = vmatprep.subr.bf16.mxu0 %v7180
        %10734 = vmatpush1.bf16.msra.mxu0 %v7179
        %10735 = vmatprep.mubr.bf16.mxu0 %v1990
        %10736 = vmatmul.mubr.bf16.gmra.mrb[0].mxu0 %v1988
        %v10737 = vpop.f32.mrb[0].mxu0
        %v10738 = vadd.f32 %v10697, %v10737
        %v10739 = vpop.f32.mrb[0].mxu0
        %v10740 = vadd.f32 %v10699, %v10739
        %v10741 = vpop.f32.mrb[0].mxu0
        %v10742 = vpop.f32.mrb[0].mxu0
        %10743 = vdwg.mxu0
        %10744 = vmatprep.subr.bf16.mxu0 %v7188
        %10745 = vmatpush1.bf16.msra.mxu0 %v7187
        %10746 = vmatprep.subr.bf16.mxu0 %v7196
        %10747 = vmatpush1.bf16.msra.mxu0 %v7195
        %10748 = vmatprep.subr.bf16.mxu0 %v7204
        %10749 = vmatpush1.bf16.msra.mxu0 %v7203
        %10750 = vmatprep.subr.bf16.mxu0 %v7212
        %10751 = vmatpush1.bf16.msra.mxu0 %v7211
        %10752 = vmatprep.subr.bf16.mxu0 %v7220
        %10753 = vmatpush1.bf16.msra.mxu0 %v7219
        %10754 = vmatprep.subr.bf16.mxu0 %v7228
        %10755 = vmatpush1.bf16.msra.mxu0 %v7227
        %10756 = vmatprep.subr.bf16.mxu0 %v7236
        %10757 = vmatpush1.bf16.msra.mxu0 %v7235
        %10758 = vmatprep.subr.bf16.mxu0 %v7244
        %10759 = vmatpush1.bf16.msra.mxu0 %v7243
        %10760 = vmatprep.subr.bf16.mxu0 %v7252
        %10761 = vmatpush1.bf16.msra.mxu0 %v7251
        %10762 = vmatprep.subr.bf16.mxu0 %v7260
        %10763 = vmatpush1.bf16.msra.mxu0 %v7259
        %10764 = vmatprep.subr.bf16.mxu0 %v7268
        %10765 = vmatpush1.bf16.msra.mxu0 %v7267
        %10766 = vmatprep.subr.bf16.mxu0 %v7276
        %10767 = vmatpush1.bf16.msra.mxu0 %v7275
        %10768 = vmatprep.subr.bf16.mxu0 %v7284
        %10769 = vmatpush1.bf16.msra.mxu0 %v7283
        %10770 = vmatprep.subr.bf16.mxu0 %v7292
        %10771 = vmatpush1.bf16.msra.mxu0 %v7291
        %10772 = vmatprep.subr.bf16.mxu0 %v7300
        %10773 = vmatpush1.bf16.msra.mxu0 %v7299
        %10774 = vmatprep.subr.bf16.mxu0 %v7308
        %10775 = vmatpush1.bf16.msra.mxu0 %v7307
        %10776 = vmatprep.mubr.bf16.mxu0 %v1987
        %10777 = vmatmul.mubr.bf16.gmra.mrb[0].mxu0 %v1973
        %v10778 = vpop.f32.mrb[0].mxu0
        %v10779 = vadd.f32 %v10738, %v10778
        %v10780 = vpop.f32.mrb[0].mxu0
        %v10781 = vadd.f32 %v10740, %v10780
        %v10782 = vpop.f32.mrb[0].mxu0
        %v10783 = vpop.f32.mrb[0].mxu0
        %10784 = vdwg.mxu0
        %10785 = vmatprep.subr.bf16.mxu0 %v7316
        %10786 = vmatpush1.bf16.msra.mxu0 %v7315
        %10787 = vmatprep.subr.bf16.mxu0 %v7324
        %10788 = vmatpush1.bf16.msra.mxu0 %v7323
        %10789 = vmatprep.subr.bf16.mxu0 %v7332
        %10790 = vmatpush1.bf16.msra.mxu0 %v7331
        %10791 = vmatprep.subr.bf16.mxu0 %v7340
        %10792 = vmatpush1.bf16.msra.mxu0 %v7339
        %10793 = vmatprep.subr.bf16.mxu0 %v7348
        %10794 = vmatpush1.bf16.msra.mxu0 %v7347
        %10795 = vmatprep.subr.bf16.mxu0 %v7356
        %10796 = vmatpush1.bf16.msra.mxu0 %v7355
        %10797 = vmatprep.subr.bf16.mxu0 %v7364
        %10798 = vmatpush1.bf16.msra.mxu0 %v7363
        %10799 = vmatprep.subr.bf16.mxu0 %v7372
        %10800 = vmatpush1.bf16.msra.mxu0 %v7371
        %10801 = vmatprep.subr.bf16.mxu0 %v7380
        %10802 = vmatpush1.bf16.msra.mxu0 %v7379
        %10803 = vmatprep.subr.bf16.mxu0 %v7388
        %10804 = vmatpush1.bf16.msra.mxu0 %v7387
        %10805 = vmatprep.subr.bf16.mxu0 %v7396
        %10806 = vmatpush1.bf16.msra.mxu0 %v7395
        %10807 = vmatprep.subr.bf16.mxu0 %v7404
        %10808 = vmatpush1.bf16.msra.mxu0 %v7403
        %10809 = vmatprep.subr.bf16.mxu0 %v7412
        %10810 = vmatpush1.bf16.msra.mxu0 %v7411
        %10811 = vmatprep.subr.bf16.mxu0 %v7420
        %10812 = vmatpush1.bf16.msra.mxu0 %v7419
        %10813 = vmatprep.subr.bf16.mxu0 %v7428
        %10814 = vmatpush1.bf16.msra.mxu0 %v7427
        %10815 = vmatprep.subr.bf16.mxu0 %v7436
        %10816 = vmatpush1.bf16.msra.mxu0 %v7435
        %10817 = vmatprep.mubr.bf16.mxu0 %v1991
        %10818 = vmatmul.mubr.bf16.gmra.mrb[0].mxu0 %v1989
        %v10819 = vpop.f32.mrb[0].mxu0
        %v10820 = vadd.f32 %v10779, %v10819
        %v10821 = vpop.f32.mrb[0].mxu0
        %v10822 = vadd.f32 %v10781, %v10821
        %v10823 = vpop.f32.mrb[0].mxu0
        %v10824 = vpop.f32.mrb[0].mxu0
        %10825 = vdwg.mxu0
        %10826 = vmatprep.subr.bf16.mxu0 %v7444
        %10827 = vmatpush1.bf16.msra.mxu0 %v7443
        %10828 = vmatprep.subr.bf16.mxu0 %v7452
        %10829 = vmatpush1.bf16.msra.mxu0 %v7451
        %10830 = vmatprep.subr.bf16.mxu0 %v7460
        %10831 = vmatpush1.bf16.msra.mxu0 %v7459
        %10832 = vmatprep.subr.bf16.mxu0 %v7468
        %10833 = vmatpush1.bf16.msra.mxu0 %v7467
        %10834 = vmatprep.subr.bf16.mxu0 %v7476
        %10835 = vmatpush1.bf16.msra.mxu0 %v7475
        %10836 = vmatprep.subr.bf16.mxu0 %v7484
        %10837 = vmatpush1.bf16.msra.mxu0 %v7483
        %10838 = vmatprep.subr.bf16.mxu0 %v7492
        %10839 = vmatpush1.bf16.msra.mxu0 %v7491
        %10840 = vmatprep.subr.bf16.mxu0 %v7500
        %10841 = vmatpush1.bf16.msra.mxu0 %v7499
        %10842 = vmatprep.subr.bf16.mxu0 %v7508
        %10843 = vmatpush1.bf16.msra.mxu0 %v7507
        %10844 = vmatprep.subr.bf16.mxu0 %v7516
        %10845 = vmatpush1.bf16.msra.mxu0 %v7515
        %10846 = vmatprep.subr.bf16.mxu0 %v7524
        %10847 = vmatpush1.bf16.msra.mxu0 %v7523
        %10848 = vmatprep.subr.bf16.mxu0 %v7532
        %10849 = vmatpush1.bf16.msra.mxu0 %v7531
        %10850 = vmatprep.subr.bf16.mxu0 %v7540
        %10851 = vmatpush1.bf16.msra.mxu0 %v7539
        %10852 = vmatprep.subr.bf16.mxu0 %v7548
        %10853 = vmatpush1.bf16.msra.mxu0 %v7547
        %10854 = vmatprep.subr.bf16.mxu0 %v7556
        %10855 = vmatpush1.bf16.msra.mxu0 %v7555
        %10856 = vmatprep.subr.bf16.mxu0 %v7564
        %10857 = vmatpush1.bf16.msra.mxu0 %v7563
        %10858 = vmatprep.mubr.bf16.mxu0 %v2029
        %10859 = vmatmul.mubr.bf16.gmra.mrb[0].mxu0 %v2015
        %v10860 = vpop.f32.mrb[0].mxu0
        %v10861 = vadd.f32 %v10820, %v10860
        %v10862 = vpop.f32.mrb[0].mxu0
        %v10863 = vadd.f32 %v10822, %v10862
        %v10864 = vpop.f32.mrb[0].mxu0
        %v10865 = vpop.f32.mrb[0].mxu0
        %10866 = vdwg.mxu0
        %10867 = vmatprep.subr.bf16.mxu0 %v7572
        %10868 = vmatpush1.bf16.msra.mxu0 %v7571
        %10869 = vmatprep.subr.bf16.mxu0 %v7580
        %10870 = vmatpush1.bf16.msra.mxu0 %v7579
        %10871 = vmatprep.subr.bf16.mxu0 %v7588
        %10872 = vmatpush1.bf16.msra.mxu0 %v7587
        %10873 = vmatprep.subr.bf16.mxu0 %v7596
        %10874 = vmatpush1.bf16.msra.mxu0 %v7595
        %10875 = vmatprep.subr.bf16.mxu0 %v7604
        %10876 = vmatpush1.bf16.msra.mxu0 %v7603
        %10877 = vmatprep.subr.bf16.mxu0 %v7612
        %10878 = vmatpush1.bf16.msra.mxu0 %v7611
        %10879 = vmatprep.subr.bf16.mxu0 %v7620
        %10880 = vmatpush1.bf16.msra.mxu0 %v7619
        %10881 = vmatprep.subr.bf16.mxu0 %v7628
        %10882 = vmatpush1.bf16.msra.mxu0 %v7627
        %10883 = vmatprep.subr.bf16.mxu0 %v7636
        %10884 = vmatpush1.bf16.msra.mxu0 %v7635
        %10885 = vmatprep.subr.bf16.mxu0 %v7644
        %10886 = vmatpush1.bf16.msra.mxu0 %v7643
        %10887 = vmatprep.subr.bf16.mxu0 %v7652
        %10888 = vmatpush1.bf16.msra.mxu0 %v7651
        %10889 = vmatprep.subr.bf16.mxu0 %v7660
        %10890 = vmatpush1.bf16.msra.mxu0 %v7659
        %10891 = vmatprep.subr.bf16.mxu0 %v7668
        %10892 = vmatpush1.bf16.msra.mxu0 %v7667
        %10893 = vmatprep.subr.bf16.mxu0 %v7676
        %10894 = vmatpush1.bf16.msra.mxu0 %v7675
        %10895 = vmatprep.subr.bf16.mxu0 %v7684
        %10896 = vmatpush1.bf16.msra.mxu0 %v7683
        %10897 = vmatprep.subr.bf16.mxu0 %v7692
        %10898 = vmatpush1.bf16.msra.mxu0 %v7691
        %10899 = vmatprep.mubr.bf16.mxu0 %v2039
        %10900 = vmatmul.mubr.bf16.gmra.mrb[0].mxu0 %v2037
        %v10901 = vpop.f32.mrb[0].mxu0
        %v10902 = vadd.f32 %v10861, %v10901
        %v10903 = vpop.f32.mrb[0].mxu0
        %v10904 = vadd.f32 %v10863, %v10903
        %v10905 = vpop.f32.mrb[0].mxu0
        %v10906 = vpop.f32.mrb[0].mxu0
        %10907 = vdwg.mxu0
        %10908 = vmatprep.subr.bf16.mxu0 %v7700
        %10909 = vmatpush1.bf16.msra.mxu0 %v7699
        %10910 = vmatprep.subr.bf16.mxu0 %v7708
        %10911 = vmatpush1.bf16.msra.mxu0 %v7707
        %10912 = vmatprep.subr.bf16.mxu0 %v7716
        %10913 = vmatpush1.bf16.msra.mxu0 %v7715
        %10914 = vmatprep.subr.bf16.mxu0 %v7724
        %10915 = vmatpush1.bf16.msra.mxu0 %v7723
        %10916 = vmatprep.subr.bf16.mxu0 %v7732
        %10917 = vmatpush1.bf16.msra.mxu0 %v7731
        %10918 = vmatprep.subr.bf16.mxu0 %v7740
        %10919 = vmatpush1.bf16.msra.mxu0 %v7739
        %10920 = vmatprep.subr.bf16.mxu0 %v7748
        %10921 = vmatpush1.bf16.msra.mxu0 %v7747
        %10922 = vmatprep.subr.bf16.mxu0 %v7756
        %10923 = vmatpush1.bf16.msra.mxu0 %v7755
        %10924 = vmatprep.subr.bf16.mxu0 %v7764
        %10925 = vmatpush1.bf16.msra.mxu0 %v7763
        %10926 = vmatprep.subr.bf16.mxu0 %v7772
        %10927 = vmatpush1.bf16.msra.mxu0 %v7771
        %10928 = vmatprep.subr.bf16.mxu0 %v7780
        %10929 = vmatpush1.bf16.msra.mxu0 %v7779
        %10930 = vmatprep.subr.bf16.mxu0 %v7788
        %10931 = vmatpush1.bf16.msra.mxu0 %v7787
        %10932 = vmatprep.subr.bf16.mxu0 %v7796
        %10933 = vmatpush1.bf16.msra.mxu0 %v7795
        %10934 = vmatprep.subr.bf16.mxu0 %v7804
        %10935 = vmatpush1.bf16.msra.mxu0 %v7803
        %10936 = vmatprep.subr.bf16.mxu0 %v7812
        %10937 = vmatpush1.bf16.msra.mxu0 %v7811
        %10938 = vmatprep.subr.bf16.mxu0 %v7820
        %10939 = vmatpush1.bf16.msra.mxu0 %v7819
        %10940 = vmatprep.mubr.bf16.mxu0 %v2036
        %10941 = vmatmul.mubr.bf16.gmra.mrb[0].mxu0 %v2022
        %v10942 = vpop.f32.mrb[0].mxu0
        %v10943 = vadd.f32 %v10902, %v10942
        %v10944 = vpop.f32.mrb[0].mxu0
        %v10945 = vadd.f32 %v10904, %v10944
        %v10946 = vpop.f32.mrb[0].mxu0
        %v10947 = vpop.f32.mrb[0].mxu0
        %10948 = vdwg.mxu0
        %10949 = vmatprep.subr.bf16.mxu0 %v7828
        %10950 = vmatpush1.bf16.msra.mxu0 %v7827
        %10951 = vmatprep.subr.bf16.mxu0 %v7836
        %10952 = vmatpush1.bf16.msra.mxu0 %v7835
        %10953 = vmatprep.subr.bf16.mxu0 %v7844
        %10954 = vmatpush1.bf16.msra.mxu0 %v7843
        %10955 = vmatprep.subr.bf16.mxu0 %v7852
        %10956 = vmatpush1.bf16.msra.mxu0 %v7851
        %10957 = vmatprep.subr.bf16.mxu0 %v7860
        %10958 = vmatpush1.bf16.msra.mxu0 %v7859
        %10959 = vmatprep.subr.bf16.mxu0 %v7868
        %10960 = vmatpush1.bf16.msra.mxu0 %v7867
        %10961 = vmatprep.subr.bf16.mxu0 %v7876
        %10962 = vmatpush1.bf16.msra.mxu0 %v7875
        %10963 = vmatprep.subr.bf16.mxu0 %v7884
        %10964 = vmatpush1.bf16.msra.mxu0 %v7883
        %10965 = vmatprep.subr.bf16.mxu0 %v7892
        %10966 = vmatpush1.bf16.msra.mxu0 %v7891
        %10967 = vmatprep.subr.bf16.mxu0 %v7900
        %10968 = vmatpush1.bf16.msra.mxu0 %v7899
        %10969 = vmatprep.subr.bf16.mxu0 %v7908
        %10970 = vmatpush1.bf16.msra.mxu0 %v7907
        %10971 = vmatprep.subr.bf16.mxu0 %v7916
        %10972 = vmatpush1.bf16.msra.mxu0 %v7915
        %10973 = vmatprep.subr.bf16.mxu0 %v7924
        %10974 = vmatpush1.bf16.msra.mxu0 %v7923
        %10975 = vmatprep.subr.bf16.mxu0 %v7932
        %10976 = vmatpush1.bf16.msra.mxu0 %v7931
        %10977 = vmatprep.subr.bf16.mxu0 %v7940
        %10978 = vmatpush1.bf16.msra.mxu0 %v7939
        %10979 = vmatprep.subr.bf16.mxu0 %v7948
        %10980 = vmatpush1.bf16.msra.mxu0 %v7947
        %10981 = vmatprep.mubr.bf16.mxu0 %v2040
        %10982 = vmatmul.mubr.bf16.gmra.mrb[0].mxu0 %v2038
        %v10983 = vpop.f32.mrb[0].mxu0
        %v10984 = vadd.f32 %v10943, %v10983
        %v10985 = vpop.f32.mrb[0].mxu0
        %v10986 = vadd.f32 %v10945, %v10985
        %v10987 = vpop.f32.mrb[0].mxu0
        %v10988 = vpop.f32.mrb[0].mxu0
        %10989 = vdwg.mxu0
        %10990 = vmatprep.subr.bf16.mxu0 %v7956
        %10991 = vmatpush1.bf16.msra.mxu0 %v7955
        %10992 = vmatprep.subr.bf16.mxu0 %v7964
        %10993 = vmatpush1.bf16.msra.mxu0 %v7963
        %10994 = vmatprep.subr.bf16.mxu0 %v7972
        %10995 = vmatpush1.bf16.msra.mxu0 %v7971
        %10996 = vmatprep.subr.bf16.mxu0 %v7980
        %10997 = vmatpush1.bf16.msra.mxu0 %v7979
        %10998 = vmatprep.subr.bf16.mxu0 %v7988
        %10999 = vmatpush1.bf16.msra.mxu0 %v7987
        %11000 = vmatprep.subr.bf16.mxu0 %v7996
        %11001 = vmatpush1.bf16.msra.mxu0 %v7995
        %11002 = vmatprep.subr.bf16.mxu0 %v8004
        %11003 = vmatpush1.bf16.msra.mxu0 %v8003
        %11004 = vmatprep.subr.bf16.mxu0 %v8012
        %11005 = vmatpush1.bf16.msra.mxu0 %v8011
        %11006 = vmatprep.subr.bf16.mxu0 %v8020
        %11007 = vmatpush1.bf16.msra.mxu0 %v8019
        %11008 = vmatprep.subr.bf16.mxu0 %v8028
        %11009 = vmatpush1.bf16.msra.mxu0 %v8027
        %11010 = vmatprep.subr.bf16.mxu0 %v8036
        %11011 = vmatpush1.bf16.msra.mxu0 %v8035
        %11012 = vmatprep.subr.bf16.mxu0 %v8044
        %11013 = vmatpush1.bf16.msra.mxu0 %v8043
        %11014 = vmatprep.subr.bf16.mxu0 %v8052
        %11015 = vmatpush1.bf16.msra.mxu0 %v8051
        %11016 = vmatprep.subr.bf16.mxu0 %v8060
        %11017 = vmatpush1.bf16.msra.mxu0 %v8059
        %11018 = vmatprep.subr.bf16.mxu0 %v8068
        %11019 = vmatpush1.bf16.msra.mxu0 %v8067
        %11020 = vmatprep.subr.bf16.mxu0 %v8076
        %11021 = vmatpush1.bf16.msra.mxu0 %v8075
        %11022 = vmatprep.mubr.bf16.mxu0 %v2078
        %11023 = vmatmul.mubr.bf16.gmra.mrb[0].mxu0 %v2064
        %v11024 = vpop.f32.mrb[0].mxu0
        %v11025 = vadd.f32 %v10984, %v11024
        %v11026 = vpop.f32.mrb[0].mxu0
        %v11027 = vadd.f32 %v10986, %v11026
        %v11028 = vpop.f32.mrb[0].mxu0
        %v11029 = vpop.f32.mrb[0].mxu0
        %11030 = vdwg.mxu0
        %11031 = vmatprep.subr.bf16.mxu0 %v8084
        %11032 = vmatpush1.bf16.msra.mxu0 %v8083
        %11033 = vmatprep.subr.bf16.mxu0 %v8092
        %11034 = vmatpush1.bf16.msra.mxu0 %v8091
        %11035 = vmatprep.subr.bf16.mxu0 %v8100
        %11036 = vmatpush1.bf16.msra.mxu0 %v8099
        %11037 = vmatprep.subr.bf16.mxu0 %v8108
        %11038 = vmatpush1.bf16.msra.mxu0 %v8107
        %11039 = vmatprep.subr.bf16.mxu0 %v8116
        %11040 = vmatpush1.bf16.msra.mxu0 %v8115
        %11041 = vmatprep.subr.bf16.mxu0 %v8124
        %11042 = vmatpush1.bf16.msra.mxu0 %v8123
        %11043 = vmatprep.subr.bf16.mxu0 %v8132
        %11044 = vmatpush1.bf16.msra.mxu0 %v8131
        %11045 = vmatprep.subr.bf16.mxu0 %v8140
        %11046 = vmatpush1.bf16.msra.mxu0 %v8139
        %11047 = vmatprep.subr.bf16.mxu0 %v8148
        %11048 = vmatpush1.bf16.msra.mxu0 %v8147
        %11049 = vmatprep.subr.bf16.mxu0 %v8156
        %11050 = vmatpush1.bf16.msra.mxu0 %v8155
        %11051 = vmatprep.subr.bf16.mxu0 %v8164
        %11052 = vmatpush1.bf16.msra.mxu0 %v8163
        %11053 = vmatprep.subr.bf16.mxu0 %v8172
        %11054 = vmatpush1.bf16.msra.mxu0 %v8171
        %11055 = vmatprep.subr.bf16.mxu0 %v8180
        %11056 = vmatpush1.bf16.msra.mxu0 %v8179
        %11057 = vmatprep.subr.bf16.mxu0 %v8188
        %11058 = vmatpush1.bf16.msra.mxu0 %v8187
        %11059 = vmatprep.subr.bf16.mxu0 %v8196
        %11060 = vmatpush1.bf16.msra.mxu0 %v8195
        %11061 = vmatprep.subr.bf16.mxu0 %v8204
        %11062 = vmatpush1.bf16.msra.mxu0 %v8203
        %11063 = vmatprep.mubr.bf16.mxu0 %v2088
        %11064 = vmatmul.mubr.bf16.gmra.mrb[0].mxu0 %v2086
        %v11065 = vpop.f32.mrb[0].mxu0
        %v11066 = vadd.f32 %v11025, %v11065
        %v11067 = vpop.f32.mrb[0].mxu0
        %v11068 = vadd.f32 %v11027, %v11067
        %v11069 = vpop.f32.mrb[0].mxu0
        %v11070 = vpop.f32.mrb[0].mxu0
        %11071 = vdwg.mxu0
        %11072 = vmatprep.subr.bf16.mxu0 %v8212
        %11073 = vmatpush1.bf16.msra.mxu0 %v8211
        %11074 = vmatprep.subr.bf16.mxu0 %v8220
        %11075 = vmatpush1.bf16.msra.mxu0 %v8219
        %11076 = vmatprep.subr.bf16.mxu0 %v8228
        %11077 = vmatpush1.bf16.msra.mxu0 %v8227
        %11078 = vmatprep.subr.bf16.mxu0 %v8236
        %11079 = vmatpush1.bf16.msra.mxu0 %v8235
        %11080 = vmatprep.subr.bf16.mxu0 %v8244
        %11081 = vmatpush1.bf16.msra.mxu0 %v8243
        %11082 = vmatprep.subr.bf16.mxu0 %v8252
        %11083 = vmatpush1.bf16.msra.mxu0 %v8251
        %11084 = vmatprep.subr.bf16.mxu0 %v8260
        %11085 = vmatpush1.bf16.msra.mxu0 %v8259
        %11086 = vmatprep.subr.bf16.mxu0 %v8268
        %11087 = vmatpush1.bf16.msra.mxu0 %v8267
        %11088 = vmatprep.subr.bf16.mxu0 %v8276
        %11089 = vmatpush1.bf16.msra.mxu0 %v8275
        %11090 = vmatprep.subr.bf16.mxu0 %v8284
        %11091 = vmatpush1.bf16.msra.mxu0 %v8283
        %11092 = vmatprep.subr.bf16.mxu0 %v8292
        %11093 = vmatpush1.bf16.msra.mxu0 %v8291
        %11094 = vmatprep.subr.bf16.mxu0 %v8300
        %11095 = vmatpush1.bf16.msra.mxu0 %v8299
        %11096 = vmatprep.subr.bf16.mxu0 %v8308
        %11097 = vmatpush1.bf16.msra.mxu0 %v8307
        %11098 = vmatprep.subr.bf16.mxu0 %v8316
        %11099 = vmatpush1.bf16.msra.mxu0 %v8315
        %11100 = vmatprep.subr.bf16.mxu0 %v8324
        %11101 = vmatpush1.bf16.msra.mxu0 %v8323
        %11102 = vmatprep.subr.bf16.mxu0 %v8332
        %11103 = vmatpush1.bf16.msra.mxu0 %v8331
        %11104 = vmatprep.mubr.bf16.mxu0 %v2085
        %11105 = vmatmul.mubr.bf16.gmra.mrb[0].mxu0 %v2071
        %v11106 = vpop.f32.mrb[0].mxu0
        %v11107 = vadd.f32 %v11066, %v11106
        %v11108 = vpop.f32.mrb[0].mxu0
        %v11109 = vadd.f32 %v11068, %v11108
        %v11110 = vpop.f32.mrb[0].mxu0
        %v11111 = vpop.f32.mrb[0].mxu0
        %11112 = vdwg.mxu0
        %11113 = vmatprep.subr.bf16.mxu0 %v8340
        %11114 = vmatpush1.bf16.msra.mxu0 %v8339
        %11115 = vmatprep.subr.bf16.mxu0 %v8348
        %11116 = vmatpush1.bf16.msra.mxu0 %v8347
        %11117 = vmatprep.subr.bf16.mxu0 %v8356
        %11118 = vmatpush1.bf16.msra.mxu0 %v8355
        %11119 = vmatprep.subr.bf16.mxu0 %v8364
        %11120 = vmatpush1.bf16.msra.mxu0 %v8363
        %11121 = vmatprep.subr.bf16.mxu0 %v8372
        %11122 = vmatpush1.bf16.msra.mxu0 %v8371
        %11123 = vmatprep.subr.bf16.mxu0 %v8380
        %11124 = vmatpush1.bf16.msra.mxu0 %v8379
        %11125 = vmatprep.subr.bf16.mxu0 %v8388
        %11126 = vmatpush1.bf16.msra.mxu0 %v8387
        %11127 = vmatprep.subr.bf16.mxu0 %v8396
        %11128 = vmatpush1.bf16.msra.mxu0 %v8395
        %11129 = vmatprep.subr.bf16.mxu0 %v8404
        %11130 = vmatpush1.bf16.msra.mxu0 %v8403
        %11131 = vmatprep.subr.bf16.mxu0 %v8412
        %11132 = vmatpush1.bf16.msra.mxu0 %v8411
        %11133 = vmatprep.subr.bf16.mxu0 %v8420
        %11134 = vmatpush1.bf16.msra.mxu0 %v8419
        %11135 = vmatprep.subr.bf16.mxu0 %v8428
        %11136 = vmatpush1.bf16.msra.mxu0 %v8427
        %11137 = vmatprep.subr.bf16.mxu0 %v8436
        %11138 = vmatpush1.bf16.msra.mxu0 %v8435
        %11139 = vmatprep.subr.bf16.mxu0 %v8444
        %11140 = vmatpush1.bf16.msra.mxu0 %v8443
        %11141 = vmatprep.subr.bf16.mxu0 %v8452
        %11142 = vmatpush1.bf16.msra.mxu0 %v8451
        %11143 = vmatprep.subr.bf16.mxu0 %v8460
        %11144 = vmatpush1.bf16.msra.mxu0 %v8459
        %11145 = vmatprep.mubr.bf16.mxu0 %v2089
        %11146 = vmatmul.mubr.bf16.gmra.mrb[0].mxu0 %v2087
        %v11147 = vpop.f32.mrb[0].mxu0
        %v11148 = vadd.f32 %v11107, %v11147
        %v11149 = vpop.f32.mrb[0].mxu0
        %v11150 = vadd.f32 %v11109, %v11149
        %v11151 = vpop.f32.mrb[0].mxu0
        %v11152 = vpop.f32.mrb[0].mxu0
        %11153 = vdwg.mxu0
        %11154 = vmatprep.subr.bf16.mxu0 %v8468
        %11155 = vmatpush1.bf16.msra.mxu0 %v8467
        %11156 = vmatprep.subr.bf16.mxu0 %v8476
        %11157 = vmatpush1.bf16.msra.mxu0 %v8475
        %11158 = vmatprep.subr.bf16.mxu0 %v8484
        %11159 = vmatpush1.bf16.msra.mxu0 %v8483
        %11160 = vmatprep.subr.bf16.mxu0 %v8492
        %11161 = vmatpush1.bf16.msra.mxu0 %v8491
        %11162 = vmatprep.subr.bf16.mxu0 %v8500
        %11163 = vmatpush1.bf16.msra.mxu0 %v8499
        %11164 = vmatprep.subr.bf16.mxu0 %v8508
        %11165 = vmatpush1.bf16.msra.mxu0 %v8507
        %11166 = vmatprep.subr.bf16.mxu0 %v8516
        %11167 = vmatpush1.bf16.msra.mxu0 %v8515
        %11168 = vmatprep.subr.bf16.mxu0 %v8524
        %11169 = vmatpush1.bf16.msra.mxu0 %v8523
        %11170 = vmatprep.subr.bf16.mxu0 0
        %11171 = vmatpush1.bf16.msra.mxu0 0
        %11172 = vmatprep.subr.bf16.mxu0 0
        %11173 = vmatpush1.bf16.msra.mxu0 0
        %11174 = vmatprep.subr.bf16.mxu0 0
        %11175 = vmatpush1.bf16.msra.mxu0 0
        %11176 = vmatprep.subr.bf16.mxu0 0
        %11177 = vmatpush1.bf16.msra.mxu0 0
        %11178 = vmatprep.subr.bf16.mxu0 0
        %11179 = vmatpush1.bf16.msra.mxu0 0
        %11180 = vmatprep.subr.bf16.mxu0 0
        %11181 = vmatpush1.bf16.msra.mxu0 0
        %11182 = vmatprep.subr.bf16.mxu0 0
        %11183 = vmatpush1.bf16.msra.mxu0 0
        %11184 = vmatprep.subr.bf16.mxu0 0
        %11185 = vmatpush1.bf16.msra.mxu0 0
        %11186 = vmatprep.mubr.bf16.mxu0 0
        %11187 = vmatmul.mubr.bf16.gmra.mrb[0].mxu0 %v2103
        %v11188 = vpop.f32.mrb[0].mxu0
        %v11189 = vadd.f32 %v11148, %v11188
        %v11190 = vpop.f32.mrb[0].mxu0
        %v11191 = vadd.f32 %v11150, %v11190
        %v11192 = vpop.f32.mrb[0].mxu0
        %v11193 = vpop.f32.mrb[0].mxu0
        %11194 = vdwg.mxu0
        %11195 = vmatprep.subr.bf16.mxu0 %v6934
        %11196 = vmatpush1.bf16.msra.mxu0 %v6933
        %11197 = vmatprep.subr.bf16.mxu0 %v6942
        %11198 = vmatpush1.bf16.msra.mxu0 %v6941
        %11199 = vmatprep.subr.bf16.mxu0 %v6950
        %11200 = vmatpush1.bf16.msra.mxu0 %v6949
        %11201 = vmatprep.subr.bf16.mxu0 %v6958
        %11202 = vmatpush1.bf16.msra.mxu0 %v6957
        %11203 = vmatprep.subr.bf16.mxu0 %v6966
        %11204 = vmatpush1.bf16.msra.mxu0 %v6965
        %11205 = vmatprep.subr.bf16.mxu0 %v6974
        %11206 = vmatpush1.bf16.msra.mxu0 %v6973
        %11207 = vmatprep.subr.bf16.mxu0 %v6982
        %11208 = vmatpush1.bf16.msra.mxu0 %v6981
        %11209 = vmatprep.subr.bf16.mxu0 %v6990
        %11210 = vmatpush1.bf16.msra.mxu0 %v6989
        %11211 = vmatprep.subr.bf16.mxu0 %v6998
        %11212 = vmatpush1.bf16.msra.mxu0 %v6997
        %11213 = vmatprep.subr.bf16.mxu0 %v7006
        %11214 = vmatpush1.bf16.msra.mxu0 %v7005
        %11215 = vmatprep.subr.bf16.mxu0 %v7014
        %11216 = vmatpush1.bf16.msra.mxu0 %v7013
        %11217 = vmatprep.subr.bf16.mxu0 %v7022
        %11218 = vmatpush1.bf16.msra.mxu0 %v7021
        %11219 = vmatprep.subr.bf16.mxu0 %v7030
        %11220 = vmatpush1.bf16.msra.mxu0 %v7029
        %11221 = vmatprep.subr.bf16.mxu0 %v7038
        %11222 = vmatpush1.bf16.msra.mxu0 %v7037
        %11223 = vmatprep.subr.bf16.mxu0 %v7046
        %11224 = vmatpush1.bf16.msra.mxu0 %v7045
        %11225 = vmatprep.subr.bf16.mxu0 %v7054
        %11226 = vmatpush1.bf16.msra.mxu0 %v7053
        %11227 = vmatprep.mubr.bf16.mxu0 %v1980
        %11228 = vmatmul.mubr.bf16.gmra.mrb[0].mxu0 %v1966
        %v11229 = vpop.f32.mrb[0].mxu0
        %v11230 = vadd.f32 %v1918, %v11229
        %v11231 = vpop.f32.mrb[0].mxu0
        %v11232 = vadd.f32 %v1922, %v11231
        %v11233 = vpop.f32.mrb[0].mxu0
        %v11234 = vpop.f32.mrb[0].mxu0
        %11235 = vdwg.mxu0
        %11236 = vmatprep.subr.bf16.mxu0 %v7062
        %11237 = vmatpush1.bf16.msra.mxu0 %v7061
        %11238 = vmatprep.subr.bf16.mxu0 %v7070
        %11239 = vmatpush1.bf16.msra.mxu0 %v7069
        %11240 = vmatprep.subr.bf16.mxu0 %v7078
        %11241 = vmatpush1.bf16.msra.mxu0 %v7077
        %11242 = vmatprep.subr.bf16.mxu0 %v7086
        %11243 = vmatpush1.bf16.msra.mxu0 %v7085
        %11244 = vmatprep.subr.bf16.mxu0 %v7094
        %11245 = vmatpush1.bf16.msra.mxu0 %v7093
        %11246 = vmatprep.subr.bf16.mxu0 %v7102
        %11247 = vmatpush1.bf16.msra.mxu0 %v7101
        %11248 = vmatprep.subr.bf16.mxu0 %v7110
        %11249 = vmatpush1.bf16.msra.mxu0 %v7109
        %11250 = vmatprep.subr.bf16.mxu0 %v7118
        %11251 = vmatpush1.bf16.msra.mxu0 %v7117
        %11252 = vmatprep.subr.bf16.mxu0 %v7126
        %11253 = vmatpush1.bf16.msra.mxu0 %v7125
        %11254 = vmatprep.subr.bf16.mxu0 %v7134
        %11255 = vmatpush1.bf16.msra.mxu0 %v7133
        %11256 = vmatprep.subr.bf16.mxu0 %v7142
        %11257 = vmatpush1.bf16.msra.mxu0 %v7141
        %11258 = vmatprep.subr.bf16.mxu0 %v7150
        %11259 = vmatpush1.bf16.msra.mxu0 %v7149
        %11260 = vmatprep.subr.bf16.mxu0 %v7158
        %11261 = vmatpush1.bf16.msra.mxu0 %v7157
        %11262 = vmatprep.subr.bf16.mxu0 %v7166
        %11263 = vmatpush1.bf16.msra.mxu0 %v7165
        %11264 = vmatprep.subr.bf16.mxu0 %v7174
        %11265 = vmatpush1.bf16.msra.mxu0 %v7173
        %11266 = vmatprep.subr.bf16.mxu0 %v7182
        %11267 = vmatpush1.bf16.msra.mxu0 %v7181
        %11268 = vmatprep.mubr.bf16.mxu0 %v1990
        %11269 = vmatmul.mubr.bf16.gmra.mrb[0].mxu0 %v1988
        %v11270 = vpop.f32.mrb[0].mxu0
        %v11271 = vadd.f32 %v11230, %v11270
        %v11272 = vpop.f32.mrb[0].mxu0
        %v11273 = vadd.f32 %v11232, %v11272
        %v11274 = vpop.f32.mrb[0].mxu0
        %v11275 = vpop.f32.mrb[0].mxu0
        %11276 = vdwg.mxu0
        %11277 = vmatprep.subr.bf16.mxu0 %v7190
        %11278 = vmatpush1.bf16.msra.mxu0 %v7189
        %11279 = vmatprep.subr.bf16.mxu0 %v7198
        %11280 = vmatpush1.bf16.msra.mxu0 %v7197
        %11281 = vmatprep.subr.bf16.mxu0 %v7206
        %11282 = vmatpush1.bf16.msra.mxu0 %v7205
        %11283 = vmatprep.subr.bf16.mxu0 %v7214
        %11284 = vmatpush1.bf16.msra.mxu0 %v7213
        %11285 = vmatprep.subr.bf16.mxu0 %v7222
        %11286 = vmatpush1.bf16.msra.mxu0 %v7221
        %11287 = vmatprep.subr.bf16.mxu0 %v7230
        %11288 = vmatpush1.bf16.msra.mxu0 %v7229
        %11289 = vmatprep.subr.bf16.mxu0 %v7238
        %11290 = vmatpush1.bf16.msra.mxu0 %v7237
        %11291 = vmatprep.subr.bf16.mxu0 %v7246
        %11292 = vmatpush1.bf16.msra.mxu0 %v7245
        %11293 = vmatprep.subr.bf16.mxu0 %v7254
        %11294 = vmatpush1.bf16.msra.mxu0 %v7253
        %11295 = vmatprep.subr.bf16.mxu0 %v7262
        %11296 = vmatpush1.bf16.msra.mxu0 %v7261
        %11297 = vmatprep.subr.bf16.mxu0 %v7270
        %11298 = vmatpush1.bf16.msra.mxu0 %v7269
        %11299 = vmatprep.subr.bf16.mxu0 %v7278
        %11300 = vmatpush1.bf16.msra.mxu0 %v7277
        %11301 = vmatprep.subr.bf16.mxu0 %v7286
        %11302 = vmatpush1.bf16.msra.mxu0 %v7285
        %11303 = vmatprep.subr.bf16.mxu0 %v7294
        %11304 = vmatpush1.bf16.msra.mxu0 %v7293
        %11305 = vmatprep.subr.bf16.mxu0 %v7302
        %11306 = vmatpush1.bf16.msra.mxu0 %v7301
        %11307 = vmatprep.subr.bf16.mxu0 %v7310
        %11308 = vmatpush1.bf16.msra.mxu0 %v7309
        %11309 = vmatprep.mubr.bf16.mxu0 %v1987
        %11310 = vmatmul.mubr.bf16.gmra.mrb[0].mxu0 %v1973
        %v11311 = vpop.f32.mrb[0].mxu0
        %v11312 = vadd.f32 %v11271, %v11311
        %v11313 = vpop.f32.mrb[0].mxu0
        %v11314 = vadd.f32 %v11273, %v11313
        %v11315 = vpop.f32.mrb[0].mxu0
        %v11316 = vpop.f32.mrb[0].mxu0
        %11317 = vdwg.mxu0
        %11318 = vmatprep.subr.bf16.mxu0 %v7318
        %11319 = vmatpush1.bf16.msra.mxu0 %v7317
        %11320 = vmatprep.subr.bf16.mxu0 %v7326
        %11321 = vmatpush1.bf16.msra.mxu0 %v7325
        %11322 = vmatprep.subr.bf16.mxu0 %v7334
        %11323 = vmatpush1.bf16.msra.mxu0 %v7333
        %11324 = vmatprep.subr.bf16.mxu0 %v7342
        %11325 = vmatpush1.bf16.msra.mxu0 %v7341
        %11326 = vmatprep.subr.bf16.mxu0 %v7350
        %11327 = vmatpush1.bf16.msra.mxu0 %v7349
        %11328 = vmatprep.subr.bf16.mxu0 %v7358
        %11329 = vmatpush1.bf16.msra.mxu0 %v7357
        %11330 = vmatprep.subr.bf16.mxu0 %v7366
        %11331 = vmatpush1.bf16.msra.mxu0 %v7365
        %11332 = vmatprep.subr.bf16.mxu0 %v7374
        %11333 = vmatpush1.bf16.msra.mxu0 %v7373
        %11334 = vmatprep.subr.bf16.mxu0 %v7382
        %11335 = vmatpush1.bf16.msra.mxu0 %v7381
        %11336 = vmatprep.subr.bf16.mxu0 %v7390
        %11337 = vmatpush1.bf16.msra.mxu0 %v7389
        %11338 = vmatprep.subr.bf16.mxu0 %v7398
        %11339 = vmatpush1.bf16.msra.mxu0 %v7397
        %11340 = vmatprep.subr.bf16.mxu0 %v7406
        %11341 = vmatpush1.bf16.msra.mxu0 %v7405
        %11342 = vmatprep.subr.bf16.mxu0 %v7414
        %11343 = vmatpush1.bf16.msra.mxu0 %v7413
        %11344 = vmatprep.subr.bf16.mxu0 %v7422
        %11345 = vmatpush1.bf16.msra.mxu0 %v7421
        %11346 = vmatprep.subr.bf16.mxu0 %v7430
        %11347 = vmatpush1.bf16.msra.mxu0 %v7429
        %11348 = vmatprep.subr.bf16.mxu0 %v7438
        %11349 = vmatpush1.bf16.msra.mxu0 %v7437
        %11350 = vmatprep.mubr.bf16.mxu0 %v1991
        %11351 = vmatmul.mubr.bf16.gmra.mrb[0].mxu0 %v1989
        %v11352 = vpop.f32.mrb[0].mxu0
        %v11353 = vadd.f32 %v11312, %v11352
        %v11354 = vpop.f32.mrb[0].mxu0
        %v11355 = vadd.f32 %v11314, %v11354
        %v11356 = vpop.f32.mrb[0].mxu0
        %v11357 = vpop.f32.mrb[0].mxu0
        %11358 = vdwg.mxu0
        %11359 = vmatprep.subr.bf16.mxu0 %v7446
        %11360 = vmatpush1.bf16.msra.mxu0 %v7445
        %11361 = vmatprep.subr.bf16.mxu0 %v7454
        %11362 = vmatpush1.bf16.msra.mxu0 %v7453
        %11363 = vmatprep.subr.bf16.mxu0 %v7462
        %11364 = vmatpush1.bf16.msra.mxu0 %v7461
        %11365 = vmatprep.subr.bf16.mxu0 %v7470
        %11366 = vmatpush1.bf16.msra.mxu0 %v7469
        %11367 = vmatprep.subr.bf16.mxu0 %v7478
        %11368 = vmatpush1.bf16.msra.mxu0 %v7477
        %11369 = vmatprep.subr.bf16.mxu0 %v7486
        %11370 = vmatpush1.bf16.msra.mxu0 %v7485
        %11371 = vmatprep.subr.bf16.mxu0 %v7494
        %11372 = vmatpush1.bf16.msra.mxu0 %v7493
        %11373 = vmatprep.subr.bf16.mxu0 %v7502
        %11374 = vmatpush1.bf16.msra.mxu0 %v7501
        %11375 = vmatprep.subr.bf16.mxu0 %v7510
        %11376 = vmatpush1.bf16.msra.mxu0 %v7509
        %11377 = vmatprep.subr.bf16.mxu0 %v7518
        %11378 = vmatpush1.bf16.msra.mxu0 %v7517
        %11379 = vmatprep.subr.bf16.mxu0 %v7526
        %11380 = vmatpush1.bf16.msra.mxu0 %v7525
        %11381 = vmatprep.subr.bf16.mxu0 %v7534
        %11382 = vmatpush1.bf16.msra.mxu0 %v7533
        %11383 = vmatprep.subr.bf16.mxu0 %v7542
        %11384 = vmatpush1.bf16.msra.mxu0 %v7541
        %11385 = vmatprep.subr.bf16.mxu0 %v7550
        %11386 = vmatpush1.bf16.msra.mxu0 %v7549
        %11387 = vmatprep.subr.bf16.mxu0 %v7558
        %11388 = vmatpush1.bf16.msra.mxu0 %v7557
        %11389 = vmatprep.subr.bf16.mxu0 %v7566
        %11390 = vmatpush1.bf16.msra.mxu0 %v7565
        %11391 = vmatprep.mubr.bf16.mxu0 %v2029
        %11392 = vmatmul.mubr.bf16.gmra.mrb[0].mxu0 %v2015
        %v11393 = vpop.f32.mrb[0].mxu0
        %v11394 = vadd.f32 %v11353, %v11393
        %v11395 = vpop.f32.mrb[0].mxu0
        %v11396 = vadd.f32 %v11355, %v11395
        %v11397 = vpop.f32.mrb[0].mxu0
        %v11398 = vpop.f32.mrb[0].mxu0
        %11399 = vdwg.mxu0
        %11400 = vmatprep.subr.bf16.mxu0 %v7574
        %11401 = vmatpush1.bf16.msra.mxu0 %v7573
        %11402 = vmatprep.subr.bf16.mxu0 %v7582
        %11403 = vmatpush1.bf16.msra.mxu0 %v7581
        %11404 = vmatprep.subr.bf16.mxu0 %v7590
        %11405 = vmatpush1.bf16.msra.mxu0 %v7589
        %11406 = vmatprep.subr.bf16.mxu0 %v7598
        %11407 = vmatpush1.bf16.msra.mxu0 %v7597
        %11408 = vmatprep.subr.bf16.mxu0 %v7606
        %11409 = vmatpush1.bf16.msra.mxu0 %v7605
        %11410 = vmatprep.subr.bf16.mxu0 %v7614
        %11411 = vmatpush1.bf16.msra.mxu0 %v7613
        %11412 = vmatprep.subr.bf16.mxu0 %v7622
        %11413 = vmatpush1.bf16.msra.mxu0 %v7621
        %11414 = vmatprep.subr.bf16.mxu0 %v7630
        %11415 = vmatpush1.bf16.msra.mxu0 %v7629
        %11416 = vmatprep.subr.bf16.mxu0 %v7638
        %11417 = vmatpush1.bf16.msra.mxu0 %v7637
        %11418 = vmatprep.subr.bf16.mxu0 %v7646
        %11419 = vmatpush1.bf16.msra.mxu0 %v7645
        %11420 = vmatprep.subr.bf16.mxu0 %v7654
        %11421 = vmatpush1.bf16.msra.mxu0 %v7653
        %11422 = vmatprep.subr.bf16.mxu0 %v7662
        %11423 = vmatpush1.bf16.msra.mxu0 %v7661
        %11424 = vmatprep.subr.bf16.mxu0 %v7670
        %11425 = vmatpush1.bf16.msra.mxu0 %v7669
        %11426 = vmatprep.subr.bf16.mxu0 %v7678
        %11427 = vmatpush1.bf16.msra.mxu0 %v7677
        %11428 = vmatprep.subr.bf16.mxu0 %v7686
        %11429 = vmatpush1.bf16.msra.mxu0 %v7685
        %11430 = vmatprep.subr.bf16.mxu0 %v7694
        %11431 = vmatpush1.bf16.msra.mxu0 %v7693
        %11432 = vmatprep.mubr.bf16.mxu0 %v2039
        %11433 = vmatmul.mubr.bf16.gmra.mrb[0].mxu0 %v2037
        %v11434 = vpop.f32.mrb[0].mxu0
        %v11435 = vadd.f32 %v11394, %v11434
        %v11436 = vpop.f32.mrb[0].mxu0
        %v11437 = vadd.f32 %v11396, %v11436
        %v11438 = vpop.f32.mrb[0].mxu0
        %v11439 = vpop.f32.mrb[0].mxu0
        %11440 = vdwg.mxu0
        %11441 = vmatprep.subr.bf16.mxu0 %v7702
        %11442 = vmatpush1.bf16.msra.mxu0 %v7701
        %11443 = vmatprep.subr.bf16.mxu0 %v7710
        %11444 = vmatpush1.bf16.msra.mxu0 %v7709
        %11445 = vmatprep.subr.bf16.mxu0 %v7718
        %11446 = vmatpush1.bf16.msra.mxu0 %v7717
        %11447 = vmatprep.subr.bf16.mxu0 %v7726
        %11448 = vmatpush1.bf16.msra.mxu0 %v7725
        %11449 = vmatprep.subr.bf16.mxu0 %v7734
        %11450 = vmatpush1.bf16.msra.mxu0 %v7733
        %11451 = vmatprep.subr.bf16.mxu0 %v7742
        %11452 = vmatpush1.bf16.msra.mxu0 %v7741
        %11453 = vmatprep.subr.bf16.mxu0 %v7750
        %11454 = vmatpush1.bf16.msra.mxu0 %v7749
        %11455 = vmatprep.subr.bf16.mxu0 %v7758
        %11456 = vmatpush1.bf16.msra.mxu0 %v7757
        %11457 = vmatprep.subr.bf16.mxu0 %v7766
        %11458 = vmatpush1.bf16.msra.mxu0 %v7765
        %11459 = vmatprep.subr.bf16.mxu0 %v7774
        %11460 = vmatpush1.bf16.msra.mxu0 %v7773
        %11461 = vmatprep.subr.bf16.mxu0 %v7782
        %11462 = vmatpush1.bf16.msra.mxu0 %v7781
        %11463 = vmatprep.subr.bf16.mxu0 %v7790
        %11464 = vmatpush1.bf16.msra.mxu0 %v7789
        %11465 = vmatprep.subr.bf16.mxu0 %v7798
        %11466 = vmatpush1.bf16.msra.mxu0 %v7797
        %11467 = vmatprep.subr.bf16.mxu0 %v7806
        %11468 = vmatpush1.bf16.msra.mxu0 %v7805
        %11469 = vmatprep.subr.bf16.mxu0 %v7814
        %11470 = vmatpush1.bf16.msra.mxu0 %v7813
        %11471 = vmatprep.subr.bf16.mxu0 %v7822
        %11472 = vmatpush1.bf16.msra.mxu0 %v7821
        %11473 = vmatprep.mubr.bf16.mxu0 %v2036
        %11474 = vmatmul.mubr.bf16.gmra.mrb[0].mxu0 %v2022
        %v11475 = vpop.f32.mrb[0].mxu0
        %v11476 = vadd.f32 %v11435, %v11475
        %v11477 = vpop.f32.mrb[0].mxu0
        %v11478 = vadd.f32 %v11437, %v11477
        %v11479 = vpop.f32.mrb[0].mxu0
        %v11480 = vpop.f32.mrb[0].mxu0
        %11481 = vdwg.mxu0
        %11482 = vmatprep.subr.bf16.mxu0 %v7830
        %11483 = vmatpush1.bf16.msra.mxu0 %v7829
        %11484 = vmatprep.subr.bf16.mxu0 %v7838
        %11485 = vmatpush1.bf16.msra.mxu0 %v7837
        %11486 = vmatprep.subr.bf16.mxu0 %v7846
        %11487 = vmatpush1.bf16.msra.mxu0 %v7845
        %11488 = vmatprep.subr.bf16.mxu0 %v7854
        %11489 = vmatpush1.bf16.msra.mxu0 %v7853
        %11490 = vmatprep.subr.bf16.mxu0 %v7862
        %11491 = vmatpush1.bf16.msra.mxu0 %v7861
        %11492 = vmatprep.subr.bf16.mxu0 %v7870
        %11493 = vmatpush1.bf16.msra.mxu0 %v7869
        %11494 = vmatprep.subr.bf16.mxu0 %v7878
        %11495 = vmatpush1.bf16.msra.mxu0 %v7877
        %11496 = vmatprep.subr.bf16.mxu0 %v7886
        %11497 = vmatpush1.bf16.msra.mxu0 %v7885
        %11498 = vmatprep.subr.bf16.mxu0 %v7894
        %11499 = vmatpush1.bf16.msra.mxu0 %v7893
        %11500 = vmatprep.subr.bf16.mxu0 %v7902
        %11501 = vmatpush1.bf16.msra.mxu0 %v7901
        %11502 = vmatprep.subr.bf16.mxu0 %v7910
        %11503 = vmatpush1.bf16.msra.mxu0 %v7909
        %11504 = vmatprep.subr.bf16.mxu0 %v7918
        %11505 = vmatpush1.bf16.msra.mxu0 %v7917
        %11506 = vmatprep.subr.bf16.mxu0 %v7926
        %11507 = vmatpush1.bf16.msra.mxu0 %v7925
        %11508 = vmatprep.subr.bf16.mxu0 %v7934
        %11509 = vmatpush1.bf16.msra.mxu0 %v7933
        %11510 = vmatprep.subr.bf16.mxu0 %v7942
        %11511 = vmatpush1.bf16.msra.mxu0 %v7941
        %11512 = vmatprep.subr.bf16.mxu0 %v7950
        %11513 = vmatpush1.bf16.msra.mxu0 %v7949
        %11514 = vmatprep.mubr.bf16.mxu0 %v2040
        %11515 = vmatmul.mubr.bf16.gmra.mrb[0].mxu0 %v2038
        %v11516 = vpop.f32.mrb[0].mxu0
        %v11517 = vadd.f32 %v11476, %v11516
        %v11518 = vpop.f32.mrb[0].mxu0
        %v11519 = vadd.f32 %v11478, %v11518
        %v11520 = vpop.f32.mrb[0].mxu0
        %v11521 = vpop.f32.mrb[0].mxu0
        %11522 = vdwg.mxu0
        %11523 = vmatprep.subr.bf16.mxu0 %v7958
        %11524 = vmatpush1.bf16.msra.mxu0 %v7957
        %11525 = vmatprep.subr.bf16.mxu0 %v7966
        %11526 = vmatpush1.bf16.msra.mxu0 %v7965
        %11527 = vmatprep.subr.bf16.mxu0 %v7974
        %11528 = vmatpush1.bf16.msra.mxu0 %v7973
        %11529 = vmatprep.subr.bf16.mxu0 %v7982
        %11530 = vmatpush1.bf16.msra.mxu0 %v7981
        %11531 = vmatprep.subr.bf16.mxu0 %v7990
        %11532 = vmatpush1.bf16.msra.mxu0 %v7989
        %11533 = vmatprep.subr.bf16.mxu0 %v7998
        %11534 = vmatpush1.bf16.msra.mxu0 %v7997
        %11535 = vmatprep.subr.bf16.mxu0 %v8006
        %11536 = vmatpush1.bf16.msra.mxu0 %v8005
        %11537 = vmatprep.subr.bf16.mxu0 %v8014
        %11538 = vmatpush1.bf16.msra.mxu0 %v8013
        %11539 = vmatprep.subr.bf16.mxu0 %v8022
        %11540 = vmatpush1.bf16.msra.mxu0 %v8021
        %11541 = vmatprep.subr.bf16.mxu0 %v8030
        %11542 = vmatpush1.bf16.msra.mxu0 %v8029
        %11543 = vmatprep.subr.bf16.mxu0 %v8038
        %11544 = vmatpush1.bf16.msra.mxu0 %v8037
        %11545 = vmatprep.subr.bf16.mxu0 %v8046
        %11546 = vmatpush1.bf16.msra.mxu0 %v8045
        %11547 = vmatprep.subr.bf16.mxu0 %v8054
        %11548 = vmatpush1.bf16.msra.mxu0 %v8053
        %11549 = vmatprep.subr.bf16.mxu0 %v8062
        %11550 = vmatpush1.bf16.msra.mxu0 %v8061
        %11551 = vmatprep.subr.bf16.mxu0 %v8070
        %11552 = vmatpush1.bf16.msra.mxu0 %v8069
        %11553 = vmatprep.subr.bf16.mxu0 %v8078
        %11554 = vmatpush1.bf16.msra.mxu0 %v8077
        %11555 = vmatprep.mubr.bf16.mxu0 %v2078
        %11556 = vmatmul.mubr.bf16.gmra.mrb[0].mxu0 %v2064
        %v11557 = vpop.f32.mrb[0].mxu0
        %v11558 = vadd.f32 %v11517, %v11557
        %v11559 = vpop.f32.mrb[0].mxu0
        %v11560 = vadd.f32 %v11519, %v11559
        %v11561 = vpop.f32.mrb[0].mxu0
        %v11562 = vpop.f32.mrb[0].mxu0
        %11563 = vdwg.mxu0
        %11564 = vmatprep.subr.bf16.mxu0 %v8086
        %11565 = vmatpush1.bf16.msra.mxu0 %v8085
        %11566 = vmatprep.subr.bf16.mxu0 %v8094
        %11567 = vmatpush1.bf16.msra.mxu0 %v8093
        %11568 = vmatprep.subr.bf16.mxu0 %v8102
        %11569 = vmatpush1.bf16.msra.mxu0 %v8101
        %11570 = vmatprep.subr.bf16.mxu0 %v8110
        %11571 = vmatpush1.bf16.msra.mxu0 %v8109
        %11572 = vmatprep.subr.bf16.mxu0 %v8118
        %11573 = vmatpush1.bf16.msra.mxu0 %v8117
        %11574 = vmatprep.subr.bf16.mxu0 %v8126
        %11575 = vmatpush1.bf16.msra.mxu0 %v8125
        %11576 = vmatprep.subr.bf16.mxu0 %v8134
        %11577 = vmatpush1.bf16.msra.mxu0 %v8133
        %11578 = vmatprep.subr.bf16.mxu0 %v8142
        %11579 = vmatpush1.bf16.msra.mxu0 %v8141
        %11580 = vmatprep.subr.bf16.mxu0 %v8150
        %11581 = vmatpush1.bf16.msra.mxu0 %v8149
        %11582 = vmatprep.subr.bf16.mxu0 %v8158
        %11583 = vmatpush1.bf16.msra.mxu0 %v8157
        %11584 = vmatprep.subr.bf16.mxu0 %v8166
        %11585 = vmatpush1.bf16.msra.mxu0 %v8165
        %11586 = vmatprep.subr.bf16.mxu0 %v8174
        %11587 = vmatpush1.bf16.msra.mxu0 %v8173
        %11588 = vmatprep.subr.bf16.mxu0 %v8182
        %11589 = vmatpush1.bf16.msra.mxu0 %v8181
        %11590 = vmatprep.subr.bf16.mxu0 %v8190
        %11591 = vmatpush1.bf16.msra.mxu0 %v8189
        %11592 = vmatprep.subr.bf16.mxu0 %v8198
        %11593 = vmatpush1.bf16.msra.mxu0 %v8197
        %11594 = vmatprep.subr.bf16.mxu0 %v8206
        %11595 = vmatpush1.bf16.msra.mxu0 %v8205
        %11596 = vmatprep.mubr.bf16.mxu0 %v2088
        %11597 = vmatmul.mubr.bf16.gmra.mrb[0].mxu0 %v2086
        %v11598 = vpop.f32.mrb[0].mxu0
        %v11599 = vadd.f32 %v11558, %v11598
        %v11600 = vpop.f32.mrb[0].mxu0
        %v11601 = vadd.f32 %v11560, %v11600
        %v11602 = vpop.f32.mrb[0].mxu0
        %v11603 = vpop.f32.mrb[0].mxu0
        %11604 = vdwg.mxu0
        %11605 = vmatprep.subr.bf16.mxu0 %v8214
        %11606 = vmatpush1.bf16.msra.mxu0 %v8213
        %11607 = vmatprep.subr.bf16.mxu0 %v8222
        %11608 = vmatpush1.bf16.msra.mxu0 %v8221
        %11609 = vmatprep.subr.bf16.mxu0 %v8230
        %11610 = vmatpush1.bf16.msra.mxu0 %v8229
        %11611 = vmatprep.subr.bf16.mxu0 %v8238
        %11612 = vmatpush1.bf16.msra.mxu0 %v8237
        %11613 = vmatprep.subr.bf16.mxu0 %v8246
        %11614 = vmatpush1.bf16.msra.mxu0 %v8245
        %11615 = vmatprep.subr.bf16.mxu0 %v8254
        %11616 = vmatpush1.bf16.msra.mxu0 %v8253
        %11617 = vmatprep.subr.bf16.mxu0 %v8262
        %11618 = vmatpush1.bf16.msra.mxu0 %v8261
        %11619 = vmatprep.subr.bf16.mxu0 %v8270
        %11620 = vmatpush1.bf16.msra.mxu0 %v8269
        %11621 = vmatprep.subr.bf16.mxu0 %v8278
        %11622 = vmatpush1.bf16.msra.mxu0 %v8277
        %11623 = vmatprep.subr.bf16.mxu0 %v8286
        %11624 = vmatpush1.bf16.msra.mxu0 %v8285
        %11625 = vmatprep.subr.bf16.mxu0 %v8294
        %11626 = vmatpush1.bf16.msra.mxu0 %v8293
        %11627 = vmatprep.subr.bf16.mxu0 %v8302
        %11628 = vmatpush1.bf16.msra.mxu0 %v8301
        %11629 = vmatprep.subr.bf16.mxu0 %v8310
        %11630 = vmatpush1.bf16.msra.mxu0 %v8309
        %11631 = vmatprep.subr.bf16.mxu0 %v8318
        %11632 = vmatpush1.bf16.msra.mxu0 %v8317
        %11633 = vmatprep.subr.bf16.mxu0 %v8326
        %11634 = vmatpush1.bf16.msra.mxu0 %v8325
        %11635 = vmatprep.subr.bf16.mxu0 %v8334
        %11636 = vmatpush1.bf16.msra.mxu0 %v8333
        %11637 = vmatprep.mubr.bf16.mxu0 %v2085
        %11638 = vmatmul.mubr.bf16.gmra.mrb[0].mxu0 %v2071
        %v11639 = vpop.f32.mrb[0].mxu0
        %v11640 = vadd.f32 %v11599, %v11639
        %v11641 = vpop.f32.mrb[0].mxu0
        %v11642 = vadd.f32 %v11601, %v11641
        %v11643 = vpop.f32.mrb[0].mxu0
        %v11644 = vpop.f32.mrb[0].mxu0
        %11645 = vdwg.mxu0
        %11646 = vmatprep.subr.bf16.mxu0 %v8342
        %11647 = vmatpush1.bf16.msra.mxu0 %v8341
        %11648 = vmatprep.subr.bf16.mxu0 %v8350
        %11649 = vmatpush1.bf16.msra.mxu0 %v8349
        %11650 = vmatprep.subr.bf16.mxu0 %v8358
        %11651 = vmatpush1.bf16.msra.mxu0 %v8357
        %11652 = vmatprep.subr.bf16.mxu0 %v8366
        %11653 = vmatpush1.bf16.msra.mxu0 %v8365
        %11654 = vmatprep.subr.bf16.mxu0 %v8374
        %11655 = vmatpush1.bf16.msra.mxu0 %v8373
        %11656 = vmatprep.subr.bf16.mxu0 %v8382
        %11657 = vmatpush1.bf16.msra.mxu0 %v8381
        %11658 = vmatprep.subr.bf16.mxu0 %v8390
        %11659 = vmatpush1.bf16.msra.mxu0 %v8389
        %11660 = vmatprep.subr.bf16.mxu0 %v8398
        %11661 = vmatpush1.bf16.msra.mxu0 %v8397
        %11662 = vmatprep.subr.bf16.mxu0 %v8406
        %11663 = vmatpush1.bf16.msra.mxu0 %v8405
        %11664 = vmatprep.subr.bf16.mxu0 %v8414
        %11665 = vmatpush1.bf16.msra.mxu0 %v8413
        %11666 = vmatprep.subr.bf16.mxu0 %v8422
        %11667 = vmatpush1.bf16.msra.mxu0 %v8421
        %11668 = vmatprep.subr.bf16.mxu0 %v8430
        %11669 = vmatpush1.bf16.msra.mxu0 %v8429
        %11670 = vmatprep.subr.bf16.mxu0 %v8438
        %11671 = vmatpush1.bf16.msra.mxu0 %v8437
        %11672 = vmatprep.subr.bf16.mxu0 %v8446
        %11673 = vmatpush1.bf16.msra.mxu0 %v8445
        %11674 = vmatprep.subr.bf16.mxu0 %v8454
        %11675 = vmatpush1.bf16.msra.mxu0 %v8453
        %11676 = vmatprep.subr.bf16.mxu0 %v8462
        %11677 = vmatpush1.bf16.msra.mxu0 %v8461
        %11678 = vmatprep.mubr.bf16.mxu0 %v2089
        %11679 = vmatmul.mubr.bf16.gmra.mrb[0].mxu0 %v2087
        %v11680 = vpop.f32.mrb[0].mxu0
        %v11681 = vadd.f32 %v11640, %v11680
        %v11682 = vpop.f32.mrb[0].mxu0
        %v11683 = vadd.f32 %v11642, %v11682
        %v11684 = vpop.f32.mrb[0].mxu0
        %v11685 = vpop.f32.mrb[0].mxu0
        %11686 = vdwg.mxu0
        %11687 = vmatprep.subr.bf16.mxu0 %v8470
        %11688 = vmatpush1.bf16.msra.mxu0 %v8469
        %11689 = vmatprep.subr.bf16.mxu0 %v8478
        %11690 = vmatpush1.bf16.msra.mxu0 %v8477
        %11691 = vmatprep.subr.bf16.mxu0 %v8486
        %11692 = vmatpush1.bf16.msra.mxu0 %v8485
        %11693 = vmatprep.subr.bf16.mxu0 %v8494
        %11694 = vmatpush1.bf16.msra.mxu0 %v8493
        %11695 = vmatprep.subr.bf16.mxu0 %v8502
        %11696 = vmatpush1.bf16.msra.mxu0 %v8501
        %11697 = vmatprep.subr.bf16.mxu0 %v8510
        %11698 = vmatpush1.bf16.msra.mxu0 %v8509
        %11699 = vmatprep.subr.bf16.mxu0 %v8518
        %11700 = vmatpush1.bf16.msra.mxu0 %v8517
        %11701 = vmatprep.subr.bf16.mxu0 %v8526
        %11702 = vmatpush1.bf16.msra.mxu0 %v8525
        %11703 = vmatprep.subr.bf16.mxu0 0
        %11704 = vmatpush1.bf16.msra.mxu0 0
        %11705 = vmatprep.subr.bf16.mxu0 0
        %11706 = vmatpush1.bf16.msra.mxu0 0
        %11707 = vmatprep.subr.bf16.mxu0 0
        %11708 = vmatpush1.bf16.msra.mxu0 0
        %11709 = vmatprep.subr.bf16.mxu0 0
        %11710 = vmatpush1.bf16.msra.mxu0 0
        %11711 = vmatprep.subr.bf16.mxu0 0
        %11712 = vmatpush1.bf16.msra.mxu0 0
        %11713 = vmatprep.subr.bf16.mxu0 0
        %11714 = vmatpush1.bf16.msra.mxu0 0
        %11715 = vmatprep.subr.bf16.mxu0 0
        %11716 = vmatpush1.bf16.msra.mxu0 0
        %11717 = vmatprep.subr.bf16.mxu0 0
        %11718 = vmatpush1.bf16.msra.mxu0 0
        %11719 = vmatprep.mubr.bf16.mxu0 0
        %11720 = vmatmul.mubr.bf16.gmra.mrb[0].mxu0 %v2103
        %v11721 = vpop.f32.mrb[0].mxu0
        %v11722 = vadd.f32 %v11681, %v11721
        %v11723 = vpop.f32.mrb[0].mxu0
        %v11724 = vadd.f32 %v11683, %v11723
        %v11725 = vpop.f32.mrb[0].mxu0
        %v11726 = vpop.f32.mrb[0].mxu0
        %11727 = vdwg.mxu0
        %11728 = vmatprep.subr.bf16.mxu0 %v6936
        %11729 = vmatpush1.bf16.msra.mxu0 %v6935
        %11730 = vmatprep.subr.bf16.mxu0 %v6944
        %11731 = vmatpush1.bf16.msra.mxu0 %v6943
        %11732 = vmatprep.subr.bf16.mxu0 %v6952
        %11733 = vmatpush1.bf16.msra.mxu0 %v6951
        %11734 = vmatprep.subr.bf16.mxu0 %v6960
        %11735 = vmatpush1.bf16.msra.mxu0 %v6959
        %11736 = vmatprep.subr.bf16.mxu0 %v6968
        %11737 = vmatpush1.bf16.msra.mxu0 %v6967
        %11738 = vmatprep.subr.bf16.mxu0 %v6976
        %11739 = vmatpush1.bf16.msra.mxu0 %v6975
        %11740 = vmatprep.subr.bf16.mxu0 %v6984
        %11741 = vmatpush1.bf16.msra.mxu0 %v6983
        %11742 = vmatprep.subr.bf16.mxu0 %v6992
        %11743 = vmatpush1.bf16.msra.mxu0 %v6991
        %11744 = vmatprep.subr.bf16.mxu0 %v7000
        %11745 = vmatpush1.bf16.msra.mxu0 %v6999
        %11746 = vmatprep.subr.bf16.mxu0 %v7008
        %11747 = vmatpush1.bf16.msra.mxu0 %v7007
        %11748 = vmatprep.subr.bf16.mxu0 %v7016
        %11749 = vmatpush1.bf16.msra.mxu0 %v7015
        %11750 = vmatprep.subr.bf16.mxu0 %v7024
        %11751 = vmatpush1.bf16.msra.mxu0 %v7023
        %11752 = vmatprep.subr.bf16.mxu0 %v7032
        %11753 = vmatpush1.bf16.msra.mxu0 %v7031
        %11754 = vmatprep.subr.bf16.mxu0 %v7040
        %11755 = vmatpush1.bf16.msra.mxu0 %v7039
        %11756 = vmatprep.subr.bf16.mxu0 %v7048
        %11757 = vmatpush1.bf16.msra.mxu0 %v7047
        %11758 = vmatprep.subr.bf16.mxu0 %v7056
        %11759 = vmatpush1.bf16.msra.mxu0 %v7055
        %11760 = vmatprep.mubr.bf16.mxu0 %v1980
        %11761 = vmatmul.mubr.bf16.gmra.mrb[0].mxu0 %v1966
        %v11762 = vpop.f32.mrb[0].mxu0
        %v11763 = vadd.f32 %v1926, %v11762
        %v11764 = vpop.f32.mrb[0].mxu0
        %v11765 = vadd.f32 %v1930, %v11764
        %v11766 = vpop.f32.mrb[0].mxu0
        %v11767 = vpop.f32.mrb[0].mxu0
        %11768 = vdwg.mxu0
        %11769 = vmatprep.subr.bf16.mxu0 %v7064
        %11770 = vmatpush1.bf16.msra.mxu0 %v7063
        %11771 = vmatprep.subr.bf16.mxu0 %v7072
        %11772 = vmatpush1.bf16.msra.mxu0 %v7071
        %11773 = vmatprep.subr.bf16.mxu0 %v7080
        %11774 = vmatpush1.bf16.msra.mxu0 %v7079
        %11775 = vmatprep.subr.bf16.mxu0 %v7088
        %11776 = vmatpush1.bf16.msra.mxu0 %v7087
        %11777 = vmatprep.subr.bf16.mxu0 %v7096
        %11778 = vmatpush1.bf16.msra.mxu0 %v7095
        %11779 = vmatprep.subr.bf16.mxu0 %v7104
        %11780 = vmatpush1.bf16.msra.mxu0 %v7103
        %11781 = vmatprep.subr.bf16.mxu0 %v7112
        %11782 = vmatpush1.bf16.msra.mxu0 %v7111
        %11783 = vmatprep.subr.bf16.mxu0 %v7120
        %11784 = vmatpush1.bf16.msra.mxu0 %v7119
        %11785 = vmatprep.subr.bf16.mxu0 %v7128
        %11786 = vmatpush1.bf16.msra.mxu0 %v7127
        %11787 = vmatprep.subr.bf16.mxu0 %v7136
        %11788 = vmatpush1.bf16.msra.mxu0 %v7135
        %11789 = vmatprep.subr.bf16.mxu0 %v7144
        %11790 = vmatpush1.bf16.msra.mxu0 %v7143
        %11791 = vmatprep.subr.bf16.mxu0 %v7152
        %11792 = vmatpush1.bf16.msra.mxu0 %v7151
        %11793 = vmatprep.subr.bf16.mxu0 %v7160
        %11794 = vmatpush1.bf16.msra.mxu0 %v7159
        %11795 = vmatprep.subr.bf16.mxu0 %v7168
        %11796 = vmatpush1.bf16.msra.mxu0 %v7167
        %11797 = vmatprep.subr.bf16.mxu0 %v7176
        %11798 = vmatpush1.bf16.msra.mxu0 %v7175
        %11799 = vmatprep.subr.bf16.mxu0 %v7184
        %11800 = vmatpush1.bf16.msra.mxu0 %v7183
        %11801 = vmatprep.mubr.bf16.mxu0 %v1990
        %11802 = vmatmul.mubr.bf16.gmra.mrb[0].mxu0 %v1988
        %v11803 = vpop.f32.mrb[0].mxu0
        %v11804 = vadd.f32 %v11763, %v11803
        %v11805 = vpop.f32.mrb[0].mxu0
        %v11806 = vadd.f32 %v11765, %v11805
        %v11807 = vpop.f32.mrb[0].mxu0
        %v11808 = vpop.f32.mrb[0].mxu0
        %11809 = vdwg.mxu0
        %11810 = vmatprep.subr.bf16.mxu0 %v7192
        %11811 = vmatpush1.bf16.msra.mxu0 %v7191
        %11812 = vmatprep.subr.bf16.mxu0 %v7200
        %11813 = vmatpush1.bf16.msra.mxu0 %v7199
        %11814 = vmatprep.subr.bf16.mxu0 %v7208
        %11815 = vmatpush1.bf16.msra.mxu0 %v7207
        %11816 = vmatprep.subr.bf16.mxu0 %v7216
        %11817 = vmatpush1.bf16.msra.mxu0 %v7215
        %11818 = vmatprep.subr.bf16.mxu0 %v7224
        %11819 = vmatpush1.bf16.msra.mxu0 %v7223
        %11820 = vmatprep.subr.bf16.mxu0 %v7232
        %11821 = vmatpush1.bf16.msra.mxu0 %v7231
        %11822 = vmatprep.subr.bf16.mxu0 %v7240
        %11823 = vmatpush1.bf16.msra.mxu0 %v7239
        %11824 = vmatprep.subr.bf16.mxu0 %v7248
        %11825 = vmatpush1.bf16.msra.mxu0 %v7247
        %11826 = vmatprep.subr.bf16.mxu0 %v7256
        %11827 = vmatpush1.bf16.msra.mxu0 %v7255
        %11828 = vmatprep.subr.bf16.mxu0 %v7264
        %11829 = vmatpush1.bf16.msra.mxu0 %v7263
        %11830 = vmatprep.subr.bf16.mxu0 %v7272
        %11831 = vmatpush1.bf16.msra.mxu0 %v7271
        %11832 = vmatprep.subr.bf16.mxu0 %v7280
        %11833 = vmatpush1.bf16.msra.mxu0 %v7279
        %11834 = vmatprep.subr.bf16.mxu0 %v7288
        %11835 = vmatpush1.bf16.msra.mxu0 %v7287
        %11836 = vmatprep.subr.bf16.mxu0 %v7296
        %11837 = vmatpush1.bf16.msra.mxu0 %v7295
        %11838 = vmatprep.subr.bf16.mxu0 %v7304
        %11839 = vmatpush1.bf16.msra.mxu0 %v7303
        %11840 = vmatprep.subr.bf16.mxu0 %v7312
        %11841 = vmatpush1.bf16.msra.mxu0 %v7311
        %11842 = vmatprep.mubr.bf16.mxu0 %v1987
        %11843 = vmatmul.mubr.bf16.gmra.mrb[0].mxu0 %v1973
        %v11844 = vpop.f32.mrb[0].mxu0
        %v11845 = vadd.f32 %v11804, %v11844
        %v11846 = vpop.f32.mrb[0].mxu0
        %v11847 = vadd.f32 %v11806, %v11846
        %v11848 = vpop.f32.mrb[0].mxu0
        %v11849 = vpop.f32.mrb[0].mxu0
        %11850 = vdwg.mxu0
        %11851 = vmatprep.subr.bf16.mxu0 %v7320
        %11852 = vmatpush1.bf16.msra.mxu0 %v7319
        %11853 = vmatprep.subr.bf16.mxu0 %v7328
        %11854 = vmatpush1.bf16.msra.mxu0 %v7327
        %11855 = vmatprep.subr.bf16.mxu0 %v7336
        %11856 = vmatpush1.bf16.msra.mxu0 %v7335
        %11857 = vmatprep.subr.bf16.mxu0 %v7344
        %11858 = vmatpush1.bf16.msra.mxu0 %v7343
        %11859 = vmatprep.subr.bf16.mxu0 %v7352
        %11860 = vmatpush1.bf16.msra.mxu0 %v7351
        %11861 = vmatprep.subr.bf16.mxu0 %v7360
        %11862 = vmatpush1.bf16.msra.mxu0 %v7359
        %11863 = vmatprep.subr.bf16.mxu0 %v7368
        %11864 = vmatpush1.bf16.msra.mxu0 %v7367
        %11865 = vmatprep.subr.bf16.mxu0 %v7376
        %11866 = vmatpush1.bf16.msra.mxu0 %v7375
        %11867 = vmatprep.subr.bf16.mxu0 %v7384
        %11868 = vmatpush1.bf16.msra.mxu0 %v7383
        %11869 = vmatprep.subr.bf16.mxu0 %v7392
        %11870 = vmatpush1.bf16.msra.mxu0 %v7391
        %11871 = vmatprep.subr.bf16.mxu0 %v7400
        %11872 = vmatpush1.bf16.msra.mxu0 %v7399
        %11873 = vmatprep.subr.bf16.mxu0 %v7408
        %11874 = vmatpush1.bf16.msra.mxu0 %v7407
        %11875 = vmatprep.subr.bf16.mxu0 %v7416
        %11876 = vmatpush1.bf16.msra.mxu0 %v7415
        %11877 = vmatprep.subr.bf16.mxu0 %v7424
        %11878 = vmatpush1.bf16.msra.mxu0 %v7423
        %11879 = vmatprep.subr.bf16.mxu0 %v7432
        %11880 = vmatpush1.bf16.msra.mxu0 %v7431
        %11881 = vmatprep.subr.bf16.mxu0 %v7440
        %11882 = vmatpush1.bf16.msra.mxu0 %v7439
        %11883 = vmatprep.mubr.bf16.mxu0 %v1991
        %11884 = vmatmul.mubr.bf16.gmra.mrb[0].mxu0 %v1989
        %v11885 = vpop.f32.mrb[0].mxu0
        %v11886 = vadd.f32 %v11845, %v11885
        %v11887 = vpop.f32.mrb[0].mxu0
        %v11888 = vadd.f32 %v11847, %v11887
        %v11889 = vpop.f32.mrb[0].mxu0
        %v11890 = vpop.f32.mrb[0].mxu0
        %11891 = vdwg.mxu0
        %11892 = vmatprep.subr.bf16.mxu0 %v7448
        %11893 = vmatpush1.bf16.msra.mxu0 %v7447
        %11894 = vmatprep.subr.bf16.mxu0 %v7456
        %11895 = vmatpush1.bf16.msra.mxu0 %v7455
        %11896 = vmatprep.subr.bf16.mxu0 %v7464
        %11897 = vmatpush1.bf16.msra.mxu0 %v7463
        %11898 = vmatprep.subr.bf16.mxu0 %v7472
        %11899 = vmatpush1.bf16.msra.mxu0 %v7471
        %11900 = vmatprep.subr.bf16.mxu0 %v7480
        %11901 = vmatpush1.bf16.msra.mxu0 %v7479
        %11902 = vmatprep.subr.bf16.mxu0 %v7488
        %11903 = vmatpush1.bf16.msra.mxu0 %v7487
        %11904 = vmatprep.subr.bf16.mxu0 %v7496
        %11905 = vmatpush1.bf16.msra.mxu0 %v7495
        %11906 = vmatprep.subr.bf16.mxu0 %v7504
        %11907 = vmatpush1.bf16.msra.mxu0 %v7503
        %11908 = vmatprep.subr.bf16.mxu0 %v7512
        %11909 = vmatpush1.bf16.msra.mxu0 %v7511
        %11910 = vmatprep.subr.bf16.mxu0 %v7520
        %11911 = vmatpush1.bf16.msra.mxu0 %v7519
        %11912 = vmatprep.subr.bf16.mxu0 %v7528
        %11913 = vmatpush1.bf16.msra.mxu0 %v7527
        %11914 = vmatprep.subr.bf16.mxu0 %v7536
        %11915 = vmatpush1.bf16.msra.mxu0 %v7535
        %11916 = vmatprep.subr.bf16.mxu0 %v7544
        %11917 = vmatpush1.bf16.msra.mxu0 %v7543
        %11918 = vmatprep.subr.bf16.mxu0 %v7552
        %11919 = vmatpush1.bf16.msra.mxu0 %v7551
        %11920 = vmatprep.subr.bf16.mxu0 %v7560
        %11921 = vmatpush1.bf16.msra.mxu0 %v7559
        %11922 = vmatprep.subr.bf16.mxu0 %v7568
        %11923 = vmatpush1.bf16.msra.mxu0 %v7567
        %11924 = vmatprep.mubr.bf16.mxu0 %v2029
        %11925 = vmatmul.mubr.bf16.gmra.mrb[0].mxu0 %v2015
        %v11926 = vpop.f32.mrb[0].mxu0
        %v11927 = vadd.f32 %v11886, %v11926
        %v11928 = vpop.f32.mrb[0].mxu0
        %v11929 = vadd.f32 %v11888, %v11928
        %v11930 = vpop.f32.mrb[0].mxu0
        %v11931 = vpop.f32.mrb[0].mxu0
        %11932 = vdwg.mxu0
        %11933 = vmatprep.subr.bf16.mxu0 %v7576
        %11934 = vmatpush1.bf16.msra.mxu0 %v7575
        %11935 = vmatprep.subr.bf16.mxu0 %v7584
        %11936 = vmatpush1.bf16.msra.mxu0 %v7583
        %11937 = vmatprep.subr.bf16.mxu0 %v7592
        %11938 = vmatpush1.bf16.msra.mxu0 %v7591
        %11939 = vmatprep.subr.bf16.mxu0 %v7600
        %11940 = vmatpush1.bf16.msra.mxu0 %v7599
        %11941 = vmatprep.subr.bf16.mxu0 %v7608
        %11942 = vmatpush1.bf16.msra.mxu0 %v7607
        %11943 = vmatprep.subr.bf16.mxu0 %v7616
        %11944 = vmatpush1.bf16.msra.mxu0 %v7615
        %11945 = vmatprep.subr.bf16.mxu0 %v7624
        %11946 = vmatpush1.bf16.msra.mxu0 %v7623
        %11947 = vmatprep.subr.bf16.mxu0 %v7632
        %11948 = vmatpush1.bf16.msra.mxu0 %v7631
        %11949 = vmatprep.subr.bf16.mxu0 %v7640
        %11950 = vmatpush1.bf16.msra.mxu0 %v7639
        %11951 = vmatprep.subr.bf16.mxu0 %v7648
        %11952 = vmatpush1.bf16.msra.mxu0 %v7647
        %11953 = vmatprep.subr.bf16.mxu0 %v7656
        %11954 = vmatpush1.bf16.msra.mxu0 %v7655
        %11955 = vmatprep.subr.bf16.mxu0 %v7664
        %11956 = vmatpush1.bf16.msra.mxu0 %v7663
        %11957 = vmatprep.subr.bf16.mxu0 %v7672
        %11958 = vmatpush1.bf16.msra.mxu0 %v7671
        %11959 = vmatprep.subr.bf16.mxu0 %v7680
        %11960 = vmatpush1.bf16.msra.mxu0 %v7679
        %11961 = vmatprep.subr.bf16.mxu0 %v7688
        %11962 = vmatpush1.bf16.msra.mxu0 %v7687
        %11963 = vmatprep.subr.bf16.mxu0 %v7696
        %11964 = vmatpush1.bf16.msra.mxu0 %v7695
        %11965 = vmatprep.mubr.bf16.mxu0 %v2039
        %11966 = vmatmul.mubr.bf16.gmra.mrb[0].mxu0 %v2037
        %v11967 = vpop.f32.mrb[0].mxu0
        %v11968 = vadd.f32 %v11927, %v11967
        %v11969 = vpop.f32.mrb[0].mxu0
        %v11970 = vadd.f32 %v11929, %v11969
        %v11971 = vpop.f32.mrb[0].mxu0
        %v11972 = vpop.f32.mrb[0].mxu0
        %11973 = vdwg.mxu0
        %11974 = vmatprep.subr.bf16.mxu0 %v7704
        %11975 = vmatpush1.bf16.msra.mxu0 %v7703
        %11976 = vmatprep.subr.bf16.mxu0 %v7712
        %11977 = vmatpush1.bf16.msra.mxu0 %v7711
        %11978 = vmatprep.subr.bf16.mxu0 %v7720
        %11979 = vmatpush1.bf16.msra.mxu0 %v7719
        %11980 = vmatprep.subr.bf16.mxu0 %v7728
        %11981 = vmatpush1.bf16.msra.mxu0 %v7727
        %11982 = vmatprep.subr.bf16.mxu0 %v7736
        %11983 = vmatpush1.bf16.msra.mxu0 %v7735
        %11984 = vmatprep.subr.bf16.mxu0 %v7744
        %11985 = vmatpush1.bf16.msra.mxu0 %v7743
        %11986 = vmatprep.subr.bf16.mxu0 %v7752
        %11987 = vmatpush1.bf16.msra.mxu0 %v7751
        %11988 = vmatprep.subr.bf16.mxu0 %v7760
        %11989 = vmatpush1.bf16.msra.mxu0 %v7759
        %11990 = vmatprep.subr.bf16.mxu0 %v7768
        %11991 = vmatpush1.bf16.msra.mxu0 %v7767
        %11992 = vmatprep.subr.bf16.mxu0 %v7776
        %11993 = vmatpush1.bf16.msra.mxu0 %v7775
        %11994 = vmatprep.subr.bf16.mxu0 %v7784
        %11995 = vmatpush1.bf16.msra.mxu0 %v7783
        %11996 = vmatprep.subr.bf16.mxu0 %v7792
        %11997 = vmatpush1.bf16.msra.mxu0 %v7791
        %11998 = vmatprep.subr.bf16.mxu0 %v7800
        %11999 = vmatpush1.bf16.msra.mxu0 %v7799
        %12000 = vmatprep.subr.bf16.mxu0 %v7808
        %12001 = vmatpush1.bf16.msra.mxu0 %v7807
        %12002 = vmatprep.subr.bf16.mxu0 %v7816
        %12003 = vmatpush1.bf16.msra.mxu0 %v7815
        %12004 = vmatprep.subr.bf16.mxu0 %v7824
        %12005 = vmatpush1.bf16.msra.mxu0 %v7823
        %12006 = vmatprep.mubr.bf16.mxu0 %v2036
        %12007 = vmatmul.mubr.bf16.gmra.mrb[0].mxu0 %v2022
        %v12008 = vpop.f32.mrb[0].mxu0
        %v12009 = vadd.f32 %v11968, %v12008
        %v12010 = vpop.f32.mrb[0].mxu0
        %v12011 = vadd.f32 %v11970, %v12010
        %v12012 = vpop.f32.mrb[0].mxu0
        %v12013 = vpop.f32.mrb[0].mxu0
        %12014 = vdwg.mxu0
        %12015 = vmatprep.subr.bf16.mxu0 %v7832
        %12016 = vmatpush1.bf16.msra.mxu0 %v7831
        %12017 = vmatprep.subr.bf16.mxu0 %v7840
        %12018 = vmatpush1.bf16.msra.mxu0 %v7839
        %12019 = vmatprep.subr.bf16.mxu0 %v7848
        %12020 = vmatpush1.bf16.msra.mxu0 %v7847
        %12021 = vmatprep.subr.bf16.mxu0 %v7856
        %12022 = vmatpush1.bf16.msra.mxu0 %v7855
        %12023 = vmatprep.subr.bf16.mxu0 %v7864
        %12024 = vmatpush1.bf16.msra.mxu0 %v7863
        %12025 = vmatprep.subr.bf16.mxu0 %v7872
        %12026 = vmatpush1.bf16.msra.mxu0 %v7871
        %12027 = vmatprep.subr.bf16.mxu0 %v7880
        %12028 = vmatpush1.bf16.msra.mxu0 %v7879
        %12029 = vmatprep.subr.bf16.mxu0 %v7888
        %12030 = vmatpush1.bf16.msra.mxu0 %v7887
        %12031 = vmatprep.subr.bf16.mxu0 %v7896
        %12032 = vmatpush1.bf16.msra.mxu0 %v7895
        %12033 = vmatprep.subr.bf16.mxu0 %v7904
        %12034 = vmatpush1.bf16.msra.mxu0 %v7903
        %12035 = vmatprep.subr.bf16.mxu0 %v7912
        %12036 = vmatpush1.bf16.msra.mxu0 %v7911
        %12037 = vmatprep.subr.bf16.mxu0 %v7920
        %12038 = vmatpush1.bf16.msra.mxu0 %v7919
        %12039 = vmatprep.subr.bf16.mxu0 %v7928
        %12040 = vmatpush1.bf16.msra.mxu0 %v7927
        %12041 = vmatprep.subr.bf16.mxu0 %v7936
        %12042 = vmatpush1.bf16.msra.mxu0 %v7935
        %12043 = vmatprep.subr.bf16.mxu0 %v7944
        %12044 = vmatpush1.bf16.msra.mxu0 %v7943
        %12045 = vmatprep.subr.bf16.mxu0 %v7952
        %12046 = vmatpush1.bf16.msra.mxu0 %v7951
        %12047 = vmatprep.mubr.bf16.mxu0 %v2040
        %12048 = vmatmul.mubr.bf16.gmra.mrb[0].mxu0 %v2038
        %v12049 = vpop.f32.mrb[0].mxu0
        %v12050 = vadd.f32 %v12009, %v12049
        %v12051 = vpop.f32.mrb[0].mxu0
        %v12052 = vadd.f32 %v12011, %v12051
        %v12053 = vpop.f32.mrb[0].mxu0
        %v12054 = vpop.f32.mrb[0].mxu0
        %12055 = vdwg.mxu0
        %12056 = vmatprep.subr.bf16.mxu0 %v7960
        %12057 = vmatpush1.bf16.msra.mxu0 %v7959
        %12058 = vmatprep.subr.bf16.mxu0 %v7968
        %12059 = vmatpush1.bf16.msra.mxu0 %v7967
        %12060 = vmatprep.subr.bf16.mxu0 %v7976
        %12061 = vmatpush1.bf16.msra.mxu0 %v7975
        %12062 = vmatprep.subr.bf16.mxu0 %v7984
        %12063 = vmatpush1.bf16.msra.mxu0 %v7983
        %12064 = vmatprep.subr.bf16.mxu0 %v7992
        %12065 = vmatpush1.bf16.msra.mxu0 %v7991
        %12066 = vmatprep.subr.bf16.mxu0 %v8000
        %12067 = vmatpush1.bf16.msra.mxu0 %v7999
        %12068 = vmatprep.subr.bf16.mxu0 %v8008
        %12069 = vmatpush1.bf16.msra.mxu0 %v8007
        %12070 = vmatprep.subr.bf16.mxu0 %v8016
        %12071 = vmatpush1.bf16.msra.mxu0 %v8015
        %12072 = vmatprep.subr.bf16.mxu0 %v8024
        %12073 = vmatpush1.bf16.msra.mxu0 %v8023
        %12074 = vmatprep.subr.bf16.mxu0 %v8032
        %12075 = vmatpush1.bf16.msra.mxu0 %v8031
        %12076 = vmatprep.subr.bf16.mxu0 %v8040
        %12077 = vmatpush1.bf16.msra.mxu0 %v8039
        %12078 = vmatprep.subr.bf16.mxu0 %v8048
        %12079 = vmatpush1.bf16.msra.mxu0 %v8047
        %12080 = vmatprep.subr.bf16.mxu0 %v8056
        %12081 = vmatpush1.bf16.msra.mxu0 %v8055
        %12082 = vmatprep.subr.bf16.mxu0 %v8064
        %12083 = vmatpush1.bf16.msra.mxu0 %v8063
        %12084 = vmatprep.subr.bf16.mxu0 %v8072
        %12085 = vmatpush1.bf16.msra.mxu0 %v8071
        %12086 = vmatprep.subr.bf16.mxu0 %v8080
        %12087 = vmatpush1.bf16.msra.mxu0 %v8079
        %12088 = vmatprep.mubr.bf16.mxu0 %v2078
        %12089 = vmatmul.mubr.bf16.gmra.mrb[0].mxu0 %v2064
        %v12090 = vpop.f32.mrb[0].mxu0
        %v12091 = vadd.f32 %v12050, %v12090
        %v12092 = vpop.f32.mrb[0].mxu0
        %v12093 = vadd.f32 %v12052, %v12092
        %v12094 = vpop.f32.mrb[0].mxu0
        %v12095 = vpop.f32.mrb[0].mxu0
        %12096 = vdwg.mxu0
        %12097 = vmatprep.subr.bf16.mxu0 %v8088
        %12098 = vmatpush1.bf16.msra.mxu0 %v8087
        %12099 = vmatprep.subr.bf16.mxu0 %v8096
        %12100 = vmatpush1.bf16.msra.mxu0 %v8095
        %12101 = vmatprep.subr.bf16.mxu0 %v8104
        %12102 = vmatpush1.bf16.msra.mxu0 %v8103
        %12103 = vmatprep.subr.bf16.mxu0 %v8112
        %12104 = vmatpush1.bf16.msra.mxu0 %v8111
        %12105 = vmatprep.subr.bf16.mxu0 %v8120
        %12106 = vmatpush1.bf16.msra.mxu0 %v8119
        %12107 = vmatprep.subr.bf16.mxu0 %v8128
        %12108 = vmatpush1.bf16.msra.mxu0 %v8127
        %12109 = vmatprep.subr.bf16.mxu0 %v8136
        %12110 = vmatpush1.bf16.msra.mxu0 %v8135
        %12111 = vmatprep.subr.bf16.mxu0 %v8144
        %12112 = vmatpush1.bf16.msra.mxu0 %v8143
        %12113 = vmatprep.subr.bf16.mxu0 %v8152
        %12114 = vmatpush1.bf16.msra.mxu0 %v8151
        %12115 = vmatprep.subr.bf16.mxu0 %v8160
        %12116 = vmatpush1.bf16.msra.mxu0 %v8159
        %12117 = vmatprep.subr.bf16.mxu0 %v8168
        %12118 = vmatpush1.bf16.msra.mxu0 %v8167
        %12119 = vmatprep.subr.bf16.mxu0 %v8176
        %12120 = vmatpush1.bf16.msra.mxu0 %v8175
        %12121 = vmatprep.subr.bf16.mxu0 %v8184
        %12122 = vmatpush1.bf16.msra.mxu0 %v8183
        %12123 = vmatprep.subr.bf16.mxu0 %v8192
        %12124 = vmatpush1.bf16.msra.mxu0 %v8191
        %12125 = vmatprep.subr.bf16.mxu0 %v8200
        %12126 = vmatpush1.bf16.msra.mxu0 %v8199
        %12127 = vmatprep.subr.bf16.mxu0 %v8208
        %12128 = vmatpush1.bf16.msra.mxu0 %v8207
        %12129 = vmatprep.mubr.bf16.mxu0 %v2088
        %12130 = vmatmul.mubr.bf16.gmra.mrb[0].mxu0 %v2086
        %v12131 = vpop.f32.mrb[0].mxu0
        %v12132 = vadd.f32 %v12091, %v12131
        %v12133 = vpop.f32.mrb[0].mxu0
        %v12134 = vadd.f32 %v12093, %v12133
        %v12135 = vpop.f32.mrb[0].mxu0
        %v12136 = vpop.f32.mrb[0].mxu0
        %12137 = vdwg.mxu0
        %12138 = vmatprep.subr.bf16.mxu0 %v8216
        %12139 = vmatpush1.bf16.msra.mxu0 %v8215
        %12140 = vmatprep.subr.bf16.mxu0 %v8224
        %12141 = vmatpush1.bf16.msra.mxu0 %v8223
        %12142 = vmatprep.subr.bf16.mxu0 %v8232
        %12143 = vmatpush1.bf16.msra.mxu0 %v8231
        %12144 = vmatprep.subr.bf16.mxu0 %v8240
        %12145 = vmatpush1.bf16.msra.mxu0 %v8239
        %12146 = vmatprep.subr.bf16.mxu0 %v8248
        %12147 = vmatpush1.bf16.msra.mxu0 %v8247
        %12148 = vmatprep.subr.bf16.mxu0 %v8256
        %12149 = vmatpush1.bf16.msra.mxu0 %v8255
        %12150 = vmatprep.subr.bf16.mxu0 %v8264
        %12151 = vmatpush1.bf16.msra.mxu0 %v8263
        %12152 = vmatprep.subr.bf16.mxu0 %v8272
        %12153 = vmatpush1.bf16.msra.mxu0 %v8271
        %12154 = vmatprep.subr.bf16.mxu0 %v8280
        %12155 = vmatpush1.bf16.msra.mxu0 %v8279
        %12156 = vmatprep.subr.bf16.mxu0 %v8288
        %12157 = vmatpush1.bf16.msra.mxu0 %v8287
        %12158 = vmatprep.subr.bf16.mxu0 %v8296
        %12159 = vmatpush1.bf16.msra.mxu0 %v8295
        %12160 = vmatprep.subr.bf16.mxu0 %v8304
        %12161 = vmatpush1.bf16.msra.mxu0 %v8303
        %12162 = vmatprep.subr.bf16.mxu0 %v8312
        %12163 = vmatpush1.bf16.msra.mxu0 %v8311
        %12164 = vmatprep.subr.bf16.mxu0 %v8320
        %12165 = vmatpush1.bf16.msra.mxu0 %v8319
        %12166 = vmatprep.subr.bf16.mxu0 %v8328
        %12167 = vmatpush1.bf16.msra.mxu0 %v8327
        %12168 = vmatprep.subr.bf16.mxu0 %v8336
        %12169 = vmatpush1.bf16.msra.mxu0 %v8335
        %12170 = vmatprep.mubr.bf16.mxu0 %v2085
        %12171 = vmatmul.mubr.bf16.gmra.mrb[0].mxu0 %v2071
        %v12172 = vpop.f32.mrb[0].mxu0
        %v12173 = vadd.f32 %v12132, %v12172
        %v12174 = vpop.f32.mrb[0].mxu0
        %v12175 = vadd.f32 %v12134, %v12174
        %v12176 = vpop.f32.mrb[0].mxu0
        %v12177 = vpop.f32.mrb[0].mxu0
        %12178 = vdwg.mxu0
        %12179 = vmatprep.subr.bf16.mxu0 %v8344
        %12180 = vmatpush1.bf16.msra.mxu0 %v8343
        %12181 = vmatprep.subr.bf16.mxu0 %v8352
        %12182 = vmatpush1.bf16.msra.mxu0 %v8351
        %12183 = vmatprep.subr.bf16.mxu0 %v8360
        %12184 = vmatpush1.bf16.msra.mxu0 %v8359
        %12185 = vmatprep.subr.bf16.mxu0 %v8368
        %12186 = vmatpush1.bf16.msra.mxu0 %v8367
        %12187 = vmatprep.subr.bf16.mxu0 %v8376
        %12188 = vmatpush1.bf16.msra.mxu0 %v8375
        %12189 = vmatprep.subr.bf16.mxu0 %v8384
        %12190 = vmatpush1.bf16.msra.mxu0 %v8383
        %12191 = vmatprep.subr.bf16.mxu0 %v8392
        %12192 = vmatpush1.bf16.msra.mxu0 %v8391
        %12193 = vmatprep.subr.bf16.mxu0 %v8400
        %12194 = vmatpush1.bf16.msra.mxu0 %v8399
        %12195 = vmatprep.subr.bf16.mxu0 %v8408
        %12196 = vmatpush1.bf16.msra.mxu0 %v8407
        %12197 = vmatprep.subr.bf16.mxu0 %v8416
        %12198 = vmatpush1.bf16.msra.mxu0 %v8415
        %12199 = vmatprep.subr.bf16.mxu0 %v8424
        %12200 = vmatpush1.bf16.msra.mxu0 %v8423
        %12201 = vmatprep.subr.bf16.mxu0 %v8432
        %12202 = vmatpush1.bf16.msra.mxu0 %v8431
        %12203 = vmatprep.subr.bf16.mxu0 %v8440
        %12204 = vmatpush1.bf16.msra.mxu0 %v8439
        %12205 = vmatprep.subr.bf16.mxu0 %v8448
        %12206 = vmatpush1.bf16.msra.mxu0 %v8447
        %12207 = vmatprep.subr.bf16.mxu0 %v8456
        %12208 = vmatpush1.bf16.msra.mxu0 %v8455
        %12209 = vmatprep.subr.bf16.mxu0 %v8464
        %12210 = vmatpush1.bf16.msra.mxu0 %v8463
        %12211 = vmatprep.mubr.bf16.mxu0 %v2089
        %12212 = vmatmul.mubr.bf16.gmra.mrb[0].mxu0 %v2087
        %v12213 = vpop.f32.mrb[0].mxu0
        %v12214 = vadd.f32 %v12173, %v12213
        %v12215 = vpop.f32.mrb[0].mxu0
        %v12216 = vadd.f32 %v12175, %v12215
        %v12217 = vpop.f32.mrb[0].mxu0
        %v12218 = vpop.f32.mrb[0].mxu0
        %12219 = vdwg.mxu0
        %12220 = vmatprep.subr.bf16.mxu0 %v8472
        %12221 = vmatpush1.bf16.msra.mxu0 %v8471
        %12222 = vmatprep.subr.bf16.mxu0 %v8480
        %12223 = vmatpush1.bf16.msra.mxu0 %v8479
        %12224 = vmatprep.subr.bf16.mxu0 %v8488
        %12225 = vmatpush1.bf16.msra.mxu0 %v8487
        %12226 = vmatprep.subr.bf16.mxu0 %v8496
        %12227 = vmatpush1.bf16.msra.mxu0 %v8495
        %12228 = vmatprep.subr.bf16.mxu0 %v8504
        %12229 = vmatpush1.bf16.msra.mxu0 %v8503
        %12230 = vmatprep.subr.bf16.mxu0 %v8512
        %12231 = vmatpush1.bf16.msra.mxu0 %v8511
        %12232 = vmatprep.subr.bf16.mxu0 %v8520
        %12233 = vmatpush1.bf16.msra.mxu0 %v8519
        %12234 = vmatprep.subr.bf16.mxu0 %v8528
        %12235 = vmatpush1.bf16.msra.mxu0 %v8527
        %12236 = vmatprep.subr.bf16.mxu0 0
        %12237 = vmatpush1.bf16.msra.mxu0 0
        %12238 = vmatprep.subr.bf16.mxu0 0
        %12239 = vmatpush1.bf16.msra.mxu0 0
        %12240 = vmatprep.subr.bf16.mxu0 0
        %12241 = vmatpush1.bf16.msra.mxu0 0
        %12242 = vmatprep.subr.bf16.mxu0 0
        %12243 = vmatpush1.bf16.msra.mxu0 0
        %12244 = vmatprep.subr.bf16.mxu0 0
        %12245 = vmatpush1.bf16.msra.mxu0 0
        %12246 = vmatprep.subr.bf16.mxu0 0
        %12247 = vmatpush1.bf16.msra.mxu0 0
        %12248 = vmatprep.subr.bf16.mxu0 0
        %12249 = vmatpush1.bf16.msra.mxu0 0
        %12250 = vmatprep.subr.bf16.mxu0 0
        %12251 = vmatpush1.bf16.msra.mxu0 0
        %12252 = vmatprep.mubr.bf16.mxu0 0
        %12253 = vmatmul.mubr.bf16.gmra.mrb[0].mxu0 %v2103
        %v12254 = vpop.f32.mrb[0].mxu0
        %v12255 = vadd.f32 %v12214, %v12254
        %v12256 = vpop.f32.mrb[0].mxu0
        %v12257 = vadd.f32 %v12216, %v12256
        %v12258 = vpop.f32.mrb[0].mxu0
        %v12259 = vpop.f32.mrb[0].mxu0
        %12260 = vdwg.mxu0
        %v12261 = vmax.f32 %v10656, 0.0
        %v12262 = vmax.f32 %v10658, 0.0
        %v12263 = vmax.f32 %v11189, 0.0
        %v12264 = vmax.f32 %v11191, 0.0
        %v12265 = vmax.f32 %v11722, 0.0
        %v12266 = vmax.f32 %v11724, 0.0
        %v12267 = vmax.f32 %v12255, 0.0
        %v12268 = vmax.f32 %v12257, 0.0
        %s12269 = smul.u32 %s24, 2
        %s12270 = sadd.s32 %s12269, %s25
        %s12271 = smul.u32 %s12270, 1024
        %v12272 = vld [vmem:[#allocation2] sm:$0x3]
        %s12273 = scalar_lea.vmem %s3, %s12271
        %v12274 = vld [vmem:[%s12273] sm:$0xff]
        %v12275 = vld [vmem:[%s12273 + $0x8] sm:$0xff]
        %v12276 = vld [vmem:[%s12273 + $0x10] sm:$0xff]
        %v12277 = vld [vmem:[%s12273 + $0x18] sm:$0xff]
        %v12278 = vld [vmem:[%s12273 + $0x20] sm:$0xff]
        %v12279 = vld [vmem:[%s12273 + $0x28] sm:$0xff]
        %v12280 = vld [vmem:[%s12273 + $0x30] sm:$0xff]
        %v12281 = vld [vmem:[%s12273 + $0x38] sm:$0xff]
        %v12282 = vld [vmem:[%s12273 + $0x40] sm:$0xff]
        %v12283 = vld [vmem:[%s12273 + $0x48] sm:$0xff]
        %v12284 = vld [vmem:[%s12273 + $0x50] sm:$0xff]
        %v12285 = vld [vmem:[%s12273 + $0x58] sm:$0xff]
        %v12286 = vld [vmem:[%s12273 + $0x60] sm:$0xff]
        %v12287 = vld [vmem:[%s12273 + $0x68] sm:$0xff]
        %v12288 = vld [vmem:[%s12273 + $0x70] sm:$0xff]
        %v12289 = vld [vmem:[%s12273 + $0x78] sm:$0xff]
        %v12290 = vld [vmem:[%s12273 + $0x80] sm:$0xff]
        %v12291 = vld [vmem:[%s12273 + $0x88] sm:$0xff]
        %v12292 = vld [vmem:[%s12273 + $0x90] sm:$0xff]
        %v12293 = vld [vmem:[%s12273 + $0x98] sm:$0xff]
        %v12294 = vld [vmem:[%s12273 + $0xa0] sm:$0xff]
        %v12295 = vld [vmem:[%s12273 + $0xa8] sm:$0xff]
        %v12296 = vld [vmem:[%s12273 + $0xb0] sm:$0xff]
        %v12297 = vld [vmem:[%s12273 + $0xb8] sm:$0xff]
        %v12298 = vld [vmem:[%s12273 + $0xc0] sm:$0xff]
        %v12299 = vld [vmem:[%s12273 + $0xc8] sm:$0xff]
        %v12300 = vld [vmem:[%s12273 + $0xd0] sm:$0xff]
        %v12301 = vld [vmem:[%s12273 + $0xd8] sm:$0xff]
        %v12302 = vld [vmem:[%s12273 + $0xe0] sm:$0xff]
        %v12303 = vld [vmem:[%s12273 + $0xe8] sm:$0xff]
        %v12304 = vld [vmem:[%s12273 + $0xf0] sm:$0xff]
        %v12305 = vld [vmem:[%s12273 + $0xf8] sm:$0xff]
        %v12306 = vld [vmem:[%s12273 + $0x100] sm:$0xff]
        %v12307 = vld [vmem:[%s12273 + $0x108] sm:$0xff]
        %v12308 = vld [vmem:[%s12273 + $0x110] sm:$0xff]
        %v12309 = vld [vmem:[%s12273 + $0x118] sm:$0xff]
        %v12310 = vld [vmem:[%s12273 + $0x120] sm:$0xff]
        %v12311 = vld [vmem:[%s12273 + $0x128] sm:$0xff]
        %v12312 = vld [vmem:[%s12273 + $0x130] sm:$0xff]
        %v12313 = vld [vmem:[%s12273 + $0x138] sm:$0xff]
        %v12314 = vld [vmem:[%s12273 + $0x140] sm:$0xff]
        %v12315 = vld [vmem:[%s12273 + $0x148] sm:$0xff]
        %v12316 = vld [vmem:[%s12273 + $0x150] sm:$0xff]
        %v12317 = vld [vmem:[%s12273 + $0x158] sm:$0xff]
        %v12318 = vld [vmem:[%s12273 + $0x160] sm:$0xff]
        %v12319 = vld [vmem:[%s12273 + $0x168] sm:$0xff]
        %v12320 = vld [vmem:[%s12273 + $0x170] sm:$0xff]
        %v12321 = vld [vmem:[%s12273 + $0x178] sm:$0xff]
        %v12322 = vld [vmem:[%s12273 + $0x180] sm:$0xff]
        %v12323 = vld [vmem:[%s12273 + $0x188] sm:$0xff]
        %v12324 = vld [vmem:[%s12273 + $0x190] sm:$0xff]
        %v12325 = vld [vmem:[%s12273 + $0x198] sm:$0xff]
        %v12326 = vld [vmem:[%s12273 + $0x1a0] sm:$0xff]
        %v12327 = vld [vmem:[%s12273 + $0x1a8] sm:$0xff]
        %v12328 = vld [vmem:[%s12273 + $0x1b0] sm:$0xff]
        %v12329 = vld [vmem:[%s12273 + $0x1b8] sm:$0xff]
        %v12330 = vld [vmem:[%s12273 + $0x1c0] sm:$0xff]
        %v12331 = vld [vmem:[%s12273 + $0x1c8] sm:$0xff]
        %v12332 = vld [vmem:[%s12273 + $0x1d0] sm:$0xff]
        %v12333 = vld [vmem:[%s12273 + $0x1d8] sm:$0xff]
        %v12334 = vld [vmem:[%s12273 + $0x1e0] sm:$0xff]
        %v12335 = vld [vmem:[%s12273 + $0x1e8] sm:$0xff]
        %v12336 = vld [vmem:[%s12273 + $0x1f0] sm:$0xff]
        %v12337 = vld [vmem:[%s12273 + $0x1f8] sm:$0xff]
        %v12338 = vld [vmem:[%s12273 + $0x200] sm:$0xff]
        %v12339 = vld [vmem:[%s12273 + $0x208] sm:$0xff]
        %v12340 = vld [vmem:[%s12273 + $0x210] sm:$0xff]
        %v12341 = vld [vmem:[%s12273 + $0x218] sm:$0xff]
        %v12342 = vld [vmem:[%s12273 + $0x220] sm:$0xff]
        %v12343 = vld [vmem:[%s12273 + $0x228] sm:$0xff]
        %v12344 = vld [vmem:[%s12273 + $0x230] sm:$0xff]
        %v12345 = vld [vmem:[%s12273 + $0x238] sm:$0xff]
        %v12346 = vld [vmem:[%s12273 + $0x240] sm:$0xff]
        %v12347 = vld [vmem:[%s12273 + $0x248] sm:$0xff]
        %v12348 = vld [vmem:[%s12273 + $0x250] sm:$0xff]
        %v12349 = vld [vmem:[%s12273 + $0x258] sm:$0xff]
        %v12350 = vld [vmem:[%s12273 + $0x260] sm:$0xff]
        %v12351 = vld [vmem:[%s12273 + $0x268] sm:$0xff]
        %v12352 = vld [vmem:[%s12273 + $0x270] sm:$0xff]
        %v12353 = vld [vmem:[%s12273 + $0x278] sm:$0xff]
        %v12354 = vld [vmem:[%s12273 + $0x280] sm:$0xff]
        %v12355 = vld [vmem:[%s12273 + $0x288] sm:$0xff]
        %v12356 = vld [vmem:[%s12273 + $0x290] sm:$0xff]
        %v12357 = vld [vmem:[%s12273 + $0x298] sm:$0xff]
        %v12358 = vld [vmem:[%s12273 + $0x2a0] sm:$0xff]
        %v12359 = vld [vmem:[%s12273 + $0x2a8] sm:$0xff]
        %v12360 = vld [vmem:[%s12273 + $0x2b0] sm:$0xff]
        %v12361 = vld [vmem:[%s12273 + $0x2b8] sm:$0xff]
        %v12362 = vld [vmem:[%s12273 + $0x2c0] sm:$0xff]
        %v12363 = vld [vmem:[%s12273 + $0x2c8] sm:$0xff]
        %v12364 = vld [vmem:[%s12273 + $0x2d0] sm:$0xff]
        %v12365 = vld [vmem:[%s12273 + $0x2d8] sm:$0xff]
        %v12366 = vld [vmem:[%s12273 + $0x2e0] sm:$0xff]
        %v12367 = vld [vmem:[%s12273 + $0x2e8] sm:$0xff]
        %v12368 = vld [vmem:[%s12273 + $0x2f0] sm:$0xff]
        %v12369 = vld [vmem:[%s12273 + $0x2f8] sm:$0xff]
        %v12370 = vld [vmem:[%s12273 + $0x300] sm:$0xff]
        %v12371 = vld [vmem:[%s12273 + $0x308] sm:$0xff]
        %v12372 = vld [vmem:[%s12273 + $0x310] sm:$0xff]
        %v12373 = vld [vmem:[%s12273 + $0x318] sm:$0xff]
        %v12374 = vld [vmem:[%s12273 + $0x320] sm:$0xff]
        %v12375 = vld [vmem:[%s12273 + $0x328] sm:$0xff]
        %v12376 = vld [vmem:[%s12273 + $0x330] sm:$0xff]
        %v12377 = vld [vmem:[%s12273 + $0x338] sm:$0xff]
        %v12378 = vld [vmem:[%s12273 + $0x340] sm:$0xff]
        %v12379 = vld [vmem:[%s12273 + $0x348] sm:$0xff]
        %v12380 = vld [vmem:[%s12273 + $0x350] sm:$0xff]
        %v12381 = vld [vmem:[%s12273 + $0x358] sm:$0xff]
        %v12382 = vld [vmem:[%s12273 + $0x360] sm:$0xff]
        %v12383 = vld [vmem:[%s12273 + $0x368] sm:$0xff]
        %v12384 = vld [vmem:[%s12273 + $0x370] sm:$0xff]
        %v12385 = vld [vmem:[%s12273 + $0x378] sm:$0xff]
        %v12386 = vld [vmem:[%s12273 + $0x380] sm:$0xff]
        %v12387 = vld [vmem:[%s12273 + $0x388] sm:$0xff]
        %v12388 = vld [vmem:[%s12273 + $0x390] sm:$0xff]
        %v12389 = vld [vmem:[%s12273 + $0x398] sm:$0xff]
        %v12390 = vld [vmem:[%s12273 + $0x3a0] sm:$0xff]
        %v12391 = vld [vmem:[%s12273 + $0x3a8] sm:$0xff]
        %v12392 = vld [vmem:[%s12273 + $0x3b0] sm:$0xff]
        %v12393 = vld [vmem:[%s12273 + $0x3b8] sm:$0xff]
        %v12394 = vld [vmem:[%s12273 + $0x3c0] sm:$0xff]
        %v12395 = vld [vmem:[%s12273 + $0x3c8] sm:$0xff]
        %v12396 = vld [vmem:[%s12273 + $0x3d0] sm:$0xff]
        %v12397 = vld [vmem:[%s12273 + $0x3d8] sm:$0xff]
        %v12398 = vld [vmem:[%s12273 + $0x3e0] sm:$0xff]
        %v12399 = vld [vmem:[%s12273 + $0x3e8] sm:$0xff]
        %v12400 = vld [vmem:[%s12273 + $0x3f0] sm:$0xff]
        %v12401 = vld [vmem:[%s12273 + $0x3f8] sm:$0xff]
        %12402 = vmatprep.subr.mxu0 0.0
        %12403 = vmatpush1.msra.mxu0 %v12274
        %12404 = vmatprep.subr.mxu0 0.0
        %12405 = vmatpush1.msra.mxu0 %v12275
        %12406 = vmatprep.subr.mxu0 0.0
        %12407 = vmatpush1.msra.mxu0 %v12276
        %12408 = vmatprep.subr.mxu0 0.0
        %12409 = vmatpush1.msra.mxu0 %v12277
        %12410 = vmatprep.subr.mxu0 0.0
        %12411 = vmatpush1.msra.mxu0 %v12278
        %12412 = vmatprep.subr.mxu0 0.0
        %12413 = vmatpush1.msra.mxu0 %v12279
        %12414 = vmatprep.subr.mxu0 0.0
        %12415 = vmatpush1.msra.mxu0 %v12280
        %12416 = vmatprep.subr.mxu0 0.0
        %12417 = vmatpush1.msra.mxu0 %v12281
        %12418 = vmatprep.subr.mxu0 0.0
        %12419 = vmatpush1.msra.mxu0 %v12282
        %12420 = vmatprep.subr.mxu0 0.0
        %12421 = vmatpush1.msra.mxu0 %v12283
        %12422 = vmatprep.subr.mxu0 0.0
        %12423 = vmatpush1.msra.mxu0 %v12284
        %12424 = vmatprep.subr.mxu0 0.0
        %12425 = vmatpush1.msra.mxu0 %v12285
        %12426 = vmatprep.subr.mxu0 0.0
        %12427 = vmatpush1.msra.mxu0 %v12286
        %12428 = vmatprep.subr.mxu0 0.0
        %12429 = vmatpush1.msra.mxu0 %v12287
        %12430 = vmatprep.subr.mxu0 0.0
        %12431 = vmatpush1.msra.mxu0 %v12288
        %12432 = vmatprep.subr.mxu0 0.0
        %12433 = vmatpush1.msra.mxu0 %v12289
        %12434 = vmatprep.subr.mxu0 0.0
        %12435 = vmatpush1.msra.mxu0 %v12290
        %12436 = vmatprep.subr.mxu0 0.0
        %12437 = vmatpush1.msra.mxu0 %v12291
        %12438 = vmatprep.subr.mxu0 0.0
        %12439 = vmatpush1.msra.mxu0 %v12292
        %12440 = vmatprep.subr.mxu0 0.0
        %12441 = vmatpush1.msra.mxu0 %v12293
        %12442 = vmatprep.subr.mxu0 0.0
        %12443 = vmatpush1.msra.mxu0 %v12294
        %12444 = vmatprep.subr.mxu0 0.0
        %12445 = vmatpush1.msra.mxu0 %v12295
        %12446 = vmatprep.subr.mxu0 0.0
        %12447 = vmatpush1.msra.mxu0 %v12296
        %12448 = vmatprep.subr.mxu0 0.0
        %12449 = vmatpush1.msra.mxu0 %v12297
        %12450 = vmatprep.subr.mxu0 0.0
        %12451 = vmatpush1.msra.mxu0 %v12298
        %12452 = vmatprep.subr.mxu0 0.0
        %12453 = vmatpush1.msra.mxu0 %v12299
        %12454 = vmatprep.subr.mxu0 0.0
        %12455 = vmatpush1.msra.mxu0 %v12300
        %12456 = vmatprep.subr.mxu0 0.0
        %12457 = vmatpush1.msra.mxu0 %v12301
        %12458 = vmatprep.subr.mxu0 0.0
        %12459 = vmatpush1.msra.mxu0 %v12302
        %12460 = vmatprep.subr.mxu0 0.0
        %12461 = vmatpush1.msra.mxu0 %v12303
        %12462 = vmatprep.subr.mxu0 0.0
        %12463 = vmatpush1.msra.mxu0 %v12304
        %12464 = vmatprep.subr.mxu0 0.0
        %12465 = vmatpush1.msra.mxu0 %v12305
        %12466 = vmatprep.mubr.f32.mxu0 %v12262
        %12467 = vmatmul.mubr.f32.gmra.mrb[0].mxu0 %v12261
        %v12468 = vpop.f32.mrb[0].mxu0
        %v12469 = vadd.f32 0.0, %v12468
        %v12470 = vpop.f32.mrb[0].mxu0
        %12471 = vdwg.mxu0
        %12472 = vmatprep.subr.mxu0 0.0
        %12473 = vmatpush1.msra.mxu0 %v12306
        %12474 = vmatprep.subr.mxu0 0.0
        %12475 = vmatpush1.msra.mxu0 %v12307
        %12476 = vmatprep.subr.mxu0 0.0
        %12477 = vmatpush1.msra.mxu0 %v12308
        %12478 = vmatprep.subr.mxu0 0.0
        %12479 = vmatpush1.msra.mxu0 %v12309
        %12480 = vmatprep.subr.mxu0 0.0
        %12481 = vmatpush1.msra.mxu0 %v12310
        %12482 = vmatprep.subr.mxu0 0.0
        %12483 = vmatpush1.msra.mxu0 %v12311
        %12484 = vmatprep.subr.mxu0 0.0
        %12485 = vmatpush1.msra.mxu0 %v12312
        %12486 = vmatprep.subr.mxu0 0.0
        %12487 = vmatpush1.msra.mxu0 %v12313
        %12488 = vmatprep.subr.mxu0 0.0
        %12489 = vmatpush1.msra.mxu0 %v12314
        %12490 = vmatprep.subr.mxu0 0.0
        %12491 = vmatpush1.msra.mxu0 %v12315
        %12492 = vmatprep.subr.mxu0 0.0
        %12493 = vmatpush1.msra.mxu0 %v12316
        %12494 = vmatprep.subr.mxu0 0.0
        %12495 = vmatpush1.msra.mxu0 %v12317
        %12496 = vmatprep.subr.mxu0 0.0
        %12497 = vmatpush1.msra.mxu0 %v12318
        %12498 = vmatprep.subr.mxu0 0.0
        %12499 = vmatpush1.msra.mxu0 %v12319
        %12500 = vmatprep.subr.mxu0 0.0
        %12501 = vmatpush1.msra.mxu0 %v12320
        %12502 = vmatprep.subr.mxu0 0.0
        %12503 = vmatpush1.msra.mxu0 %v12321
        %12504 = vmatprep.subr.mxu0 0.0
        %12505 = vmatpush1.msra.mxu0 %v12322
        %12506 = vmatprep.subr.mxu0 0.0
        %12507 = vmatpush1.msra.mxu0 %v12323
        %12508 = vmatprep.subr.mxu0 0.0
        %12509 = vmatpush1.msra.mxu0 %v12324
        %12510 = vmatprep.subr.mxu0 0.0
        %12511 = vmatpush1.msra.mxu0 %v12325
        %12512 = vmatprep.subr.mxu0 0.0
        %12513 = vmatpush1.msra.mxu0 %v12326
        %12514 = vmatprep.subr.mxu0 0.0
        %12515 = vmatpush1.msra.mxu0 %v12327
        %12516 = vmatprep.subr.mxu0 0.0
        %12517 = vmatpush1.msra.mxu0 %v12328
        %12518 = vmatprep.subr.mxu0 0.0
        %12519 = vmatpush1.msra.mxu0 %v12329
        %12520 = vmatprep.subr.mxu0 0.0
        %12521 = vmatpush1.msra.mxu0 %v12330
        %12522 = vmatprep.subr.mxu0 0.0
        %12523 = vmatpush1.msra.mxu0 %v12331
        %12524 = vmatprep.subr.mxu0 0.0
        %12525 = vmatpush1.msra.mxu0 %v12332
        %12526 = vmatprep.subr.mxu0 0.0
        %12527 = vmatpush1.msra.mxu0 %v12333
        %12528 = vmatprep.subr.mxu0 0.0
        %12529 = vmatpush1.msra.mxu0 %v12334
        %12530 = vmatprep.subr.mxu0 0.0
        %12531 = vmatpush1.msra.mxu0 %v12335
        %12532 = vmatprep.subr.mxu0 0.0
        %12533 = vmatpush1.msra.mxu0 %v12336
        %12534 = vmatprep.subr.mxu0 0.0
        %12535 = vmatpush1.msra.mxu0 %v12337
        %12536 = vmatprep.mubr.f32.mxu0 %v12264
        %12537 = vmatmul.mubr.f32.gmra.mrb[0].mxu0 %v12263
        %v12538 = vpop.f32.mrb[0].mxu0
        %v12539 = vadd.f32 %v12469, %v12538
        %v12540 = vpop.f32.mrb[0].mxu0
        %12541 = vdwg.mxu0
        %12542 = vmatprep.subr.mxu0 0.0
        %12543 = vmatpush1.msra.mxu0 %v12338
        %12544 = vmatprep.subr.mxu0 0.0
        %12545 = vmatpush1.msra.mxu0 %v12339
        %12546 = vmatprep.subr.mxu0 0.0
        %12547 = vmatpush1.msra.mxu0 %v12340
        %12548 = vmatprep.subr.mxu0 0.0
        %12549 = vmatpush1.msra.mxu0 %v12341
        %12550 = vmatprep.subr.mxu0 0.0
        %12551 = vmatpush1.msra.mxu0 %v12342
        %12552 = vmatprep.subr.mxu0 0.0
        %12553 = vmatpush1.msra.mxu0 %v12343
        %12554 = vmatprep.subr.mxu0 0.0
        %12555 = vmatpush1.msra.mxu0 %v12344
        %12556 = vmatprep.subr.mxu0 0.0
        %12557 = vmatpush1.msra.mxu0 %v12345
        %12558 = vmatprep.subr.mxu0 0.0
        %12559 = vmatpush1.msra.mxu0 %v12346
        %12560 = vmatprep.subr.mxu0 0.0
        %12561 = vmatpush1.msra.mxu0 %v12347
        %12562 = vmatprep.subr.mxu0 0.0
        %12563 = vmatpush1.msra.mxu0 %v12348
        %12564 = vmatprep.subr.mxu0 0.0
        %12565 = vmatpush1.msra.mxu0 %v12349
        %12566 = vmatprep.subr.mxu0 0.0
        %12567 = vmatpush1.msra.mxu0 %v12350
        %12568 = vmatprep.subr.mxu0 0.0
        %12569 = vmatpush1.msra.mxu0 %v12351
        %12570 = vmatprep.subr.mxu0 0.0
        %12571 = vmatpush1.msra.mxu0 %v12352
        %12572 = vmatprep.subr.mxu0 0.0
        %12573 = vmatpush1.msra.mxu0 %v12353
        %12574 = vmatprep.subr.mxu0 0.0
        %12575 = vmatpush1.msra.mxu0 %v12354
        %12576 = vmatprep.subr.mxu0 0.0
        %12577 = vmatpush1.msra.mxu0 %v12355
        %12578 = vmatprep.subr.mxu0 0.0
        %12579 = vmatpush1.msra.mxu0 %v12356
        %12580 = vmatprep.subr.mxu0 0.0
        %12581 = vmatpush1.msra.mxu0 %v12357
        %12582 = vmatprep.subr.mxu0 0.0
        %12583 = vmatpush1.msra.mxu0 %v12358
        %12584 = vmatprep.subr.mxu0 0.0
        %12585 = vmatpush1.msra.mxu0 %v12359
        %12586 = vmatprep.subr.mxu0 0.0
        %12587 = vmatpush1.msra.mxu0 %v12360
        %12588 = vmatprep.subr.mxu0 0.0
        %12589 = vmatpush1.msra.mxu0 %v12361
        %12590 = vmatprep.subr.mxu0 0.0
        %12591 = vmatpush1.msra.mxu0 %v12362
        %12592 = vmatprep.subr.mxu0 0.0
        %12593 = vmatpush1.msra.mxu0 %v12363
        %12594 = vmatprep.subr.mxu0 0.0
        %12595 = vmatpush1.msra.mxu0 %v12364
        %12596 = vmatprep.subr.mxu0 0.0
        %12597 = vmatpush1.msra.mxu0 %v12365
        %12598 = vmatprep.subr.mxu0 0.0
        %12599 = vmatpush1.msra.mxu0 %v12366
        %12600 = vmatprep.subr.mxu0 0.0
        %12601 = vmatpush1.msra.mxu0 %v12367
        %12602 = vmatprep.subr.mxu0 0.0
        %12603 = vmatpush1.msra.mxu0 %v12368
        %12604 = vmatprep.subr.mxu0 0.0
        %12605 = vmatpush1.msra.mxu0 %v12369
        %12606 = vmatprep.mubr.f32.mxu0 %v12266
        %12607 = vmatmul.mubr.f32.gmra.mrb[0].mxu0 %v12265
        %v12608 = vpop.f32.mrb[0].mxu0
        %v12609 = vadd.f32 %v12539, %v12608
        %v12610 = vpop.f32.mrb[0].mxu0
        %12611 = vdwg.mxu0
        %12612 = vmatprep.subr.mxu0 0.0
        %12613 = vmatpush1.msra.mxu0 %v12370
        %12614 = vmatprep.subr.mxu0 0.0
        %12615 = vmatpush1.msra.mxu0 %v12371
        %12616 = vmatprep.subr.mxu0 0.0
        %12617 = vmatpush1.msra.mxu0 %v12372
        %12618 = vmatprep.subr.mxu0 0.0
        %12619 = vmatpush1.msra.mxu0 %v12373
        %12620 = vmatprep.subr.mxu0 0.0
        %12621 = vmatpush1.msra.mxu0 %v12374
        %12622 = vmatprep.subr.mxu0 0.0
        %12623 = vmatpush1.msra.mxu0 %v12375
        %12624 = vmatprep.subr.mxu0 0.0
        %12625 = vmatpush1.msra.mxu0 %v12376
        %12626 = vmatprep.subr.mxu0 0.0
        %12627 = vmatpush1.msra.mxu0 %v12377
        %12628 = vmatprep.subr.mxu0 0.0
        %12629 = vmatpush1.msra.mxu0 %v12378
        %12630 = vmatprep.subr.mxu0 0.0
        %12631 = vmatpush1.msra.mxu0 %v12379
        %12632 = vmatprep.subr.mxu0 0.0
        %12633 = vmatpush1.msra.mxu0 %v12380
        %12634 = vmatprep.subr.mxu0 0.0
        %12635 = vmatpush1.msra.mxu0 %v12381
        %12636 = vmatprep.subr.mxu0 0.0
        %12637 = vmatpush1.msra.mxu0 %v12382
        %12638 = vmatprep.subr.mxu0 0.0
        %12639 = vmatpush1.msra.mxu0 %v12383
        %12640 = vmatprep.subr.mxu0 0.0
        %12641 = vmatpush1.msra.mxu0 %v12384
        %12642 = vmatprep.subr.mxu0 0.0
        %12643 = vmatpush1.msra.mxu0 %v12385
        %12644 = vmatprep.subr.mxu0 0.0
        %12645 = vmatpush1.msra.mxu0 %v12386
        %12646 = vmatprep.subr.mxu0 0.0
        %12647 = vmatpush1.msra.mxu0 %v12387
        %12648 = vmatprep.subr.mxu0 0.0
        %12649 = vmatpush1.msra.mxu0 %v12388
        %12650 = vmatprep.subr.mxu0 0.0
        %12651 = vmatpush1.msra.mxu0 %v12389
        %12652 = vmatprep.subr.mxu0 0.0
        %12653 = vmatpush1.msra.mxu0 %v12390
        %12654 = vmatprep.subr.mxu0 0.0
        %12655 = vmatpush1.msra.mxu0 %v12391
        %12656 = vmatprep.subr.mxu0 0.0
        %12657 = vmatpush1.msra.mxu0 %v12392
        %12658 = vmatprep.subr.mxu0 0.0
        %12659 = vmatpush1.msra.mxu0 %v12393
        %12660 = vmatprep.subr.mxu0 0.0
        %12661 = vmatpush1.msra.mxu0 %v12394
        %12662 = vmatprep.subr.mxu0 0.0
        %12663 = vmatpush1.msra.mxu0 %v12395
        %12664 = vmatprep.subr.mxu0 0.0
        %12665 = vmatpush1.msra.mxu0 %v12396
        %12666 = vmatprep.subr.mxu0 0.0
        %12667 = vmatpush1.msra.mxu0 %v12397
        %12668 = vmatprep.subr.mxu0 0.0
        %12669 = vmatpush1.msra.mxu0 %v12398
        %12670 = vmatprep.subr.mxu0 0.0
        %12671 = vmatpush1.msra.mxu0 %v12399
        %12672 = vmatprep.subr.mxu0 0.0
        %12673 = vmatpush1.msra.mxu0 %v12400
        %12674 = vmatprep.subr.mxu0 0.0
        %12675 = vmatpush1.msra.mxu0 %v12401
        %12676 = vmatprep.mubr.f32.mxu0 %v12268
        %12677 = vmatmul.mubr.f32.gmra.mrb[0].mxu0 %v12267
        %v12678 = vpop.f32.mrb[0].mxu0
        %v12679 = vadd.f32 %v12609, %v12678
        %v12680 = vpop.f32.mrb[0].mxu0
        %12681 = vdwg.mxu0
        %v12682 = vadd.f32 %v12272, %v12679
        %vm12683 = vcmask 50176
        %12684 = vst.msk [vmem:[#allocation2] sm:$0x3] %vm12683, %v12682
        %p12685 = scmp.eq.s32.totalorder %s25, 1
        // Predicated region
        $region53: #{tpu_custom_call.1} parent=35 // pred_check
          %p12686 = pneg %p12685
        $region54: #{tpu_custom_call.1} parent=35 // pred_check_branch
          %12688 = sbr.rel (%p12686) target = $region56
        $region55: #{tpu_custom_call.1} parent=35 // pred_region
          %v12689 = vld [vmem:[#allocation2] sm:$0x3]
          %12690 = vst.msk [vmem:[#allocation9] sm:$0x3] %vm12683, %v12689
        $region56: #{tpu_custom_call.1} parent=35 // pred_fallthru
          _
        // Predicated region
        $region57: #{tpu_custom_call.1} parent=35 // pred_check
          %p12691 = pneg %p152
        $region58: #{tpu_custom_call.1} parent=35 // pred_check_branch
          %12693 = sbr.rel (%p12691) target = $region60
        $region59: #{tpu_custom_call.1} parent=35 // pred_region
          %s12695 = ssub.s32 32, 32
          %12696 = vsyncadd [#allocation5], %s12695
          %s12697 = smul.addr %s24, 32
          %s12698 = scalar_lea.hbm %s4, %s12697
          %s12700 = sshll.u32 [#allocation9], 4
          %s12701 = int_to_ptr.vmem [resolvable:$true] %s12700
          %12703 = dma.vmem_to_hbm [thread:$0]  %s12701, 32, %s12698, [#allocation5]
        $region60: #{tpu_custom_call.1} parent=35 // pred_fallthru
          _
        // Predicated region
        $region61: #{tpu_custom_call.1} parent=35 // pred_check
          %p12704 = pneg %p152
        $region62: #{tpu_custom_call.1} parent=35 // pred_check_branch
          %12706 = sbr.rel (%p12704) target = $region64
        $region63: #{tpu_custom_call.1} parent=35 // pred_region
          %12707 = dma.done [#allocation5], 32
        $region64: #{tpu_custom_call.1} parent=35 // pred_fallthru
          _
      $region36: #{tpu_custom_call.1} parent=5 // pred_fallthru
        _
      %p12708 = scmp.le.s32.totalorder 2, %s15
      // Predicated region
      $region65: #{tpu_custom_call.1} parent=5 // pred_check
        %p12709 = pneg %p12708
      $region66: #{tpu_custom_call.1} parent=5 // pred_check_branch
        %12711 = sbr.rel (%p12709) target = $region68
      $region67: #{tpu_custom_call.1} parent=5 // pred_region
        %s12712 = ssub.s32 %s15, 2
      $region68: #{tpu_custom_call.1} parent=5 // pred_fallthru
        _
    $region6: #{tpu_custom_call.1} parent=1 // loop_footer
      %s19 = sadd.s32 1, %s15
    $region7: #{tpu_custom_call.1} parent=1 // loop_footer_branch
      %14 = sbr.rel target = $region3
    $region8: #{tpu_custom_call.1} parent=1 // loop_exit
      _
    %12713 = vsyncpa [#allocation4], 1
    %s12714 = scalar_lea.sflag [#allocation4], 1
    %12715 = vsyncpa %s12714, 1
    %12716 = vsyncpa [#allocation7], 1
    %s12717 = scalar_lea.sflag [#allocation7], 1
    %12718 = vsyncpa %s12717, 1
    %12719 = vsyncpa [#allocation5], 1
    %s12720 = scalar_lea.sflag [#allocation5], 1
    %12721 = vsyncpa %s12720, 1

</llo_original>
